<compile_context>
chip_gen: v7x
topology: tpu7x:2x2x1
jax: 0.10.0
libtpu: 0.0.40
codegen_flags: <defaults>
</compile_context>

<pallas_src>
import jax
import jax.numpy as jnp
from jax import lax
from jax.experimental import pallas as pl
from jax.experimental.pallas import tpu as pltpu

HIGHEST = jax.lax.Precision.HIGHEST


def convblock_kernel(x_ref,                       # (NB, H, W, Cin) f32
                     w1_ref, s1_ref, b1_ref,      # (9*Cin, Co) bf16, (1, Co) f32, (1, Co) f32
                     w2_ref, s2_ref, b2_ref,      # (9*Co, Co) bf16, ...
                     w3_ref, s3_ref, b3_ref,
                     caw1_ref, cab1_ref,          # (Co, Co//4) f32, (1, Co//4) f32
                     caw2_ref, cab2_ref,          # (Co//4, Co) f32, (1, Co) f32
                     out_ref):                    # (NB, H, W, Co) f32
    NB, H, W, _ = x_ref.shape
    Co = out_ref.shape[-1]
    M = NB * H * W

    def conv3x3(x4d, w_ref):
        # x4d: (NB, H, W, Ci) f32;  w_ref: (9*Ci, Co) bf16.
        nb, h, w, ci = x4d.shape
        # zero-pad H/W by 1 on the value (no scratch zeroing / VMEM roundtrip)
        zr = jnp.zeros((nb, 1, w, ci), jnp.float32)
        xp = jnp.concatenate([zr, x4d, zr], axis=1)            # (NB, H+2, W, Ci)
        zc = jnp.zeros((nb, h + 2, 1, ci), jnp.float32)
        xp = jnp.concatenate([zc, xp, zc], axis=2)             # (NB, H+2, W+2, Ci)
        # im2col: 9 shifted windows stacked along channels -> ONE MXU matmul
        taps = [xp[:, dy:dy + h, dx:dx + w, :]
                for dy in range(3) for dx in range(3)]
        slab = jnp.concatenate(taps, axis=-1)                  # (NB, H, W, 9*Ci)
        patches = slab.reshape(nb * h * w, 9 * ci).astype(jnp.bfloat16)
        return jnp.dot(patches, w_ref[...],                    # bf16 x bf16 -> f32
                       preferred_element_type=jnp.float32)     # (M, Co)

    x = x_ref[...]                                             # (NB, H, W, Cin)

    # x1 = relu(bn1(conv1(x)))
    x1 = jnp.maximum(conv3x3(x, w1_ref) * s1_ref[...] + b1_ref[...], 0.0)      # (M, Co)

    # x2 = relu(bn2(conv2(x1)))
    x2 = jnp.maximum(conv3x3(x1.reshape(NB, H, W, Co), w2_ref)
                     * s2_ref[...] + b2_ref[...], 0.0)                          # (M, Co)

    # x3 = bn3(conv3(x2))   (no relu)
    x3 = conv3x3(x2.reshape(NB, H, W, Co), w3_ref) * s3_ref[...] + b3_ref[...]  # (M, Co)

    # Channel attention, batched over NB: gap -> 1x1 conv -> 1x1 conv -> sigmoid
    x3_b = x3.reshape(NB, H * W, Co)
    gap = jnp.mean(x3_b, axis=1)                                                # (NB, Co)
    h = jnp.dot(gap, caw1_ref[...], preferred_element_type=jnp.float32) + cab1_ref[...]
    att = jax.nn.sigmoid(
        jnp.dot(h, caw2_ref[...], preferred_element_type=jnp.float32) + cab2_ref[...])  # (NB, Co)

    # out = relu(x3 * att + x1)
    out = jnp.maximum(x3_b * att[:, None, :] + x1.reshape(NB, H * W, Co), 0.0)
    out_ref[...] = out.reshape(NB, H, W, Co)


def convblock_forward(x_nhwc, params, *, nb=2):
    """x_nhwc: (N, H, W, Cin) f32.  Returns (N, H, W, Cout) f32."""
    N, H, W, Cin = x_nhwc.shape
    Cout = params["s1"].shape[-1]
    assert N % nb == 0, "batch must be divisible by the per-step block NB"

    # Wrapper-side layout plumbing: reshape HWIO conv weights to (9*Ci, Co) for
    # the single im2col matmul and cast MXU operands to bf16 (halves weight DMA).
    w1m = params["w1"].reshape(9 * Cin, Cout).astype(jnp.bfloat16)
    w2m = params["w2"].reshape(9 * Cout, Cout).astype(jnp.bfloat16)
    w3m = params["w3"].reshape(9 * Cout, Cout).astype(jnp.bfloat16)

    args = (x_nhwc,
            w1m, params["s1"], params["b1"],
            w2m, params["s2"], params["b2"],
            w3m, params["s3"], params["b3"],
            params["caw1"], params["cab1"], params["caw2"], params["cab2"])

    def const_spec(a):
        nd = a.ndim
        return pl.BlockSpec(a.shape, lambda b: (0,) * nd)

    in_specs = ([pl.BlockSpec((nb, H, W, Cin), lambda b: (b, 0, 0, 0))]
                + [const_spec(a) for a in args[1:]])
    out_specs = pl.BlockSpec((nb, H, W, Cout), lambda b: (b, 0, 0, 0))

    return pl.pallas_call(
        convblock_kernel,
        out_shape=jax.ShapeDtypeStruct((N, H, W, Cout), jnp.float32),
        grid_spec=pltpu.PrefetchScalarGridSpec(
            num_scalar_prefetch=0,
            grid=(N // nb,),
            in_specs=in_specs,
            out_specs=out_specs),
        compiler_params=pltpu.CompilerParams(
            dimension_semantics=("parallel",),      # batch-blocks split across v7x TCs
            vmem_limit_bytes=32 * 1024 * 1024),     # ample headroom (~7 MB peak used)
    )(*args)


def init_params(key, in_channels, out_channels, reduction=4, eps=1e-5):
    cred = out_channels // reduction
    keys = jax.random.split(key, 16)
    ki = iter(range(16))

    def conv_bn(ci, co):
        fan_in = 9 * ci
        w = jax.random.normal(keys[next(ki)], (3, 3, ci, co), jnp.float32) / jnp.sqrt(fan_in)
        bias = 0.1 * jax.random.normal(keys[next(ki)], (co,), jnp.float32)
        gamma = 1.0 + 0.1 * jax.random.normal(keys[next(ki)], (co,), jnp.float32)
        beta = 0.1 * jax.random.normal(keys[next(ki)], (co,), jnp.float32)
        rmean = jnp.zeros((co,), jnp.float32)        # fresh BatchNorm2d running stats
        rvar = jnp.ones((co,), jnp.float32)
        scale = gamma / jnp.sqrt(rvar + eps)         # fold BN (eval) + conv bias
        shift = (bias - rmean) * scale + beta
        return w, scale.reshape(1, co), shift.reshape(1, co)

    w1, s1, b1 = conv_bn(in_channels, out_channels)
    w2, s2, b2 = conv_bn(out_channels, out_channels)
    w3, s3, b3 = conv_bn(out_channels, out_channels)

    caw1 = (jax.random.normal(keys[next(ki)], (out_channels, cred), jnp.float32)
            / jnp.sqrt(out_channels))
    cab1 = 0.1 * jax.random.normal(keys[next(ki)], (1, cred), jnp.float32)
    caw2 = (jax.random.normal(keys[next(ki)], (cred, out_channels), jnp.float32)
            / jnp.sqrt(cred))
    cab2 = 0.1 * jax.random.normal(keys[next(ki)], (1, out_channels), jnp.float32)

    return dict(w1=w1, s1=s1, b1=b1, w2=w2, s2=s2, b2=b2, w3=w3, s3=s3, b3=b3,
                caw1=caw1, cab1=cab1, caw2=caw2, cab2=cab2)


def ref_forward(x, p):
    """Pure-JAX f32 reference (NHWC), same folded-BN parameterization."""
    def c3(a, w):
        return lax.conv_general_dilated(
            a, w, window_strides=(1, 1), padding=((1, 1), (1, 1)),
            dimension_numbers=("NHWC", "HWIO", "NHWC"), precision=HIGHEST)

    x1 = jax.nn.relu(c3(x, p["w1"]) * p["s1"] + p["b1"])
    x2 = jax.nn.relu(c3(x1, p["w2"]) * p["s2"] + p["b2"])
    x3 = c3(x2, p["w3"]) * p["s3"] + p["b3"]
    gap = jnp.mean(x3, axis=(1, 2))                                   # (N, Co)
    h = gap @ p["caw1"] + p["cab1"]
    att = jax.nn.sigmoid(h @ p["caw2"] + p["cab2"])                   # (N, Co)
    return jax.nn.relu(x3 * att[:, None, None, :] + x1)


if __name__ == "__main__":
    key = jax.random.PRNGKey(0)
    k_x, k_p = jax.random.split(key)

    # N=4 with NB=2 -> even grid of 2 (both v7x TensorCores busy);
    # Cout=128 -> output channels exactly fill the 128-lane axis (lane-dense stores).
    N, Cin, H, W = 4, 4, 16, 16
    Cout = 128

    # Build input in the PyTorch NCHW convention, then convert to NHWC.
    x_nchw = jax.random.normal(k_x, (N, Cin, H, W), jnp.float32)
    x_nhwc = jnp.transpose(x_nchw, (0, 2, 3, 1))

    params = init_params(k_p, Cin, Cout)

    out = convblock_forward(x_nhwc, params, nb=2)
    jax.block_until_ready(out)

    ref = ref_forward(x_nhwc, params)
    assert out.shape == (N, H, W, Cout)
    max_err = float(jnp.max(jnp.abs(out - ref)))
    assert jnp.allclose(out, ref, atol=1e-2, rtol=1e-2), (
        f"mismatch vs JAX reference (max abs err {max_err})")

    print("KERNEL_OK")
</pallas_src>

<mosaic_0001>
module attributes {stable_mosaic.version = 11 : i64} {
  func.func @convblock_kernel(%arg0: i32, %arg1: memref<2x16x16x4xf32, #tpu.memory_space<vmem>>, %arg2: memref<36x128xbf16, #tpu.memory_space<vmem>>, %arg3: memref<1x128xf32, #tpu.memory_space<vmem>>, %arg4: memref<1x128xf32, #tpu.memory_space<vmem>>, %arg5: memref<1152x128xbf16, #tpu.memory_space<vmem>>, %arg6: memref<1x128xf32, #tpu.memory_space<vmem>>, %arg7: memref<1x128xf32, #tpu.memory_space<vmem>>, %arg8: memref<1152x128xbf16, #tpu.memory_space<vmem>>, %arg9: memref<1x128xf32, #tpu.memory_space<vmem>>, %arg10: memref<1x128xf32, #tpu.memory_space<vmem>>, %arg11: memref<128x32xf32, #tpu.memory_space<vmem>>, %arg12: memref<1x32xf32, #tpu.memory_space<vmem>>, %arg13: memref<32x128xf32, #tpu.memory_space<vmem>>, %arg14: memref<1x128xf32, #tpu.memory_space<vmem>>, %arg15: memref<2x16x16x128xf32, #tpu.memory_space<vmem>>) attributes {dimension_semantics = [#tpu.dimension_semantics<parallel>], iteration_bounds = array<i64: 2>, scalar_prefetch = 0 : i64, scratch_operands = 0 : i64, tpu.core_type = #tpu.core_type<tc>, window_params = [{transform_indices = @transform_0, window_bounds = array<i64: 2, 16, 16, 4>}, {pipeline_mode = #tpu.pipeline_mode<synchronous>, transform_indices = @transform_1, window_bounds = array<i64: 36, 128>}, {pipeline_mode = #tpu.pipeline_mode<synchronous>, transform_indices = @transform_2, window_bounds = array<i64: 1, 128>}, {pipeline_mode = #tpu.pipeline_mode<synchronous>, transform_indices = @transform_3, window_bounds = array<i64: 1, 128>}, {pipeline_mode = #tpu.pipeline_mode<synchronous>, transform_indices = @transform_4, window_bounds = array<i64: 1152, 128>}, {pipeline_mode = #tpu.pipeline_mode<synchronous>, transform_indices = @transform_5, window_bounds = array<i64: 1, 128>}, {pipeline_mode = #tpu.pipeline_mode<synchronous>, transform_indices = @transform_6, window_bounds = array<i64: 1, 128>}, {pipeline_mode = #tpu.pipeline_mode<synchronous>, transform_indices = @transform_7, window_bounds = array<i64: 1152, 128>}, {pipeline_mode = #tpu.pipeline_mode<synchronous>, transform_indices = @transform_8, window_bounds = array<i64: 1, 128>}, {pipeline_mode = #tpu.pipeline_mode<synchronous>, transform_indices = @transform_9, window_bounds = array<i64: 1, 128>}, {pipeline_mode = #tpu.pipeline_mode<synchronous>, transform_indices = @transform_10, window_bounds = array<i64: 128, 32>}, {pipeline_mode = #tpu.pipeline_mode<synchronous>, transform_indices = @transform_11, window_bounds = array<i64: 1, 32>}, {pipeline_mode = #tpu.pipeline_mode<synchronous>, transform_indices = @transform_12, window_bounds = array<i64: 32, 128>}, {pipeline_mode = #tpu.pipeline_mode<synchronous>, transform_indices = @transform_13, window_bounds = array<i64: 1, 128>}, {transform_indices = @transform_14, window_bounds = array<i64: 2, 16, 16, 128>}]} {
    %c0 = arith.constant 0 : index
    %c0_0 = arith.constant 0 : index
    %c0_1 = arith.constant 0 : index
    %c0_2 = arith.constant 0 : index
    %0 = vector.load %arg1[%c0, %c0_0, %c0_1, %c0_2] : memref<2x16x16x4xf32, #tpu.memory_space<vmem>>, vector<2x16x16x4xf32>
    %cst = arith.constant 0.000000e+00 : f32
    %1 = vector.broadcast %cst : f32 to vector<2x1x16x4xf32>
    %2 = tpu.concatenate %1, %0, %1 in 1 : vector<2x1x16x4xf32>, vector<2x16x16x4xf32>, vector<2x1x16x4xf32> -> vector<2x18x16x4xf32>
    %cst_3 = arith.constant 0.000000e+00 : f32
    %3 = vector.broadcast %cst_3 : f32 to vector<2x18x1x4xf32>
    %4 = tpu.concatenate %3, %2, %3 in 2 : vector<2x18x1x4xf32>, vector<2x18x16x4xf32>, vector<2x18x1x4xf32> -> vector<2x18x18x4xf32>
    %5 = vector.extract_strided_slice %4 {offsets = [0, 0, 0, 0], sizes = [2, 16, 16, 4], strides = [1, 1, 1, 1]} : vector<2x18x18x4xf32> to vector<2x16x16x4xf32>
    %6 = vector.extract_strided_slice %4 {offsets = [0, 0, 1, 0], sizes = [2, 16, 16, 4], strides = [1, 1, 1, 1]} : vector<2x18x18x4xf32> to vector<2x16x16x4xf32>
    %7 = vector.extract_strided_slice %4 {offsets = [0, 0, 2, 0], sizes = [2, 16, 16, 4], strides = [1, 1, 1, 1]} : vector<2x18x18x4xf32> to vector<2x16x16x4xf32>
    %8 = vector.extract_strided_slice %4 {offsets = [0, 1, 0, 0], sizes = [2, 16, 16, 4], strides = [1, 1, 1, 1]} : vector<2x18x18x4xf32> to vector<2x16x16x4xf32>
    %9 = vector.extract_strided_slice %4 {offsets = [0, 1, 1, 0], sizes = [2, 16, 16, 4], strides = [1, 1, 1, 1]} : vector<2x18x18x4xf32> to vector<2x16x16x4xf32>
    %10 = vector.extract_strided_slice %4 {offsets = [0, 1, 2, 0], sizes = [2, 16, 16, 4], strides = [1, 1, 1, 1]} : vector<2x18x18x4xf32> to vector<2x16x16x4xf32>
    %11 = vector.extract_strided_slice %4 {offsets = [0, 2, 0, 0], sizes = [2, 16, 16, 4], strides = [1, 1, 1, 1]} : vector<2x18x18x4xf32> to vector<2x16x16x4xf32>
    %12 = vector.extract_strided_slice %4 {offsets = [0, 2, 1, 0], sizes = [2, 16, 16, 4], strides = [1, 1, 1, 1]} : vector<2x18x18x4xf32> to vector<2x16x16x4xf32>
    %13 = vector.extract_strided_slice %4 {offsets = [0, 2, 2, 0], sizes = [2, 16, 16, 4], strides = [1, 1, 1, 1]} : vector<2x18x18x4xf32> to vector<2x16x16x4xf32>
    %14 = tpu.concatenate %5, %6, %7, %8, %9, %10, %11, %12, %13 in 3 : vector<2x16x16x4xf32>, vector<2x16x16x4xf32>, vector<2x16x16x4xf32>, vector<2x16x16x4xf32>, vector<2x16x16x4xf32>, vector<2x16x16x4xf32>, vector<2x16x16x4xf32>, vector<2x16x16x4xf32>, vector<2x16x16x4xf32> -> vector<2x16x16x36xf32>
    %15 = vector.shape_cast %14 : vector<2x16x16x36xf32> to vector<512x36xf32>
    %16 = arith.truncf %15 : vector<512x36xf32> to vector<512x36xbf16>
    %c0_4 = arith.constant 0 : index
    %c0_5 = arith.constant 0 : index
    %17 = vector.load %arg2[%c0_4, %c0_5] : memref<36x128xbf16, #tpu.memory_space<vmem>>, vector<36x128xbf16>
    %cst_6 = arith.constant dense<0.000000e+00> : vector<512x128xf32>
    %18 = tpu.matmul %16, %17, %cst_6 {dimension_numbers = #tpu.dot_dimension_numbers<[1], [0], [0], [1], [0, 0, 1, 1], [], []>} : vector<512x36xbf16>, vector<36x128xbf16>, vector<512x128xf32> -> vector<512x128xf32>
    %c0_7 = arith.constant 0 : index
    %c0_8 = arith.constant 0 : index
    %19 = vector.load %arg3[%c0_7, %c0_8] : memref<1x128xf32, #tpu.memory_space<vmem>>, vector<1x128xf32>
    %20 = vector.broadcast %19 : vector<1x128xf32> to vector<512x128xf32>
    %21 = arith.mulf %18, %20 : vector<512x128xf32>
    %c0_9 = arith.constant 0 : index
    %c0_10 = arith.constant 0 : index
    %22 = vector.load %arg4[%c0_9, %c0_10] : memref<1x128xf32, #tpu.memory_space<vmem>>, vector<1x128xf32>
    %23 = vector.broadcast %22 : vector<1x128xf32> to vector<512x128xf32>
    %24 = arith.addf %21, %23 : vector<512x128xf32>
    %cst_11 = arith.constant 0.000000e+00 : f32
    %25 = vector.broadcast %cst_11 : f32 to vector<512x128xf32>
    %26 = arith.maximumf %24, %25 : vector<512x128xf32>
    %27 = vector.shape_cast %26 : vector<512x128xf32> to vector<2x16x16x128xf32>
    %cst_12 = arith.constant 0.000000e+00 : f32
    %28 = vector.broadcast %cst_12 : f32 to vector<2x1x16x128xf32>
    %29 = tpu.concatenate %28, %27, %28 in 1 : vector<2x1x16x128xf32>, vector<2x16x16x128xf32>, vector<2x1x16x128xf32> -> vector<2x18x16x128xf32>
    %cst_13 = arith.constant 0.000000e+00 : f32
    %30 = vector.broadcast %cst_13 : f32 to vector<2x18x1x128xf32>
    %31 = tpu.concatenate %30, %29, %30 in 2 : vector<2x18x1x128xf32>, vector<2x18x16x128xf32>, vector<2x18x1x128xf32> -> vector<2x18x18x128xf32>
    %32 = vector.extract_strided_slice %31 {offsets = [0, 0, 0, 0], sizes = [2, 16, 16, 128], strides = [1, 1, 1, 1]} : vector<2x18x18x128xf32> to vector<2x16x16x128xf32>
    %33 = vector.extract_strided_slice %31 {offsets = [0, 0, 1, 0], sizes = [2, 16, 16, 128], strides = [1, 1, 1, 1]} : vector<2x18x18x128xf32> to vector<2x16x16x128xf32>
    %34 = vector.extract_strided_slice %31 {offsets = [0, 0, 2, 0], sizes = [2, 16, 16, 128], strides = [1, 1, 1, 1]} : vector<2x18x18x128xf32> to vector<2x16x16x128xf32>
    %35 = vector.extract_strided_slice %31 {offsets = [0, 1, 0, 0], sizes = [2, 16, 16, 128], strides = [1, 1, 1, 1]} : vector<2x18x18x128xf32> to vector<2x16x16x128xf32>
    %36 = vector.extract_strided_slice %31 {offsets = [0, 1, 1, 0], sizes = [2, 16, 16, 128], strides = [1, 1, 1, 1]} : vector<2x18x18x128xf32> to vector<2x16x16x128xf32>
    %37 = vector.extract_strided_slice %31 {offsets = [0, 1, 2, 0], sizes = [2, 16, 16, 128], strides = [1, 1, 1, 1]} : vector<2x18x18x128xf32> to vector<2x16x16x128xf32>
    %38 = vector.extract_strided_slice %31 {offsets = [0, 2, 0, 0], sizes = [2, 16, 16, 128], strides = [1, 1, 1, 1]} : vector<2x18x18x128xf32> to vector<2x16x16x128xf32>
    %39 = vector.extract_strided_slice %31 {offsets = [0, 2, 1, 0], sizes = [2, 16, 16, 128], strides = [1, 1, 1, 1]} : vector<2x18x18x128xf32> to vector<2x16x16x128xf32>
    %40 = vector.extract_strided_slice %31 {offsets = [0, 2, 2, 0], sizes = [2, 16, 16, 128], strides = [1, 1, 1, 1]} : vector<2x18x18x128xf32> to vector<2x16x16x128xf32>
    %41 = tpu.concatenate %32, %33, %34, %35, %36, %37, %38, %39, %40 in 3 : vector<2x16x16x128xf32>, vector<2x16x16x128xf32>, vector<2x16x16x128xf32>, vector<2x16x16x128xf32>, vector<2x16x16x128xf32>, vector<2x16x16x128xf32>, vector<2x16x16x128xf32>, vector<2x16x16x128xf32>, vector<2x16x16x128xf32> -> vector<2x16x16x1152xf32>
    %42 = vector.shape_cast %41 : vector<2x16x16x1152xf32> to vector<512x1152xf32>
    %43 = arith.truncf %42 : vector<512x1152xf32> to vector<512x1152xbf16>
    %c0_14 = arith.constant 0 : index
    %c0_15 = arith.constant 0 : index
    %44 = vector.load %arg5[%c0_14, %c0_15] : memref<1152x128xbf16, #tpu.memory_space<vmem>>, vector<1152x128xbf16>
    %cst_16 = arith.constant dense<0.000000e+00> : vector<512x128xf32>
    %45 = tpu.matmul %43, %44, %cst_16 {dimension_numbers = #tpu.dot_dimension_numbers<[1], [0], [0], [1], [0, 0, 1, 1], [], []>} : vector<512x1152xbf16>, vector<1152x128xbf16>, vector<512x128xf32> -> vector<512x128xf32>
    %c0_17 = arith.constant 0 : index
    %c0_18 = arith.constant 0 : index
    %46 = vector.load %arg6[%c0_17, %c0_18] : memref<1x128xf32, #tpu.memory_space<vmem>>, vector<1x128xf32>
    %47 = vector.broadcast %46 : vector<1x128xf32> to vector<512x128xf32>
    %48 = arith.mulf %45, %47 : vector<512x128xf32>
    %c0_19 = arith.constant 0 : index
    %c0_20 = arith.constant 0 : index
    %49 = vector.load %arg7[%c0_19, %c0_20] : memref<1x128xf32, #tpu.memory_space<vmem>>, vector<1x128xf32>
    %50 = vector.broadcast %49 : vector<1x128xf32> to vector<512x128xf32>
    %51 = arith.addf %48, %50 : vector<512x128xf32>
    %cst_21 = arith.constant 0.000000e+00 : f32
    %52 = vector.broadcast %cst_21 : f32 to vector<512x128xf32>
    %53 = arith.maximumf %51, %52 : vector<512x128xf32>
    %54 = vector.shape_cast %53 : vector<512x128xf32> to vector<2x16x16x128xf32>
    %cst_22 = arith.constant 0.000000e+00 : f32
    %55 = vector.broadcast %cst_22 : f32 to vector<2x1x16x128xf32>
    %56 = tpu.concatenate %55, %54, %55 in 1 : vector<2x1x16x128xf32>, vector<2x16x16x128xf32>, vector<2x1x16x128xf32> -> vector<2x18x16x128xf32>
    %cst_23 = arith.constant 0.000000e+00 : f32
    %57 = vector.broadcast %cst_23 : f32 to vector<2x18x1x128xf32>
    %58 = tpu.concatenate %57, %56, %57 in 2 : vector<2x18x1x128xf32>, vector<2x18x16x128xf32>, vector<2x18x1x128xf32> -> vector<2x18x18x128xf32>
    %59 = vector.extract_strided_slice %58 {offsets = [0, 0, 0, 0], sizes = [2, 16, 16, 128], strides = [1, 1, 1, 1]} : vector<2x18x18x128xf32> to vector<2x16x16x128xf32>
    %60 = vector.extract_strided_slice %58 {offsets = [0, 0, 1, 0], sizes = [2, 16, 16, 128], strides = [1, 1, 1, 1]} : vector<2x18x18x128xf32> to vector<2x16x16x128xf32>
    %61 = vector.extract_strided_slice %58 {offsets = [0, 0, 2, 0], sizes = [2, 16, 16, 128], strides = [1, 1, 1, 1]} : vector<2x18x18x128xf32> to vector<2x16x16x128xf32>
    %62 = vector.extract_strided_slice %58 {offsets = [0, 1, 0, 0], sizes = [2, 16, 16, 128], strides = [1, 1, 1, 1]} : vector<2x18x18x128xf32> to vector<2x16x16x128xf32>
    %63 = vector.extract_strided_slice %58 {offsets = [0, 1, 1, 0], sizes = [2, 16, 16, 128], strides = [1, 1, 1, 1]} : vector<2x18x18x128xf32> to vector<2x16x16x128xf32>
    %64 = vector.extract_strided_slice %58 {offsets = [0, 1, 2, 0], sizes = [2, 16, 16, 128], strides = [1, 1, 1, 1]} : vector<2x18x18x128xf32> to vector<2x16x16x128xf32>
    %65 = vector.extract_strided_slice %58 {offsets = [0, 2, 0, 0], sizes = [2, 16, 16, 128], strides = [1, 1, 1, 1]} : vector<2x18x18x128xf32> to vector<2x16x16x128xf32>
    %66 = vector.extract_strided_slice %58 {offsets = [0, 2, 1, 0], sizes = [2, 16, 16, 128], strides = [1, 1, 1, 1]} : vector<2x18x18x128xf32> to vector<2x16x16x128xf32>
    %67 = vector.extract_strided_slice %58 {offsets = [0, 2, 2, 0], sizes = [2, 16, 16, 128], strides = [1, 1, 1, 1]} : vector<2x18x18x128xf32> to vector<2x16x16x128xf32>
    %68 = tpu.concatenate %59, %60, %61, %62, %63, %64, %65, %66, %67 in 3 : vector<2x16x16x128xf32>, vector<2x16x16x128xf32>, vector<2x16x16x128xf32>, vector<2x16x16x128xf32>, vector<2x16x16x128xf32>, vector<2x16x16x128xf32>, vector<2x16x16x128xf32>, vector<2x16x16x128xf32>, vector<2x16x16x128xf32> -> vector<2x16x16x1152xf32>
    %69 = vector.shape_cast %68 : vector<2x16x16x1152xf32> to vector<512x1152xf32>
    %70 = arith.truncf %69 : vector<512x1152xf32> to vector<512x1152xbf16>
    %c0_24 = arith.constant 0 : index
    %c0_25 = arith.constant 0 : index
    %71 = vector.load %arg8[%c0_24, %c0_25] : memref<1152x128xbf16, #tpu.memory_space<vmem>>, vector<1152x128xbf16>
    %cst_26 = arith.constant dense<0.000000e+00> : vector<512x128xf32>
    %72 = tpu.matmul %70, %71, %cst_26 {dimension_numbers = #tpu.dot_dimension_numbers<[1], [0], [0], [1], [0, 0, 1, 1], [], []>} : vector<512x1152xbf16>, vector<1152x128xbf16>, vector<512x128xf32> -> vector<512x128xf32>
    %c0_27 = arith.constant 0 : index
    %c0_28 = arith.constant 0 : index
    %73 = vector.load %arg9[%c0_27, %c0_28] : memref<1x128xf32, #tpu.memory_space<vmem>>, vector<1x128xf32>
    %74 = vector.broadcast %73 : vector<1x128xf32> to vector<512x128xf32>
    %75 = arith.mulf %72, %74 : vector<512x128xf32>
    %c0_29 = arith.constant 0 : index
    %c0_30 = arith.constant 0 : index
    %76 = vector.load %arg10[%c0_29, %c0_30] : memref<1x128xf32, #tpu.memory_space<vmem>>, vector<1x128xf32>
    %77 = vector.broadcast %76 : vector<1x128xf32> to vector<512x128xf32>
    %78 = arith.addf %75, %77 : vector<512x128xf32>
    %79 = vector.shape_cast %78 : vector<512x128xf32> to vector<2x256x128xf32>
    %cst_31 = arith.constant dense<0.000000e+00> : vector<2x128xf32>
    %80 = vector.multi_reduction <add>, %79, %cst_31 [1] : vector<2x256x128xf32> to vector<2x128xf32>
    %cst_32 = arith.constant 2.560000e+02 : f32
    %81 = vector.broadcast %cst_32 : f32 to vector<2x128xf32>
    %82 = arith.divf %80, %81 : vector<2x128xf32>
    %c0_33 = arith.constant 0 : index
    %c0_34 = arith.constant 0 : index
    %83 = vector.load %arg11[%c0_33, %c0_34] : memref<128x32xf32, #tpu.memory_space<vmem>>, vector<128x32xf32>
    %cst_35 = arith.constant dense<0.000000e+00> : vector<2x32xf32>
    %84 = tpu.matmul %82, %83, %cst_35 {dimension_numbers = #tpu.dot_dimension_numbers<[1], [0], [0], [1], [0, 0, 1, 1], [], []>} : vector<2x128xf32>, vector<128x32xf32>, vector<2x32xf32> -> vector<2x32xf32>
    %c0_36 = arith.constant 0 : index
    %c0_37 = arith.constant 0 : index
    %85 = vector.load %arg12[%c0_36, %c0_37] : memref<1x32xf32, #tpu.memory_space<vmem>>, vector<1x32xf32>
    %86 = vector.broadcast %85 : vector<1x32xf32> to vector<2x32xf32>
    %87 = arith.addf %84, %86 : vector<2x32xf32>
    %c0_38 = arith.constant 0 : index
    %c0_39 = arith.constant 0 : index
    %88 = vector.load %arg13[%c0_38, %c0_39] : memref<32x128xf32, #tpu.memory_space<vmem>>, vector<32x128xf32>
    %cst_40 = arith.constant dense<0.000000e+00> : vector<2x128xf32>
    %89 = tpu.matmul %87, %88, %cst_40 {dimension_numbers = #tpu.dot_dimension_numbers<[1], [0], [0], [1], [0, 0, 1, 1], [], []>} : vector<2x32xf32>, vector<32x128xf32>, vector<2x128xf32> -> vector<2x128xf32>
    %c0_41 = arith.constant 0 : index
    %c0_42 = arith.constant 0 : index
    %90 = vector.load %arg14[%c0_41, %c0_42] : memref<1x128xf32, #tpu.memory_space<vmem>>, vector<1x128xf32>
    %91 = vector.broadcast %90 : vector<1x128xf32> to vector<2x128xf32>
    %92 = arith.addf %89, %91 : vector<2x128xf32>
    %93 = arith.negf %92 : vector<2x128xf32>
    %94 = math.exp %93 : vector<2x128xf32>
    %cst_43 = arith.constant 1.000000e+00 : f32
    %95 = vector.broadcast %cst_43 : f32 to vector<2x128xf32>
    %96 = arith.addf %95, %94 : vector<2x128xf32>
    %97 = arith.divf %95, %96 : vector<2x128xf32>
    %98 = vector.shape_cast %97 : vector<2x128xf32> to vector<2x1x128xf32>
    %99 = vector.broadcast %98 : vector<2x1x128xf32> to vector<2x256x128xf32>
    %100 = arith.mulf %79, %99 : vector<2x256x128xf32>
    %101 = vector.shape_cast %26 : vector<512x128xf32> to vector<2x256x128xf32>
    %102 = arith.addf %100, %101 : vector<2x256x128xf32>
    %cst_44 = arith.constant 0.000000e+00 : f32
    %103 = vector.broadcast %cst_44 : f32 to vector<2x256x128xf32>
    %104 = arith.maximumf %102, %103 : vector<2x256x128xf32>
    %105 = vector.shape_cast %104 : vector<2x256x128xf32> to vector<2x16x16x128xf32>
    %c0_45 = arith.constant 0 : index
    %c0_46 = arith.constant 0 : index
    %c0_47 = arith.constant 0 : index
    %c0_48 = arith.constant 0 : index
    %106 = vector.load %arg15[%c0_45, %c0_46, %c0_47, %c0_48] : memref<2x16x16x128xf32, #tpu.memory_space<vmem>>, vector<2x16x16x128xf32>
    tpu.vector_store %arg15[%c0_45, %c0_46, %c0_47, %c0_48], %105 {strides = array<i32>} : memref<2x16x16x128xf32, #tpu.memory_space<vmem>>, vector<2x16x16x128xf32>,
    return
  }
  func.func @transform_0(%arg0: i32) -> (i32, i32, i32, i32) {
    %c0_i32 = arith.constant 0 : i32
    %c0_i32_0 = arith.constant 0 : i32
    %c0_i32_1 = arith.constant 0 : i32
    %c0_i32_2 = arith.constant 0 : i32
    return %arg0, %c0_i32, %c0_i32_0, %c0_i32_1 : i32, i32, i32, i32
  }
  func.func @transform_1(%arg0: i32) -> (i32, i32) {
    %c0_i32 = arith.constant 0 : i32
    %c0_i32_0 = arith.constant 0 : i32
    %c0_i32_1 = arith.constant 0 : i32
    return %c0_i32, %c0_i32_0 : i32, i32
  }
  func.func @transform_2(%arg0: i32) -> (i32, i32) {
    %c0_i32 = arith.constant 0 : i32
    %c0_i32_0 = arith.constant 0 : i32
    %c0_i32_1 = arith.constant 0 : i32
    return %c0_i32, %c0_i32_0 : i32, i32
  }
  func.func @transform_3(%arg0: i32) -> (i32, i32) {
    %c0_i32 = arith.constant 0 : i32
    %c0_i32_0 = arith.constant 0 : i32
    %c0_i32_1 = arith.constant 0 : i32
    return %c0_i32, %c0_i32_0 : i32, i32
  }
  func.func @transform_4(%arg0: i32) -> (i32, i32) {
    %c0_i32 = arith.constant 0 : i32
    %c0_i32_0 = arith.constant 0 : i32
    %c0_i32_1 = arith.constant 0 : i32
    return %c0_i32, %c0_i32_0 : i32, i32
  }
  func.func @transform_5(%arg0: i32) -> (i32, i32) {
    %c0_i32 = arith.constant 0 : i32
    %c0_i32_0 = arith.constant 0 : i32
    %c0_i32_1 = arith.constant 0 : i32
    return %c0_i32, %c0_i32_0 : i32, i32
  }
  func.func @transform_6(%arg0: i32) -> (i32, i32) {
    %c0_i32 = arith.constant 0 : i32
    %c0_i32_0 = arith.constant 0 : i32
    %c0_i32_1 = arith.constant 0 : i32
    return %c0_i32, %c0_i32_0 : i32, i32
  }
  func.func @transform_7(%arg0: i32) -> (i32, i32) {
    %c0_i32 = arith.constant 0 : i32
    %c0_i32_0 = arith.constant 0 : i32
    %c0_i32_1 = arith.constant 0 : i32
    return %c0_i32, %c0_i32_0 : i32, i32
  }
  func.func @transform_8(%arg0: i32) -> (i32, i32) {
    %c0_i32 = arith.constant 0 : i32
    %c0_i32_0 = arith.constant 0 : i32
    %c0_i32_1 = arith.constant 0 : i32
    return %c0_i32, %c0_i32_0 : i32, i32
  }
  func.func @transform_9(%arg0: i32) -> (i32, i32) {
    %c0_i32 = arith.constant 0 : i32
    %c0_i32_0 = arith.constant 0 : i32
    %c0_i32_1 = arith.constant 0 : i32
    return %c0_i32, %c0_i32_0 : i32, i32
  }
  func.func @transform_10(%arg0: i32) -> (i32, i32) {
    %c0_i32 = arith.constant 0 : i32
    %c0_i32_0 = arith.constant 0 : i32
    %c0_i32_1 = arith.constant 0 : i32
    return %c0_i32, %c0_i32_0 : i32, i32
  }
  func.func @transform_11(%arg0: i32) -> (i32, i32) {
    %c0_i32 = arith.constant 0 : i32
    %c0_i32_0 = arith.constant 0 : i32
    %c0_i32_1 = arith.constant 0 : i32
    return %c0_i32, %c0_i32_0 : i32, i32
  }
  func.func @transform_12(%arg0: i32) -> (i32, i32) {
    %c0_i32 = arith.constant 0 : i32
    %c0_i32_0 = arith.constant 0 : i32
    %c0_i32_1 = arith.constant 0 : i32
    return %c0_i32, %c0_i32_0 : i32, i32
  }
  func.func @transform_13(%arg0: i32) -> (i32, i32) {
    %c0_i32 = arith.constant 0 : i32
    %c0_i32_0 = arith.constant 0 : i32
    %c0_i32_1 = arith.constant 0 : i32
    return %c0_i32, %c0_i32_0 : i32, i32
  }
  func.func @transform_14(%arg0: i32) -> (i32, i32, i32, i32) {
    %c0_i32 = arith.constant 0 : i32
    %c0_i32_0 = arith.constant 0 : i32
    %c0_i32_1 = arith.constant 0 : i32
    %c0_i32_2 = arith.constant 0 : i32
    return %arg0, %c0_i32, %c0_i32_0, %c0_i32_1 : i32, i32, i32, i32
  }
}

</mosaic_0001>

<llo_original>
// kernel: tpu_custom_call.1
$region0: #{tpu_custom_call.1}
  #allocation0 [shape = 'u32[]', space=smem, size = 0x4, offset = 0x4, fixed_abs, tag = 'smem constant byte address 0x4 - core index']
  #allocation1 [shape = 'u32[144,128]{1,0:T(1,128)}', space=vmem, size = 0x12000, scoped, tag = 'internal scratch']
  %s0 = inlined_call_operand.vmem [shape: f32[4,16,16,4], index: 0, kind: input, shape index: {}]
  %s1 = inlined_call_operand.vmem [shape: bf16[36,128], index: 1, kind: input, shape index: {}]
  %s2 = inlined_call_operand.vmem [shape: f32[1,128], index: 2, kind: input, shape index: {}]
  %s3 = inlined_call_operand.vmem [shape: f32[1,128], index: 3, kind: input, shape index: {}]
  %s4 = inlined_call_operand.vmem [shape: bf16[1152,128], index: 4, kind: input, shape index: {}]
  %s5 = inlined_call_operand.vmem [shape: f32[1,128], index: 5, kind: input, shape index: {}]
  %s6 = inlined_call_operand.vmem [shape: f32[1,128], index: 6, kind: input, shape index: {}]
  %s7 = inlined_call_operand.vmem [shape: bf16[1152,128], index: 7, kind: input, shape index: {}]
  %s8 = inlined_call_operand.vmem [shape: f32[1,128], index: 8, kind: input, shape index: {}]
  %s9 = inlined_call_operand.vmem [shape: f32[1,128], index: 9, kind: input, shape index: {}]
  %s10 = inlined_call_operand.vmem [shape: f32[128,32], index: 10, kind: input, shape index: {}]
  %s11 = inlined_call_operand.vmem [shape: f32[1,32], index: 11, kind: input, shape index: {}]
  %s12 = inlined_call_operand.vmem [shape: f32[32,128], index: 12, kind: input, shape index: {}]
  %s13 = inlined_call_operand.vmem [shape: f32[1,128], index: 13, kind: input, shape index: {}]
  %s14 = inlined_call_operand.hbm [shape: f32[4,16,16,128], index: 14, kind: output, shape index: {}]
  %s15 = sld [smem:[#allocation0]]
  $region89: #{tpu_custom_call.1} parent=0
    _
  %s17 = ssub.s32 1, %s15
  %s18 = scalar_select 0, %s17, %s15
  $region1: #{tpu_custom_call.1} parent=0
    #allocation2 [shape = 'u8[524288]{0}', space=vmem, size = 0x80000, scoped, tag = 'output window, operand 0']
    #allocation3 [shape = 's32[2]{0}', space=sflag, size = 0x8, scoped, tag = 'scoped memory for tpu_custom_call.1']
    %19 = vsyncpa [#allocation3], 0
    %s20 = scalar_lea.sflag [#allocation3], 1
    %21 = vsyncpa %s20, 0
    loop: start=0, step=1, limit=4
    $region2: #{tpu_custom_call.1} parent=1 // loop_pre_header
      _
    $region3: #{tpu_custom_call.1} parent=1 // loop_header
      %s23 = sphi 0, %s27
      %p24 = scmp.ge.s32.totalorder %s23, 4
      %s33 = sphi 0, %s35
      %s36 = sphi 0, %s33
      %s37 = sphi 0, %s36
      %s53 = sphi 0, %s37
      %s57 = sphi 0, %s57
      %s59 = sphi 0, %s57
      %s60 = sphi 0, %s59
      %s74 = sphi 0, %s60
      %s78 = sphi 0, %s78
      %s80 = sphi 0, %s78
      %s81 = sphi 0, %s80
      %s95 = sphi 0, %s81
      %s99 = sphi 0, %s99
      %s101 = sphi 0, %s99
      %s102 = sphi 0, %s101
      %s116 = sphi 0, %s102
      %s120 = sphi 0, %s120
      %s122 = sphi 0, %s120
      %s123 = sphi 0, %s122
      %s137 = sphi 0, %s123
      %s141 = sphi 0, %s141
      %s143 = sphi 0, %s141
      %s144 = sphi 0, %s143
      %s158 = sphi 0, %s144
      %s162 = sphi 0, %s162
      %s164 = sphi 0, %s162
      %s165 = sphi 0, %s164
      %s179 = sphi 0, %s165
      %s183 = sphi 0, %s183
      %s185 = sphi 0, %s183
      %s186 = sphi 0, %s185
      %s200 = sphi 0, %s186
      %s204 = sphi 0, %s204
      %s206 = sphi 0, %s204
      %s207 = sphi 0, %s206
      %s221 = sphi 0, %s207
      %s225 = sphi 0, %s225
      %s227 = sphi 0, %s225
      %s228 = sphi 0, %s227
      %s242 = sphi 0, %s228
      %s246 = sphi 0, %s246
      %s248 = sphi 0, %s246
      %s249 = sphi 0, %s248
      %s263 = sphi 0, %s249
      %s267 = sphi 0, %s267
      %s269 = sphi 0, %s267
      %s270 = sphi 0, %s269
      %s284 = sphi 0, %s270
      %s288 = sphi 0, %s288
      %s290 = sphi 0, %s288
      %s291 = sphi 0, %s290
      %s305 = sphi 0, %s291
      %s309 = sphi 0, %s309
      %s311 = sphi 0, %s309
      %s312 = sphi 0, %s311
      %s326 = sphi 0, %s312
      %s332 = sphi 0, %s334
      %s335 = sphi 0, %s332
      %s336 = sphi 0, %s335
      %s352 = sphi 0, %s336
    $region4: #{tpu_custom_call.1} parent=1 // loop_header_branch
      %26 = sbr.rel (%p24) target = $region8
    $region5: #{tpu_custom_call.1} parent=1 // loop_body
      %s28 = ssub.s32 %s23, 1
      %s29 = ssub.s32 %s23, 2
      %s30 = sadd.s32 %s23, 1
      %s31 = ssub.s32 %s23, %s30
      %p32 = scmp.eq.s32.totalorder %s31, 0
      %s34 = sadd.s32 %s33, 1
      %s35 = scalar_select %p32, %s33, %s34
      %p38 = pneg %p32
      %p39 = scmp.eq.s32.totalorder %s23, 1
      %p40 = por %p38, %p39
      %p41 = scmp.ne.s32.totalorder %s33, %s36
      %p42 = scmp.eq.s32.totalorder %s23, 0
      %p43 = por %p41, %p42
      %p44 = scmp.ne.s32.totalorder %s33, %s36
      %p45 = scmp.eq.s32.totalorder %s28, 1
      %p46 = por %p44, %p45
      %p47 = scmp.ne.s32.totalorder %s36, %s37
      %p48 = scmp.eq.s32.totalorder %s28, 0
      %p49 = por %p47, %p48
      %p50 = scmp.ne.s32.totalorder %s36, %s37
      %p51 = scmp.eq.s32.totalorder %s29, 1
      %p52 = por %p50, %p51
      %p54 = scmp.ne.s32.totalorder %s37, %s53
      %p55 = scmp.eq.s32.totalorder %s29, 0
      %p56 = por %p54, %p55
      %s58 = sadd.s32 %s57, 1
      %p61 = scmp.eq.s32.totalorder %s23, 1
      %p62 = scmp.ne.s32.totalorder %s57, %s59
      %p63 = scmp.eq.s32.totalorder %s23, 0
      %p64 = por %p62, %p63
      %p65 = scmp.ne.s32.totalorder %s57, %s59
      %p66 = scmp.eq.s32.totalorder %s28, 1
      %p67 = por %p65, %p66
      %p68 = scmp.ne.s32.totalorder %s59, %s60
      %p69 = scmp.eq.s32.totalorder %s28, 0
      %p70 = por %p68, %p69
      %p71 = scmp.ne.s32.totalorder %s59, %s60
      %p72 = scmp.eq.s32.totalorder %s29, 1
      %p73 = por %p71, %p72
      %p75 = scmp.ne.s32.totalorder %s60, %s74
      %p76 = scmp.eq.s32.totalorder %s29, 0
      %p77 = por %p75, %p76
      %s79 = sadd.s32 %s78, 1
      %p82 = scmp.eq.s32.totalorder %s23, 1
      %p83 = scmp.ne.s32.totalorder %s78, %s80
      %p84 = scmp.eq.s32.totalorder %s23, 0
      %p85 = por %p83, %p84
      %p86 = scmp.ne.s32.totalorder %s78, %s80
      %p87 = scmp.eq.s32.totalorder %s28, 1
      %p88 = por %p86, %p87
      %p89 = scmp.ne.s32.totalorder %s80, %s81
      %p90 = scmp.eq.s32.totalorder %s28, 0
      %p91 = por %p89, %p90
      %p92 = scmp.ne.s32.totalorder %s80, %s81
      %p93 = scmp.eq.s32.totalorder %s29, 1
      %p94 = por %p92, %p93
      %p96 = scmp.ne.s32.totalorder %s81, %s95
      %p97 = scmp.eq.s32.totalorder %s29, 0
      %p98 = por %p96, %p97
      %s100 = sadd.s32 %s99, 1
      %p103 = scmp.eq.s32.totalorder %s23, 1
      %p104 = scmp.ne.s32.totalorder %s99, %s101
      %p105 = scmp.eq.s32.totalorder %s23, 0
      %p106 = por %p104, %p105
      %p107 = scmp.ne.s32.totalorder %s99, %s101
      %p108 = scmp.eq.s32.totalorder %s28, 1
      %p109 = por %p107, %p108
      %p110 = scmp.ne.s32.totalorder %s101, %s102
      %p111 = scmp.eq.s32.totalorder %s28, 0
      %p112 = por %p110, %p111
      %p113 = scmp.ne.s32.totalorder %s101, %s102
      %p114 = scmp.eq.s32.totalorder %s29, 1
      %p115 = por %p113, %p114
      %p117 = scmp.ne.s32.totalorder %s102, %s116
      %p118 = scmp.eq.s32.totalorder %s29, 0
      %p119 = por %p117, %p118
      %s121 = sadd.s32 %s120, 1
      %p124 = scmp.eq.s32.totalorder %s23, 1
      %p125 = scmp.ne.s32.totalorder %s120, %s122
      %p126 = scmp.eq.s32.totalorder %s23, 0
      %p127 = por %p125, %p126
      %p128 = scmp.ne.s32.totalorder %s120, %s122
      %p129 = scmp.eq.s32.totalorder %s28, 1
      %p130 = por %p128, %p129
      %p131 = scmp.ne.s32.totalorder %s122, %s123
      %p132 = scmp.eq.s32.totalorder %s28, 0
      %p133 = por %p131, %p132
      %p134 = scmp.ne.s32.totalorder %s122, %s123
      %p135 = scmp.eq.s32.totalorder %s29, 1
      %p136 = por %p134, %p135
      %p138 = scmp.ne.s32.totalorder %s123, %s137
      %p139 = scmp.eq.s32.totalorder %s29, 0
      %p140 = por %p138, %p139
      %s142 = sadd.s32 %s141, 1
      %p145 = scmp.eq.s32.totalorder %s23, 1
      %p146 = scmp.ne.s32.totalorder %s141, %s143
      %p147 = scmp.eq.s32.totalorder %s23, 0
      %p148 = por %p146, %p147
      %p149 = scmp.ne.s32.totalorder %s141, %s143
      %p150 = scmp.eq.s32.totalorder %s28, 1
      %p151 = por %p149, %p150
      %p152 = scmp.ne.s32.totalorder %s143, %s144
      %p153 = scmp.eq.s32.totalorder %s28, 0
      %p154 = por %p152, %p153
      %p155 = scmp.ne.s32.totalorder %s143, %s144
      %p156 = scmp.eq.s32.totalorder %s29, 1
      %p157 = por %p155, %p156
      %p159 = scmp.ne.s32.totalorder %s144, %s158
      %p160 = scmp.eq.s32.totalorder %s29, 0
      %p161 = por %p159, %p160
      %s163 = sadd.s32 %s162, 1
      %p166 = scmp.eq.s32.totalorder %s23, 1
      %p167 = scmp.ne.s32.totalorder %s162, %s164
      %p168 = scmp.eq.s32.totalorder %s23, 0
      %p169 = por %p167, %p168
      %p170 = scmp.ne.s32.totalorder %s162, %s164
      %p171 = scmp.eq.s32.totalorder %s28, 1
      %p172 = por %p170, %p171
      %p173 = scmp.ne.s32.totalorder %s164, %s165
      %p174 = scmp.eq.s32.totalorder %s28, 0
      %p175 = por %p173, %p174
      %p176 = scmp.ne.s32.totalorder %s164, %s165
      %p177 = scmp.eq.s32.totalorder %s29, 1
      %p178 = por %p176, %p177
      %p180 = scmp.ne.s32.totalorder %s165, %s179
      %p181 = scmp.eq.s32.totalorder %s29, 0
      %p182 = por %p180, %p181
      %s184 = sadd.s32 %s183, 1
      %p187 = scmp.eq.s32.totalorder %s23, 1
      %p188 = scmp.ne.s32.totalorder %s183, %s185
      %p189 = scmp.eq.s32.totalorder %s23, 0
      %p190 = por %p188, %p189
      %p191 = scmp.ne.s32.totalorder %s183, %s185
      %p192 = scmp.eq.s32.totalorder %s28, 1
      %p193 = por %p191, %p192
      %p194 = scmp.ne.s32.totalorder %s185, %s186
      %p195 = scmp.eq.s32.totalorder %s28, 0
      %p196 = por %p194, %p195
      %p197 = scmp.ne.s32.totalorder %s185, %s186
      %p198 = scmp.eq.s32.totalorder %s29, 1
      %p199 = por %p197, %p198
      %p201 = scmp.ne.s32.totalorder %s186, %s200
      %p202 = scmp.eq.s32.totalorder %s29, 0
      %p203 = por %p201, %p202
      %s205 = sadd.s32 %s204, 1
      %p208 = scmp.eq.s32.totalorder %s23, 1
      %p209 = scmp.ne.s32.totalorder %s204, %s206
      %p210 = scmp.eq.s32.totalorder %s23, 0
      %p211 = por %p209, %p210
      %p212 = scmp.ne.s32.totalorder %s204, %s206
      %p213 = scmp.eq.s32.totalorder %s28, 1
      %p214 = por %p212, %p213
      %p215 = scmp.ne.s32.totalorder %s206, %s207
      %p216 = scmp.eq.s32.totalorder %s28, 0
      %p217 = por %p215, %p216
      %p218 = scmp.ne.s32.totalorder %s206, %s207
      %p219 = scmp.eq.s32.totalorder %s29, 1
      %p220 = por %p218, %p219
      %p222 = scmp.ne.s32.totalorder %s207, %s221
      %p223 = scmp.eq.s32.totalorder %s29, 0
      %p224 = por %p222, %p223
      %s226 = sadd.s32 %s225, 1
      %p229 = scmp.eq.s32.totalorder %s23, 1
      %p230 = scmp.ne.s32.totalorder %s225, %s227
      %p231 = scmp.eq.s32.totalorder %s23, 0
      %p232 = por %p230, %p231
      %p233 = scmp.ne.s32.totalorder %s225, %s227
      %p234 = scmp.eq.s32.totalorder %s28, 1
      %p235 = por %p233, %p234
      %p236 = scmp.ne.s32.totalorder %s227, %s228
      %p237 = scmp.eq.s32.totalorder %s28, 0
      %p238 = por %p236, %p237
      %p239 = scmp.ne.s32.totalorder %s227, %s228
      %p240 = scmp.eq.s32.totalorder %s29, 1
      %p241 = por %p239, %p240
      %p243 = scmp.ne.s32.totalorder %s228, %s242
      %p244 = scmp.eq.s32.totalorder %s29, 0
      %p245 = por %p243, %p244
      %s247 = sadd.s32 %s246, 1
      %p250 = scmp.eq.s32.totalorder %s23, 1
      %p251 = scmp.ne.s32.totalorder %s246, %s248
      %p252 = scmp.eq.s32.totalorder %s23, 0
      %p253 = por %p251, %p252
      %p254 = scmp.ne.s32.totalorder %s246, %s248
      %p255 = scmp.eq.s32.totalorder %s28, 1
      %p256 = por %p254, %p255
      %p257 = scmp.ne.s32.totalorder %s248, %s249
      %p258 = scmp.eq.s32.totalorder %s28, 0
      %p259 = por %p257, %p258
      %p260 = scmp.ne.s32.totalorder %s248, %s249
      %p261 = scmp.eq.s32.totalorder %s29, 1
      %p262 = por %p260, %p261
      %p264 = scmp.ne.s32.totalorder %s249, %s263
      %p265 = scmp.eq.s32.totalorder %s29, 0
      %p266 = por %p264, %p265
      %s268 = sadd.s32 %s267, 1
      %p271 = scmp.eq.s32.totalorder %s23, 1
      %p272 = scmp.ne.s32.totalorder %s267, %s269
      %p273 = scmp.eq.s32.totalorder %s23, 0
      %p274 = por %p272, %p273
      %p275 = scmp.ne.s32.totalorder %s267, %s269
      %p276 = scmp.eq.s32.totalorder %s28, 1
      %p277 = por %p275, %p276
      %p278 = scmp.ne.s32.totalorder %s269, %s270
      %p279 = scmp.eq.s32.totalorder %s28, 0
      %p280 = por %p278, %p279
      %p281 = scmp.ne.s32.totalorder %s269, %s270
      %p282 = scmp.eq.s32.totalorder %s29, 1
      %p283 = por %p281, %p282
      %p285 = scmp.ne.s32.totalorder %s270, %s284
      %p286 = scmp.eq.s32.totalorder %s29, 0
      %p287 = por %p285, %p286
      %s289 = sadd.s32 %s288, 1
      %p292 = scmp.eq.s32.totalorder %s23, 1
      %p293 = scmp.ne.s32.totalorder %s288, %s290
      %p294 = scmp.eq.s32.totalorder %s23, 0
      %p295 = por %p293, %p294
      %p296 = scmp.ne.s32.totalorder %s288, %s290
      %p297 = scmp.eq.s32.totalorder %s28, 1
      %p298 = por %p296, %p297
      %p299 = scmp.ne.s32.totalorder %s290, %s291
      %p300 = scmp.eq.s32.totalorder %s28, 0
      %p301 = por %p299, %p300
      %p302 = scmp.ne.s32.totalorder %s290, %s291
      %p303 = scmp.eq.s32.totalorder %s29, 1
      %p304 = por %p302, %p303
      %p306 = scmp.ne.s32.totalorder %s291, %s305
      %p307 = scmp.eq.s32.totalorder %s29, 0
      %p308 = por %p306, %p307
      %s310 = sadd.s32 %s309, 1
      %p313 = scmp.eq.s32.totalorder %s23, 1
      %p314 = scmp.ne.s32.totalorder %s309, %s311
      %p315 = scmp.eq.s32.totalorder %s23, 0
      %p316 = por %p314, %p315
      %p317 = scmp.ne.s32.totalorder %s309, %s311
      %p318 = scmp.eq.s32.totalorder %s28, 1
      %p319 = por %p317, %p318
      %p320 = scmp.ne.s32.totalorder %s311, %s312
      %p321 = scmp.eq.s32.totalorder %s28, 0
      %p322 = por %p320, %p321
      %p323 = scmp.ne.s32.totalorder %s311, %s312
      %p324 = scmp.eq.s32.totalorder %s29, 1
      %p325 = por %p323, %p324
      %p327 = scmp.ne.s32.totalorder %s312, %s326
      %p328 = scmp.eq.s32.totalorder %s29, 0
      %p329 = por %p327, %p328
      %s330 = ssub.s32 %s23, %s30
      %p331 = scmp.eq.s32.totalorder %s330, 0
      %s333 = sadd.s32 %s332, 1
      %s334 = scalar_select %p331, %s332, %s333
      %p337 = pneg %p331
      %p338 = scmp.eq.s32.totalorder %s23, 1
      %p339 = por %p337, %p338
      %p340 = scmp.ne.s32.totalorder %s332, %s335
      %p341 = scmp.eq.s32.totalorder %s23, 0
      %p342 = por %p340, %p341
      %p343 = scmp.ne.s32.totalorder %s332, %s335
      %p344 = scmp.eq.s32.totalorder %s28, 1
      %p345 = por %p343, %p344
      %p346 = scmp.ne.s32.totalorder %s335, %s336
      %p347 = scmp.eq.s32.totalorder %s28, 0
      %p348 = por %p346, %p347
      %p349 = scmp.ne.s32.totalorder %s335, %s336
      %p350 = scmp.eq.s32.totalorder %s29, 1
      %p351 = por %p349, %p350
      %p353 = scmp.ne.s32.totalorder %s336, %s352
      %p354 = scmp.eq.s32.totalorder %s29, 0
      %p355 = por %p353, %p354
      %p356 = scmp.le.s32.totalorder 1, %s23
      %p357 = scmp.lt.s32.totalorder %s23, 3
      %p358 = pnand %p356, %p357
      %p359 = pneg %p358
      // Predicated region
      $region9: #{tpu_custom_call.1} parent=5 // pred_check
        _
      $region10: #{tpu_custom_call.1} parent=5 // pred_check_branch
        %361 = sbr.rel (%p358) target = $region12
      $region11: #{tpu_custom_call.1} parent=5 // pred_region
        %s362 = ssub.s32 %s23, 1
        // Predicated region
        $region13: #{tpu_custom_call.1} parent=11 // pred_check
          %p363 = pneg %p70
        $region14: #{tpu_custom_call.1} parent=11 // pred_check_branch
          %365 = sbr.rel (%p363) target = $region16
        $region15: #{tpu_custom_call.1} parent=11 // pred_region
          _
        $region16: #{tpu_custom_call.1} parent=11 // pred_fallthru
          _
        // Predicated region
        $region17: #{tpu_custom_call.1} parent=11 // pred_check
          %p366 = pneg %p91
        $region18: #{tpu_custom_call.1} parent=11 // pred_check_branch
          %368 = sbr.rel (%p366) target = $region20
        $region19: #{tpu_custom_call.1} parent=11 // pred_region
          _
        $region20: #{tpu_custom_call.1} parent=11 // pred_fallthru
          _
        // Predicated region
        $region21: #{tpu_custom_call.1} parent=11 // pred_check
          %p369 = pneg %p112
        $region22: #{tpu_custom_call.1} parent=11 // pred_check_branch
          %371 = sbr.rel (%p369) target = $region24
        $region23: #{tpu_custom_call.1} parent=11 // pred_region
          _
        $region24: #{tpu_custom_call.1} parent=11 // pred_fallthru
          _
        // Predicated region
        $region25: #{tpu_custom_call.1} parent=11 // pred_check
          %p372 = pneg %p133
        $region26: #{tpu_custom_call.1} parent=11 // pred_check_branch
          %374 = sbr.rel (%p372) target = $region28
        $region27: #{tpu_custom_call.1} parent=11 // pred_region
          _
        $region28: #{tpu_custom_call.1} parent=11 // pred_fallthru
          _
        // Predicated region
        $region29: #{tpu_custom_call.1} parent=11 // pred_check
          %p375 = pneg %p154
        $region30: #{tpu_custom_call.1} parent=11 // pred_check_branch
          %377 = sbr.rel (%p375) target = $region32
        $region31: #{tpu_custom_call.1} parent=11 // pred_region
          _
        $region32: #{tpu_custom_call.1} parent=11 // pred_fallthru
          _
        // Predicated region
        $region33: #{tpu_custom_call.1} parent=11 // pred_check
          %p378 = pneg %p175
        $region34: #{tpu_custom_call.1} parent=11 // pred_check_branch
          %380 = sbr.rel (%p378) target = $region36
        $region35: #{tpu_custom_call.1} parent=11 // pred_region
          _
        $region36: #{tpu_custom_call.1} parent=11 // pred_fallthru
          _
        // Predicated region
        $region37: #{tpu_custom_call.1} parent=11 // pred_check
          %p381 = pneg %p196
        $region38: #{tpu_custom_call.1} parent=11 // pred_check_branch
          %383 = sbr.rel (%p381) target = $region40
        $region39: #{tpu_custom_call.1} parent=11 // pred_region
          _
        $region40: #{tpu_custom_call.1} parent=11 // pred_fallthru
          _
        // Predicated region
        $region41: #{tpu_custom_call.1} parent=11 // pred_check
          %p384 = pneg %p217
        $region42: #{tpu_custom_call.1} parent=11 // pred_check_branch
          %386 = sbr.rel (%p384) target = $region44
        $region43: #{tpu_custom_call.1} parent=11 // pred_region
          _
        $region44: #{tpu_custom_call.1} parent=11 // pred_fallthru
          _
        // Predicated region
        $region45: #{tpu_custom_call.1} parent=11 // pred_check
          %p387 = pneg %p238
        $region46: #{tpu_custom_call.1} parent=11 // pred_check_branch
          %389 = sbr.rel (%p387) target = $region48
        $region47: #{tpu_custom_call.1} parent=11 // pred_region
          _
        $region48: #{tpu_custom_call.1} parent=11 // pred_fallthru
          _
        // Predicated region
        $region49: #{tpu_custom_call.1} parent=11 // pred_check
          %p390 = pneg %p259
        $region50: #{tpu_custom_call.1} parent=11 // pred_check_branch
          %392 = sbr.rel (%p390) target = $region52
        $region51: #{tpu_custom_call.1} parent=11 // pred_region
          _
        $region52: #{tpu_custom_call.1} parent=11 // pred_fallthru
          _
        // Predicated region
        $region53: #{tpu_custom_call.1} parent=11 // pred_check
          %p393 = pneg %p280
        $region54: #{tpu_custom_call.1} parent=11 // pred_check_branch
          %395 = sbr.rel (%p393) target = $region56
        $region55: #{tpu_custom_call.1} parent=11 // pred_region
          _
        $region56: #{tpu_custom_call.1} parent=11 // pred_fallthru
          _
        // Predicated region
        $region57: #{tpu_custom_call.1} parent=11 // pred_check
          %p396 = pneg %p301
        $region58: #{tpu_custom_call.1} parent=11 // pred_check_branch
          %398 = sbr.rel (%p396) target = $region60
        $region59: #{tpu_custom_call.1} parent=11 // pred_region
          _
        $region60: #{tpu_custom_call.1} parent=11 // pred_fallthru
          _
        // Predicated region
        $region61: #{tpu_custom_call.1} parent=11 // pred_check
          %p399 = pneg %p322
        $region62: #{tpu_custom_call.1} parent=11 // pred_check_branch
          %401 = sbr.rel (%p399) target = $region64
        $region63: #{tpu_custom_call.1} parent=11 // pred_region
          _
        $region64: #{tpu_custom_call.1} parent=11 // pred_fallthru
          _
      $region12: #{tpu_custom_call.1} parent=5 // pred_fallthru
        _
      %p402 = scmp.lt.s32.totalorder %s23, 2
      // Predicated region
      $region65: #{tpu_custom_call.1} parent=5 // pred_check
        %p403 = pneg %p402
      $region66: #{tpu_custom_call.1} parent=5 // pred_check_branch
        %405 = sbr.rel (%p403) target = $region68
      $region67: #{tpu_custom_call.1} parent=5 // pred_region
        // Predicated region
        $region69: #{tpu_custom_call.1} parent=67 // pred_check
          %p406 = pneg %p43
        $region70: #{tpu_custom_call.1} parent=67 // pred_check_branch
          %408 = sbr.rel (%p406) target = $region72
        $region71: #{tpu_custom_call.1} parent=67 // pred_region
          %s409 = smul.u32 2, %s23
          %p410 = scmp.lt.s32.totalorder %s409, 3
          %s411 = scalar_select %p410, %s409, 3
          %s412 = smul.addr %s411, 32
          %s413 = smul.addr %s412, 8
          %s414 = scalar_lea.vmem %s0, %s413
          %s415 = smul.u32 2, %s23
        $region72: #{tpu_custom_call.1} parent=67 // pred_fallthru
          _
      $region68: #{tpu_custom_call.1} parent=5 // pred_fallthru
        _
      %p416 = scmp.le.s32.totalorder 1, %s23
      %p417 = scmp.lt.s32.totalorder %s23, 3
      %p418 = pnand %p416, %p417
      %p419 = pneg %p418
      // Predicated region
      $region73: #{tpu_custom_call.1} parent=5 // pred_check
        _
      $region74: #{tpu_custom_call.1} parent=5 // pred_check_branch
        %421 = sbr.rel (%p418) target = $region76
      $region75: #{tpu_custom_call.1} parent=5 // pred_region
        %s422 = ssub.s32 %s23, 1
        %s423 = smul.u32 2, %s28
        %p424 = scmp.lt.s32.totalorder %s423, 3
        %s425 = scalar_select %p424, %s423, 3
        %s426 = smul.addr %s425, 32
        %s427 = smul.addr %s426, 8
        %s428 = scalar_lea.vmem %s0, %s427
        %p429 = pneg %p49
        %p430 = pneg %p46
        %p431 = pneg %p70
        %p432 = pneg %p67
        %p433 = pneg %p91
        %p434 = pneg %p88
        %p435 = pneg %p112
        %p436 = pneg %p109
        %p437 = pneg %p133
        %p438 = pneg %p130
        %p439 = pneg %p154
        %p440 = pneg %p151
        %p441 = pneg %p175
        %p442 = pneg %p172
        %p443 = pneg %p196
        %p444 = pneg %p193
        %p445 = pneg %p217
        %p446 = pneg %p214
        %p447 = pneg %p238
        %p448 = pneg %p235
        %p449 = pneg %p259
        %p450 = pneg %p256
        %p451 = pneg %p280
        %p452 = pneg %p277
        %p453 = pneg %p301
        %p454 = pneg %p298
        %p455 = pneg %p322
        %p456 = pneg %p319
        %p457 = pneg %p348
        %p458 = pneg %p345
        %s459 = sand.u32 %s335, 1
        %s460 = scalar_lea.sflag [#allocation3], %s459
        %s461 = sand.u32 %s335, 1
        %s462 = smul.addr %s461, 512
        %s463 = scalar_lea.vmem [#allocation2], %s462
        %s464 = smul.u32 2, %s28
        %p465 = scmp.lt.s32.totalorder %s464, 3
        %s466 = scalar_select %p465, %s464, 3
        %s467 = smul.addr %s466, 32
        %s468 = smul.addr %s467, 8
        %s469 = scalar_lea.vmem %s0, %s468
        %s470 = smul.u32 2, %s28
        %s471 = smul.u32 2, %s28
        %v473 = vld [vmem:[%s469] sm:$0xff]
        %v474 = vld [vmem:[%s469 + $0x8] sm:$0xff]
        %v475 = vld [vmem:[%s469 + $0x10] sm:$0xff]
        %v476 = vld [vmem:[%s469 + $0x18] sm:$0xff]
        %v477 = vld [vmem:[%s469 + $0x20] sm:$0xff]
        %v478 = vld [vmem:[%s469 + $0x28] sm:$0xff]
        %v479 = vld [vmem:[%s469 + $0x30] sm:$0xff]
        %v480 = vld [vmem:[%s469 + $0x38] sm:$0xff]
        %v481 = vld [vmem:[%s469 + $0x40] sm:$0xff]
        %v482 = vld [vmem:[%s469 + $0x48] sm:$0xff]
        %v483 = vld [vmem:[%s469 + $0x50] sm:$0xff]
        %v484 = vld [vmem:[%s469 + $0x58] sm:$0xff]
        %v485 = vld [vmem:[%s469 + $0x60] sm:$0xff]
        %v486 = vld [vmem:[%s469 + $0x68] sm:$0xff]
        %v487 = vld [vmem:[%s469 + $0x70] sm:$0xff]
        %v488 = vld [vmem:[%s469 + $0x78] sm:$0xff]
        %v489 = vld [vmem:[%s469 + $0x80] sm:$0xff]
        %v490 = vld [vmem:[%s469 + $0x88] sm:$0xff]
        %v491 = vld [vmem:[%s469 + $0x90] sm:$0xff]
        %v492 = vld [vmem:[%s469 + $0x98] sm:$0xff]
        %v493 = vld [vmem:[%s469 + $0xa0] sm:$0xff]
        %v494 = vld [vmem:[%s469 + $0xa8] sm:$0xff]
        %v495 = vld [vmem:[%s469 + $0xb0] sm:$0xff]
        %v496 = vld [vmem:[%s469 + $0xb8] sm:$0xff]
        %v497 = vld [vmem:[%s469 + $0xc0] sm:$0xff]
        %v498 = vld [vmem:[%s469 + $0xc8] sm:$0xff]
        %v499 = vld [vmem:[%s469 + $0xd0] sm:$0xff]
        %v500 = vld [vmem:[%s469 + $0xd8] sm:$0xff]
        %v501 = vld [vmem:[%s469 + $0xe0] sm:$0xff]
        %v502 = vld [vmem:[%s469 + $0xe8] sm:$0xff]
        %v503 = vld [vmem:[%s469 + $0xf0] sm:$0xff]
        %v504 = vld [vmem:[%s469 + $0xf8] sm:$0xff]
        %v505 = vld [vmem:[%s469 + $0x100] sm:$0xff]
        %v506 = vld [vmem:[%s469 + $0x108] sm:$0xff]
        %v507 = vld [vmem:[%s469 + $0x110] sm:$0xff]
        %v508 = vld [vmem:[%s469 + $0x118] sm:$0xff]
        %v509 = vld [vmem:[%s469 + $0x120] sm:$0xff]
        %v510 = vld [vmem:[%s469 + $0x128] sm:$0xff]
        %v511 = vld [vmem:[%s469 + $0x130] sm:$0xff]
        %v512 = vld [vmem:[%s469 + $0x138] sm:$0xff]
        %v513 = vld [vmem:[%s469 + $0x140] sm:$0xff]
        %v514 = vld [vmem:[%s469 + $0x148] sm:$0xff]
        %v515 = vld [vmem:[%s469 + $0x150] sm:$0xff]
        %v516 = vld [vmem:[%s469 + $0x158] sm:$0xff]
        %v517 = vld [vmem:[%s469 + $0x160] sm:$0xff]
        %v518 = vld [vmem:[%s469 + $0x168] sm:$0xff]
        %v519 = vld [vmem:[%s469 + $0x170] sm:$0xff]
        %v520 = vld [vmem:[%s469 + $0x178] sm:$0xff]
        %v521 = vld [vmem:[%s469 + $0x180] sm:$0xff]
        %v522 = vld [vmem:[%s469 + $0x188] sm:$0xff]
        %v523 = vld [vmem:[%s469 + $0x190] sm:$0xff]
        %v524 = vld [vmem:[%s469 + $0x198] sm:$0xff]
        %v525 = vld [vmem:[%s469 + $0x1a0] sm:$0xff]
        %v526 = vld [vmem:[%s469 + $0x1a8] sm:$0xff]
        %v527 = vld [vmem:[%s469 + $0x1b0] sm:$0xff]
        %v528 = vld [vmem:[%s469 + $0x1b8] sm:$0xff]
        %v529 = vld [vmem:[%s469 + $0x1c0] sm:$0xff]
        %v530 = vld [vmem:[%s469 + $0x1c8] sm:$0xff]
        %v531 = vld [vmem:[%s469 + $0x1d0] sm:$0xff]
        %v532 = vld [vmem:[%s469 + $0x1d8] sm:$0xff]
        %v533 = vld [vmem:[%s469 + $0x1e0] sm:$0xff]
        %v534 = vld [vmem:[%s469 + $0x1e8] sm:$0xff]
        %v535 = vld [vmem:[%s469 + $0x1f0] sm:$0xff]
        %v536 = vld [vmem:[%s469 + $0x1f8] sm:$0xff]
        %vm602 = vcmask 1040384
        %v603 = vrot.slane 0.0, 7
        %v604 = vsel %vm602, %v603, %v603
        %v605 = vrot.slane %v473, 7
        %v606 = vrot.slane %v474, 7
        %v607 = vsel %vm602, %v605, %v606
        %v608 = vrot.slane %v475, 7
        %v609 = vrot.slane %v476, 7
        %v610 = vsel %vm602, %v608, %v609
        %v611 = vrot.slane %v477, 7
        %v612 = vrot.slane %v478, 7
        %v613 = vsel %vm602, %v611, %v612
        %v614 = vrot.slane %v479, 7
        %v615 = vrot.slane %v480, 7
        %v616 = vsel %vm602, %v614, %v615
        %v617 = vrot.slane %v481, 7
        %v618 = vrot.slane %v482, 7
        %v619 = vsel %vm602, %v617, %v618
        %v620 = vrot.slane %v483, 7
        %v621 = vrot.slane %v484, 7
        %v622 = vsel %vm602, %v620, %v621
        %v623 = vrot.slane %v485, 7
        %v624 = vrot.slane %v486, 7
        %v625 = vsel %vm602, %v623, %v624
        %v626 = vrot.slane %v487, 7
        %v627 = vrot.slane %v488, 7
        %v628 = vsel %vm602, %v626, %v627
        %v629 = vrot.slane %v489, 7
        %v630 = vrot.slane %v490, 7
        %v631 = vsel %vm602, %v629, %v630
        %v632 = vrot.slane %v491, 7
        %v633 = vrot.slane %v492, 7
        %v634 = vsel %vm602, %v632, %v633
        %v635 = vrot.slane %v493, 7
        %v636 = vrot.slane %v494, 7
        %v637 = vsel %vm602, %v635, %v636
        %v638 = vrot.slane %v495, 7
        %v639 = vrot.slane %v496, 7
        %v640 = vsel %vm602, %v638, %v639
        %v641 = vrot.slane %v497, 7
        %v642 = vrot.slane %v498, 7
        %v643 = vsel %vm602, %v641, %v642
        %v644 = vrot.slane %v499, 7
        %v645 = vrot.slane %v500, 7
        %v646 = vsel %vm602, %v644, %v645
        %v647 = vrot.slane %v501, 7
        %v648 = vrot.slane %v502, 7
        %v649 = vsel %vm602, %v647, %v648
        %v650 = vrot.slane %v503, 7
        %v651 = vrot.slane %v504, 7
        %v652 = vsel %vm602, %v650, %v651
        %v653 = vrot.slane %v505, 7
        %v654 = vrot.slane %v506, 7
        %v655 = vsel %vm602, %v653, %v654
        %v656 = vrot.slane %v507, 7
        %v657 = vrot.slane %v508, 7
        %v658 = vsel %vm602, %v656, %v657
        %v659 = vrot.slane %v509, 7
        %v660 = vrot.slane %v510, 7
        %v661 = vsel %vm602, %v659, %v660
        %v662 = vrot.slane %v511, 7
        %v663 = vrot.slane %v512, 7
        %v664 = vsel %vm602, %v662, %v663
        %v665 = vrot.slane %v513, 7
        %v666 = vrot.slane %v514, 7
        %v667 = vsel %vm602, %v665, %v666
        %v668 = vrot.slane %v515, 7
        %v669 = vrot.slane %v516, 7
        %v670 = vsel %vm602, %v668, %v669
        %v671 = vrot.slane %v517, 7
        %v672 = vrot.slane %v518, 7
        %v673 = vsel %vm602, %v671, %v672
        %v674 = vrot.slane %v519, 7
        %v675 = vrot.slane %v520, 7
        %v676 = vsel %vm602, %v674, %v675
        %v677 = vrot.slane %v521, 7
        %v678 = vrot.slane %v522, 7
        %v679 = vsel %vm602, %v677, %v678
        %v680 = vrot.slane %v523, 7
        %v681 = vrot.slane %v524, 7
        %v682 = vsel %vm602, %v680, %v681
        %v683 = vrot.slane %v525, 7
        %v684 = vrot.slane %v526, 7
        %v685 = vsel %vm602, %v683, %v684
        %v686 = vrot.slane %v527, 7
        %v687 = vrot.slane %v528, 7
        %v688 = vsel %vm602, %v686, %v687
        %v689 = vrot.slane %v529, 7
        %v690 = vrot.slane %v530, 7
        %v691 = vsel %vm602, %v689, %v690
        %v692 = vrot.slane %v531, 7
        %v693 = vrot.slane %v532, 7
        %v694 = vsel %vm602, %v692, %v693
        %v695 = vrot.slane %v533, 7
        %v696 = vrot.slane %v534, 7
        %v697 = vsel %vm602, %v695, %v696
        %v698 = vrot.slane %v535, 7
        %v699 = vrot.slane %v536, 7
        %v700 = vsel %vm602, %v698, %v699
        %v797 = vsel %vm602, 0.0, %v603
        %v798 = vsel %vm602, 0.0, %v605
        %v799 = vsel %vm602, 0.0, %v608
        %v800 = vsel %vm602, 0.0, %v611
        %v801 = vsel %vm602, 0.0, %v614
        %v802 = vsel %vm602, 0.0, %v617
        %v803 = vsel %vm602, 0.0, %v620
        %v804 = vsel %vm602, 0.0, %v623
        %v805 = vsel %vm602, 0.0, %v626
        %v806 = vsel %vm602, 0.0, %v629
        %v807 = vsel %vm602, 0.0, %v632
        %v808 = vsel %vm602, 0.0, %v635
        %v809 = vsel %vm602, 0.0, %v638
        %v810 = vsel %vm602, 0.0, %v641
        %v811 = vsel %vm602, 0.0, %v644
        %v812 = vsel %vm602, 0.0, %v647
        %v813 = vsel %vm602, 0.0, %v650
        %v814 = vsel %vm602, 0.0, %v653
        %v815 = vsel %vm602, 0.0, %v656
        %v816 = vsel %vm602, 0.0, %v659
        %v817 = vsel %vm602, 0.0, %v662
        %v818 = vsel %vm602, 0.0, %v665
        %v819 = vsel %vm602, 0.0, %v668
        %v820 = vsel %vm602, 0.0, %v671
        %v821 = vsel %vm602, 0.0, %v674
        %v822 = vsel %vm602, 0.0, %v677
        %v823 = vsel %vm602, 0.0, %v680
        %v824 = vsel %vm602, 0.0, %v683
        %v825 = vsel %vm602, 0.0, %v686
        %v826 = vsel %vm602, 0.0, %v689
        %v827 = vsel %vm602, 0.0, %v692
        %v828 = vsel %vm602, 0.0, %v695
        %v829 = vsel %vm602, 0.0, %v698
        %v830 = vsel %vm602, %v603, 0.0
        %v831 = vsel %vm602, %v606, 0.0
        %v832 = vsel %vm602, %v609, 0.0
        %v833 = vsel %vm602, %v612, 0.0
        %v834 = vsel %vm602, %v615, 0.0
        %v835 = vsel %vm602, %v618, 0.0
        %v836 = vsel %vm602, %v621, 0.0
        %v837 = vsel %vm602, %v624, 0.0
        %v838 = vsel %vm602, %v627, 0.0
        %v839 = vsel %vm602, %v630, 0.0
        %v840 = vsel %vm602, %v633, 0.0
        %v841 = vsel %vm602, %v636, 0.0
        %v842 = vsel %vm602, %v639, 0.0
        %v843 = vsel %vm602, %v642, 0.0
        %v844 = vsel %vm602, %v645, 0.0
        %v845 = vsel %vm602, %v648, 0.0
        %v846 = vsel %vm602, %v651, 0.0
        %v847 = vsel %vm602, %v654, 0.0
        %v848 = vsel %vm602, %v657, 0.0
        %v849 = vsel %vm602, %v660, 0.0
        %v850 = vsel %vm602, %v663, 0.0
        %v851 = vsel %vm602, %v666, 0.0
        %v852 = vsel %vm602, %v669, 0.0
        %v853 = vsel %vm602, %v672, 0.0
        %v854 = vsel %vm602, %v675, 0.0
        %v855 = vsel %vm602, %v678, 0.0
        %v856 = vsel %vm602, %v681, 0.0
        %v857 = vsel %vm602, %v684, 0.0
        %v858 = vsel %vm602, %v687, 0.0
        %v859 = vsel %vm602, %v690, 0.0
        %v860 = vsel %vm602, %v693, 0.0
        %v861 = vsel %vm602, %v696, 0.0
        %v862 = vsel %vm602, %v699, 0.0
        %vm925 = vcmask 1046528
        %v926 = vrot.slane %v797, 1
        %v927 = vrot.slane %v604, 1
        %v928 = vsel %vm925, %v926, %v927
        %v929 = vrot.slane %v830, 1
        %v930 = vsel %vm925, %v927, %v929
        %v931 = vrot.slane %v798, 1
        %v932 = vrot.slane %v607, 1
        %v933 = vsel %vm925, %v931, %v932
        %v934 = vrot.slane %v831, 1
        %v935 = vsel %vm925, %v932, %v934
        %v936 = vrot.slane %v799, 1
        %v937 = vrot.slane %v610, 1
        %v938 = vsel %vm925, %v936, %v937
        %v939 = vrot.slane %v832, 1
        %v940 = vsel %vm925, %v937, %v939
        %v941 = vrot.slane %v800, 1
        %v942 = vrot.slane %v613, 1
        %v943 = vsel %vm925, %v941, %v942
        %v944 = vrot.slane %v833, 1
        %v945 = vsel %vm925, %v942, %v944
        %v946 = vrot.slane %v801, 1
        %v947 = vrot.slane %v616, 1
        %v948 = vsel %vm925, %v946, %v947
        %v949 = vrot.slane %v834, 1
        %v950 = vsel %vm925, %v947, %v949
        %v951 = vrot.slane %v802, 1
        %v952 = vrot.slane %v619, 1
        %v953 = vsel %vm925, %v951, %v952
        %v954 = vrot.slane %v835, 1
        %v955 = vsel %vm925, %v952, %v954
        %v956 = vrot.slane %v803, 1
        %v957 = vrot.slane %v622, 1
        %v958 = vsel %vm925, %v956, %v957
        %v959 = vrot.slane %v836, 1
        %v960 = vsel %vm925, %v957, %v959
        %v961 = vrot.slane %v804, 1
        %v962 = vrot.slane %v625, 1
        %v963 = vsel %vm925, %v961, %v962
        %v964 = vrot.slane %v837, 1
        %v965 = vsel %vm925, %v962, %v964
        %v966 = vrot.slane %v805, 1
        %v967 = vrot.slane %v628, 1
        %v968 = vsel %vm925, %v966, %v967
        %v969 = vrot.slane %v838, 1
        %v970 = vsel %vm925, %v967, %v969
        %v971 = vrot.slane %v806, 1
        %v972 = vrot.slane %v631, 1
        %v973 = vsel %vm925, %v971, %v972
        %v974 = vrot.slane %v839, 1
        %v975 = vsel %vm925, %v972, %v974
        %v976 = vrot.slane %v807, 1
        %v977 = vrot.slane %v634, 1
        %v978 = vsel %vm925, %v976, %v977
        %v979 = vrot.slane %v840, 1
        %v980 = vsel %vm925, %v977, %v979
        %v981 = vrot.slane %v808, 1
        %v982 = vrot.slane %v637, 1
        %v983 = vsel %vm925, %v981, %v982
        %v984 = vrot.slane %v841, 1
        %v985 = vsel %vm925, %v982, %v984
        %v986 = vrot.slane %v809, 1
        %v987 = vrot.slane %v640, 1
        %v988 = vsel %vm925, %v986, %v987
        %v989 = vrot.slane %v842, 1
        %v990 = vsel %vm925, %v987, %v989
        %v991 = vrot.slane %v810, 1
        %v992 = vrot.slane %v643, 1
        %v993 = vsel %vm925, %v991, %v992
        %v994 = vrot.slane %v843, 1
        %v995 = vsel %vm925, %v992, %v994
        %v996 = vrot.slane %v811, 1
        %v997 = vrot.slane %v646, 1
        %v998 = vsel %vm925, %v996, %v997
        %v999 = vrot.slane %v844, 1
        %v1000 = vsel %vm925, %v997, %v999
        %v1001 = vrot.slane %v812, 1
        %v1002 = vrot.slane %v649, 1
        %v1003 = vsel %vm925, %v1001, %v1002
        %v1004 = vrot.slane %v845, 1
        %v1005 = vsel %vm925, %v1002, %v1004
        %v1006 = vrot.slane %v814, 1
        %v1007 = vrot.slane %v655, 1
        %v1008 = vsel %vm925, %v1006, %v1007
        %v1009 = vrot.slane %v847, 1
        %v1010 = vsel %vm925, %v1007, %v1009
        %v1011 = vrot.slane %v815, 1
        %v1012 = vrot.slane %v658, 1
        %v1013 = vsel %vm925, %v1011, %v1012
        %v1014 = vrot.slane %v848, 1
        %v1015 = vsel %vm925, %v1012, %v1014
        %v1016 = vrot.slane %v816, 1
        %v1017 = vrot.slane %v661, 1
        %v1018 = vsel %vm925, %v1016, %v1017
        %v1019 = vrot.slane %v849, 1
        %v1020 = vsel %vm925, %v1017, %v1019
        %v1021 = vrot.slane %v817, 1
        %v1022 = vrot.slane %v664, 1
        %v1023 = vsel %vm925, %v1021, %v1022
        %v1024 = vrot.slane %v850, 1
        %v1025 = vsel %vm925, %v1022, %v1024
        %v1026 = vrot.slane %v818, 1
        %v1027 = vrot.slane %v667, 1
        %v1028 = vsel %vm925, %v1026, %v1027
        %v1029 = vrot.slane %v851, 1
        %v1030 = vsel %vm925, %v1027, %v1029
        %v1031 = vrot.slane %v819, 1
        %v1032 = vrot.slane %v670, 1
        %v1033 = vsel %vm925, %v1031, %v1032
        %v1034 = vrot.slane %v852, 1
        %v1035 = vsel %vm925, %v1032, %v1034
        %v1036 = vrot.slane %v820, 1
        %v1037 = vrot.slane %v673, 1
        %v1038 = vsel %vm925, %v1036, %v1037
        %v1039 = vrot.slane %v853, 1
        %v1040 = vsel %vm925, %v1037, %v1039
        %v1041 = vrot.slane %v821, 1
        %v1042 = vrot.slane %v676, 1
        %v1043 = vsel %vm925, %v1041, %v1042
        %v1044 = vrot.slane %v854, 1
        %v1045 = vsel %vm925, %v1042, %v1044
        %v1046 = vrot.slane %v822, 1
        %v1047 = vrot.slane %v679, 1
        %v1048 = vsel %vm925, %v1046, %v1047
        %v1049 = vrot.slane %v855, 1
        %v1050 = vsel %vm925, %v1047, %v1049
        %v1051 = vrot.slane %v823, 1
        %v1052 = vrot.slane %v682, 1
        %v1053 = vsel %vm925, %v1051, %v1052
        %v1054 = vrot.slane %v856, 1
        %v1055 = vsel %vm925, %v1052, %v1054
        %v1056 = vrot.slane %v824, 1
        %v1057 = vrot.slane %v685, 1
        %v1058 = vsel %vm925, %v1056, %v1057
        %v1059 = vrot.slane %v857, 1
        %v1060 = vsel %vm925, %v1057, %v1059
        %v1061 = vrot.slane %v825, 1
        %v1062 = vrot.slane %v688, 1
        %v1063 = vsel %vm925, %v1061, %v1062
        %v1064 = vrot.slane %v858, 1
        %v1065 = vsel %vm925, %v1062, %v1064
        %v1066 = vrot.slane %v826, 1
        %v1067 = vrot.slane %v691, 1
        %v1068 = vsel %vm925, %v1066, %v1067
        %v1069 = vrot.slane %v859, 1
        %v1070 = vsel %vm925, %v1067, %v1069
        %v1071 = vrot.slane %v827, 1
        %v1072 = vrot.slane %v694, 1
        %v1073 = vsel %vm925, %v1071, %v1072
        %v1074 = vrot.slane %v860, 1
        %v1075 = vsel %vm925, %v1072, %v1074
        %v1076 = vrot.slane %v828, 1
        %v1077 = vrot.slane %v697, 1
        %v1078 = vsel %vm925, %v1076, %v1077
        %v1079 = vrot.slane %v861, 1
        %v1080 = vsel %vm925, %v1077, %v1079
        %1081 = vrot.lane.b32.xlu0 %v928, 4
        %v1082 = vpop.permute.xlu0 %1081
        %1083 = vrot.lane.b32.xlu0 %v930, 4
        %v1084 = vpop.permute.xlu0 %1083
        %1085 = vrot.lane.b32.xlu0 %v933, 4
        %v1086 = vpop.permute.xlu0 %1085
        %1087 = vrot.lane.b32.xlu0 %v935, 4
        %v1088 = vpop.permute.xlu0 %1087
        %1089 = vrot.lane.b32.xlu0 %v938, 4
        %v1090 = vpop.permute.xlu0 %1089
        %1091 = vrot.lane.b32.xlu0 %v940, 4
        %v1092 = vpop.permute.xlu0 %1091
        %1093 = vrot.lane.b32.xlu0 %v943, 4
        %v1094 = vpop.permute.xlu0 %1093
        %1095 = vrot.lane.b32.xlu0 %v945, 4
        %v1096 = vpop.permute.xlu0 %1095
        %1097 = vrot.lane.b32.xlu0 %v948, 4
        %v1098 = vpop.permute.xlu0 %1097
        %1099 = vrot.lane.b32.xlu0 %v950, 4
        %v1100 = vpop.permute.xlu0 %1099
        %1101 = vrot.lane.b32.xlu0 %v953, 4
        %v1102 = vpop.permute.xlu0 %1101
        %1103 = vrot.lane.b32.xlu0 %v955, 4
        %v1104 = vpop.permute.xlu0 %1103
        %1105 = vrot.lane.b32.xlu0 %v958, 4
        %v1106 = vpop.permute.xlu0 %1105
        %1107 = vrot.lane.b32.xlu0 %v960, 4
        %v1108 = vpop.permute.xlu0 %1107
        %1109 = vrot.lane.b32.xlu0 %v963, 4
        %v1110 = vpop.permute.xlu0 %1109
        %1111 = vrot.lane.b32.xlu0 %v965, 4
        %v1112 = vpop.permute.xlu0 %1111
        %1113 = vrot.lane.b32.xlu0 %v968, 4
        %v1114 = vpop.permute.xlu0 %1113
        %1115 = vrot.lane.b32.xlu0 %v970, 4
        %v1116 = vpop.permute.xlu0 %1115
        %1117 = vrot.lane.b32.xlu0 %v973, 4
        %v1118 = vpop.permute.xlu0 %1117
        %1119 = vrot.lane.b32.xlu0 %v975, 4
        %v1120 = vpop.permute.xlu0 %1119
        %1121 = vrot.lane.b32.xlu0 %v978, 4
        %v1122 = vpop.permute.xlu0 %1121
        %1123 = vrot.lane.b32.xlu0 %v980, 4
        %v1124 = vpop.permute.xlu0 %1123
        %1125 = vrot.lane.b32.xlu0 %v983, 4
        %v1126 = vpop.permute.xlu0 %1125
        %1127 = vrot.lane.b32.xlu0 %v985, 4
        %v1128 = vpop.permute.xlu0 %1127
        %1129 = vrot.lane.b32.xlu0 %v988, 4
        %v1130 = vpop.permute.xlu0 %1129
        %1131 = vrot.lane.b32.xlu0 %v990, 4
        %v1132 = vpop.permute.xlu0 %1131
        %1133 = vrot.lane.b32.xlu0 %v993, 4
        %v1134 = vpop.permute.xlu0 %1133
        %1135 = vrot.lane.b32.xlu0 %v995, 4
        %v1136 = vpop.permute.xlu0 %1135
        %1137 = vrot.lane.b32.xlu0 %v998, 4
        %v1138 = vpop.permute.xlu0 %1137
        %1139 = vrot.lane.b32.xlu0 %v1000, 4
        %v1140 = vpop.permute.xlu0 %1139
        %1141 = vrot.lane.b32.xlu0 %v1003, 4
        %v1142 = vpop.permute.xlu0 %1141
        %1143 = vrot.lane.b32.xlu0 %v1005, 4
        %v1144 = vpop.permute.xlu0 %1143
        %1145 = vrot.lane.b32.xlu0 %v1008, 4
        %v1146 = vpop.permute.xlu0 %1145
        %1147 = vrot.lane.b32.xlu0 %v1010, 4
        %v1148 = vpop.permute.xlu0 %1147
        %1149 = vrot.lane.b32.xlu0 %v1013, 4
        %v1150 = vpop.permute.xlu0 %1149
        %1151 = vrot.lane.b32.xlu0 %v1015, 4
        %v1152 = vpop.permute.xlu0 %1151
        %1153 = vrot.lane.b32.xlu0 %v1018, 4
        %v1154 = vpop.permute.xlu0 %1153
        %1155 = vrot.lane.b32.xlu0 %v1020, 4
        %v1156 = vpop.permute.xlu0 %1155
        %1157 = vrot.lane.b32.xlu0 %v1023, 4
        %v1158 = vpop.permute.xlu0 %1157
        %1159 = vrot.lane.b32.xlu0 %v1025, 4
        %v1160 = vpop.permute.xlu0 %1159
        %1161 = vrot.lane.b32.xlu0 %v1028, 4
        %v1162 = vpop.permute.xlu0 %1161
        %1163 = vrot.lane.b32.xlu0 %v1030, 4
        %v1164 = vpop.permute.xlu0 %1163
        %1165 = vrot.lane.b32.xlu0 %v1033, 4
        %v1166 = vpop.permute.xlu0 %1165
        %1167 = vrot.lane.b32.xlu0 %v1035, 4
        %v1168 = vpop.permute.xlu0 %1167
        %1169 = vrot.lane.b32.xlu0 %v1038, 4
        %v1170 = vpop.permute.xlu0 %1169
        %1171 = vrot.lane.b32.xlu0 %v1040, 4
        %v1172 = vpop.permute.xlu0 %1171
        %1173 = vrot.lane.b32.xlu0 %v1043, 4
        %v1174 = vpop.permute.xlu0 %1173
        %1175 = vrot.lane.b32.xlu0 %v1045, 4
        %v1176 = vpop.permute.xlu0 %1175
        %1177 = vrot.lane.b32.xlu0 %v1048, 4
        %v1178 = vpop.permute.xlu0 %1177
        %1179 = vrot.lane.b32.xlu0 %v1050, 4
        %v1180 = vpop.permute.xlu0 %1179
        %1181 = vrot.lane.b32.xlu0 %v1053, 4
        %v1182 = vpop.permute.xlu0 %1181
        %1183 = vrot.lane.b32.xlu0 %v1055, 4
        %v1184 = vpop.permute.xlu0 %1183
        %1185 = vrot.lane.b32.xlu0 %v1058, 4
        %v1186 = vpop.permute.xlu0 %1185
        %1187 = vrot.lane.b32.xlu0 %v1060, 4
        %v1188 = vpop.permute.xlu0 %1187
        %1189 = vrot.lane.b32.xlu0 %v1063, 4
        %v1190 = vpop.permute.xlu0 %1189
        %1191 = vrot.lane.b32.xlu0 %v1065, 4
        %v1192 = vpop.permute.xlu0 %1191
        %1193 = vrot.lane.b32.xlu0 %v1068, 4
        %v1194 = vpop.permute.xlu0 %1193
        %1195 = vrot.lane.b32.xlu0 %v1070, 4
        %v1196 = vpop.permute.xlu0 %1195
        %1197 = vrot.lane.b32.xlu0 %v1073, 4
        %v1198 = vpop.permute.xlu0 %1197
        %1199 = vrot.lane.b32.xlu0 %v1075, 4
        %v1200 = vpop.permute.xlu0 %1199
        %1201 = vrot.lane.b32.xlu0 %v1078, 4
        %v1202 = vpop.permute.xlu0 %1201
        %1203 = vrot.lane.b32.xlu0 %v1080, 4
        %v1204 = vpop.permute.xlu0 %1203
        %vm1267 = vcmask 1045504
        %v1268 = vrot.slane %v797, 2
        %v1269 = vrot.slane %v604, 2
        %v1270 = vsel %vm1267, %v1268, %v1269
        %v1271 = vrot.slane %v830, 2
        %v1272 = vsel %vm1267, %v1269, %v1271
        %v1273 = vrot.slane %v798, 2
        %v1274 = vrot.slane %v607, 2
        %v1275 = vsel %vm1267, %v1273, %v1274
        %v1276 = vrot.slane %v831, 2
        %v1277 = vsel %vm1267, %v1274, %v1276
        %v1278 = vrot.slane %v799, 2
        %v1279 = vrot.slane %v610, 2
        %v1280 = vsel %vm1267, %v1278, %v1279
        %v1281 = vrot.slane %v832, 2
        %v1282 = vsel %vm1267, %v1279, %v1281
        %v1283 = vrot.slane %v800, 2
        %v1284 = vrot.slane %v613, 2
        %v1285 = vsel %vm1267, %v1283, %v1284
        %v1286 = vrot.slane %v833, 2
        %v1287 = vsel %vm1267, %v1284, %v1286
        %v1288 = vrot.slane %v801, 2
        %v1289 = vrot.slane %v616, 2
        %v1290 = vsel %vm1267, %v1288, %v1289
        %v1291 = vrot.slane %v834, 2
        %v1292 = vsel %vm1267, %v1289, %v1291
        %v1293 = vrot.slane %v802, 2
        %v1294 = vrot.slane %v619, 2
        %v1295 = vsel %vm1267, %v1293, %v1294
        %v1296 = vrot.slane %v835, 2
        %v1297 = vsel %vm1267, %v1294, %v1296
        %v1298 = vrot.slane %v803, 2
        %v1299 = vrot.slane %v622, 2
        %v1300 = vsel %vm1267, %v1298, %v1299
        %v1301 = vrot.slane %v836, 2
        %v1302 = vsel %vm1267, %v1299, %v1301
        %v1303 = vrot.slane %v804, 2
        %v1304 = vrot.slane %v625, 2
        %v1305 = vsel %vm1267, %v1303, %v1304
        %v1306 = vrot.slane %v837, 2
        %v1307 = vsel %vm1267, %v1304, %v1306
        %v1308 = vrot.slane %v805, 2
        %v1309 = vrot.slane %v628, 2
        %v1310 = vsel %vm1267, %v1308, %v1309
        %v1311 = vrot.slane %v838, 2
        %v1312 = vsel %vm1267, %v1309, %v1311
        %v1313 = vrot.slane %v806, 2
        %v1314 = vrot.slane %v631, 2
        %v1315 = vsel %vm1267, %v1313, %v1314
        %v1316 = vrot.slane %v839, 2
        %v1317 = vsel %vm1267, %v1314, %v1316
        %v1318 = vrot.slane %v807, 2
        %v1319 = vrot.slane %v634, 2
        %v1320 = vsel %vm1267, %v1318, %v1319
        %v1321 = vrot.slane %v840, 2
        %v1322 = vsel %vm1267, %v1319, %v1321
        %v1323 = vrot.slane %v808, 2
        %v1324 = vrot.slane %v637, 2
        %v1325 = vsel %vm1267, %v1323, %v1324
        %v1326 = vrot.slane %v841, 2
        %v1327 = vsel %vm1267, %v1324, %v1326
        %v1328 = vrot.slane %v809, 2
        %v1329 = vrot.slane %v640, 2
        %v1330 = vsel %vm1267, %v1328, %v1329
        %v1331 = vrot.slane %v842, 2
        %v1332 = vsel %vm1267, %v1329, %v1331
        %v1333 = vrot.slane %v810, 2
        %v1334 = vrot.slane %v643, 2
        %v1335 = vsel %vm1267, %v1333, %v1334
        %v1336 = vrot.slane %v843, 2
        %v1337 = vsel %vm1267, %v1334, %v1336
        %v1338 = vrot.slane %v811, 2
        %v1339 = vrot.slane %v646, 2
        %v1340 = vsel %vm1267, %v1338, %v1339
        %v1341 = vrot.slane %v844, 2
        %v1342 = vsel %vm1267, %v1339, %v1341
        %v1343 = vrot.slane %v812, 2
        %v1344 = vrot.slane %v649, 2
        %v1345 = vsel %vm1267, %v1343, %v1344
        %v1346 = vrot.slane %v845, 2
        %v1347 = vsel %vm1267, %v1344, %v1346
        %v1348 = vrot.slane %v814, 2
        %v1349 = vrot.slane %v655, 2
        %v1350 = vsel %vm1267, %v1348, %v1349
        %v1351 = vrot.slane %v847, 2
        %v1352 = vsel %vm1267, %v1349, %v1351
        %v1353 = vrot.slane %v815, 2
        %v1354 = vrot.slane %v658, 2
        %v1355 = vsel %vm1267, %v1353, %v1354
        %v1356 = vrot.slane %v848, 2
        %v1357 = vsel %vm1267, %v1354, %v1356
        %v1358 = vrot.slane %v816, 2
        %v1359 = vrot.slane %v661, 2
        %v1360 = vsel %vm1267, %v1358, %v1359
        %v1361 = vrot.slane %v849, 2
        %v1362 = vsel %vm1267, %v1359, %v1361
        %v1363 = vrot.slane %v817, 2
        %v1364 = vrot.slane %v664, 2
        %v1365 = vsel %vm1267, %v1363, %v1364
        %v1366 = vrot.slane %v850, 2
        %v1367 = vsel %vm1267, %v1364, %v1366
        %v1368 = vrot.slane %v818, 2
        %v1369 = vrot.slane %v667, 2
        %v1370 = vsel %vm1267, %v1368, %v1369
        %v1371 = vrot.slane %v851, 2
        %v1372 = vsel %vm1267, %v1369, %v1371
        %v1373 = vrot.slane %v819, 2
        %v1374 = vrot.slane %v670, 2
        %v1375 = vsel %vm1267, %v1373, %v1374
        %v1376 = vrot.slane %v852, 2
        %v1377 = vsel %vm1267, %v1374, %v1376
        %v1378 = vrot.slane %v820, 2
        %v1379 = vrot.slane %v673, 2
        %v1380 = vsel %vm1267, %v1378, %v1379
        %v1381 = vrot.slane %v853, 2
        %v1382 = vsel %vm1267, %v1379, %v1381
        %v1383 = vrot.slane %v821, 2
        %v1384 = vrot.slane %v676, 2
        %v1385 = vsel %vm1267, %v1383, %v1384
        %v1386 = vrot.slane %v854, 2
        %v1387 = vsel %vm1267, %v1384, %v1386
        %v1388 = vrot.slane %v822, 2
        %v1389 = vrot.slane %v679, 2
        %v1390 = vsel %vm1267, %v1388, %v1389
        %v1391 = vrot.slane %v855, 2
        %v1392 = vsel %vm1267, %v1389, %v1391
        %v1393 = vrot.slane %v823, 2
        %v1394 = vrot.slane %v682, 2
        %v1395 = vsel %vm1267, %v1393, %v1394
        %v1396 = vrot.slane %v856, 2
        %v1397 = vsel %vm1267, %v1394, %v1396
        %v1398 = vrot.slane %v824, 2
        %v1399 = vrot.slane %v685, 2
        %v1400 = vsel %vm1267, %v1398, %v1399
        %v1401 = vrot.slane %v857, 2
        %v1402 = vsel %vm1267, %v1399, %v1401
        %v1403 = vrot.slane %v825, 2
        %v1404 = vrot.slane %v688, 2
        %v1405 = vsel %vm1267, %v1403, %v1404
        %v1406 = vrot.slane %v858, 2
        %v1407 = vsel %vm1267, %v1404, %v1406
        %v1408 = vrot.slane %v826, 2
        %v1409 = vrot.slane %v691, 2
        %v1410 = vsel %vm1267, %v1408, %v1409
        %v1411 = vrot.slane %v859, 2
        %v1412 = vsel %vm1267, %v1409, %v1411
        %v1413 = vrot.slane %v827, 2
        %v1414 = vrot.slane %v694, 2
        %v1415 = vsel %vm1267, %v1413, %v1414
        %v1416 = vrot.slane %v860, 2
        %v1417 = vsel %vm1267, %v1414, %v1416
        %v1418 = vrot.slane %v828, 2
        %v1419 = vrot.slane %v697, 2
        %v1420 = vsel %vm1267, %v1418, %v1419
        %v1421 = vrot.slane %v861, 2
        %v1422 = vsel %vm1267, %v1419, %v1421
        %1423 = vrot.lane.b32.xlu0 %v1270, 8
        %v1424 = vpop.permute.xlu0 %1423
        %1425 = vrot.lane.b32.xlu0 %v1272, 8
        %v1426 = vpop.permute.xlu0 %1425
        %1427 = vrot.lane.b32.xlu0 %v1275, 8
        %v1428 = vpop.permute.xlu0 %1427
        %1429 = vrot.lane.b32.xlu0 %v1277, 8
        %v1430 = vpop.permute.xlu0 %1429
        %1431 = vrot.lane.b32.xlu0 %v1280, 8
        %v1432 = vpop.permute.xlu0 %1431
        %1433 = vrot.lane.b32.xlu0 %v1282, 8
        %v1434 = vpop.permute.xlu0 %1433
        %1435 = vrot.lane.b32.xlu0 %v1285, 8
        %v1436 = vpop.permute.xlu0 %1435
        %1437 = vrot.lane.b32.xlu0 %v1287, 8
        %v1438 = vpop.permute.xlu0 %1437
        %1439 = vrot.lane.b32.xlu0 %v1290, 8
        %v1440 = vpop.permute.xlu0 %1439
        %1441 = vrot.lane.b32.xlu0 %v1292, 8
        %v1442 = vpop.permute.xlu0 %1441
        %1443 = vrot.lane.b32.xlu0 %v1295, 8
        %v1444 = vpop.permute.xlu0 %1443
        %1445 = vrot.lane.b32.xlu0 %v1297, 8
        %v1446 = vpop.permute.xlu0 %1445
        %1447 = vrot.lane.b32.xlu0 %v1300, 8
        %v1448 = vpop.permute.xlu0 %1447
        %1449 = vrot.lane.b32.xlu0 %v1302, 8
        %v1450 = vpop.permute.xlu0 %1449
        %1451 = vrot.lane.b32.xlu0 %v1305, 8
        %v1452 = vpop.permute.xlu0 %1451
        %1453 = vrot.lane.b32.xlu0 %v1307, 8
        %v1454 = vpop.permute.xlu0 %1453
        %1455 = vrot.lane.b32.xlu0 %v1310, 8
        %v1456 = vpop.permute.xlu0 %1455
        %1457 = vrot.lane.b32.xlu0 %v1312, 8
        %v1458 = vpop.permute.xlu0 %1457
        %1459 = vrot.lane.b32.xlu0 %v1315, 8
        %v1460 = vpop.permute.xlu0 %1459
        %1461 = vrot.lane.b32.xlu0 %v1317, 8
        %v1462 = vpop.permute.xlu0 %1461
        %1463 = vrot.lane.b32.xlu0 %v1320, 8
        %v1464 = vpop.permute.xlu0 %1463
        %1465 = vrot.lane.b32.xlu0 %v1322, 8
        %v1466 = vpop.permute.xlu0 %1465
        %1467 = vrot.lane.b32.xlu0 %v1325, 8
        %v1468 = vpop.permute.xlu0 %1467
        %1469 = vrot.lane.b32.xlu0 %v1327, 8
        %v1470 = vpop.permute.xlu0 %1469
        %1471 = vrot.lane.b32.xlu0 %v1330, 8
        %v1472 = vpop.permute.xlu0 %1471
        %1473 = vrot.lane.b32.xlu0 %v1332, 8
        %v1474 = vpop.permute.xlu0 %1473
        %1475 = vrot.lane.b32.xlu0 %v1335, 8
        %v1476 = vpop.permute.xlu0 %1475
        %1477 = vrot.lane.b32.xlu0 %v1337, 8
        %v1478 = vpop.permute.xlu0 %1477
        %1479 = vrot.lane.b32.xlu0 %v1340, 8
        %v1480 = vpop.permute.xlu0 %1479
        %1481 = vrot.lane.b32.xlu0 %v1342, 8
        %v1482 = vpop.permute.xlu0 %1481
        %1483 = vrot.lane.b32.xlu0 %v1345, 8
        %v1484 = vpop.permute.xlu0 %1483
        %1485 = vrot.lane.b32.xlu0 %v1347, 8
        %v1486 = vpop.permute.xlu0 %1485
        %1487 = vrot.lane.b32.xlu0 %v1350, 8
        %v1488 = vpop.permute.xlu0 %1487
        %1489 = vrot.lane.b32.xlu0 %v1352, 8
        %v1490 = vpop.permute.xlu0 %1489
        %1491 = vrot.lane.b32.xlu0 %v1355, 8
        %v1492 = vpop.permute.xlu0 %1491
        %1493 = vrot.lane.b32.xlu0 %v1357, 8
        %v1494 = vpop.permute.xlu0 %1493
        %1495 = vrot.lane.b32.xlu0 %v1360, 8
        %v1496 = vpop.permute.xlu0 %1495
        %1497 = vrot.lane.b32.xlu0 %v1362, 8
        %v1498 = vpop.permute.xlu0 %1497
        %1499 = vrot.lane.b32.xlu0 %v1365, 8
        %v1500 = vpop.permute.xlu0 %1499
        %1501 = vrot.lane.b32.xlu0 %v1367, 8
        %v1502 = vpop.permute.xlu0 %1501
        %1503 = vrot.lane.b32.xlu0 %v1370, 8
        %v1504 = vpop.permute.xlu0 %1503
        %1505 = vrot.lane.b32.xlu0 %v1372, 8
        %v1506 = vpop.permute.xlu0 %1505
        %1507 = vrot.lane.b32.xlu0 %v1375, 8
        %v1508 = vpop.permute.xlu0 %1507
        %1509 = vrot.lane.b32.xlu0 %v1377, 8
        %v1510 = vpop.permute.xlu0 %1509
        %1511 = vrot.lane.b32.xlu0 %v1380, 8
        %v1512 = vpop.permute.xlu0 %1511
        %1513 = vrot.lane.b32.xlu0 %v1382, 8
        %v1514 = vpop.permute.xlu0 %1513
        %1515 = vrot.lane.b32.xlu0 %v1385, 8
        %v1516 = vpop.permute.xlu0 %1515
        %1517 = vrot.lane.b32.xlu0 %v1387, 8
        %v1518 = vpop.permute.xlu0 %1517
        %1519 = vrot.lane.b32.xlu0 %v1390, 8
        %v1520 = vpop.permute.xlu0 %1519
        %1521 = vrot.lane.b32.xlu0 %v1392, 8
        %v1522 = vpop.permute.xlu0 %1521
        %1523 = vrot.lane.b32.xlu0 %v1395, 8
        %v1524 = vpop.permute.xlu0 %1523
        %1525 = vrot.lane.b32.xlu0 %v1397, 8
        %v1526 = vpop.permute.xlu0 %1525
        %1527 = vrot.lane.b32.xlu0 %v1400, 8
        %v1528 = vpop.permute.xlu0 %1527
        %1529 = vrot.lane.b32.xlu0 %v1402, 8
        %v1530 = vpop.permute.xlu0 %1529
        %1531 = vrot.lane.b32.xlu0 %v1405, 8
        %v1532 = vpop.permute.xlu0 %1531
        %1533 = vrot.lane.b32.xlu0 %v1407, 8
        %v1534 = vpop.permute.xlu0 %1533
        %1535 = vrot.lane.b32.xlu0 %v1410, 8
        %v1536 = vpop.permute.xlu0 %1535
        %1537 = vrot.lane.b32.xlu0 %v1412, 8
        %v1538 = vpop.permute.xlu0 %1537
        %1539 = vrot.lane.b32.xlu0 %v1415, 8
        %v1540 = vpop.permute.xlu0 %1539
        %1541 = vrot.lane.b32.xlu0 %v1417, 8
        %v1542 = vpop.permute.xlu0 %1541
        %1543 = vrot.lane.b32.xlu0 %v1420, 8
        %v1544 = vpop.permute.xlu0 %1543
        %1545 = vrot.lane.b32.xlu0 %v1422, 8
        %v1546 = vpop.permute.xlu0 %1545
        %1611 = vrot.lane.b32.xlu0 %v798, 12
        %v1612 = vpop.permute.xlu0 %1611
        %1613 = vrot.lane.b32.xlu0 %v607, 12
        %v1614 = vpop.permute.xlu0 %1613
        %1615 = vrot.lane.b32.xlu0 %v799, 12
        %v1616 = vpop.permute.xlu0 %1615
        %1617 = vrot.lane.b32.xlu0 %v610, 12
        %v1618 = vpop.permute.xlu0 %1617
        %1619 = vrot.lane.b32.xlu0 %v800, 12
        %v1620 = vpop.permute.xlu0 %1619
        %1621 = vrot.lane.b32.xlu0 %v613, 12
        %v1622 = vpop.permute.xlu0 %1621
        %1623 = vrot.lane.b32.xlu0 %v801, 12
        %v1624 = vpop.permute.xlu0 %1623
        %1625 = vrot.lane.b32.xlu0 %v616, 12
        %v1626 = vpop.permute.xlu0 %1625
        %1627 = vrot.lane.b32.xlu0 %v802, 12
        %v1628 = vpop.permute.xlu0 %1627
        %1629 = vrot.lane.b32.xlu0 %v619, 12
        %v1630 = vpop.permute.xlu0 %1629
        %1631 = vrot.lane.b32.xlu0 %v803, 12
        %v1632 = vpop.permute.xlu0 %1631
        %1633 = vrot.lane.b32.xlu0 %v622, 12
        %v1634 = vpop.permute.xlu0 %1633
        %1635 = vrot.lane.b32.xlu0 %v804, 12
        %v1636 = vpop.permute.xlu0 %1635
        %1637 = vrot.lane.b32.xlu0 %v625, 12
        %v1638 = vpop.permute.xlu0 %1637
        %1639 = vrot.lane.b32.xlu0 %v805, 12
        %v1640 = vpop.permute.xlu0 %1639
        %1641 = vrot.lane.b32.xlu0 %v628, 12
        %v1642 = vpop.permute.xlu0 %1641
        %1643 = vrot.lane.b32.xlu0 %v806, 12
        %v1644 = vpop.permute.xlu0 %1643
        %1645 = vrot.lane.b32.xlu0 %v631, 12
        %v1646 = vpop.permute.xlu0 %1645
        %1647 = vrot.lane.b32.xlu0 %v807, 12
        %v1648 = vpop.permute.xlu0 %1647
        %1649 = vrot.lane.b32.xlu0 %v634, 12
        %v1650 = vpop.permute.xlu0 %1649
        %1651 = vrot.lane.b32.xlu0 %v808, 12
        %v1652 = vpop.permute.xlu0 %1651
        %1653 = vrot.lane.b32.xlu0 %v637, 12
        %v1654 = vpop.permute.xlu0 %1653
        %1655 = vrot.lane.b32.xlu0 %v809, 12
        %v1656 = vpop.permute.xlu0 %1655
        %1657 = vrot.lane.b32.xlu0 %v640, 12
        %v1658 = vpop.permute.xlu0 %1657
        %1659 = vrot.lane.b32.xlu0 %v810, 12
        %v1660 = vpop.permute.xlu0 %1659
        %1661 = vrot.lane.b32.xlu0 %v643, 12
        %v1662 = vpop.permute.xlu0 %1661
        %1663 = vrot.lane.b32.xlu0 %v811, 12
        %v1664 = vpop.permute.xlu0 %1663
        %1665 = vrot.lane.b32.xlu0 %v646, 12
        %v1666 = vpop.permute.xlu0 %1665
        %1667 = vrot.lane.b32.xlu0 %v812, 12
        %v1668 = vpop.permute.xlu0 %1667
        %1669 = vrot.lane.b32.xlu0 %v649, 12
        %v1670 = vpop.permute.xlu0 %1669
        %1671 = vrot.lane.b32.xlu0 %v813, 12
        %v1672 = vpop.permute.xlu0 %1671
        %1673 = vrot.lane.b32.xlu0 %v652, 12
        %v1674 = vpop.permute.xlu0 %1673
        %1675 = vrot.lane.b32.xlu0 %v814, 12
        %v1676 = vpop.permute.xlu0 %1675
        %1677 = vrot.lane.b32.xlu0 %v655, 12
        %v1678 = vpop.permute.xlu0 %1677
        %1679 = vrot.lane.b32.xlu0 %v815, 12
        %v1680 = vpop.permute.xlu0 %1679
        %1681 = vrot.lane.b32.xlu0 %v658, 12
        %v1682 = vpop.permute.xlu0 %1681
        %1683 = vrot.lane.b32.xlu0 %v816, 12
        %v1684 = vpop.permute.xlu0 %1683
        %1685 = vrot.lane.b32.xlu0 %v661, 12
        %v1686 = vpop.permute.xlu0 %1685
        %1687 = vrot.lane.b32.xlu0 %v817, 12
        %v1688 = vpop.permute.xlu0 %1687
        %1689 = vrot.lane.b32.xlu0 %v664, 12
        %v1690 = vpop.permute.xlu0 %1689
        %1691 = vrot.lane.b32.xlu0 %v818, 12
        %v1692 = vpop.permute.xlu0 %1691
        %1693 = vrot.lane.b32.xlu0 %v667, 12
        %v1694 = vpop.permute.xlu0 %1693
        %1695 = vrot.lane.b32.xlu0 %v819, 12
        %v1696 = vpop.permute.xlu0 %1695
        %1697 = vrot.lane.b32.xlu0 %v670, 12
        %v1698 = vpop.permute.xlu0 %1697
        %1699 = vrot.lane.b32.xlu0 %v820, 12
        %v1700 = vpop.permute.xlu0 %1699
        %1701 = vrot.lane.b32.xlu0 %v673, 12
        %v1702 = vpop.permute.xlu0 %1701
        %1703 = vrot.lane.b32.xlu0 %v821, 12
        %v1704 = vpop.permute.xlu0 %1703
        %1705 = vrot.lane.b32.xlu0 %v676, 12
        %v1706 = vpop.permute.xlu0 %1705
        %1707 = vrot.lane.b32.xlu0 %v822, 12
        %v1708 = vpop.permute.xlu0 %1707
        %1709 = vrot.lane.b32.xlu0 %v679, 12
        %v1710 = vpop.permute.xlu0 %1709
        %1711 = vrot.lane.b32.xlu0 %v823, 12
        %v1712 = vpop.permute.xlu0 %1711
        %1713 = vrot.lane.b32.xlu0 %v682, 12
        %v1714 = vpop.permute.xlu0 %1713
        %1715 = vrot.lane.b32.xlu0 %v824, 12
        %v1716 = vpop.permute.xlu0 %1715
        %1717 = vrot.lane.b32.xlu0 %v685, 12
        %v1718 = vpop.permute.xlu0 %1717
        %1719 = vrot.lane.b32.xlu0 %v825, 12
        %v1720 = vpop.permute.xlu0 %1719
        %1721 = vrot.lane.b32.xlu0 %v688, 12
        %v1722 = vpop.permute.xlu0 %1721
        %1723 = vrot.lane.b32.xlu0 %v826, 12
        %v1724 = vpop.permute.xlu0 %1723
        %1725 = vrot.lane.b32.xlu0 %v691, 12
        %v1726 = vpop.permute.xlu0 %1725
        %1727 = vrot.lane.b32.xlu0 %v827, 12
        %v1728 = vpop.permute.xlu0 %1727
        %1729 = vrot.lane.b32.xlu0 %v694, 12
        %v1730 = vpop.permute.xlu0 %1729
        %1731 = vrot.lane.b32.xlu0 %v828, 12
        %v1732 = vpop.permute.xlu0 %1731
        %1733 = vrot.lane.b32.xlu0 %v697, 12
        %v1734 = vpop.permute.xlu0 %1733
        %1735 = vrot.lane.b32.xlu0 %v829, 12
        %v1736 = vpop.permute.xlu0 %1735
        %1737 = vrot.lane.b32.xlu0 %v700, 12
        %v1738 = vpop.permute.xlu0 %1737
        %v1805 = vrot.slane %v813, 1
        %v1806 = vrot.slane %v652, 1
        %v1807 = vsel %vm925, %v1805, %v1806
        %v1808 = vrot.slane %v846, 1
        %v1809 = vsel %vm925, %v1806, %v1808
        %v1810 = vrot.slane %v829, 1
        %v1811 = vrot.slane %v700, 1
        %v1812 = vsel %vm925, %v1810, %v1811
        %v1813 = vrot.slane %v862, 1
        %v1814 = vsel %vm925, %v1811, %v1813
        %1815 = vrot.lane.b32.xlu0 %v933, 16
        %v1816 = vpop.permute.xlu0 %1815
        %1817 = vrot.lane.b32.xlu0 %v935, 16
        %v1818 = vpop.permute.xlu0 %1817
        %1819 = vrot.lane.b32.xlu0 %v938, 16
        %v1820 = vpop.permute.xlu0 %1819
        %1821 = vrot.lane.b32.xlu0 %v940, 16
        %v1822 = vpop.permute.xlu0 %1821
        %1823 = vrot.lane.b32.xlu0 %v943, 16
        %v1824 = vpop.permute.xlu0 %1823
        %1825 = vrot.lane.b32.xlu0 %v945, 16
        %v1826 = vpop.permute.xlu0 %1825
        %1827 = vrot.lane.b32.xlu0 %v948, 16
        %v1828 = vpop.permute.xlu0 %1827
        %1829 = vrot.lane.b32.xlu0 %v950, 16
        %v1830 = vpop.permute.xlu0 %1829
        %1831 = vrot.lane.b32.xlu0 %v953, 16
        %v1832 = vpop.permute.xlu0 %1831
        %1833 = vrot.lane.b32.xlu0 %v955, 16
        %v1834 = vpop.permute.xlu0 %1833
        %1835 = vrot.lane.b32.xlu0 %v958, 16
        %v1836 = vpop.permute.xlu0 %1835
        %1837 = vrot.lane.b32.xlu0 %v960, 16
        %v1838 = vpop.permute.xlu0 %1837
        %1839 = vrot.lane.b32.xlu0 %v963, 16
        %v1840 = vpop.permute.xlu0 %1839
        %1841 = vrot.lane.b32.xlu0 %v965, 16
        %v1842 = vpop.permute.xlu0 %1841
        %1843 = vrot.lane.b32.xlu0 %v968, 16
        %v1844 = vpop.permute.xlu0 %1843
        %1845 = vrot.lane.b32.xlu0 %v970, 16
        %v1846 = vpop.permute.xlu0 %1845
        %1847 = vrot.lane.b32.xlu0 %v973, 16
        %v1848 = vpop.permute.xlu0 %1847
        %1849 = vrot.lane.b32.xlu0 %v975, 16
        %v1850 = vpop.permute.xlu0 %1849
        %1851 = vrot.lane.b32.xlu0 %v978, 16
        %v1852 = vpop.permute.xlu0 %1851
        %1853 = vrot.lane.b32.xlu0 %v980, 16
        %v1854 = vpop.permute.xlu0 %1853
        %1855 = vrot.lane.b32.xlu0 %v983, 16
        %v1856 = vpop.permute.xlu0 %1855
        %1857 = vrot.lane.b32.xlu0 %v985, 16
        %v1858 = vpop.permute.xlu0 %1857
        %1859 = vrot.lane.b32.xlu0 %v988, 16
        %v1860 = vpop.permute.xlu0 %1859
        %1861 = vrot.lane.b32.xlu0 %v990, 16
        %v1862 = vpop.permute.xlu0 %1861
        %1863 = vrot.lane.b32.xlu0 %v993, 16
        %v1864 = vpop.permute.xlu0 %1863
        %1865 = vrot.lane.b32.xlu0 %v995, 16
        %v1866 = vpop.permute.xlu0 %1865
        %1867 = vrot.lane.b32.xlu0 %v998, 16
        %v1868 = vpop.permute.xlu0 %1867
        %1869 = vrot.lane.b32.xlu0 %v1000, 16
        %v1870 = vpop.permute.xlu0 %1869
        %1871 = vrot.lane.b32.xlu0 %v1003, 16
        %v1872 = vpop.permute.xlu0 %1871
        %1873 = vrot.lane.b32.xlu0 %v1005, 16
        %v1874 = vpop.permute.xlu0 %1873
        %1875 = vrot.lane.b32.xlu0 %v1807, 16
        %v1876 = vpop.permute.xlu0 %1875
        %1877 = vrot.lane.b32.xlu0 %v1809, 16
        %v1878 = vpop.permute.xlu0 %1877
        %1879 = vrot.lane.b32.xlu0 %v1008, 16
        %v1880 = vpop.permute.xlu0 %1879
        %1881 = vrot.lane.b32.xlu0 %v1010, 16
        %v1882 = vpop.permute.xlu0 %1881
        %1883 = vrot.lane.b32.xlu0 %v1013, 16
        %v1884 = vpop.permute.xlu0 %1883
        %1885 = vrot.lane.b32.xlu0 %v1015, 16
        %v1886 = vpop.permute.xlu0 %1885
        %1887 = vrot.lane.b32.xlu0 %v1018, 16
        %v1888 = vpop.permute.xlu0 %1887
        %1889 = vrot.lane.b32.xlu0 %v1020, 16
        %v1890 = vpop.permute.xlu0 %1889
        %1891 = vrot.lane.b32.xlu0 %v1023, 16
        %v1892 = vpop.permute.xlu0 %1891
        %1893 = vrot.lane.b32.xlu0 %v1025, 16
        %v1894 = vpop.permute.xlu0 %1893
        %1895 = vrot.lane.b32.xlu0 %v1028, 16
        %v1896 = vpop.permute.xlu0 %1895
        %1897 = vrot.lane.b32.xlu0 %v1030, 16
        %v1898 = vpop.permute.xlu0 %1897
        %1899 = vrot.lane.b32.xlu0 %v1033, 16
        %v1900 = vpop.permute.xlu0 %1899
        %1901 = vrot.lane.b32.xlu0 %v1035, 16
        %v1902 = vpop.permute.xlu0 %1901
        %1903 = vrot.lane.b32.xlu0 %v1038, 16
        %v1904 = vpop.permute.xlu0 %1903
        %1905 = vrot.lane.b32.xlu0 %v1040, 16
        %v1906 = vpop.permute.xlu0 %1905
        %1907 = vrot.lane.b32.xlu0 %v1043, 16
        %v1908 = vpop.permute.xlu0 %1907
        %1909 = vrot.lane.b32.xlu0 %v1045, 16
        %v1910 = vpop.permute.xlu0 %1909
        %1911 = vrot.lane.b32.xlu0 %v1048, 16
        %v1912 = vpop.permute.xlu0 %1911
        %1913 = vrot.lane.b32.xlu0 %v1050, 16
        %v1914 = vpop.permute.xlu0 %1913
        %1915 = vrot.lane.b32.xlu0 %v1053, 16
        %v1916 = vpop.permute.xlu0 %1915
        %1917 = vrot.lane.b32.xlu0 %v1055, 16
        %v1918 = vpop.permute.xlu0 %1917
        %1919 = vrot.lane.b32.xlu0 %v1058, 16
        %v1920 = vpop.permute.xlu0 %1919
        %1921 = vrot.lane.b32.xlu0 %v1060, 16
        %v1922 = vpop.permute.xlu0 %1921
        %1923 = vrot.lane.b32.xlu0 %v1063, 16
        %v1924 = vpop.permute.xlu0 %1923
        %1925 = vrot.lane.b32.xlu0 %v1065, 16
        %v1926 = vpop.permute.xlu0 %1925
        %1927 = vrot.lane.b32.xlu0 %v1068, 16
        %v1928 = vpop.permute.xlu0 %1927
        %1929 = vrot.lane.b32.xlu0 %v1070, 16
        %v1930 = vpop.permute.xlu0 %1929
        %1931 = vrot.lane.b32.xlu0 %v1073, 16
        %v1932 = vpop.permute.xlu0 %1931
        %1933 = vrot.lane.b32.xlu0 %v1075, 16
        %v1934 = vpop.permute.xlu0 %1933
        %1935 = vrot.lane.b32.xlu0 %v1078, 16
        %v1936 = vpop.permute.xlu0 %1935
        %1937 = vrot.lane.b32.xlu0 %v1080, 16
        %v1938 = vpop.permute.xlu0 %1937
        %1939 = vrot.lane.b32.xlu0 %v1812, 16
        %v1940 = vpop.permute.xlu0 %1939
        %1941 = vrot.lane.b32.xlu0 %v1814, 16
        %v1942 = vpop.permute.xlu0 %1941
        %v2007 = vrot.slane %v813, 2
        %v2008 = vrot.slane %v652, 2
        %v2009 = vsel %vm1267, %v2007, %v2008
        %v2010 = vrot.slane %v846, 2
        %v2011 = vsel %vm1267, %v2008, %v2010
        %v2012 = vrot.slane %v829, 2
        %v2013 = vrot.slane %v700, 2
        %v2014 = vsel %vm1267, %v2012, %v2013
        %v2015 = vrot.slane %v862, 2
        %v2016 = vsel %vm1267, %v2013, %v2015
        %2017 = vrot.lane.b32.xlu0 %v1275, 20
        %v2018 = vpop.permute.xlu0 %2017
        %2019 = vrot.lane.b32.xlu0 %v1277, 20
        %v2020 = vpop.permute.xlu0 %2019
        %2021 = vrot.lane.b32.xlu0 %v1280, 20
        %v2022 = vpop.permute.xlu0 %2021
        %2023 = vrot.lane.b32.xlu0 %v1282, 20
        %v2024 = vpop.permute.xlu0 %2023
        %2025 = vrot.lane.b32.xlu0 %v1285, 20
        %v2026 = vpop.permute.xlu0 %2025
        %2027 = vrot.lane.b32.xlu0 %v1287, 20
        %v2028 = vpop.permute.xlu0 %2027
        %2029 = vrot.lane.b32.xlu0 %v1290, 20
        %v2030 = vpop.permute.xlu0 %2029
        %2031 = vrot.lane.b32.xlu0 %v1292, 20
        %v2032 = vpop.permute.xlu0 %2031
        %2033 = vrot.lane.b32.xlu0 %v1295, 20
        %v2034 = vpop.permute.xlu0 %2033
        %2035 = vrot.lane.b32.xlu0 %v1297, 20
        %v2036 = vpop.permute.xlu0 %2035
        %2037 = vrot.lane.b32.xlu0 %v1300, 20
        %v2038 = vpop.permute.xlu0 %2037
        %2039 = vrot.lane.b32.xlu0 %v1302, 20
        %v2040 = vpop.permute.xlu0 %2039
        %2041 = vrot.lane.b32.xlu0 %v1305, 20
        %v2042 = vpop.permute.xlu0 %2041
        %2043 = vrot.lane.b32.xlu0 %v1307, 20
        %v2044 = vpop.permute.xlu0 %2043
        %2045 = vrot.lane.b32.xlu0 %v1310, 20
        %v2046 = vpop.permute.xlu0 %2045
        %2047 = vrot.lane.b32.xlu0 %v1312, 20
        %v2048 = vpop.permute.xlu0 %2047
        %2049 = vrot.lane.b32.xlu0 %v1315, 20
        %v2050 = vpop.permute.xlu0 %2049
        %2051 = vrot.lane.b32.xlu0 %v1317, 20
        %v2052 = vpop.permute.xlu0 %2051
        %2053 = vrot.lane.b32.xlu0 %v1320, 20
        %v2054 = vpop.permute.xlu0 %2053
        %2055 = vrot.lane.b32.xlu0 %v1322, 20
        %v2056 = vpop.permute.xlu0 %2055
        %2057 = vrot.lane.b32.xlu0 %v1325, 20
        %v2058 = vpop.permute.xlu0 %2057
        %2059 = vrot.lane.b32.xlu0 %v1327, 20
        %v2060 = vpop.permute.xlu0 %2059
        %2061 = vrot.lane.b32.xlu0 %v1330, 20
        %v2062 = vpop.permute.xlu0 %2061
        %2063 = vrot.lane.b32.xlu0 %v1332, 20
        %v2064 = vpop.permute.xlu0 %2063
        %2065 = vrot.lane.b32.xlu0 %v1335, 20
        %v2066 = vpop.permute.xlu0 %2065
        %2067 = vrot.lane.b32.xlu0 %v1337, 20
        %v2068 = vpop.permute.xlu0 %2067
        %2069 = vrot.lane.b32.xlu0 %v1340, 20
        %v2070 = vpop.permute.xlu0 %2069
        %2071 = vrot.lane.b32.xlu0 %v1342, 20
        %v2072 = vpop.permute.xlu0 %2071
        %2073 = vrot.lane.b32.xlu0 %v1345, 20
        %v2074 = vpop.permute.xlu0 %2073
        %2075 = vrot.lane.b32.xlu0 %v1347, 20
        %v2076 = vpop.permute.xlu0 %2075
        %2077 = vrot.lane.b32.xlu0 %v2009, 20
        %v2078 = vpop.permute.xlu0 %2077
        %2079 = vrot.lane.b32.xlu0 %v2011, 20
        %v2080 = vpop.permute.xlu0 %2079
        %2081 = vrot.lane.b32.xlu0 %v1350, 20
        %v2082 = vpop.permute.xlu0 %2081
        %2083 = vrot.lane.b32.xlu0 %v1352, 20
        %v2084 = vpop.permute.xlu0 %2083
        %2085 = vrot.lane.b32.xlu0 %v1355, 20
        %v2086 = vpop.permute.xlu0 %2085
        %2087 = vrot.lane.b32.xlu0 %v1357, 20
        %v2088 = vpop.permute.xlu0 %2087
        %2089 = vrot.lane.b32.xlu0 %v1360, 20
        %v2090 = vpop.permute.xlu0 %2089
        %2091 = vrot.lane.b32.xlu0 %v1362, 20
        %v2092 = vpop.permute.xlu0 %2091
        %2093 = vrot.lane.b32.xlu0 %v1365, 20
        %v2094 = vpop.permute.xlu0 %2093
        %2095 = vrot.lane.b32.xlu0 %v1367, 20
        %v2096 = vpop.permute.xlu0 %2095
        %2097 = vrot.lane.b32.xlu0 %v1370, 20
        %v2098 = vpop.permute.xlu0 %2097
        %2099 = vrot.lane.b32.xlu0 %v1372, 20
        %v2100 = vpop.permute.xlu0 %2099
        %2101 = vrot.lane.b32.xlu0 %v1375, 20
        %v2102 = vpop.permute.xlu0 %2101
        %2103 = vrot.lane.b32.xlu0 %v1377, 20
        %v2104 = vpop.permute.xlu0 %2103
        %2105 = vrot.lane.b32.xlu0 %v1380, 20
        %v2106 = vpop.permute.xlu0 %2105
        %2107 = vrot.lane.b32.xlu0 %v1382, 20
        %v2108 = vpop.permute.xlu0 %2107
        %2109 = vrot.lane.b32.xlu0 %v1385, 20
        %v2110 = vpop.permute.xlu0 %2109
        %2111 = vrot.lane.b32.xlu0 %v1387, 20
        %v2112 = vpop.permute.xlu0 %2111
        %2113 = vrot.lane.b32.xlu0 %v1390, 20
        %v2114 = vpop.permute.xlu0 %2113
        %2115 = vrot.lane.b32.xlu0 %v1392, 20
        %v2116 = vpop.permute.xlu0 %2115
        %2117 = vrot.lane.b32.xlu0 %v1395, 20
        %v2118 = vpop.permute.xlu0 %2117
        %2119 = vrot.lane.b32.xlu0 %v1397, 20
        %v2120 = vpop.permute.xlu0 %2119
        %2121 = vrot.lane.b32.xlu0 %v1400, 20
        %v2122 = vpop.permute.xlu0 %2121
        %2123 = vrot.lane.b32.xlu0 %v1402, 20
        %v2124 = vpop.permute.xlu0 %2123
        %2125 = vrot.lane.b32.xlu0 %v1405, 20
        %v2126 = vpop.permute.xlu0 %2125
        %2127 = vrot.lane.b32.xlu0 %v1407, 20
        %v2128 = vpop.permute.xlu0 %2127
        %2129 = vrot.lane.b32.xlu0 %v1410, 20
        %v2130 = vpop.permute.xlu0 %2129
        %2131 = vrot.lane.b32.xlu0 %v1412, 20
        %v2132 = vpop.permute.xlu0 %2131
        %2133 = vrot.lane.b32.xlu0 %v1415, 20
        %v2134 = vpop.permute.xlu0 %2133
        %2135 = vrot.lane.b32.xlu0 %v1417, 20
        %v2136 = vpop.permute.xlu0 %2135
        %2137 = vrot.lane.b32.xlu0 %v1420, 20
        %v2138 = vpop.permute.xlu0 %2137
        %2139 = vrot.lane.b32.xlu0 %v1422, 20
        %v2140 = vpop.permute.xlu0 %2139
        %2141 = vrot.lane.b32.xlu0 %v2014, 20
        %v2142 = vpop.permute.xlu0 %2141
        %2143 = vrot.lane.b32.xlu0 %v2016, 20
        %v2144 = vpop.permute.xlu0 %2143
        %2209 = vrot.lane.b32.xlu0 %v799, 24
        %v2210 = vpop.permute.xlu0 %2209
        %2211 = vrot.lane.b32.xlu0 %v610, 24
        %v2212 = vpop.permute.xlu0 %2211
        %2213 = vrot.lane.b32.xlu0 %v800, 24
        %v2214 = vpop.permute.xlu0 %2213
        %2215 = vrot.lane.b32.xlu0 %v613, 24
        %v2216 = vpop.permute.xlu0 %2215
        %2217 = vrot.lane.b32.xlu0 %v801, 24
        %v2218 = vpop.permute.xlu0 %2217
        %2219 = vrot.lane.b32.xlu0 %v616, 24
        %v2220 = vpop.permute.xlu0 %2219
        %2221 = vrot.lane.b32.xlu0 %v802, 24
        %v2222 = vpop.permute.xlu0 %2221
        %2223 = vrot.lane.b32.xlu0 %v619, 24
        %v2224 = vpop.permute.xlu0 %2223
        %2225 = vrot.lane.b32.xlu0 %v803, 24
        %v2226 = vpop.permute.xlu0 %2225
        %2227 = vrot.lane.b32.xlu0 %v622, 24
        %v2228 = vpop.permute.xlu0 %2227
        %2229 = vrot.lane.b32.xlu0 %v804, 24
        %v2230 = vpop.permute.xlu0 %2229
        %2231 = vrot.lane.b32.xlu0 %v625, 24
        %v2232 = vpop.permute.xlu0 %2231
        %2233 = vrot.lane.b32.xlu0 %v805, 24
        %v2234 = vpop.permute.xlu0 %2233
        %2235 = vrot.lane.b32.xlu0 %v628, 24
        %v2236 = vpop.permute.xlu0 %2235
        %2237 = vrot.lane.b32.xlu0 %v806, 24
        %v2238 = vpop.permute.xlu0 %2237
        %2239 = vrot.lane.b32.xlu0 %v631, 24
        %v2240 = vpop.permute.xlu0 %2239
        %2241 = vrot.lane.b32.xlu0 %v807, 24
        %v2242 = vpop.permute.xlu0 %2241
        %2243 = vrot.lane.b32.xlu0 %v634, 24
        %v2244 = vpop.permute.xlu0 %2243
        %2245 = vrot.lane.b32.xlu0 %v808, 24
        %v2246 = vpop.permute.xlu0 %2245
        %2247 = vrot.lane.b32.xlu0 %v637, 24
        %v2248 = vpop.permute.xlu0 %2247
        %2249 = vrot.lane.b32.xlu0 %v809, 24
        %v2250 = vpop.permute.xlu0 %2249
        %2251 = vrot.lane.b32.xlu0 %v640, 24
        %v2252 = vpop.permute.xlu0 %2251
        %2253 = vrot.lane.b32.xlu0 %v810, 24
        %v2254 = vpop.permute.xlu0 %2253
        %2255 = vrot.lane.b32.xlu0 %v643, 24
        %v2256 = vpop.permute.xlu0 %2255
        %2257 = vrot.lane.b32.xlu0 %v811, 24
        %v2258 = vpop.permute.xlu0 %2257
        %2259 = vrot.lane.b32.xlu0 %v646, 24
        %v2260 = vpop.permute.xlu0 %2259
        %2261 = vrot.lane.b32.xlu0 %v812, 24
        %v2262 = vpop.permute.xlu0 %2261
        %2263 = vrot.lane.b32.xlu0 %v649, 24
        %v2264 = vpop.permute.xlu0 %2263
        %2265 = vrot.lane.b32.xlu0 %v813, 24
        %v2266 = vpop.permute.xlu0 %2265
        %2267 = vrot.lane.b32.xlu0 %v652, 24
        %v2268 = vpop.permute.xlu0 %2267
        %2269 = vrot.lane.b32.xlu0 %v797, 24
        %v2270 = vpop.permute.xlu0 %2269
        %2271 = vrot.lane.b32.xlu0 %v604, 24
        %v2272 = vpop.permute.xlu0 %2271
        %2273 = vrot.lane.b32.xlu0 %v815, 24
        %v2274 = vpop.permute.xlu0 %2273
        %2275 = vrot.lane.b32.xlu0 %v658, 24
        %v2276 = vpop.permute.xlu0 %2275
        %2277 = vrot.lane.b32.xlu0 %v816, 24
        %v2278 = vpop.permute.xlu0 %2277
        %2279 = vrot.lane.b32.xlu0 %v661, 24
        %v2280 = vpop.permute.xlu0 %2279
        %2281 = vrot.lane.b32.xlu0 %v817, 24
        %v2282 = vpop.permute.xlu0 %2281
        %2283 = vrot.lane.b32.xlu0 %v664, 24
        %v2284 = vpop.permute.xlu0 %2283
        %2285 = vrot.lane.b32.xlu0 %v818, 24
        %v2286 = vpop.permute.xlu0 %2285
        %2287 = vrot.lane.b32.xlu0 %v667, 24
        %v2288 = vpop.permute.xlu0 %2287
        %2289 = vrot.lane.b32.xlu0 %v819, 24
        %v2290 = vpop.permute.xlu0 %2289
        %2291 = vrot.lane.b32.xlu0 %v670, 24
        %v2292 = vpop.permute.xlu0 %2291
        %2293 = vrot.lane.b32.xlu0 %v820, 24
        %v2294 = vpop.permute.xlu0 %2293
        %2295 = vrot.lane.b32.xlu0 %v673, 24
        %v2296 = vpop.permute.xlu0 %2295
        %2297 = vrot.lane.b32.xlu0 %v821, 24
        %v2298 = vpop.permute.xlu0 %2297
        %2299 = vrot.lane.b32.xlu0 %v676, 24
        %v2300 = vpop.permute.xlu0 %2299
        %2301 = vrot.lane.b32.xlu0 %v822, 24
        %v2302 = vpop.permute.xlu0 %2301
        %2303 = vrot.lane.b32.xlu0 %v679, 24
        %v2304 = vpop.permute.xlu0 %2303
        %2305 = vrot.lane.b32.xlu0 %v823, 24
        %v2306 = vpop.permute.xlu0 %2305
        %2307 = vrot.lane.b32.xlu0 %v682, 24
        %v2308 = vpop.permute.xlu0 %2307
        %2309 = vrot.lane.b32.xlu0 %v824, 24
        %v2310 = vpop.permute.xlu0 %2309
        %2311 = vrot.lane.b32.xlu0 %v685, 24
        %v2312 = vpop.permute.xlu0 %2311
        %2313 = vrot.lane.b32.xlu0 %v825, 24
        %v2314 = vpop.permute.xlu0 %2313
        %2315 = vrot.lane.b32.xlu0 %v688, 24
        %v2316 = vpop.permute.xlu0 %2315
        %2317 = vrot.lane.b32.xlu0 %v826, 24
        %v2318 = vpop.permute.xlu0 %2317
        %2319 = vrot.lane.b32.xlu0 %v691, 24
        %v2320 = vpop.permute.xlu0 %2319
        %2321 = vrot.lane.b32.xlu0 %v827, 24
        %v2322 = vpop.permute.xlu0 %2321
        %2323 = vrot.lane.b32.xlu0 %v694, 24
        %v2324 = vpop.permute.xlu0 %2323
        %2325 = vrot.lane.b32.xlu0 %v828, 24
        %v2326 = vpop.permute.xlu0 %2325
        %2327 = vrot.lane.b32.xlu0 %v697, 24
        %v2328 = vpop.permute.xlu0 %2327
        %2329 = vrot.lane.b32.xlu0 %v829, 24
        %v2330 = vpop.permute.xlu0 %2329
        %2331 = vrot.lane.b32.xlu0 %v700, 24
        %v2332 = vpop.permute.xlu0 %2331
        %2395 = vrot.lane.b32.xlu0 %v938, 28
        %v2396 = vpop.permute.xlu0 %2395
        %2397 = vrot.lane.b32.xlu0 %v940, 28
        %v2398 = vpop.permute.xlu0 %2397
        %2399 = vrot.lane.b32.xlu0 %v943, 28
        %v2400 = vpop.permute.xlu0 %2399
        %2401 = vrot.lane.b32.xlu0 %v945, 28
        %v2402 = vpop.permute.xlu0 %2401
        %2403 = vrot.lane.b32.xlu0 %v948, 28
        %v2404 = vpop.permute.xlu0 %2403
        %2405 = vrot.lane.b32.xlu0 %v950, 28
        %v2406 = vpop.permute.xlu0 %2405
        %2407 = vrot.lane.b32.xlu0 %v953, 28
        %v2408 = vpop.permute.xlu0 %2407
        %2409 = vrot.lane.b32.xlu0 %v955, 28
        %v2410 = vpop.permute.xlu0 %2409
        %2411 = vrot.lane.b32.xlu0 %v958, 28
        %v2412 = vpop.permute.xlu0 %2411
        %2413 = vrot.lane.b32.xlu0 %v960, 28
        %v2414 = vpop.permute.xlu0 %2413
        %2415 = vrot.lane.b32.xlu0 %v963, 28
        %v2416 = vpop.permute.xlu0 %2415
        %2417 = vrot.lane.b32.xlu0 %v965, 28
        %v2418 = vpop.permute.xlu0 %2417
        %2419 = vrot.lane.b32.xlu0 %v968, 28
        %v2420 = vpop.permute.xlu0 %2419
        %2421 = vrot.lane.b32.xlu0 %v970, 28
        %v2422 = vpop.permute.xlu0 %2421
        %2423 = vrot.lane.b32.xlu0 %v973, 28
        %v2424 = vpop.permute.xlu0 %2423
        %2425 = vrot.lane.b32.xlu0 %v975, 28
        %v2426 = vpop.permute.xlu0 %2425
        %2427 = vrot.lane.b32.xlu0 %v978, 28
        %v2428 = vpop.permute.xlu0 %2427
        %2429 = vrot.lane.b32.xlu0 %v980, 28
        %v2430 = vpop.permute.xlu0 %2429
        %2431 = vrot.lane.b32.xlu0 %v983, 28
        %v2432 = vpop.permute.xlu0 %2431
        %2433 = vrot.lane.b32.xlu0 %v985, 28
        %v2434 = vpop.permute.xlu0 %2433
        %2435 = vrot.lane.b32.xlu0 %v988, 28
        %v2436 = vpop.permute.xlu0 %2435
        %2437 = vrot.lane.b32.xlu0 %v990, 28
        %v2438 = vpop.permute.xlu0 %2437
        %2439 = vrot.lane.b32.xlu0 %v993, 28
        %v2440 = vpop.permute.xlu0 %2439
        %2441 = vrot.lane.b32.xlu0 %v995, 28
        %v2442 = vpop.permute.xlu0 %2441
        %2443 = vrot.lane.b32.xlu0 %v998, 28
        %v2444 = vpop.permute.xlu0 %2443
        %2445 = vrot.lane.b32.xlu0 %v1000, 28
        %v2446 = vpop.permute.xlu0 %2445
        %2447 = vrot.lane.b32.xlu0 %v1003, 28
        %v2448 = vpop.permute.xlu0 %2447
        %2449 = vrot.lane.b32.xlu0 %v1005, 28
        %v2450 = vpop.permute.xlu0 %2449
        %2451 = vrot.lane.b32.xlu0 %v1807, 28
        %v2452 = vpop.permute.xlu0 %2451
        %2453 = vrot.lane.b32.xlu0 %v1809, 28
        %v2454 = vpop.permute.xlu0 %2453
        %2455 = vrot.lane.b32.xlu0 %v928, 28
        %v2456 = vpop.permute.xlu0 %2455
        %2457 = vrot.lane.b32.xlu0 %v930, 28
        %v2458 = vpop.permute.xlu0 %2457
        %2459 = vrot.lane.b32.xlu0 %v1013, 28
        %v2460 = vpop.permute.xlu0 %2459
        %2461 = vrot.lane.b32.xlu0 %v1015, 28
        %v2462 = vpop.permute.xlu0 %2461
        %2463 = vrot.lane.b32.xlu0 %v1018, 28
        %v2464 = vpop.permute.xlu0 %2463
        %2465 = vrot.lane.b32.xlu0 %v1020, 28
        %v2466 = vpop.permute.xlu0 %2465
        %2467 = vrot.lane.b32.xlu0 %v1023, 28
        %v2468 = vpop.permute.xlu0 %2467
        %2469 = vrot.lane.b32.xlu0 %v1025, 28
        %v2470 = vpop.permute.xlu0 %2469
        %2471 = vrot.lane.b32.xlu0 %v1028, 28
        %v2472 = vpop.permute.xlu0 %2471
        %2473 = vrot.lane.b32.xlu0 %v1030, 28
        %v2474 = vpop.permute.xlu0 %2473
        %2475 = vrot.lane.b32.xlu0 %v1033, 28
        %v2476 = vpop.permute.xlu0 %2475
        %2477 = vrot.lane.b32.xlu0 %v1035, 28
        %v2478 = vpop.permute.xlu0 %2477
        %2479 = vrot.lane.b32.xlu0 %v1038, 28
        %v2480 = vpop.permute.xlu0 %2479
        %2481 = vrot.lane.b32.xlu0 %v1040, 28
        %v2482 = vpop.permute.xlu0 %2481
        %2483 = vrot.lane.b32.xlu0 %v1043, 28
        %v2484 = vpop.permute.xlu0 %2483
        %2485 = vrot.lane.b32.xlu0 %v1045, 28
        %v2486 = vpop.permute.xlu0 %2485
        %2487 = vrot.lane.b32.xlu0 %v1048, 28
        %v2488 = vpop.permute.xlu0 %2487
        %2489 = vrot.lane.b32.xlu0 %v1050, 28
        %v2490 = vpop.permute.xlu0 %2489
        %2491 = vrot.lane.b32.xlu0 %v1053, 28
        %v2492 = vpop.permute.xlu0 %2491
        %2493 = vrot.lane.b32.xlu0 %v1055, 28
        %v2494 = vpop.permute.xlu0 %2493
        %2495 = vrot.lane.b32.xlu0 %v1058, 28
        %v2496 = vpop.permute.xlu0 %2495
        %2497 = vrot.lane.b32.xlu0 %v1060, 28
        %v2498 = vpop.permute.xlu0 %2497
        %2499 = vrot.lane.b32.xlu0 %v1063, 28
        %v2500 = vpop.permute.xlu0 %2499
        %2501 = vrot.lane.b32.xlu0 %v1065, 28
        %v2502 = vpop.permute.xlu0 %2501
        %2503 = vrot.lane.b32.xlu0 %v1068, 28
        %v2504 = vpop.permute.xlu0 %2503
        %2505 = vrot.lane.b32.xlu0 %v1070, 28
        %v2506 = vpop.permute.xlu0 %2505
        %2507 = vrot.lane.b32.xlu0 %v1073, 28
        %v2508 = vpop.permute.xlu0 %2507
        %2509 = vrot.lane.b32.xlu0 %v1075, 28
        %v2510 = vpop.permute.xlu0 %2509
        %2511 = vrot.lane.b32.xlu0 %v1078, 28
        %v2512 = vpop.permute.xlu0 %2511
        %2513 = vrot.lane.b32.xlu0 %v1080, 28
        %v2514 = vpop.permute.xlu0 %2513
        %2515 = vrot.lane.b32.xlu0 %v1812, 28
        %v2516 = vpop.permute.xlu0 %2515
        %2517 = vrot.lane.b32.xlu0 %v1814, 28
        %v2518 = vpop.permute.xlu0 %2517
        %2581 = vrot.lane.b32.xlu0 %v1280, 32
        %v2582 = vpop.permute.xlu0 %2581
        %2583 = vrot.lane.b32.xlu0 %v1282, 32
        %v2584 = vpop.permute.xlu0 %2583
        %2585 = vrot.lane.b32.xlu0 %v1285, 32
        %v2586 = vpop.permute.xlu0 %2585
        %2587 = vrot.lane.b32.xlu0 %v1287, 32
        %v2588 = vpop.permute.xlu0 %2587
        %2589 = vrot.lane.b32.xlu0 %v1290, 32
        %v2590 = vpop.permute.xlu0 %2589
        %2591 = vrot.lane.b32.xlu0 %v1292, 32
        %v2592 = vpop.permute.xlu0 %2591
        %2593 = vrot.lane.b32.xlu0 %v1295, 32
        %v2594 = vpop.permute.xlu0 %2593
        %2595 = vrot.lane.b32.xlu0 %v1297, 32
        %v2596 = vpop.permute.xlu0 %2595
        %2597 = vrot.lane.b32.xlu0 %v1300, 32
        %v2598 = vpop.permute.xlu0 %2597
        %2599 = vrot.lane.b32.xlu0 %v1302, 32
        %v2600 = vpop.permute.xlu0 %2599
        %2601 = vrot.lane.b32.xlu0 %v1305, 32
        %v2602 = vpop.permute.xlu0 %2601
        %2603 = vrot.lane.b32.xlu0 %v1307, 32
        %v2604 = vpop.permute.xlu0 %2603
        %2605 = vrot.lane.b32.xlu0 %v1310, 32
        %v2606 = vpop.permute.xlu0 %2605
        %2607 = vrot.lane.b32.xlu0 %v1312, 32
        %v2608 = vpop.permute.xlu0 %2607
        %2609 = vrot.lane.b32.xlu0 %v1315, 32
        %v2610 = vpop.permute.xlu0 %2609
        %2611 = vrot.lane.b32.xlu0 %v1317, 32
        %v2612 = vpop.permute.xlu0 %2611
        %2613 = vrot.lane.b32.xlu0 %v1320, 32
        %v2614 = vpop.permute.xlu0 %2613
        %2615 = vrot.lane.b32.xlu0 %v1322, 32
        %v2616 = vpop.permute.xlu0 %2615
        %2617 = vrot.lane.b32.xlu0 %v1325, 32
        %v2618 = vpop.permute.xlu0 %2617
        %2619 = vrot.lane.b32.xlu0 %v1327, 32
        %v2620 = vpop.permute.xlu0 %2619
        %2621 = vrot.lane.b32.xlu0 %v1330, 32
        %v2622 = vpop.permute.xlu0 %2621
        %2623 = vrot.lane.b32.xlu0 %v1332, 32
        %v2624 = vpop.permute.xlu0 %2623
        %2625 = vrot.lane.b32.xlu0 %v1335, 32
        %v2626 = vpop.permute.xlu0 %2625
        %2627 = vrot.lane.b32.xlu0 %v1337, 32
        %v2628 = vpop.permute.xlu0 %2627
        %2629 = vrot.lane.b32.xlu0 %v1340, 32
        %v2630 = vpop.permute.xlu0 %2629
        %2631 = vrot.lane.b32.xlu0 %v1342, 32
        %v2632 = vpop.permute.xlu0 %2631
        %2633 = vrot.lane.b32.xlu0 %v1345, 32
        %v2634 = vpop.permute.xlu0 %2633
        %2635 = vrot.lane.b32.xlu0 %v1347, 32
        %v2636 = vpop.permute.xlu0 %2635
        %2637 = vrot.lane.b32.xlu0 %v2009, 32
        %v2638 = vpop.permute.xlu0 %2637
        %2639 = vrot.lane.b32.xlu0 %v2011, 32
        %v2640 = vpop.permute.xlu0 %2639
        %2641 = vrot.lane.b32.xlu0 %v1270, 32
        %v2642 = vpop.permute.xlu0 %2641
        %2643 = vrot.lane.b32.xlu0 %v1272, 32
        %v2644 = vpop.permute.xlu0 %2643
        %2645 = vrot.lane.b32.xlu0 %v1355, 32
        %v2646 = vpop.permute.xlu0 %2645
        %2647 = vrot.lane.b32.xlu0 %v1357, 32
        %v2648 = vpop.permute.xlu0 %2647
        %2649 = vrot.lane.b32.xlu0 %v1360, 32
        %v2650 = vpop.permute.xlu0 %2649
        %2651 = vrot.lane.b32.xlu0 %v1362, 32
        %v2652 = vpop.permute.xlu0 %2651
        %2653 = vrot.lane.b32.xlu0 %v1365, 32
        %v2654 = vpop.permute.xlu0 %2653
        %2655 = vrot.lane.b32.xlu0 %v1367, 32
        %v2656 = vpop.permute.xlu0 %2655
        %2657 = vrot.lane.b32.xlu0 %v1370, 32
        %v2658 = vpop.permute.xlu0 %2657
        %2659 = vrot.lane.b32.xlu0 %v1372, 32
        %v2660 = vpop.permute.xlu0 %2659
        %2661 = vrot.lane.b32.xlu0 %v1375, 32
        %v2662 = vpop.permute.xlu0 %2661
        %2663 = vrot.lane.b32.xlu0 %v1377, 32
        %v2664 = vpop.permute.xlu0 %2663
        %2665 = vrot.lane.b32.xlu0 %v1380, 32
        %v2666 = vpop.permute.xlu0 %2665
        %2667 = vrot.lane.b32.xlu0 %v1382, 32
        %v2668 = vpop.permute.xlu0 %2667
        %2669 = vrot.lane.b32.xlu0 %v1385, 32
        %v2670 = vpop.permute.xlu0 %2669
        %2671 = vrot.lane.b32.xlu0 %v1387, 32
        %v2672 = vpop.permute.xlu0 %2671
        %2673 = vrot.lane.b32.xlu0 %v1390, 32
        %v2674 = vpop.permute.xlu0 %2673
        %2675 = vrot.lane.b32.xlu0 %v1392, 32
        %v2676 = vpop.permute.xlu0 %2675
        %2677 = vrot.lane.b32.xlu0 %v1395, 32
        %v2678 = vpop.permute.xlu0 %2677
        %2679 = vrot.lane.b32.xlu0 %v1397, 32
        %v2680 = vpop.permute.xlu0 %2679
        %2681 = vrot.lane.b32.xlu0 %v1400, 32
        %v2682 = vpop.permute.xlu0 %2681
        %2683 = vrot.lane.b32.xlu0 %v1402, 32
        %v2684 = vpop.permute.xlu0 %2683
        %2685 = vrot.lane.b32.xlu0 %v1405, 32
        %v2686 = vpop.permute.xlu0 %2685
        %2687 = vrot.lane.b32.xlu0 %v1407, 32
        %v2688 = vpop.permute.xlu0 %2687
        %2689 = vrot.lane.b32.xlu0 %v1410, 32
        %v2690 = vpop.permute.xlu0 %2689
        %2691 = vrot.lane.b32.xlu0 %v1412, 32
        %v2692 = vpop.permute.xlu0 %2691
        %2693 = vrot.lane.b32.xlu0 %v1415, 32
        %v2694 = vpop.permute.xlu0 %2693
        %2695 = vrot.lane.b32.xlu0 %v1417, 32
        %v2696 = vpop.permute.xlu0 %2695
        %2697 = vrot.lane.b32.xlu0 %v1420, 32
        %v2698 = vpop.permute.xlu0 %2697
        %2699 = vrot.lane.b32.xlu0 %v1422, 32
        %v2700 = vpop.permute.xlu0 %2699
        %2701 = vrot.lane.b32.xlu0 %v2014, 32
        %v2702 = vpop.permute.xlu0 %2701
        %2703 = vrot.lane.b32.xlu0 %v2016, 32
        %v2704 = vpop.permute.xlu0 %2703
        %vm2767 = vcmask 31744
        %v2768 = vsel %vm2767, %v797, %v1082
        %v2769 = vsel %vm2767, %v604, %v1084
        %v2770 = vsel %vm2767, %v798, %v1086
        %v2771 = vsel %vm2767, %v607, %v1088
        %v2772 = vsel %vm2767, %v799, %v1090
        %v2773 = vsel %vm2767, %v610, %v1092
        %v2774 = vsel %vm2767, %v800, %v1094
        %v2775 = vsel %vm2767, %v613, %v1096
        %v2776 = vsel %vm2767, %v801, %v1098
        %v2777 = vsel %vm2767, %v616, %v1100
        %v2778 = vsel %vm2767, %v802, %v1102
        %v2779 = vsel %vm2767, %v619, %v1104
        %v2780 = vsel %vm2767, %v803, %v1106
        %v2781 = vsel %vm2767, %v622, %v1108
        %v2782 = vsel %vm2767, %v804, %v1110
        %v2783 = vsel %vm2767, %v625, %v1112
        %v2784 = vsel %vm2767, %v805, %v1114
        %v2785 = vsel %vm2767, %v628, %v1116
        %v2786 = vsel %vm2767, %v806, %v1118
        %v2787 = vsel %vm2767, %v631, %v1120
        %v2788 = vsel %vm2767, %v807, %v1122
        %v2789 = vsel %vm2767, %v634, %v1124
        %v2790 = vsel %vm2767, %v808, %v1126
        %v2791 = vsel %vm2767, %v637, %v1128
        %v2792 = vsel %vm2767, %v809, %v1130
        %v2793 = vsel %vm2767, %v640, %v1132
        %v2794 = vsel %vm2767, %v810, %v1134
        %v2795 = vsel %vm2767, %v643, %v1136
        %v2796 = vsel %vm2767, %v811, %v1138
        %v2797 = vsel %vm2767, %v646, %v1140
        %v2798 = vsel %vm2767, %v812, %v1142
        %v2799 = vsel %vm2767, %v649, %v1144
        %v2800 = vsel %vm2767, %v814, %v1146
        %v2801 = vsel %vm2767, %v655, %v1148
        %v2802 = vsel %vm2767, %v815, %v1150
        %v2803 = vsel %vm2767, %v658, %v1152
        %v2804 = vsel %vm2767, %v816, %v1154
        %v2805 = vsel %vm2767, %v661, %v1156
        %v2806 = vsel %vm2767, %v817, %v1158
        %v2807 = vsel %vm2767, %v664, %v1160
        %v2808 = vsel %vm2767, %v818, %v1162
        %v2809 = vsel %vm2767, %v667, %v1164
        %v2810 = vsel %vm2767, %v819, %v1166
        %v2811 = vsel %vm2767, %v670, %v1168
        %v2812 = vsel %vm2767, %v820, %v1170
        %v2813 = vsel %vm2767, %v673, %v1172
        %v2814 = vsel %vm2767, %v821, %v1174
        %v2815 = vsel %vm2767, %v676, %v1176
        %v2816 = vsel %vm2767, %v822, %v1178
        %v2817 = vsel %vm2767, %v679, %v1180
        %v2818 = vsel %vm2767, %v823, %v1182
        %v2819 = vsel %vm2767, %v682, %v1184
        %v2820 = vsel %vm2767, %v824, %v1186
        %v2821 = vsel %vm2767, %v685, %v1188
        %v2822 = vsel %vm2767, %v825, %v1190
        %v2823 = vsel %vm2767, %v688, %v1192
        %v2824 = vsel %vm2767, %v826, %v1194
        %v2825 = vsel %vm2767, %v691, %v1196
        %v2826 = vsel %vm2767, %v827, %v1198
        %v2827 = vsel %vm2767, %v694, %v1200
        %v2828 = vsel %vm2767, %v828, %v1202
        %v2829 = vsel %vm2767, %v697, %v1204
        %vm2830 = vcmask 64512
        %v2831 = vsel %vm2830, %v2768, %v1424
        %v2832 = vsel %vm2830, %v2769, %v1426
        %v2833 = vsel %vm2830, %v2770, %v1428
        %v2834 = vsel %vm2830, %v2771, %v1430
        %v2835 = vsel %vm2830, %v2772, %v1432
        %v2836 = vsel %vm2830, %v2773, %v1434
        %v2837 = vsel %vm2830, %v2774, %v1436
        %v2838 = vsel %vm2830, %v2775, %v1438
        %v2839 = vsel %vm2830, %v2776, %v1440
        %v2840 = vsel %vm2830, %v2777, %v1442
        %v2841 = vsel %vm2830, %v2778, %v1444
        %v2842 = vsel %vm2830, %v2779, %v1446
        %v2843 = vsel %vm2830, %v2780, %v1448
        %v2844 = vsel %vm2830, %v2781, %v1450
        %v2845 = vsel %vm2830, %v2782, %v1452
        %v2846 = vsel %vm2830, %v2783, %v1454
        %v2847 = vsel %vm2830, %v2784, %v1456
        %v2848 = vsel %vm2830, %v2785, %v1458
        %v2849 = vsel %vm2830, %v2786, %v1460
        %v2850 = vsel %vm2830, %v2787, %v1462
        %v2851 = vsel %vm2830, %v2788, %v1464
        %v2852 = vsel %vm2830, %v2789, %v1466
        %v2853 = vsel %vm2830, %v2790, %v1468
        %v2854 = vsel %vm2830, %v2791, %v1470
        %v2855 = vsel %vm2830, %v2792, %v1472
        %v2856 = vsel %vm2830, %v2793, %v1474
        %v2857 = vsel %vm2830, %v2794, %v1476
        %v2858 = vsel %vm2830, %v2795, %v1478
        %v2859 = vsel %vm2830, %v2796, %v1480
        %v2860 = vsel %vm2830, %v2797, %v1482
        %v2861 = vsel %vm2830, %v2798, %v1484
        %v2862 = vsel %vm2830, %v2799, %v1486
        %v2863 = vsel %vm2830, %v2800, %v1488
        %v2864 = vsel %vm2830, %v2801, %v1490
        %v2865 = vsel %vm2830, %v2802, %v1492
        %v2866 = vsel %vm2830, %v2803, %v1494
        %v2867 = vsel %vm2830, %v2804, %v1496
        %v2868 = vsel %vm2830, %v2805, %v1498
        %v2869 = vsel %vm2830, %v2806, %v1500
        %v2870 = vsel %vm2830, %v2807, %v1502
        %v2871 = vsel %vm2830, %v2808, %v1504
        %v2872 = vsel %vm2830, %v2809, %v1506
        %v2873 = vsel %vm2830, %v2810, %v1508
        %v2874 = vsel %vm2830, %v2811, %v1510
        %v2875 = vsel %vm2830, %v2812, %v1512
        %v2876 = vsel %vm2830, %v2813, %v1514
        %v2877 = vsel %vm2830, %v2814, %v1516
        %v2878 = vsel %vm2830, %v2815, %v1518
        %v2879 = vsel %vm2830, %v2816, %v1520
        %v2880 = vsel %vm2830, %v2817, %v1522
        %v2881 = vsel %vm2830, %v2818, %v1524
        %v2882 = vsel %vm2830, %v2819, %v1526
        %v2883 = vsel %vm2830, %v2820, %v1528
        %v2884 = vsel %vm2830, %v2821, %v1530
        %v2885 = vsel %vm2830, %v2822, %v1532
        %v2886 = vsel %vm2830, %v2823, %v1534
        %v2887 = vsel %vm2830, %v2824, %v1536
        %v2888 = vsel %vm2830, %v2825, %v1538
        %v2889 = vsel %vm2830, %v2826, %v1540
        %v2890 = vsel %vm2830, %v2827, %v1542
        %v2891 = vsel %vm2830, %v2828, %v1544
        %v2892 = vsel %vm2830, %v2829, %v1546
        %vm2893 = vcmask 97280
        %v2894 = vsel %vm2893, %v2831, %v1612
        %v2895 = vsel %vm2893, %v2832, %v1614
        %v2896 = vsel %vm2893, %v2833, %v1616
        %v2897 = vsel %vm2893, %v2834, %v1618
        %v2898 = vsel %vm2893, %v2835, %v1620
        %v2899 = vsel %vm2893, %v2836, %v1622
        %v2900 = vsel %vm2893, %v2837, %v1624
        %v2901 = vsel %vm2893, %v2838, %v1626
        %v2902 = vsel %vm2893, %v2839, %v1628
        %v2903 = vsel %vm2893, %v2840, %v1630
        %v2904 = vsel %vm2893, %v2841, %v1632
        %v2905 = vsel %vm2893, %v2842, %v1634
        %v2906 = vsel %vm2893, %v2843, %v1636
        %v2907 = vsel %vm2893, %v2844, %v1638
        %v2908 = vsel %vm2893, %v2845, %v1640
        %v2909 = vsel %vm2893, %v2846, %v1642
        %v2910 = vsel %vm2893, %v2847, %v1644
        %v2911 = vsel %vm2893, %v2848, %v1646
        %v2912 = vsel %vm2893, %v2849, %v1648
        %v2913 = vsel %vm2893, %v2850, %v1650
        %v2914 = vsel %vm2893, %v2851, %v1652
        %v2915 = vsel %vm2893, %v2852, %v1654
        %v2916 = vsel %vm2893, %v2853, %v1656
        %v2917 = vsel %vm2893, %v2854, %v1658
        %v2918 = vsel %vm2893, %v2855, %v1660
        %v2919 = vsel %vm2893, %v2856, %v1662
        %v2920 = vsel %vm2893, %v2857, %v1664
        %v2921 = vsel %vm2893, %v2858, %v1666
        %v2922 = vsel %vm2893, %v2859, %v1668
        %v2923 = vsel %vm2893, %v2860, %v1670
        %v2924 = vsel %vm2893, %v2861, %v1672
        %v2925 = vsel %vm2893, %v2862, %v1674
        %v2926 = vsel %vm2893, %v2831, %v1676
        %v2927 = vsel %vm2893, %v2832, %v1678
        %v2928 = vsel %vm2893, %v2863, %v1680
        %v2929 = vsel %vm2893, %v2864, %v1682
        %v2930 = vsel %vm2893, %v2865, %v1684
        %v2931 = vsel %vm2893, %v2866, %v1686
        %v2932 = vsel %vm2893, %v2867, %v1688
        %v2933 = vsel %vm2893, %v2868, %v1690
        %v2934 = vsel %vm2893, %v2869, %v1692
        %v2935 = vsel %vm2893, %v2870, %v1694
        %v2936 = vsel %vm2893, %v2871, %v1696
        %v2937 = vsel %vm2893, %v2872, %v1698
        %v2938 = vsel %vm2893, %v2873, %v1700
        %v2939 = vsel %vm2893, %v2874, %v1702
        %v2940 = vsel %vm2893, %v2875, %v1704
        %v2941 = vsel %vm2893, %v2876, %v1706
        %v2942 = vsel %vm2893, %v2877, %v1708
        %v2943 = vsel %vm2893, %v2878, %v1710
        %v2944 = vsel %vm2893, %v2879, %v1712
        %v2945 = vsel %vm2893, %v2880, %v1714
        %v2946 = vsel %vm2893, %v2881, %v1716
        %v2947 = vsel %vm2893, %v2882, %v1718
        %v2948 = vsel %vm2893, %v2883, %v1720
        %v2949 = vsel %vm2893, %v2884, %v1722
        %v2950 = vsel %vm2893, %v2885, %v1724
        %v2951 = vsel %vm2893, %v2886, %v1726
        %v2952 = vsel %vm2893, %v2887, %v1728
        %v2953 = vsel %vm2893, %v2888, %v1730
        %v2954 = vsel %vm2893, %v2889, %v1732
        %v2955 = vsel %vm2893, %v2890, %v1734
        %v2956 = vsel %vm2893, %v2891, %v1736
        %v2957 = vsel %vm2893, %v2892, %v1738
        %vm2958 = vcmask 130048
        %v2959 = vsel %vm2958, %v2894, %v1816
        %v2960 = vsel %vm2958, %v2895, %v1818
        %v2961 = vsel %vm2958, %v2896, %v1820
        %v2962 = vsel %vm2958, %v2897, %v1822
        %v2963 = vsel %vm2958, %v2898, %v1824
        %v2964 = vsel %vm2958, %v2899, %v1826
        %v2965 = vsel %vm2958, %v2900, %v1828
        %v2966 = vsel %vm2958, %v2901, %v1830
        %v2967 = vsel %vm2958, %v2902, %v1832
        %v2968 = vsel %vm2958, %v2903, %v1834
        %v2969 = vsel %vm2958, %v2904, %v1836
        %v2970 = vsel %vm2958, %v2905, %v1838
        %v2971 = vsel %vm2958, %v2906, %v1840
        %v2972 = vsel %vm2958, %v2907, %v1842
        %v2973 = vsel %vm2958, %v2908, %v1844
        %v2974 = vsel %vm2958, %v2909, %v1846
        %v2975 = vsel %vm2958, %v2910, %v1848
        %v2976 = vsel %vm2958, %v2911, %v1850
        %v2977 = vsel %vm2958, %v2912, %v1852
        %v2978 = vsel %vm2958, %v2913, %v1854
        %v2979 = vsel %vm2958, %v2914, %v1856
        %v2980 = vsel %vm2958, %v2915, %v1858
        %v2981 = vsel %vm2958, %v2916, %v1860
        %v2982 = vsel %vm2958, %v2917, %v1862
        %v2983 = vsel %vm2958, %v2918, %v1864
        %v2984 = vsel %vm2958, %v2919, %v1866
        %v2985 = vsel %vm2958, %v2920, %v1868
        %v2986 = vsel %vm2958, %v2921, %v1870
        %v2987 = vsel %vm2958, %v2922, %v1872
        %v2988 = vsel %vm2958, %v2923, %v1874
        %v2989 = vsel %vm2958, %v2924, %v1876
        %v2990 = vsel %vm2958, %v2925, %v1878
        %v2991 = vsel %vm2958, %v2926, %v1880
        %v2992 = vsel %vm2958, %v2927, %v1882
        %v2993 = vsel %vm2958, %v2928, %v1884
        %v2994 = vsel %vm2958, %v2929, %v1886
        %v2995 = vsel %vm2958, %v2930, %v1888
        %v2996 = vsel %vm2958, %v2931, %v1890
        %v2997 = vsel %vm2958, %v2932, %v1892
        %v2998 = vsel %vm2958, %v2933, %v1894
        %v2999 = vsel %vm2958, %v2934, %v1896
        %v3000 = vsel %vm2958, %v2935, %v1898
        %v3001 = vsel %vm2958, %v2936, %v1900
        %v3002 = vsel %vm2958, %v2937, %v1902
        %v3003 = vsel %vm2958, %v2938, %v1904
        %v3004 = vsel %vm2958, %v2939, %v1906
        %v3005 = vsel %vm2958, %v2940, %v1908
        %v3006 = vsel %vm2958, %v2941, %v1910
        %v3007 = vsel %vm2958, %v2942, %v1912
        %v3008 = vsel %vm2958, %v2943, %v1914
        %v3009 = vsel %vm2958, %v2944, %v1916
        %v3010 = vsel %vm2958, %v2945, %v1918
        %v3011 = vsel %vm2958, %v2946, %v1920
        %v3012 = vsel %vm2958, %v2947, %v1922
        %v3013 = vsel %vm2958, %v2948, %v1924
        %v3014 = vsel %vm2958, %v2949, %v1926
        %v3015 = vsel %vm2958, %v2950, %v1928
        %v3016 = vsel %vm2958, %v2951, %v1930
        %v3017 = vsel %vm2958, %v2952, %v1932
        %v3018 = vsel %vm2958, %v2953, %v1934
        %v3019 = vsel %vm2958, %v2954, %v1936
        %v3020 = vsel %vm2958, %v2955, %v1938
        %v3021 = vsel %vm2958, %v2956, %v1940
        %v3022 = vsel %vm2958, %v2957, %v1942
        %vm3023 = vcmask 162816
        %v3024 = vsel %vm3023, %v2959, %v2018
        %v3025 = vsel %vm3023, %v2960, %v2020
        %v3026 = vsel %vm3023, %v2961, %v2022
        %v3027 = vsel %vm3023, %v2962, %v2024
        %v3028 = vsel %vm3023, %v2963, %v2026
        %v3029 = vsel %vm3023, %v2964, %v2028
        %v3030 = vsel %vm3023, %v2965, %v2030
        %v3031 = vsel %vm3023, %v2966, %v2032
        %v3032 = vsel %vm3023, %v2967, %v2034
        %v3033 = vsel %vm3023, %v2968, %v2036
        %v3034 = vsel %vm3023, %v2969, %v2038
        %v3035 = vsel %vm3023, %v2970, %v2040
        %v3036 = vsel %vm3023, %v2971, %v2042
        %v3037 = vsel %vm3023, %v2972, %v2044
        %v3038 = vsel %vm3023, %v2973, %v2046
        %v3039 = vsel %vm3023, %v2974, %v2048
        %v3040 = vsel %vm3023, %v2975, %v2050
        %v3041 = vsel %vm3023, %v2976, %v2052
        %v3042 = vsel %vm3023, %v2977, %v2054
        %v3043 = vsel %vm3023, %v2978, %v2056
        %v3044 = vsel %vm3023, %v2979, %v2058
        %v3045 = vsel %vm3023, %v2980, %v2060
        %v3046 = vsel %vm3023, %v2981, %v2062
        %v3047 = vsel %vm3023, %v2982, %v2064
        %v3048 = vsel %vm3023, %v2983, %v2066
        %v3049 = vsel %vm3023, %v2984, %v2068
        %v3050 = vsel %vm3023, %v2985, %v2070
        %v3051 = vsel %vm3023, %v2986, %v2072
        %v3052 = vsel %vm3023, %v2987, %v2074
        %v3053 = vsel %vm3023, %v2988, %v2076
        %v3054 = vsel %vm3023, %v2989, %v2078
        %v3055 = vsel %vm3023, %v2990, %v2080
        %v3056 = vsel %vm3023, %v2991, %v2082
        %v3057 = vsel %vm3023, %v2992, %v2084
        %v3058 = vsel %vm3023, %v2993, %v2086
        %v3059 = vsel %vm3023, %v2994, %v2088
        %v3060 = vsel %vm3023, %v2995, %v2090
        %v3061 = vsel %vm3023, %v2996, %v2092
        %v3062 = vsel %vm3023, %v2997, %v2094
        %v3063 = vsel %vm3023, %v2998, %v2096
        %v3064 = vsel %vm3023, %v2999, %v2098
        %v3065 = vsel %vm3023, %v3000, %v2100
        %v3066 = vsel %vm3023, %v3001, %v2102
        %v3067 = vsel %vm3023, %v3002, %v2104
        %v3068 = vsel %vm3023, %v3003, %v2106
        %v3069 = vsel %vm3023, %v3004, %v2108
        %v3070 = vsel %vm3023, %v3005, %v2110
        %v3071 = vsel %vm3023, %v3006, %v2112
        %v3072 = vsel %vm3023, %v3007, %v2114
        %v3073 = vsel %vm3023, %v3008, %v2116
        %v3074 = vsel %vm3023, %v3009, %v2118
        %v3075 = vsel %vm3023, %v3010, %v2120
        %v3076 = vsel %vm3023, %v3011, %v2122
        %v3077 = vsel %vm3023, %v3012, %v2124
        %v3078 = vsel %vm3023, %v3013, %v2126
        %v3079 = vsel %vm3023, %v3014, %v2128
        %v3080 = vsel %vm3023, %v3015, %v2130
        %v3081 = vsel %vm3023, %v3016, %v2132
        %v3082 = vsel %vm3023, %v3017, %v2134
        %v3083 = vsel %vm3023, %v3018, %v2136
        %v3084 = vsel %vm3023, %v3019, %v2138
        %v3085 = vsel %vm3023, %v3020, %v2140
        %v3086 = vsel %vm3023, %v3021, %v2142
        %v3087 = vsel %vm3023, %v3022, %v2144
        %vm3088 = vcmask 195584
        %v3089 = vsel %vm3088, %v3024, %v2210
        %v3090 = vsel %vm3088, %v3025, %v2212
        %v3091 = vsel %vm3088, %v3026, %v2214
        %v3092 = vsel %vm3088, %v3027, %v2216
        %v3093 = vsel %vm3088, %v3028, %v2218
        %v3094 = vsel %vm3088, %v3029, %v2220
        %v3095 = vsel %vm3088, %v3030, %v2222
        %v3096 = vsel %vm3088, %v3031, %v2224
        %v3097 = vsel %vm3088, %v3032, %v2226
        %v3098 = vsel %vm3088, %v3033, %v2228
        %v3099 = vsel %vm3088, %v3034, %v2230
        %v3100 = vsel %vm3088, %v3035, %v2232
        %v3101 = vsel %vm3088, %v3036, %v2234
        %v3102 = vsel %vm3088, %v3037, %v2236
        %v3103 = vsel %vm3088, %v3038, %v2238
        %v3104 = vsel %vm3088, %v3039, %v2240
        %v3105 = vsel %vm3088, %v3040, %v2242
        %v3106 = vsel %vm3088, %v3041, %v2244
        %v3107 = vsel %vm3088, %v3042, %v2246
        %v3108 = vsel %vm3088, %v3043, %v2248
        %v3109 = vsel %vm3088, %v3044, %v2250
        %v3110 = vsel %vm3088, %v3045, %v2252
        %v3111 = vsel %vm3088, %v3046, %v2254
        %v3112 = vsel %vm3088, %v3047, %v2256
        %v3113 = vsel %vm3088, %v3048, %v2258
        %v3114 = vsel %vm3088, %v3049, %v2260
        %v3115 = vsel %vm3088, %v3050, %v2262
        %v3116 = vsel %vm3088, %v3051, %v2264
        %v3117 = vsel %vm3088, %v3052, %v2266
        %v3118 = vsel %vm3088, %v3053, %v2268
        %v3119 = vsel %vm3088, %v3054, %v2270
        %v3120 = vsel %vm3088, %v3055, %v2272
        %v3121 = vsel %vm3088, %v3056, %v2274
        %v3122 = vsel %vm3088, %v3057, %v2276
        %v3123 = vsel %vm3088, %v3058, %v2278
        %v3124 = vsel %vm3088, %v3059, %v2280
        %v3125 = vsel %vm3088, %v3060, %v2282
        %v3126 = vsel %vm3088, %v3061, %v2284
        %v3127 = vsel %vm3088, %v3062, %v2286
        %v3128 = vsel %vm3088, %v3063, %v2288
        %v3129 = vsel %vm3088, %v3064, %v2290
        %v3130 = vsel %vm3088, %v3065, %v2292
        %v3131 = vsel %vm3088, %v3066, %v2294
        %v3132 = vsel %vm3088, %v3067, %v2296
        %v3133 = vsel %vm3088, %v3068, %v2298
        %v3134 = vsel %vm3088, %v3069, %v2300
        %v3135 = vsel %vm3088, %v3070, %v2302
        %v3136 = vsel %vm3088, %v3071, %v2304
        %v3137 = vsel %vm3088, %v3072, %v2306
        %v3138 = vsel %vm3088, %v3073, %v2308
        %v3139 = vsel %vm3088, %v3074, %v2310
        %v3140 = vsel %vm3088, %v3075, %v2312
        %v3141 = vsel %vm3088, %v3076, %v2314
        %v3142 = vsel %vm3088, %v3077, %v2316
        %v3143 = vsel %vm3088, %v3078, %v2318
        %v3144 = vsel %vm3088, %v3079, %v2320
        %v3145 = vsel %vm3088, %v3080, %v2322
        %v3146 = vsel %vm3088, %v3081, %v2324
        %v3147 = vsel %vm3088, %v3082, %v2326
        %v3148 = vsel %vm3088, %v3083, %v2328
        %v3149 = vsel %vm3088, %v3084, %v2330
        %v3150 = vsel %vm3088, %v3085, %v2332
        %v3151 = vsel %vm3088, %v3086, %v2270
        %v3152 = vsel %vm3088, %v3087, %v2272
        %vm3153 = vcmask 228352
        %v3154 = vsel %vm3153, %v3089, %v2396
        %v3155 = vsel %vm3153, %v3090, %v2398
        %v3156 = vsel %vm3153, %v3091, %v2400
        %v3157 = vsel %vm3153, %v3092, %v2402
        %v3158 = vsel %vm3153, %v3093, %v2404
        %v3159 = vsel %vm3153, %v3094, %v2406
        %v3160 = vsel %vm3153, %v3095, %v2408
        %v3161 = vsel %vm3153, %v3096, %v2410
        %v3162 = vsel %vm3153, %v3097, %v2412
        %v3163 = vsel %vm3153, %v3098, %v2414
        %v3164 = vsel %vm3153, %v3099, %v2416
        %v3165 = vsel %vm3153, %v3100, %v2418
        %v3166 = vsel %vm3153, %v3101, %v2420
        %v3167 = vsel %vm3153, %v3102, %v2422
        %v3168 = vsel %vm3153, %v3103, %v2424
        %v3169 = vsel %vm3153, %v3104, %v2426
        %v3170 = vsel %vm3153, %v3105, %v2428
        %v3171 = vsel %vm3153, %v3106, %v2430
        %v3172 = vsel %vm3153, %v3107, %v2432
        %v3173 = vsel %vm3153, %v3108, %v2434
        %v3174 = vsel %vm3153, %v3109, %v2436
        %v3175 = vsel %vm3153, %v3110, %v2438
        %v3176 = vsel %vm3153, %v3111, %v2440
        %v3177 = vsel %vm3153, %v3112, %v2442
        %v3178 = vsel %vm3153, %v3113, %v2444
        %v3179 = vsel %vm3153, %v3114, %v2446
        %v3180 = vsel %vm3153, %v3115, %v2448
        %v3181 = vsel %vm3153, %v3116, %v2450
        %v3182 = vsel %vm3153, %v3117, %v2452
        %v3183 = vsel %vm3153, %v3118, %v2454
        %v3184 = vsel %vm3153, %v3119, %v2456
        %v3185 = vsel %vm3153, %v3120, %v2458
        %v3186 = vsel %vm3153, %v3121, %v2460
        %v3187 = vsel %vm3153, %v3122, %v2462
        %v3188 = vsel %vm3153, %v3123, %v2464
        %v3189 = vsel %vm3153, %v3124, %v2466
        %v3190 = vsel %vm3153, %v3125, %v2468
        %v3191 = vsel %vm3153, %v3126, %v2470
        %v3192 = vsel %vm3153, %v3127, %v2472
        %v3193 = vsel %vm3153, %v3128, %v2474
        %v3194 = vsel %vm3153, %v3129, %v2476
        %v3195 = vsel %vm3153, %v3130, %v2478
        %v3196 = vsel %vm3153, %v3131, %v2480
        %v3197 = vsel %vm3153, %v3132, %v2482
        %v3198 = vsel %vm3153, %v3133, %v2484
        %v3199 = vsel %vm3153, %v3134, %v2486
        %v3200 = vsel %vm3153, %v3135, %v2488
        %v3201 = vsel %vm3153, %v3136, %v2490
        %v3202 = vsel %vm3153, %v3137, %v2492
        %v3203 = vsel %vm3153, %v3138, %v2494
        %v3204 = vsel %vm3153, %v3139, %v2496
        %v3205 = vsel %vm3153, %v3140, %v2498
        %v3206 = vsel %vm3153, %v3141, %v2500
        %v3207 = vsel %vm3153, %v3142, %v2502
        %v3208 = vsel %vm3153, %v3143, %v2504
        %v3209 = vsel %vm3153, %v3144, %v2506
        %v3210 = vsel %vm3153, %v3145, %v2508
        %v3211 = vsel %vm3153, %v3146, %v2510
        %v3212 = vsel %vm3153, %v3147, %v2512
        %v3213 = vsel %vm3153, %v3148, %v2514
        %v3214 = vsel %vm3153, %v3149, %v2516
        %v3215 = vsel %vm3153, %v3150, %v2518
        %v3216 = vsel %vm3153, %v3151, %v2456
        %v3217 = vsel %vm3153, %v3152, %v2458
        %vm3218 = vcmask 261120
        %v3219 = vsel %vm3218, %v3154, %v2582
        %v3220 = vsel %vm3218, %v3155, %v2584
        %v3221 = vsel %vm3218, %v3156, %v2586
        %v3222 = vsel %vm3218, %v3157, %v2588
        %v3223 = vsel %vm3218, %v3158, %v2590
        %v3224 = vsel %vm3218, %v3159, %v2592
        %v3225 = vsel %vm3218, %v3160, %v2594
        %v3226 = vsel %vm3218, %v3161, %v2596
        %v3227 = vsel %vm3218, %v3162, %v2598
        %v3228 = vsel %vm3218, %v3163, %v2600
        %v3229 = vsel %vm3218, %v3164, %v2602
        %v3230 = vsel %vm3218, %v3165, %v2604
        %v3231 = vsel %vm3218, %v3166, %v2606
        %v3232 = vsel %vm3218, %v3167, %v2608
        %v3233 = vsel %vm3218, %v3168, %v2610
        %v3234 = vsel %vm3218, %v3169, %v2612
        %v3235 = vsel %vm3218, %v3170, %v2614
        %v3236 = vsel %vm3218, %v3171, %v2616
        %v3237 = vsel %vm3218, %v3172, %v2618
        %v3238 = vsel %vm3218, %v3173, %v2620
        %v3239 = vsel %vm3218, %v3174, %v2622
        %v3240 = vsel %vm3218, %v3175, %v2624
        %v3241 = vsel %vm3218, %v3176, %v2626
        %v3242 = vsel %vm3218, %v3177, %v2628
        %v3243 = vsel %vm3218, %v3178, %v2630
        %v3244 = vsel %vm3218, %v3179, %v2632
        %v3245 = vsel %vm3218, %v3180, %v2634
        %v3246 = vsel %vm3218, %v3181, %v2636
        %v3247 = vsel %vm3218, %v3182, %v2638
        %v3248 = vsel %vm3218, %v3183, %v2640
        %v3249 = vsel %vm3218, %v3184, %v2642
        %v3250 = vsel %vm3218, %v3185, %v2644
        %v3251 = vsel %vm3218, %v3186, %v2646
        %v3252 = vsel %vm3218, %v3187, %v2648
        %v3253 = vsel %vm3218, %v3188, %v2650
        %v3254 = vsel %vm3218, %v3189, %v2652
        %v3255 = vsel %vm3218, %v3190, %v2654
        %v3256 = vsel %vm3218, %v3191, %v2656
        %v3257 = vsel %vm3218, %v3192, %v2658
        %v3258 = vsel %vm3218, %v3193, %v2660
        %v3259 = vsel %vm3218, %v3194, %v2662
        %v3260 = vsel %vm3218, %v3195, %v2664
        %v3261 = vsel %vm3218, %v3196, %v2666
        %v3262 = vsel %vm3218, %v3197, %v2668
        %v3263 = vsel %vm3218, %v3198, %v2670
        %v3264 = vsel %vm3218, %v3199, %v2672
        %v3265 = vsel %vm3218, %v3200, %v2674
        %v3266 = vsel %vm3218, %v3201, %v2676
        %v3267 = vsel %vm3218, %v3202, %v2678
        %v3268 = vsel %vm3218, %v3203, %v2680
        %v3269 = vsel %vm3218, %v3204, %v2682
        %v3270 = vsel %vm3218, %v3205, %v2684
        %v3271 = vsel %vm3218, %v3206, %v2686
        %v3272 = vsel %vm3218, %v3207, %v2688
        %v3273 = vsel %vm3218, %v3208, %v2690
        %v3274 = vsel %vm3218, %v3209, %v2692
        %v3275 = vsel %vm3218, %v3210, %v2694
        %v3276 = vsel %vm3218, %v3211, %v2696
        %v3277 = vsel %vm3218, %v3212, %v2698
        %v3278 = vsel %vm3218, %v3213, %v2700
        %v3279 = vsel %vm3218, %v3214, %v2702
        %v3280 = vsel %vm3218, %v3215, %v2704
        %v3281 = vsel %vm3218, %v3216, %v2642
        %v3282 = vsel %vm3218, %v3217, %v2644
        %v3283 = vpack.c.bf16 %v3220, %v3219
        %v3284 = vpack.c.bf16 %v3222, %v3221
        %v3285 = vpack.c.bf16 %v3224, %v3223
        %v3286 = vpack.c.bf16 %v3226, %v3225
        %v3287 = vpack.c.bf16 %v3228, %v3227
        %v3288 = vpack.c.bf16 %v3230, %v3229
        %v3289 = vpack.c.bf16 %v3232, %v3231
        %v3290 = vpack.c.bf16 %v3234, %v3233
        %v3291 = vpack.c.bf16 %v3236, %v3235
        %v3292 = vpack.c.bf16 %v3238, %v3237
        %v3293 = vpack.c.bf16 %v3240, %v3239
        %v3294 = vpack.c.bf16 %v3242, %v3241
        %v3295 = vpack.c.bf16 %v3244, %v3243
        %v3296 = vpack.c.bf16 %v3246, %v3245
        %v3297 = vpack.c.bf16 %v3248, %v3247
        %v3298 = vpack.c.bf16 %v3250, %v3249
        %v3299 = vpack.c.bf16 %v3252, %v3251
        %v3300 = vpack.c.bf16 %v3254, %v3253
        %v3301 = vpack.c.bf16 %v3256, %v3255
        %v3302 = vpack.c.bf16 %v3258, %v3257
        %v3303 = vpack.c.bf16 %v3260, %v3259
        %v3304 = vpack.c.bf16 %v3262, %v3261
        %v3305 = vpack.c.bf16 %v3264, %v3263
        %v3306 = vpack.c.bf16 %v3266, %v3265
        %v3307 = vpack.c.bf16 %v3268, %v3267
        %v3308 = vpack.c.bf16 %v3270, %v3269
        %v3309 = vpack.c.bf16 %v3272, %v3271
        %v3310 = vpack.c.bf16 %v3274, %v3273
        %v3311 = vpack.c.bf16 %v3276, %v3275
        %v3312 = vpack.c.bf16 %v3278, %v3277
        %v3313 = vpack.c.bf16 %v3280, %v3279
        %v3314 = vpack.c.bf16 %v3282, %v3281
        %v3315 = vld [vmem:[%s1] sm:$0xf]
        %v3316 = vld [vmem:[%s1 + $0x4] sm:$0xf]
        %v3317 = vld [vmem:[%s1 + $0x8] sm:$0xf]
        %v3318 = vld [vmem:[%s1 + $0xc] sm:$0xf]
        %v3319 = vld [vmem:[%s1 + $0x10] sm:$0x3]
        %v3325 = vunpack.c.l.b16 %v3315
        %v3326 = vunpack.c.l.b16 %v3316
        %v3327 = vunpack.c.l.b16 %v3317
        %v3328 = vunpack.c.l.b16 %v3318
        %v3329 = vunpack.c.l.b16 %v3319
        %v3330 = vpack.c.b16 %v3326, %v3325
        %v3331 = vpack.c.b16 %v3328, %v3327
        %v3332 = vpack.c.b16 %v3329, %v3329
        %vm3335 = vcmask 293888
        %v3337 = vsel %vm3335, %v3283, 0
        %v3340 = vsel %vm3335, %v3284, 0
        %v3343 = vsel %vm3335, %v3285, 0
        %v3346 = vsel %vm3335, %v3286, 0
        %v3349 = vsel %vm3335, %v3287, 0
        %v3352 = vsel %vm3335, %v3288, 0
        %v3355 = vsel %vm3335, %v3289, 0
        %v3358 = vsel %vm3335, %v3290, 0
        %v3361 = vsel %vm3335, %v3291, 0
        %v3364 = vsel %vm3335, %v3292, 0
        %v3367 = vsel %vm3335, %v3293, 0
        %v3370 = vsel %vm3335, %v3294, 0
        %v3373 = vsel %vm3335, %v3295, 0
        %v3376 = vsel %vm3335, %v3296, 0
        %v3379 = vsel %vm3335, %v3297, 0
        %v3382 = vsel %vm3335, %v3298, 0
        %v3385 = vsel %vm3335, %v3299, 0
        %v3388 = vsel %vm3335, %v3300, 0
        %v3391 = vsel %vm3335, %v3301, 0
        %v3394 = vsel %vm3335, %v3302, 0
        %v3397 = vsel %vm3335, %v3303, 0
        %v3400 = vsel %vm3335, %v3304, 0
        %v3403 = vsel %vm3335, %v3305, 0
        %v3406 = vsel %vm3335, %v3306, 0
        %v3409 = vsel %vm3335, %v3307, 0
        %v3412 = vsel %vm3335, %v3308, 0
        %v3415 = vsel %vm3335, %v3309, 0
        %v3418 = vsel %vm3335, %v3310, 0
        %v3421 = vsel %vm3335, %v3311, 0
        %v3424 = vsel %vm3335, %v3312, 0
        %v3427 = vsel %vm3335, %v3313, 0
        %v3430 = vsel %vm3335, %v3314, 0
        %vm3432 = vcmask 1041408
        %v3434 = vsel %vm3432, %v3332, 0
        %3436 = vmatprep.subr.bf16.mxu0 0
        %3437 = vmatpush1.bf16.msra.mxu0 %v3330
        %3438 = vmatprep.subr.bf16.mxu0 0
        %3439 = vmatpush1.bf16.msra.mxu0 %v3331
        %3440 = vmatprep.subr.bf16.mxu0 0
        %3441 = vmatpush1.bf16.msra.mxu0 %v3434
        %3442 = vmatprep.subr.bf16.mxu0 0
        %3443 = vmatpush1.bf16.msra.mxu0 0
        %3444 = vmatprep.subr.bf16.mxu0 0
        %3445 = vmatpush1.bf16.msra.mxu0 0
        %3446 = vmatprep.subr.bf16.mxu0 0
        %3447 = vmatpush1.bf16.msra.mxu0 0
        %3448 = vmatprep.subr.bf16.mxu0 0
        %3449 = vmatpush1.bf16.msra.mxu0 0
        %3450 = vmatprep.subr.bf16.mxu0 0
        %3451 = vmatpush1.bf16.msra.mxu0 0
        %3452 = vmatprep.subr.bf16.mxu0 0
        %3453 = vmatpush1.bf16.msra.mxu0 0
        %3454 = vmatprep.subr.bf16.mxu0 0
        %3455 = vmatpush1.bf16.msra.mxu0 0
        %3456 = vmatprep.subr.bf16.mxu0 0
        %3457 = vmatpush1.bf16.msra.mxu0 0
        %3458 = vmatprep.subr.bf16.mxu0 0
        %3459 = vmatpush1.bf16.msra.mxu0 0
        %3460 = vmatprep.subr.bf16.mxu0 0
        %3461 = vmatpush1.bf16.msra.mxu0 0
        %3462 = vmatprep.subr.bf16.mxu0 0
        %3463 = vmatpush1.bf16.msra.mxu0 0
        %3464 = vmatprep.subr.bf16.mxu0 0
        %3465 = vmatpush1.bf16.msra.mxu0 0
        %3466 = vmatprep.subr.bf16.mxu0 0
        %3467 = vmatpush1.bf16.msra.mxu0 0
        %3468 = vmatprep.mubr.bf16.mxu0 0
        %3469 = vmatmul.mubr.bf16.gmra.mrb[0].mxu0 %v3337
        %v3470 = vpop.f32.mrb[0].mxu0
        %v3471 = vadd.f32 0.0, %v3470
        %v3472 = vpop.f32.mrb[0].mxu0
        %v3473 = vpop.f32.mrb[0].mxu0
        %v3474 = vadd.f32 0.0, %v3473
        %v3475 = vpop.f32.mrb[0].mxu0
        %3476 = vmatprep.mubr.bf16.mxu0 0
        %3477 = vmatmul.mubr.bf16.gmra.mrb[0].mxu0 %v3340
        %v3478 = vpop.f32.mrb[0].mxu0
        %v3479 = vadd.f32 0.0, %v3478
        %v3480 = vpop.f32.mrb[0].mxu0
        %v3481 = vpop.f32.mrb[0].mxu0
        %v3482 = vadd.f32 0.0, %v3481
        %v3483 = vpop.f32.mrb[0].mxu0
        %3484 = vmatprep.mubr.bf16.mxu0 0
        %3485 = vmatmul.mubr.bf16.gmra.mrb[0].mxu0 %v3343
        %v3486 = vpop.f32.mrb[0].mxu0
        %v3487 = vadd.f32 0.0, %v3486
        %v3488 = vpop.f32.mrb[0].mxu0
        %v3489 = vpop.f32.mrb[0].mxu0
        %v3490 = vadd.f32 0.0, %v3489
        %v3491 = vpop.f32.mrb[0].mxu0
        %3492 = vmatprep.mubr.bf16.mxu0 0
        %3493 = vmatmul.mubr.bf16.gmra.mrb[0].mxu0 %v3346
        %v3494 = vpop.f32.mrb[0].mxu0
        %v3495 = vadd.f32 0.0, %v3494
        %v3496 = vpop.f32.mrb[0].mxu0
        %v3497 = vpop.f32.mrb[0].mxu0
        %v3498 = vadd.f32 0.0, %v3497
        %v3499 = vpop.f32.mrb[0].mxu0
        %3500 = vmatprep.mubr.bf16.mxu0 0
        %3501 = vmatmul.mubr.bf16.gmra.mrb[0].mxu0 %v3349
        %v3502 = vpop.f32.mrb[0].mxu0
        %v3503 = vadd.f32 0.0, %v3502
        %v3504 = vpop.f32.mrb[0].mxu0
        %v3505 = vpop.f32.mrb[0].mxu0
        %v3506 = vadd.f32 0.0, %v3505
        %v3507 = vpop.f32.mrb[0].mxu0
        %3508 = vmatprep.mubr.bf16.mxu0 0
        %3509 = vmatmul.mubr.bf16.gmra.mrb[0].mxu0 %v3352
        %v3510 = vpop.f32.mrb[0].mxu0
        %v3511 = vadd.f32 0.0, %v3510
        %v3512 = vpop.f32.mrb[0].mxu0
        %v3513 = vpop.f32.mrb[0].mxu0
        %v3514 = vadd.f32 0.0, %v3513
        %v3515 = vpop.f32.mrb[0].mxu0
        %3516 = vmatprep.mubr.bf16.mxu0 0
        %3517 = vmatmul.mubr.bf16.gmra.mrb[0].mxu0 %v3355
        %v3518 = vpop.f32.mrb[0].mxu0
        %v3519 = vadd.f32 0.0, %v3518
        %v3520 = vpop.f32.mrb[0].mxu0
        %v3521 = vpop.f32.mrb[0].mxu0
        %v3522 = vadd.f32 0.0, %v3521
        %v3523 = vpop.f32.mrb[0].mxu0
        %3524 = vmatprep.mubr.bf16.mxu0 0
        %3525 = vmatmul.mubr.bf16.gmra.mrb[0].mxu0 %v3358
        %v3526 = vpop.f32.mrb[0].mxu0
        %v3527 = vadd.f32 0.0, %v3526
        %v3528 = vpop.f32.mrb[0].mxu0
        %v3529 = vpop.f32.mrb[0].mxu0
        %v3530 = vadd.f32 0.0, %v3529
        %v3531 = vpop.f32.mrb[0].mxu0
        %3532 = vmatprep.mubr.bf16.mxu0 0
        %3533 = vmatmul.mubr.bf16.gmra.mrb[0].mxu0 %v3361
        %v3534 = vpop.f32.mrb[0].mxu0
        %v3535 = vadd.f32 0.0, %v3534
        %v3536 = vpop.f32.mrb[0].mxu0
        %v3537 = vpop.f32.mrb[0].mxu0
        %v3538 = vadd.f32 0.0, %v3537
        %v3539 = vpop.f32.mrb[0].mxu0
        %3540 = vmatprep.mubr.bf16.mxu0 0
        %3541 = vmatmul.mubr.bf16.gmra.mrb[0].mxu0 %v3364
        %v3542 = vpop.f32.mrb[0].mxu0
        %v3543 = vadd.f32 0.0, %v3542
        %v3544 = vpop.f32.mrb[0].mxu0
        %v3545 = vpop.f32.mrb[0].mxu0
        %v3546 = vadd.f32 0.0, %v3545
        %v3547 = vpop.f32.mrb[0].mxu0
        %3548 = vmatprep.mubr.bf16.mxu0 0
        %3549 = vmatmul.mubr.bf16.gmra.mrb[0].mxu0 %v3367
        %v3550 = vpop.f32.mrb[0].mxu0
        %v3551 = vadd.f32 0.0, %v3550
        %v3552 = vpop.f32.mrb[0].mxu0
        %v3553 = vpop.f32.mrb[0].mxu0
        %v3554 = vadd.f32 0.0, %v3553
        %v3555 = vpop.f32.mrb[0].mxu0
        %3556 = vmatprep.mubr.bf16.mxu0 0
        %3557 = vmatmul.mubr.bf16.gmra.mrb[0].mxu0 %v3370
        %v3558 = vpop.f32.mrb[0].mxu0
        %v3559 = vadd.f32 0.0, %v3558
        %v3560 = vpop.f32.mrb[0].mxu0
        %v3561 = vpop.f32.mrb[0].mxu0
        %v3562 = vadd.f32 0.0, %v3561
        %v3563 = vpop.f32.mrb[0].mxu0
        %3564 = vmatprep.mubr.bf16.mxu0 0
        %3565 = vmatmul.mubr.bf16.gmra.mrb[0].mxu0 %v3373
        %v3566 = vpop.f32.mrb[0].mxu0
        %v3567 = vadd.f32 0.0, %v3566
        %v3568 = vpop.f32.mrb[0].mxu0
        %v3569 = vpop.f32.mrb[0].mxu0
        %v3570 = vadd.f32 0.0, %v3569
        %v3571 = vpop.f32.mrb[0].mxu0
        %3572 = vmatprep.mubr.bf16.mxu0 0
        %3573 = vmatmul.mubr.bf16.gmra.mrb[0].mxu0 %v3376
        %v3574 = vpop.f32.mrb[0].mxu0
        %v3575 = vadd.f32 0.0, %v3574
        %v3576 = vpop.f32.mrb[0].mxu0
        %v3577 = vpop.f32.mrb[0].mxu0
        %v3578 = vadd.f32 0.0, %v3577
        %v3579 = vpop.f32.mrb[0].mxu0
        %3580 = vmatprep.mubr.bf16.mxu0 0
        %3581 = vmatmul.mubr.bf16.gmra.mrb[0].mxu0 %v3379
        %v3582 = vpop.f32.mrb[0].mxu0
        %v3583 = vadd.f32 0.0, %v3582
        %v3584 = vpop.f32.mrb[0].mxu0
        %v3585 = vpop.f32.mrb[0].mxu0
        %v3586 = vadd.f32 0.0, %v3585
        %v3587 = vpop.f32.mrb[0].mxu0
        %3588 = vmatprep.mubr.bf16.mxu0 0
        %3589 = vmatmul.mubr.bf16.gmra.mrb[0].mxu0 %v3382
        %v3590 = vpop.f32.mrb[0].mxu0
        %v3591 = vadd.f32 0.0, %v3590
        %v3592 = vpop.f32.mrb[0].mxu0
        %v3593 = vpop.f32.mrb[0].mxu0
        %v3594 = vadd.f32 0.0, %v3593
        %v3595 = vpop.f32.mrb[0].mxu0
        %3596 = vmatprep.mubr.bf16.mxu0 0
        %3597 = vmatmul.mubr.bf16.gmra.mrb[0].mxu0 %v3385
        %v3598 = vpop.f32.mrb[0].mxu0
        %v3599 = vadd.f32 0.0, %v3598
        %v3600 = vpop.f32.mrb[0].mxu0
        %v3601 = vpop.f32.mrb[0].mxu0
        %v3602 = vadd.f32 0.0, %v3601
        %v3603 = vpop.f32.mrb[0].mxu0
        %3604 = vmatprep.mubr.bf16.mxu0 0
        %3605 = vmatmul.mubr.bf16.gmra.mrb[0].mxu0 %v3388
        %v3606 = vpop.f32.mrb[0].mxu0
        %v3607 = vadd.f32 0.0, %v3606
        %v3608 = vpop.f32.mrb[0].mxu0
        %v3609 = vpop.f32.mrb[0].mxu0
        %v3610 = vadd.f32 0.0, %v3609
        %v3611 = vpop.f32.mrb[0].mxu0
        %3612 = vmatprep.mubr.bf16.mxu0 0
        %3613 = vmatmul.mubr.bf16.gmra.mrb[0].mxu0 %v3391
        %v3614 = vpop.f32.mrb[0].mxu0
        %v3615 = vadd.f32 0.0, %v3614
        %v3616 = vpop.f32.mrb[0].mxu0
        %v3617 = vpop.f32.mrb[0].mxu0
        %v3618 = vadd.f32 0.0, %v3617
        %v3619 = vpop.f32.mrb[0].mxu0
        %3620 = vmatprep.mubr.bf16.mxu0 0
        %3621 = vmatmul.mubr.bf16.gmra.mrb[0].mxu0 %v3394
        %v3622 = vpop.f32.mrb[0].mxu0
        %v3623 = vadd.f32 0.0, %v3622
        %v3624 = vpop.f32.mrb[0].mxu0
        %v3625 = vpop.f32.mrb[0].mxu0
        %v3626 = vadd.f32 0.0, %v3625
        %v3627 = vpop.f32.mrb[0].mxu0
        %3628 = vmatprep.mubr.bf16.mxu0 0
        %3629 = vmatmul.mubr.bf16.gmra.mrb[0].mxu0 %v3397
        %v3630 = vpop.f32.mrb[0].mxu0
        %v3631 = vadd.f32 0.0, %v3630
        %v3632 = vpop.f32.mrb[0].mxu0
        %v3633 = vpop.f32.mrb[0].mxu0
        %v3634 = vadd.f32 0.0, %v3633
        %v3635 = vpop.f32.mrb[0].mxu0
        %3636 = vmatprep.mubr.bf16.mxu0 0
        %3637 = vmatmul.mubr.bf16.gmra.mrb[0].mxu0 %v3400
        %v3638 = vpop.f32.mrb[0].mxu0
        %v3639 = vadd.f32 0.0, %v3638
        %v3640 = vpop.f32.mrb[0].mxu0
        %v3641 = vpop.f32.mrb[0].mxu0
        %v3642 = vadd.f32 0.0, %v3641
        %v3643 = vpop.f32.mrb[0].mxu0
        %3644 = vmatprep.mubr.bf16.mxu0 0
        %3645 = vmatmul.mubr.bf16.gmra.mrb[0].mxu0 %v3403
        %v3646 = vpop.f32.mrb[0].mxu0
        %v3647 = vadd.f32 0.0, %v3646
        %v3648 = vpop.f32.mrb[0].mxu0
        %v3649 = vpop.f32.mrb[0].mxu0
        %v3650 = vadd.f32 0.0, %v3649
        %v3651 = vpop.f32.mrb[0].mxu0
        %3652 = vmatprep.mubr.bf16.mxu0 0
        %3653 = vmatmul.mubr.bf16.gmra.mrb[0].mxu0 %v3406
        %v3654 = vpop.f32.mrb[0].mxu0
        %v3655 = vadd.f32 0.0, %v3654
        %v3656 = vpop.f32.mrb[0].mxu0
        %v3657 = vpop.f32.mrb[0].mxu0
        %v3658 = vadd.f32 0.0, %v3657
        %v3659 = vpop.f32.mrb[0].mxu0
        %3660 = vmatprep.mubr.bf16.mxu0 0
        %3661 = vmatmul.mubr.bf16.gmra.mrb[0].mxu0 %v3409
        %v3662 = vpop.f32.mrb[0].mxu0
        %v3663 = vadd.f32 0.0, %v3662
        %v3664 = vpop.f32.mrb[0].mxu0
        %v3665 = vpop.f32.mrb[0].mxu0
        %v3666 = vadd.f32 0.0, %v3665
        %v3667 = vpop.f32.mrb[0].mxu0
        %3668 = vmatprep.mubr.bf16.mxu0 0
        %3669 = vmatmul.mubr.bf16.gmra.mrb[0].mxu0 %v3412
        %v3670 = vpop.f32.mrb[0].mxu0
        %v3671 = vadd.f32 0.0, %v3670
        %v3672 = vpop.f32.mrb[0].mxu0
        %v3673 = vpop.f32.mrb[0].mxu0
        %v3674 = vadd.f32 0.0, %v3673
        %v3675 = vpop.f32.mrb[0].mxu0
        %3676 = vmatprep.mubr.bf16.mxu0 0
        %3677 = vmatmul.mubr.bf16.gmra.mrb[0].mxu0 %v3415
        %v3678 = vpop.f32.mrb[0].mxu0
        %v3679 = vadd.f32 0.0, %v3678
        %v3680 = vpop.f32.mrb[0].mxu0
        %v3681 = vpop.f32.mrb[0].mxu0
        %v3682 = vadd.f32 0.0, %v3681
        %v3683 = vpop.f32.mrb[0].mxu0
        %3684 = vmatprep.mubr.bf16.mxu0 0
        %3685 = vmatmul.mubr.bf16.gmra.mrb[0].mxu0 %v3418
        %v3686 = vpop.f32.mrb[0].mxu0
        %v3687 = vadd.f32 0.0, %v3686
        %v3688 = vpop.f32.mrb[0].mxu0
        %v3689 = vpop.f32.mrb[0].mxu0
        %v3690 = vadd.f32 0.0, %v3689
        %v3691 = vpop.f32.mrb[0].mxu0
        %3692 = vmatprep.mubr.bf16.mxu0 0
        %3693 = vmatmul.mubr.bf16.gmra.mrb[0].mxu0 %v3421
        %v3694 = vpop.f32.mrb[0].mxu0
        %v3695 = vadd.f32 0.0, %v3694
        %v3696 = vpop.f32.mrb[0].mxu0
        %v3697 = vpop.f32.mrb[0].mxu0
        %v3698 = vadd.f32 0.0, %v3697
        %v3699 = vpop.f32.mrb[0].mxu0
        %3700 = vmatprep.mubr.bf16.mxu0 0
        %3701 = vmatmul.mubr.bf16.gmra.mrb[0].mxu0 %v3424
        %v3702 = vpop.f32.mrb[0].mxu0
        %v3703 = vadd.f32 0.0, %v3702
        %v3704 = vpop.f32.mrb[0].mxu0
        %v3705 = vpop.f32.mrb[0].mxu0
        %v3706 = vadd.f32 0.0, %v3705
        %v3707 = vpop.f32.mrb[0].mxu0
        %3708 = vmatprep.mubr.bf16.mxu0 0
        %3709 = vmatmul.mubr.bf16.gmra.mrb[0].mxu0 %v3427
        %v3710 = vpop.f32.mrb[0].mxu0
        %v3711 = vadd.f32 0.0, %v3710
        %v3712 = vpop.f32.mrb[0].mxu0
        %v3713 = vpop.f32.mrb[0].mxu0
        %v3714 = vadd.f32 0.0, %v3713
        %v3715 = vpop.f32.mrb[0].mxu0
        %3716 = vmatprep.mubr.bf16.mxu0 0
        %3717 = vmatmul.mubr.bf16.gmra.mrb[0].mxu0 %v3430
        %v3718 = vpop.f32.mrb[0].mxu0
        %v3719 = vadd.f32 0.0, %v3718
        %v3720 = vpop.f32.mrb[0].mxu0
        %v3721 = vpop.f32.mrb[0].mxu0
        %v3722 = vadd.f32 0.0, %v3721
        %v3723 = vpop.f32.mrb[0].mxu0
        %3724 = vdwg.mxu0
        %v3725 = vld [vmem:[%s2] sm:$0x1]
        %v3727 = vlaneseq
        %v3728 = vshrl.u32 %v3727, 7
        %v3729 = vsub.s32 0, %v3728
        %v3730 = vrot.slane %v3725, %v3729
        %v3732 = vmul.f32 %v3471, %v3730
        %v3733 = vmul.f32 %v3474, %v3730
        %v3734 = vmul.f32 %v3479, %v3730
        %v3735 = vmul.f32 %v3482, %v3730
        %v3736 = vmul.f32 %v3487, %v3730
        %v3737 = vmul.f32 %v3490, %v3730
        %v3738 = vmul.f32 %v3495, %v3730
        %v3739 = vmul.f32 %v3498, %v3730
        %v3740 = vmul.f32 %v3503, %v3730
        %v3741 = vmul.f32 %v3506, %v3730
        %v3742 = vmul.f32 %v3511, %v3730
        %v3743 = vmul.f32 %v3514, %v3730
        %v3744 = vmul.f32 %v3519, %v3730
        %v3745 = vmul.f32 %v3522, %v3730
        %v3746 = vmul.f32 %v3527, %v3730
        %v3747 = vmul.f32 %v3530, %v3730
        %v3748 = vmul.f32 %v3535, %v3730
        %v3749 = vmul.f32 %v3538, %v3730
        %v3750 = vmul.f32 %v3543, %v3730
        %v3751 = vmul.f32 %v3546, %v3730
        %v3752 = vmul.f32 %v3551, %v3730
        %v3753 = vmul.f32 %v3554, %v3730
        %v3754 = vmul.f32 %v3559, %v3730
        %v3755 = vmul.f32 %v3562, %v3730
        %v3756 = vmul.f32 %v3567, %v3730
        %v3757 = vmul.f32 %v3570, %v3730
        %v3758 = vmul.f32 %v3575, %v3730
        %v3759 = vmul.f32 %v3578, %v3730
        %v3760 = vmul.f32 %v3583, %v3730
        %v3761 = vmul.f32 %v3586, %v3730
        %v3762 = vmul.f32 %v3591, %v3730
        %v3763 = vmul.f32 %v3594, %v3730
        %v3764 = vmul.f32 %v3599, %v3730
        %v3765 = vmul.f32 %v3602, %v3730
        %v3766 = vmul.f32 %v3607, %v3730
        %v3767 = vmul.f32 %v3610, %v3730
        %v3768 = vmul.f32 %v3615, %v3730
        %v3769 = vmul.f32 %v3618, %v3730
        %v3770 = vmul.f32 %v3623, %v3730
        %v3771 = vmul.f32 %v3626, %v3730
        %v3772 = vmul.f32 %v3631, %v3730
        %v3773 = vmul.f32 %v3634, %v3730
        %v3774 = vmul.f32 %v3639, %v3730
        %v3775 = vmul.f32 %v3642, %v3730
        %v3776 = vmul.f32 %v3647, %v3730
        %v3777 = vmul.f32 %v3650, %v3730
        %v3778 = vmul.f32 %v3655, %v3730
        %v3779 = vmul.f32 %v3658, %v3730
        %v3780 = vmul.f32 %v3663, %v3730
        %v3781 = vmul.f32 %v3666, %v3730
        %v3782 = vmul.f32 %v3671, %v3730
        %v3783 = vmul.f32 %v3674, %v3730
        %v3784 = vmul.f32 %v3679, %v3730
        %v3785 = vmul.f32 %v3682, %v3730
        %v3786 = vmul.f32 %v3687, %v3730
        %v3787 = vmul.f32 %v3690, %v3730
        %v3788 = vmul.f32 %v3695, %v3730
        %v3789 = vmul.f32 %v3698, %v3730
        %v3790 = vmul.f32 %v3703, %v3730
        %v3791 = vmul.f32 %v3706, %v3730
        %v3792 = vmul.f32 %v3711, %v3730
        %v3793 = vmul.f32 %v3714, %v3730
        %v3794 = vmul.f32 %v3719, %v3730
        %v3795 = vmul.f32 %v3722, %v3730
        %v3796 = vld [vmem:[%s3] sm:$0x1]
        %v3798 = vlaneseq
        %v3799 = vshrl.u32 %v3798, 7
        %v3800 = vsub.s32 0, %v3799
        %v3801 = vrot.slane %v3796, %v3800
        %v3803 = vadd.f32 %v3732, %v3801
        %v3804 = vadd.f32 %v3733, %v3801
        %v3805 = vadd.f32 %v3734, %v3801
        %v3806 = vadd.f32 %v3735, %v3801
        %v3807 = vadd.f32 %v3736, %v3801
        %v3808 = vadd.f32 %v3737, %v3801
        %v3809 = vadd.f32 %v3738, %v3801
        %v3810 = vadd.f32 %v3739, %v3801
        %v3811 = vadd.f32 %v3740, %v3801
        %v3812 = vadd.f32 %v3741, %v3801
        %v3813 = vadd.f32 %v3742, %v3801
        %v3814 = vadd.f32 %v3743, %v3801
        %v3815 = vadd.f32 %v3744, %v3801
        %v3816 = vadd.f32 %v3745, %v3801
        %v3817 = vadd.f32 %v3746, %v3801
        %v3818 = vadd.f32 %v3747, %v3801
        %v3819 = vadd.f32 %v3748, %v3801
        %v3820 = vadd.f32 %v3749, %v3801
        %v3821 = vadd.f32 %v3750, %v3801
        %v3822 = vadd.f32 %v3751, %v3801
        %v3823 = vadd.f32 %v3752, %v3801
        %v3824 = vadd.f32 %v3753, %v3801
        %v3825 = vadd.f32 %v3754, %v3801
        %v3826 = vadd.f32 %v3755, %v3801
        %v3827 = vadd.f32 %v3756, %v3801
        %v3828 = vadd.f32 %v3757, %v3801
        %v3829 = vadd.f32 %v3758, %v3801
        %v3830 = vadd.f32 %v3759, %v3801
        %v3831 = vadd.f32 %v3760, %v3801
        %v3832 = vadd.f32 %v3761, %v3801
        %v3833 = vadd.f32 %v3762, %v3801
        %v3834 = vadd.f32 %v3763, %v3801
        %v3835 = vadd.f32 %v3764, %v3801
        %v3836 = vadd.f32 %v3765, %v3801
        %v3837 = vadd.f32 %v3766, %v3801
        %v3838 = vadd.f32 %v3767, %v3801
        %v3839 = vadd.f32 %v3768, %v3801
        %v3840 = vadd.f32 %v3769, %v3801
        %v3841 = vadd.f32 %v3770, %v3801
        %v3842 = vadd.f32 %v3771, %v3801
        %v3843 = vadd.f32 %v3772, %v3801
        %v3844 = vadd.f32 %v3773, %v3801
        %v3845 = vadd.f32 %v3774, %v3801
        %v3846 = vadd.f32 %v3775, %v3801
        %v3847 = vadd.f32 %v3776, %v3801
        %v3848 = vadd.f32 %v3777, %v3801
        %v3849 = vadd.f32 %v3778, %v3801
        %v3850 = vadd.f32 %v3779, %v3801
        %v3851 = vadd.f32 %v3780, %v3801
        %v3852 = vadd.f32 %v3781, %v3801
        %v3853 = vadd.f32 %v3782, %v3801
        %v3854 = vadd.f32 %v3783, %v3801
        %v3855 = vadd.f32 %v3784, %v3801
        %v3856 = vadd.f32 %v3785, %v3801
        %v3857 = vadd.f32 %v3786, %v3801
        %v3858 = vadd.f32 %v3787, %v3801
        %v3859 = vadd.f32 %v3788, %v3801
        %v3860 = vadd.f32 %v3789, %v3801
        %v3861 = vadd.f32 %v3790, %v3801
        %v3862 = vadd.f32 %v3791, %v3801
        %v3863 = vadd.f32 %v3792, %v3801
        %v3864 = vadd.f32 %v3793, %v3801
        %v3865 = vadd.f32 %v3794, %v3801
        %v3866 = vadd.f32 %v3795, %v3801
        %v3867 = vmax.f32 %v3803, 0.0
        %v3868 = vmax.f32 %v3804, 0.0
        %v3869 = vmax.f32 %v3805, 0.0
        %v3870 = vmax.f32 %v3806, 0.0
        %v3871 = vmax.f32 %v3807, 0.0
        %v3872 = vmax.f32 %v3808, 0.0
        %v3873 = vmax.f32 %v3809, 0.0
        %v3874 = vmax.f32 %v3810, 0.0
        %v3875 = vmax.f32 %v3811, 0.0
        %v3876 = vmax.f32 %v3812, 0.0
        %v3877 = vmax.f32 %v3813, 0.0
        %v3878 = vmax.f32 %v3814, 0.0
        %v3879 = vmax.f32 %v3815, 0.0
        %v3880 = vmax.f32 %v3816, 0.0
        %v3881 = vmax.f32 %v3817, 0.0
        %v3882 = vmax.f32 %v3818, 0.0
        %v3883 = vmax.f32 %v3819, 0.0
        %v3884 = vmax.f32 %v3820, 0.0
        %v3885 = vmax.f32 %v3821, 0.0
        %v3886 = vmax.f32 %v3822, 0.0
        %v3887 = vmax.f32 %v3823, 0.0
        %v3888 = vmax.f32 %v3824, 0.0
        %v3889 = vmax.f32 %v3825, 0.0
        %v3890 = vmax.f32 %v3826, 0.0
        %v3891 = vmax.f32 %v3827, 0.0
        %v3892 = vmax.f32 %v3828, 0.0
        %v3893 = vmax.f32 %v3829, 0.0
        %v3894 = vmax.f32 %v3830, 0.0
        %v3895 = vmax.f32 %v3831, 0.0
        %v3896 = vmax.f32 %v3832, 0.0
        %v3897 = vmax.f32 %v3833, 0.0
        %v3898 = vmax.f32 %v3834, 0.0
        %v3899 = vmax.f32 %v3835, 0.0
        %v3900 = vmax.f32 %v3836, 0.0
        %v3901 = vmax.f32 %v3837, 0.0
        %v3902 = vmax.f32 %v3838, 0.0
        %v3903 = vmax.f32 %v3839, 0.0
        %v3904 = vmax.f32 %v3840, 0.0
        %v3905 = vmax.f32 %v3841, 0.0
        %v3906 = vmax.f32 %v3842, 0.0
        %v3907 = vmax.f32 %v3843, 0.0
        %v3908 = vmax.f32 %v3844, 0.0
        %v3909 = vmax.f32 %v3845, 0.0
        %v3910 = vmax.f32 %v3846, 0.0
        %v3911 = vmax.f32 %v3847, 0.0
        %v3912 = vmax.f32 %v3848, 0.0
        %v3913 = vmax.f32 %v3849, 0.0
        %v3914 = vmax.f32 %v3850, 0.0
        %v3915 = vmax.f32 %v3851, 0.0
        %v3916 = vmax.f32 %v3852, 0.0
        %v3917 = vmax.f32 %v3853, 0.0
        %v3918 = vmax.f32 %v3854, 0.0
        %v3919 = vmax.f32 %v3855, 0.0
        %v3920 = vmax.f32 %v3856, 0.0
        %v3921 = vmax.f32 %v3857, 0.0
        %v3922 = vmax.f32 %v3858, 0.0
        %v3923 = vmax.f32 %v3859, 0.0
        %v3924 = vmax.f32 %v3860, 0.0
        %v3925 = vmax.f32 %v3861, 0.0
        %v3926 = vmax.f32 %v3862, 0.0
        %v3927 = vmax.f32 %v3863, 0.0
        %v3928 = vmax.f32 %v3864, 0.0
        %v3929 = vmax.f32 %v3865, 0.0
        %v3930 = vmax.f32 %v3866, 0.0
        %v3995 = vrot.slane %v3867, 7
        %v3996 = vrot.slane %v3868, 7
        %v3997 = vsel %vm602, %v3995, %v3996
        %v3998 = vrot.slane %v3869, 7
        %v3999 = vrot.slane %v3870, 7
        %v4000 = vsel %vm602, %v3998, %v3999
        %v4001 = vrot.slane %v3871, 7
        %v4002 = vrot.slane %v3872, 7
        %v4003 = vsel %vm602, %v4001, %v4002
        %v4004 = vrot.slane %v3873, 7
        %v4005 = vrot.slane %v3874, 7
        %v4006 = vsel %vm602, %v4004, %v4005
        %v4007 = vrot.slane %v3875, 7
        %v4008 = vrot.slane %v3876, 7
        %v4009 = vsel %vm602, %v4007, %v4008
        %v4010 = vrot.slane %v3877, 7
        %v4011 = vrot.slane %v3878, 7
        %v4012 = vsel %vm602, %v4010, %v4011
        %v4013 = vrot.slane %v3879, 7
        %v4014 = vrot.slane %v3880, 7
        %v4015 = vsel %vm602, %v4013, %v4014
        %v4016 = vrot.slane %v3881, 7
        %v4017 = vrot.slane %v3882, 7
        %v4018 = vsel %vm602, %v4016, %v4017
        %v4019 = vrot.slane %v3883, 7
        %v4020 = vrot.slane %v3884, 7
        %v4021 = vsel %vm602, %v4019, %v4020
        %v4022 = vrot.slane %v3885, 7
        %v4023 = vrot.slane %v3886, 7
        %v4024 = vsel %vm602, %v4022, %v4023
        %v4025 = vrot.slane %v3887, 7
        %v4026 = vrot.slane %v3888, 7
        %v4027 = vsel %vm602, %v4025, %v4026
        %v4028 = vrot.slane %v3889, 7
        %v4029 = vrot.slane %v3890, 7
        %v4030 = vsel %vm602, %v4028, %v4029
        %v4031 = vrot.slane %v3891, 7
        %v4032 = vrot.slane %v3892, 7
        %v4033 = vsel %vm602, %v4031, %v4032
        %v4034 = vrot.slane %v3893, 7
        %v4035 = vrot.slane %v3894, 7
        %v4036 = vsel %vm602, %v4034, %v4035
        %v4037 = vrot.slane %v3895, 7
        %v4038 = vrot.slane %v3896, 7
        %v4039 = vsel %vm602, %v4037, %v4038
        %v4040 = vrot.slane %v3897, 7
        %v4041 = vrot.slane %v3898, 7
        %v4042 = vsel %vm602, %v4040, %v4041
        %v4043 = vrot.slane %v3899, 7
        %v4044 = vrot.slane %v3900, 7
        %v4045 = vsel %vm602, %v4043, %v4044
        %v4046 = vrot.slane %v3901, 7
        %v4047 = vrot.slane %v3902, 7
        %v4048 = vsel %vm602, %v4046, %v4047
        %v4049 = vrot.slane %v3903, 7
        %v4050 = vrot.slane %v3904, 7
        %v4051 = vsel %vm602, %v4049, %v4050
        %v4052 = vrot.slane %v3905, 7
        %v4053 = vrot.slane %v3906, 7
        %v4054 = vsel %vm602, %v4052, %v4053
        %v4055 = vrot.slane %v3907, 7
        %v4056 = vrot.slane %v3908, 7
        %v4057 = vsel %vm602, %v4055, %v4056
        %v4058 = vrot.slane %v3909, 7
        %v4059 = vrot.slane %v3910, 7
        %v4060 = vsel %vm602, %v4058, %v4059
        %v4061 = vrot.slane %v3911, 7
        %v4062 = vrot.slane %v3912, 7
        %v4063 = vsel %vm602, %v4061, %v4062
        %v4064 = vrot.slane %v3913, 7
        %v4065 = vrot.slane %v3914, 7
        %v4066 = vsel %vm602, %v4064, %v4065
        %v4067 = vrot.slane %v3915, 7
        %v4068 = vrot.slane %v3916, 7
        %v4069 = vsel %vm602, %v4067, %v4068
        %v4070 = vrot.slane %v3917, 7
        %v4071 = vrot.slane %v3918, 7
        %v4072 = vsel %vm602, %v4070, %v4071
        %v4073 = vrot.slane %v3919, 7
        %v4074 = vrot.slane %v3920, 7
        %v4075 = vsel %vm602, %v4073, %v4074
        %v4076 = vrot.slane %v3921, 7
        %v4077 = vrot.slane %v3922, 7
        %v4078 = vsel %vm602, %v4076, %v4077
        %v4079 = vrot.slane %v3923, 7
        %v4080 = vrot.slane %v3924, 7
        %v4081 = vsel %vm602, %v4079, %v4080
        %v4082 = vrot.slane %v3925, 7
        %v4083 = vrot.slane %v3926, 7
        %v4084 = vsel %vm602, %v4082, %v4083
        %v4085 = vrot.slane %v3927, 7
        %v4086 = vrot.slane %v3928, 7
        %v4087 = vsel %vm602, %v4085, %v4086
        %v4088 = vrot.slane %v3929, 7
        %v4089 = vrot.slane %v3930, 7
        %v4090 = vsel %vm602, %v4088, %v4089
        %v4187 = vsel %vm602, 0.0, %v3995
        %v4188 = vsel %vm602, 0.0, %v3998
        %v4189 = vsel %vm602, 0.0, %v4001
        %v4190 = vsel %vm602, 0.0, %v4004
        %v4191 = vsel %vm602, 0.0, %v4007
        %v4192 = vsel %vm602, 0.0, %v4010
        %v4193 = vsel %vm602, 0.0, %v4013
        %v4194 = vsel %vm602, 0.0, %v4016
        %v4195 = vsel %vm602, 0.0, %v4019
        %v4196 = vsel %vm602, 0.0, %v4022
        %v4197 = vsel %vm602, 0.0, %v4025
        %v4198 = vsel %vm602, 0.0, %v4028
        %v4199 = vsel %vm602, 0.0, %v4031
        %v4200 = vsel %vm602, 0.0, %v4034
        %v4201 = vsel %vm602, 0.0, %v4037
        %v4202 = vsel %vm602, 0.0, %v4040
        %v4203 = vsel %vm602, 0.0, %v4043
        %v4204 = vsel %vm602, 0.0, %v4046
        %v4205 = vsel %vm602, 0.0, %v4049
        %v4206 = vsel %vm602, 0.0, %v4052
        %v4207 = vsel %vm602, 0.0, %v4055
        %v4208 = vsel %vm602, 0.0, %v4058
        %v4209 = vsel %vm602, 0.0, %v4061
        %v4210 = vsel %vm602, 0.0, %v4064
        %v4211 = vsel %vm602, 0.0, %v4067
        %v4212 = vsel %vm602, 0.0, %v4070
        %v4213 = vsel %vm602, 0.0, %v4073
        %v4214 = vsel %vm602, 0.0, %v4076
        %v4215 = vsel %vm602, 0.0, %v4079
        %v4216 = vsel %vm602, 0.0, %v4082
        %v4217 = vsel %vm602, 0.0, %v4085
        %v4218 = vsel %vm602, 0.0, %v4088
        %v4219 = vsel %vm602, %v3996, 0.0
        %v4220 = vsel %vm602, %v3999, 0.0
        %v4221 = vsel %vm602, %v4002, 0.0
        %v4222 = vsel %vm602, %v4005, 0.0
        %v4223 = vsel %vm602, %v4008, 0.0
        %v4224 = vsel %vm602, %v4011, 0.0
        %v4225 = vsel %vm602, %v4014, 0.0
        %v4226 = vsel %vm602, %v4017, 0.0
        %v4227 = vsel %vm602, %v4020, 0.0
        %v4228 = vsel %vm602, %v4023, 0.0
        %v4229 = vsel %vm602, %v4026, 0.0
        %v4230 = vsel %vm602, %v4029, 0.0
        %v4231 = vsel %vm602, %v4032, 0.0
        %v4232 = vsel %vm602, %v4035, 0.0
        %v4233 = vsel %vm602, %v4038, 0.0
        %v4234 = vsel %vm602, %v4041, 0.0
        %v4235 = vsel %vm602, %v4044, 0.0
        %v4236 = vsel %vm602, %v4047, 0.0
        %v4237 = vsel %vm602, %v4050, 0.0
        %v4238 = vsel %vm602, %v4053, 0.0
        %v4239 = vsel %vm602, %v4056, 0.0
        %v4240 = vsel %vm602, %v4059, 0.0
        %v4241 = vsel %vm602, %v4062, 0.0
        %v4242 = vsel %vm602, %v4065, 0.0
        %v4243 = vsel %vm602, %v4068, 0.0
        %v4244 = vsel %vm602, %v4071, 0.0
        %v4245 = vsel %vm602, %v4074, 0.0
        %v4246 = vsel %vm602, %v4077, 0.0
        %v4247 = vsel %vm602, %v4080, 0.0
        %v4248 = vsel %vm602, %v4083, 0.0
        %v4249 = vsel %vm602, %v4086, 0.0
        %v4250 = vsel %vm602, %v4089, 0.0
        %v4311 = vrot.slane %v4187, 1
        %v4312 = vrot.slane %v3997, 1
        %v4313 = vsel %vm925, %v4311, %v4312
        %v4314 = vrot.slane %v4219, 1
        %v4315 = vsel %vm925, %v4312, %v4314
        %v4316 = vrot.slane %v4188, 1
        %v4317 = vrot.slane %v4000, 1
        %v4318 = vsel %vm925, %v4316, %v4317
        %v4319 = vrot.slane %v4220, 1
        %v4320 = vsel %vm925, %v4317, %v4319
        %v4321 = vrot.slane %v4189, 1
        %v4322 = vrot.slane %v4003, 1
        %v4323 = vsel %vm925, %v4321, %v4322
        %v4324 = vrot.slane %v4221, 1
        %v4325 = vsel %vm925, %v4322, %v4324
        %v4326 = vrot.slane %v4190, 1
        %v4327 = vrot.slane %v4006, 1
        %v4328 = vsel %vm925, %v4326, %v4327
        %v4329 = vrot.slane %v4222, 1
        %v4330 = vsel %vm925, %v4327, %v4329
        %v4331 = vrot.slane %v4191, 1
        %v4332 = vrot.slane %v4009, 1
        %v4333 = vsel %vm925, %v4331, %v4332
        %v4334 = vrot.slane %v4223, 1
        %v4335 = vsel %vm925, %v4332, %v4334
        %v4336 = vrot.slane %v4192, 1
        %v4337 = vrot.slane %v4012, 1
        %v4338 = vsel %vm925, %v4336, %v4337
        %v4339 = vrot.slane %v4224, 1
        %v4340 = vsel %vm925, %v4337, %v4339
        %v4341 = vrot.slane %v4193, 1
        %v4342 = vrot.slane %v4015, 1
        %v4343 = vsel %vm925, %v4341, %v4342
        %v4344 = vrot.slane %v4225, 1
        %v4345 = vsel %vm925, %v4342, %v4344
        %v4346 = vrot.slane %v4194, 1
        %v4347 = vrot.slane %v4018, 1
        %v4348 = vsel %vm925, %v4346, %v4347
        %v4349 = vrot.slane %v4226, 1
        %v4350 = vsel %vm925, %v4347, %v4349
        %v4351 = vrot.slane %v4195, 1
        %v4352 = vrot.slane %v4021, 1
        %v4353 = vsel %vm925, %v4351, %v4352
        %v4354 = vrot.slane %v4227, 1
        %v4355 = vsel %vm925, %v4352, %v4354
        %v4356 = vrot.slane %v4196, 1
        %v4357 = vrot.slane %v4024, 1
        %v4358 = vsel %vm925, %v4356, %v4357
        %v4359 = vrot.slane %v4228, 1
        %v4360 = vsel %vm925, %v4357, %v4359
        %v4361 = vrot.slane %v4197, 1
        %v4362 = vrot.slane %v4027, 1
        %v4363 = vsel %vm925, %v4361, %v4362
        %v4364 = vrot.slane %v4229, 1
        %v4365 = vsel %vm925, %v4362, %v4364
        %v4366 = vrot.slane %v4198, 1
        %v4367 = vrot.slane %v4030, 1
        %v4368 = vsel %vm925, %v4366, %v4367
        %v4369 = vrot.slane %v4230, 1
        %v4370 = vsel %vm925, %v4367, %v4369
        %v4371 = vrot.slane %v4199, 1
        %v4372 = vrot.slane %v4033, 1
        %v4373 = vsel %vm925, %v4371, %v4372
        %v4374 = vrot.slane %v4231, 1
        %v4375 = vsel %vm925, %v4372, %v4374
        %v4376 = vrot.slane %v4200, 1
        %v4377 = vrot.slane %v4036, 1
        %v4378 = vsel %vm925, %v4376, %v4377
        %v4379 = vrot.slane %v4232, 1
        %v4380 = vsel %vm925, %v4377, %v4379
        %v4381 = vrot.slane %v4201, 1
        %v4382 = vrot.slane %v4039, 1
        %v4383 = vsel %vm925, %v4381, %v4382
        %v4384 = vrot.slane %v4233, 1
        %v4385 = vsel %vm925, %v4382, %v4384
        %v4386 = vrot.slane %v4203, 1
        %v4387 = vrot.slane %v4045, 1
        %v4388 = vsel %vm925, %v4386, %v4387
        %v4389 = vrot.slane %v4235, 1
        %v4390 = vsel %vm925, %v4387, %v4389
        %v4391 = vrot.slane %v4204, 1
        %v4392 = vrot.slane %v4048, 1
        %v4393 = vsel %vm925, %v4391, %v4392
        %v4394 = vrot.slane %v4236, 1
        %v4395 = vsel %vm925, %v4392, %v4394
        %v4396 = vrot.slane %v4205, 1
        %v4397 = vrot.slane %v4051, 1
        %v4398 = vsel %vm925, %v4396, %v4397
        %v4399 = vrot.slane %v4237, 1
        %v4400 = vsel %vm925, %v4397, %v4399
        %v4401 = vrot.slane %v4206, 1
        %v4402 = vrot.slane %v4054, 1
        %v4403 = vsel %vm925, %v4401, %v4402
        %v4404 = vrot.slane %v4238, 1
        %v4405 = vsel %vm925, %v4402, %v4404
        %v4406 = vrot.slane %v4207, 1
        %v4407 = vrot.slane %v4057, 1
        %v4408 = vsel %vm925, %v4406, %v4407
        %v4409 = vrot.slane %v4239, 1
        %v4410 = vsel %vm925, %v4407, %v4409
        %v4411 = vrot.slane %v4208, 1
        %v4412 = vrot.slane %v4060, 1
        %v4413 = vsel %vm925, %v4411, %v4412
        %v4414 = vrot.slane %v4240, 1
        %v4415 = vsel %vm925, %v4412, %v4414
        %v4416 = vrot.slane %v4209, 1
        %v4417 = vrot.slane %v4063, 1
        %v4418 = vsel %vm925, %v4416, %v4417
        %v4419 = vrot.slane %v4241, 1
        %v4420 = vsel %vm925, %v4417, %v4419
        %v4421 = vrot.slane %v4210, 1
        %v4422 = vrot.slane %v4066, 1
        %v4423 = vsel %vm925, %v4421, %v4422
        %v4424 = vrot.slane %v4242, 1
        %v4425 = vsel %vm925, %v4422, %v4424
        %v4426 = vrot.slane %v4211, 1
        %v4427 = vrot.slane %v4069, 1
        %v4428 = vsel %vm925, %v4426, %v4427
        %v4429 = vrot.slane %v4243, 1
        %v4430 = vsel %vm925, %v4427, %v4429
        %v4431 = vrot.slane %v4212, 1
        %v4432 = vrot.slane %v4072, 1
        %v4433 = vsel %vm925, %v4431, %v4432
        %v4434 = vrot.slane %v4244, 1
        %v4435 = vsel %vm925, %v4432, %v4434
        %v4436 = vrot.slane %v4213, 1
        %v4437 = vrot.slane %v4075, 1
        %v4438 = vsel %vm925, %v4436, %v4437
        %v4439 = vrot.slane %v4245, 1
        %v4440 = vsel %vm925, %v4437, %v4439
        %v4441 = vrot.slane %v4214, 1
        %v4442 = vrot.slane %v4078, 1
        %v4443 = vsel %vm925, %v4441, %v4442
        %v4444 = vrot.slane %v4246, 1
        %v4445 = vsel %vm925, %v4442, %v4444
        %v4446 = vrot.slane %v4215, 1
        %v4447 = vrot.slane %v4081, 1
        %v4448 = vsel %vm925, %v4446, %v4447
        %v4449 = vrot.slane %v4247, 1
        %v4450 = vsel %vm925, %v4447, %v4449
        %v4451 = vrot.slane %v4216, 1
        %v4452 = vrot.slane %v4084, 1
        %v4453 = vsel %vm925, %v4451, %v4452
        %v4454 = vrot.slane %v4248, 1
        %v4455 = vsel %vm925, %v4452, %v4454
        %v4456 = vrot.slane %v4217, 1
        %v4457 = vrot.slane %v4087, 1
        %v4458 = vsel %vm925, %v4456, %v4457
        %v4459 = vrot.slane %v4249, 1
        %v4460 = vsel %vm925, %v4457, %v4459
        %v4523 = vrot.slane %v4187, 2
        %v4524 = vrot.slane %v3997, 2
        %v4525 = vsel %vm1267, %v4523, %v4524
        %v4526 = vrot.slane %v4219, 2
        %v4527 = vsel %vm1267, %v4524, %v4526
        %v4528 = vrot.slane %v4188, 2
        %v4529 = vrot.slane %v4000, 2
        %v4530 = vsel %vm1267, %v4528, %v4529
        %v4531 = vrot.slane %v4220, 2
        %v4532 = vsel %vm1267, %v4529, %v4531
        %v4533 = vrot.slane %v4189, 2
        %v4534 = vrot.slane %v4003, 2
        %v4535 = vsel %vm1267, %v4533, %v4534
        %v4536 = vrot.slane %v4221, 2
        %v4537 = vsel %vm1267, %v4534, %v4536
        %v4538 = vrot.slane %v4190, 2
        %v4539 = vrot.slane %v4006, 2
        %v4540 = vsel %vm1267, %v4538, %v4539
        %v4541 = vrot.slane %v4222, 2
        %v4542 = vsel %vm1267, %v4539, %v4541
        %v4543 = vrot.slane %v4191, 2
        %v4544 = vrot.slane %v4009, 2
        %v4545 = vsel %vm1267, %v4543, %v4544
        %v4546 = vrot.slane %v4223, 2
        %v4547 = vsel %vm1267, %v4544, %v4546
        %v4548 = vrot.slane %v4192, 2
        %v4549 = vrot.slane %v4012, 2
        %v4550 = vsel %vm1267, %v4548, %v4549
        %v4551 = vrot.slane %v4224, 2
        %v4552 = vsel %vm1267, %v4549, %v4551
        %v4553 = vrot.slane %v4193, 2
        %v4554 = vrot.slane %v4015, 2
        %v4555 = vsel %vm1267, %v4553, %v4554
        %v4556 = vrot.slane %v4225, 2
        %v4557 = vsel %vm1267, %v4554, %v4556
        %v4558 = vrot.slane %v4194, 2
        %v4559 = vrot.slane %v4018, 2
        %v4560 = vsel %vm1267, %v4558, %v4559
        %v4561 = vrot.slane %v4226, 2
        %v4562 = vsel %vm1267, %v4559, %v4561
        %v4563 = vrot.slane %v4195, 2
        %v4564 = vrot.slane %v4021, 2
        %v4565 = vsel %vm1267, %v4563, %v4564
        %v4566 = vrot.slane %v4227, 2
        %v4567 = vsel %vm1267, %v4564, %v4566
        %v4568 = vrot.slane %v4196, 2
        %v4569 = vrot.slane %v4024, 2
        %v4570 = vsel %vm1267, %v4568, %v4569
        %v4571 = vrot.slane %v4228, 2
        %v4572 = vsel %vm1267, %v4569, %v4571
        %v4573 = vrot.slane %v4197, 2
        %v4574 = vrot.slane %v4027, 2
        %v4575 = vsel %vm1267, %v4573, %v4574
        %v4576 = vrot.slane %v4229, 2
        %v4577 = vsel %vm1267, %v4574, %v4576
        %v4578 = vrot.slane %v4198, 2
        %v4579 = vrot.slane %v4030, 2
        %v4580 = vsel %vm1267, %v4578, %v4579
        %v4581 = vrot.slane %v4230, 2
        %v4582 = vsel %vm1267, %v4579, %v4581
        %v4583 = vrot.slane %v4199, 2
        %v4584 = vrot.slane %v4033, 2
        %v4585 = vsel %vm1267, %v4583, %v4584
        %v4586 = vrot.slane %v4231, 2
        %v4587 = vsel %vm1267, %v4584, %v4586
        %v4588 = vrot.slane %v4200, 2
        %v4589 = vrot.slane %v4036, 2
        %v4590 = vsel %vm1267, %v4588, %v4589
        %v4591 = vrot.slane %v4232, 2
        %v4592 = vsel %vm1267, %v4589, %v4591
        %v4593 = vrot.slane %v4201, 2
        %v4594 = vrot.slane %v4039, 2
        %v4595 = vsel %vm1267, %v4593, %v4594
        %v4596 = vrot.slane %v4233, 2
        %v4597 = vsel %vm1267, %v4594, %v4596
        %v4598 = vrot.slane %v4203, 2
        %v4599 = vrot.slane %v4045, 2
        %v4600 = vsel %vm1267, %v4598, %v4599
        %v4601 = vrot.slane %v4235, 2
        %v4602 = vsel %vm1267, %v4599, %v4601
        %v4603 = vrot.slane %v4204, 2
        %v4604 = vrot.slane %v4048, 2
        %v4605 = vsel %vm1267, %v4603, %v4604
        %v4606 = vrot.slane %v4236, 2
        %v4607 = vsel %vm1267, %v4604, %v4606
        %v4608 = vrot.slane %v4205, 2
        %v4609 = vrot.slane %v4051, 2
        %v4610 = vsel %vm1267, %v4608, %v4609
        %v4611 = vrot.slane %v4237, 2
        %v4612 = vsel %vm1267, %v4609, %v4611
        %v4613 = vrot.slane %v4206, 2
        %v4614 = vrot.slane %v4054, 2
        %v4615 = vsel %vm1267, %v4613, %v4614
        %v4616 = vrot.slane %v4238, 2
        %v4617 = vsel %vm1267, %v4614, %v4616
        %v4618 = vrot.slane %v4207, 2
        %v4619 = vrot.slane %v4057, 2
        %v4620 = vsel %vm1267, %v4618, %v4619
        %v4621 = vrot.slane %v4239, 2
        %v4622 = vsel %vm1267, %v4619, %v4621
        %v4623 = vrot.slane %v4208, 2
        %v4624 = vrot.slane %v4060, 2
        %v4625 = vsel %vm1267, %v4623, %v4624
        %v4626 = vrot.slane %v4240, 2
        %v4627 = vsel %vm1267, %v4624, %v4626
        %v4628 = vrot.slane %v4209, 2
        %v4629 = vrot.slane %v4063, 2
        %v4630 = vsel %vm1267, %v4628, %v4629
        %v4631 = vrot.slane %v4241, 2
        %v4632 = vsel %vm1267, %v4629, %v4631
        %v4633 = vrot.slane %v4210, 2
        %v4634 = vrot.slane %v4066, 2
        %v4635 = vsel %vm1267, %v4633, %v4634
        %v4636 = vrot.slane %v4242, 2
        %v4637 = vsel %vm1267, %v4634, %v4636
        %v4638 = vrot.slane %v4211, 2
        %v4639 = vrot.slane %v4069, 2
        %v4640 = vsel %vm1267, %v4638, %v4639
        %v4641 = vrot.slane %v4243, 2
        %v4642 = vsel %vm1267, %v4639, %v4641
        %v4643 = vrot.slane %v4212, 2
        %v4644 = vrot.slane %v4072, 2
        %v4645 = vsel %vm1267, %v4643, %v4644
        %v4646 = vrot.slane %v4244, 2
        %v4647 = vsel %vm1267, %v4644, %v4646
        %v4648 = vrot.slane %v4213, 2
        %v4649 = vrot.slane %v4075, 2
        %v4650 = vsel %vm1267, %v4648, %v4649
        %v4651 = vrot.slane %v4245, 2
        %v4652 = vsel %vm1267, %v4649, %v4651
        %v4653 = vrot.slane %v4214, 2
        %v4654 = vrot.slane %v4078, 2
        %v4655 = vsel %vm1267, %v4653, %v4654
        %v4656 = vrot.slane %v4246, 2
        %v4657 = vsel %vm1267, %v4654, %v4656
        %v4658 = vrot.slane %v4215, 2
        %v4659 = vrot.slane %v4081, 2
        %v4660 = vsel %vm1267, %v4658, %v4659
        %v4661 = vrot.slane %v4247, 2
        %v4662 = vsel %vm1267, %v4659, %v4661
        %v4663 = vrot.slane %v4216, 2
        %v4664 = vrot.slane %v4084, 2
        %v4665 = vsel %vm1267, %v4663, %v4664
        %v4666 = vrot.slane %v4248, 2
        %v4667 = vsel %vm1267, %v4664, %v4666
        %v4668 = vrot.slane %v4217, 2
        %v4669 = vrot.slane %v4087, 2
        %v4670 = vsel %vm1267, %v4668, %v4669
        %v4671 = vrot.slane %v4249, 2
        %v4672 = vsel %vm1267, %v4669, %v4671
        %v4739 = vrot.slane %v4202, 1
        %v4740 = vrot.slane %v4042, 1
        %v4741 = vsel %vm925, %v4739, %v4740
        %v4742 = vrot.slane %v4234, 1
        %v4743 = vsel %vm925, %v4740, %v4742
        %v4744 = vrot.slane %v4218, 1
        %v4745 = vrot.slane %v4090, 1
        %v4746 = vsel %vm925, %v4744, %v4745
        %v4747 = vrot.slane %v4250, 1
        %v4748 = vsel %vm925, %v4745, %v4747
        %v4753 = vrot.slane %v4202, 2
        %v4754 = vrot.slane %v4042, 2
        %v4755 = vsel %vm1267, %v4753, %v4754
        %v4756 = vrot.slane %v4234, 2
        %v4757 = vsel %vm1267, %v4754, %v4756
        %v4758 = vrot.slane %v4218, 2
        %v4759 = vrot.slane %v4090, 2
        %v4760 = vsel %vm1267, %v4758, %v4759
        %v4761 = vrot.slane %v4250, 2
        %v4762 = vsel %vm1267, %v4759, %v4761
        %v4767 = vpack.c.bf16 %v604, %v797
        %v4768 = vpack.c.bf16 %v930, %v928
        %v4769 = vpack.c.bf16 %v1272, %v1270
        %v4770 = vpack.c.bf16 %v3997, %v4187
        %v4771 = vpack.c.bf16 %v4315, %v4313
        %v4772 = vpack.c.bf16 %v4527, %v4525
        %v4773 = vpack.c.bf16 %v4000, %v4188
        %v4774 = vpack.c.bf16 %v4320, %v4318
        %v4775 = vpack.c.bf16 %v4532, %v4530
        %v4776 = vpack.c.bf16 %v4003, %v4189
        %v4777 = vpack.c.bf16 %v4325, %v4323
        %v4778 = vpack.c.bf16 %v4537, %v4535
        %v4779 = vpack.c.bf16 %v4006, %v4190
        %v4780 = vpack.c.bf16 %v4330, %v4328
        %v4781 = vpack.c.bf16 %v4542, %v4540
        %v4782 = vpack.c.bf16 %v4009, %v4191
        %v4783 = vpack.c.bf16 %v4335, %v4333
        %v4784 = vpack.c.bf16 %v4547, %v4545
        %v4785 = vpack.c.bf16 %v4012, %v4192
        %v4786 = vpack.c.bf16 %v4340, %v4338
        %v4787 = vpack.c.bf16 %v4552, %v4550
        %v4788 = vpack.c.bf16 %v4015, %v4193
        %v4789 = vpack.c.bf16 %v4345, %v4343
        %v4790 = vpack.c.bf16 %v4557, %v4555
        %v4791 = vpack.c.bf16 %v4018, %v4194
        %v4792 = vpack.c.bf16 %v4350, %v4348
        %v4793 = vpack.c.bf16 %v4562, %v4560
        %v4794 = vpack.c.bf16 %v4021, %v4195
        %v4795 = vpack.c.bf16 %v4355, %v4353
        %v4796 = vpack.c.bf16 %v4567, %v4565
        %v4797 = vpack.c.bf16 %v4024, %v4196
        %v4798 = vpack.c.bf16 %v4360, %v4358
        %v4799 = vpack.c.bf16 %v4572, %v4570
        %v4800 = vpack.c.bf16 %v4027, %v4197
        %v4801 = vpack.c.bf16 %v4365, %v4363
        %v4802 = vpack.c.bf16 %v4577, %v4575
        %v4803 = vpack.c.bf16 %v4030, %v4198
        %v4804 = vpack.c.bf16 %v4370, %v4368
        %v4805 = vpack.c.bf16 %v4582, %v4580
        %v4806 = vpack.c.bf16 %v4033, %v4199
        %v4807 = vpack.c.bf16 %v4375, %v4373
        %v4808 = vpack.c.bf16 %v4587, %v4585
        %v4809 = vpack.c.bf16 %v4036, %v4200
        %v4810 = vpack.c.bf16 %v4380, %v4378
        %v4811 = vpack.c.bf16 %v4592, %v4590
        %v4812 = vpack.c.bf16 %v4039, %v4201
        %v4813 = vpack.c.bf16 %v4385, %v4383
        %v4814 = vpack.c.bf16 %v4597, %v4595
        %v4815 = vpack.c.bf16 %v4042, %v4202
        %v4816 = vpack.c.bf16 %v4743, %v4741
        %v4817 = vpack.c.bf16 %v4757, %v4755
        %v4818 = vpack.c.bf16 %v4045, %v4203
        %v4819 = vpack.c.bf16 %v4390, %v4388
        %v4820 = vpack.c.bf16 %v4602, %v4600
        %v4821 = vpack.c.bf16 %v4048, %v4204
        %v4822 = vpack.c.bf16 %v4395, %v4393
        %v4823 = vpack.c.bf16 %v4607, %v4605
        %v4824 = vpack.c.bf16 %v4051, %v4205
        %v4825 = vpack.c.bf16 %v4400, %v4398
        %v4826 = vpack.c.bf16 %v4612, %v4610
        %v4827 = vpack.c.bf16 %v4054, %v4206
        %v4828 = vpack.c.bf16 %v4405, %v4403
        %v4829 = vpack.c.bf16 %v4617, %v4615
        %v4830 = vpack.c.bf16 %v4057, %v4207
        %v4831 = vpack.c.bf16 %v4410, %v4408
        %v4832 = vpack.c.bf16 %v4622, %v4620
        %v4833 = vpack.c.bf16 %v4060, %v4208
        %v4834 = vpack.c.bf16 %v4415, %v4413
        %v4835 = vpack.c.bf16 %v4627, %v4625
        %v4836 = vpack.c.bf16 %v4063, %v4209
        %v4837 = vpack.c.bf16 %v4420, %v4418
        %v4838 = vpack.c.bf16 %v4632, %v4630
        %v4839 = vpack.c.bf16 %v4066, %v4210
        %v4840 = vpack.c.bf16 %v4425, %v4423
        %v4841 = vpack.c.bf16 %v4637, %v4635
        %v4842 = vpack.c.bf16 %v4069, %v4211
        %v4843 = vpack.c.bf16 %v4430, %v4428
        %v4844 = vpack.c.bf16 %v4642, %v4640
        %v4845 = vpack.c.bf16 %v4072, %v4212
        %v4846 = vpack.c.bf16 %v4435, %v4433
        %v4847 = vpack.c.bf16 %v4647, %v4645
        %v4848 = vpack.c.bf16 %v4075, %v4213
        %v4849 = vpack.c.bf16 %v4440, %v4438
        %v4850 = vpack.c.bf16 %v4652, %v4650
        %v4851 = vpack.c.bf16 %v4078, %v4214
        %v4852 = vpack.c.bf16 %v4445, %v4443
        %v4853 = vpack.c.bf16 %v4657, %v4655
        %v4854 = vpack.c.bf16 %v4081, %v4215
        %v4855 = vpack.c.bf16 %v4450, %v4448
        %v4856 = vpack.c.bf16 %v4662, %v4660
        %v4857 = vpack.c.bf16 %v4084, %v4216
        %v4858 = vpack.c.bf16 %v4455, %v4453
        %v4859 = vpack.c.bf16 %v4667, %v4665
        %v4860 = vpack.c.bf16 %v4087, %v4217
        %v4861 = vpack.c.bf16 %v4460, %v4458
        %v4862 = vpack.c.bf16 %v4672, %v4670
        %v4863 = vpack.c.bf16 %v4090, %v4218
        %v4864 = vpack.c.bf16 %v4748, %v4746
        %v4865 = vpack.c.bf16 %v4762, %v4760
        %v4866 = vld [vmem:[%s4] sm:$0xf]
        %v4867 = vld [vmem:[%s4 + $0x4] sm:$0xf]
        %v4868 = vld [vmem:[%s4 + $0x8] sm:$0xf]
        %v4869 = vld [vmem:[%s4 + $0xc] sm:$0xf]
        %v4870 = vld [vmem:[%s4 + $0x10] sm:$0xf]
        %v4871 = vld [vmem:[%s4 + $0x14] sm:$0xf]
        %v4872 = vld [vmem:[%s4 + $0x18] sm:$0xf]
        %v4873 = vld [vmem:[%s4 + $0x1c] sm:$0xf]
        %v4874 = vld [vmem:[%s4 + $0x20] sm:$0xf]
        %v4875 = vld [vmem:[%s4 + $0x24] sm:$0xf]
        %v4876 = vld [vmem:[%s4 + $0x28] sm:$0xf]
        %v4877 = vld [vmem:[%s4 + $0x2c] sm:$0xf]
        %v4878 = vld [vmem:[%s4 + $0x30] sm:$0xf]
        %v4879 = vld [vmem:[%s4 + $0x34] sm:$0xf]
        %v4880 = vld [vmem:[%s4 + $0x38] sm:$0xf]
        %v4881 = vld [vmem:[%s4 + $0x3c] sm:$0xf]
        %v4882 = vld [vmem:[%s4 + $0x40] sm:$0xf]
        %v4883 = vld [vmem:[%s4 + $0x44] sm:$0xf]
        %v4884 = vld [vmem:[%s4 + $0x48] sm:$0xf]
        %v4885 = vld [vmem:[%s4 + $0x4c] sm:$0xf]
        %v4886 = vld [vmem:[%s4 + $0x50] sm:$0xf]
        %v4887 = vld [vmem:[%s4 + $0x54] sm:$0xf]
        %v4888 = vld [vmem:[%s4 + $0x58] sm:$0xf]
        %v4889 = vld [vmem:[%s4 + $0x5c] sm:$0xf]
        %v4890 = vld [vmem:[%s4 + $0x60] sm:$0xf]
        %v4891 = vld [vmem:[%s4 + $0x64] sm:$0xf]
        %v4892 = vld [vmem:[%s4 + $0x68] sm:$0xf]
        %v4893 = vld [vmem:[%s4 + $0x6c] sm:$0xf]
        %v4894 = vld [vmem:[%s4 + $0x70] sm:$0xf]
        %v4895 = vld [vmem:[%s4 + $0x74] sm:$0xf]
        %v4896 = vld [vmem:[%s4 + $0x78] sm:$0xf]
        %v4897 = vld [vmem:[%s4 + $0x7c] sm:$0xf]
        %v4898 = vld [vmem:[%s4 + $0x80] sm:$0xf]
        %v4899 = vld [vmem:[%s4 + $0x84] sm:$0xf]
        %v4900 = vld [vmem:[%s4 + $0x88] sm:$0xf]
        %v4901 = vld [vmem:[%s4 + $0x8c] sm:$0xf]
        %v4902 = vld [vmem:[%s4 + $0x90] sm:$0xf]
        %v4903 = vld [vmem:[%s4 + $0x94] sm:$0xf]
        %v4904 = vld [vmem:[%s4 + $0x98] sm:$0xf]
        %v4905 = vld [vmem:[%s4 + $0x9c] sm:$0xf]
        %v4906 = vld [vmem:[%s4 + $0xa0] sm:$0xf]
        %v4907 = vld [vmem:[%s4 + $0xa4] sm:$0xf]
        %v4908 = vld [vmem:[%s4 + $0xa8] sm:$0xf]
        %v4909 = vld [vmem:[%s4 + $0xac] sm:$0xf]
        %v4910 = vld [vmem:[%s4 + $0xb0] sm:$0xf]
        %v4911 = vld [vmem:[%s4 + $0xb4] sm:$0xf]
        %v4912 = vld [vmem:[%s4 + $0xb8] sm:$0xf]
        %v4913 = vld [vmem:[%s4 + $0xbc] sm:$0xf]
        %v4914 = vld [vmem:[%s4 + $0xc0] sm:$0xf]
        %v4915 = vld [vmem:[%s4 + $0xc4] sm:$0xf]
        %v4916 = vld [vmem:[%s4 + $0xc8] sm:$0xf]
        %v4917 = vld [vmem:[%s4 + $0xcc] sm:$0xf]
        %v4918 = vld [vmem:[%s4 + $0xd0] sm:$0xf]
        %v4919 = vld [vmem:[%s4 + $0xd4] sm:$0xf]
        %v4920 = vld [vmem:[%s4 + $0xd8] sm:$0xf]
        %v4921 = vld [vmem:[%s4 + $0xdc] sm:$0xf]
        %v4922 = vld [vmem:[%s4 + $0xe0] sm:$0xf]
        %v4923 = vld [vmem:[%s4 + $0xe4] sm:$0xf]
        %v4924 = vld [vmem:[%s4 + $0xe8] sm:$0xf]
        %v4925 = vld [vmem:[%s4 + $0xec] sm:$0xf]
        %v4926 = vld [vmem:[%s4 + $0xf0] sm:$0xf]
        %v4927 = vld [vmem:[%s4 + $0xf4] sm:$0xf]
        %v4928 = vld [vmem:[%s4 + $0xf8] sm:$0xf]
        %v4929 = vld [vmem:[%s4 + $0xfc] sm:$0xf]
        %v4930 = vld [vmem:[%s4 + $0x100] sm:$0xf]
        %v4931 = vld [vmem:[%s4 + $0x104] sm:$0xf]
        %v4932 = vld [vmem:[%s4 + $0x108] sm:$0xf]
        %v4933 = vld [vmem:[%s4 + $0x10c] sm:$0xf]
        %v4934 = vld [vmem:[%s4 + $0x110] sm:$0xf]
        %v4935 = vld [vmem:[%s4 + $0x114] sm:$0xf]
        %v4936 = vld [vmem:[%s4 + $0x118] sm:$0xf]
        %v4937 = vld [vmem:[%s4 + $0x11c] sm:$0xf]
        %v4938 = vld [vmem:[%s4 + $0x120] sm:$0xf]
        %v4939 = vld [vmem:[%s4 + $0x124] sm:$0xf]
        %v4940 = vld [vmem:[%s4 + $0x128] sm:$0xf]
        %v4941 = vld [vmem:[%s4 + $0x12c] sm:$0xf]
        %v4942 = vld [vmem:[%s4 + $0x130] sm:$0xf]
        %v4943 = vld [vmem:[%s4 + $0x134] sm:$0xf]
        %v4944 = vld [vmem:[%s4 + $0x138] sm:$0xf]
        %v4945 = vld [vmem:[%s4 + $0x13c] sm:$0xf]
        %v4946 = vld [vmem:[%s4 + $0x140] sm:$0xf]
        %v4947 = vld [vmem:[%s4 + $0x144] sm:$0xf]
        %v4948 = vld [vmem:[%s4 + $0x148] sm:$0xf]
        %v4949 = vld [vmem:[%s4 + $0x14c] sm:$0xf]
        %v4950 = vld [vmem:[%s4 + $0x150] sm:$0xf]
        %v4951 = vld [vmem:[%s4 + $0x154] sm:$0xf]
        %v4952 = vld [vmem:[%s4 + $0x158] sm:$0xf]
        %v4953 = vld [vmem:[%s4 + $0x15c] sm:$0xf]
        %v4954 = vld [vmem:[%s4 + $0x160] sm:$0xf]
        %v4955 = vld [vmem:[%s4 + $0x164] sm:$0xf]
        %v4956 = vld [vmem:[%s4 + $0x168] sm:$0xf]
        %v4957 = vld [vmem:[%s4 + $0x16c] sm:$0xf]
        %v4958 = vld [vmem:[%s4 + $0x170] sm:$0xf]
        %v4959 = vld [vmem:[%s4 + $0x174] sm:$0xf]
        %v4960 = vld [vmem:[%s4 + $0x178] sm:$0xf]
        %v4961 = vld [vmem:[%s4 + $0x17c] sm:$0xf]
        %v4962 = vld [vmem:[%s4 + $0x180] sm:$0xf]
        %v4963 = vld [vmem:[%s4 + $0x184] sm:$0xf]
        %v4964 = vld [vmem:[%s4 + $0x188] sm:$0xf]
        %v4965 = vld [vmem:[%s4 + $0x18c] sm:$0xf]
        %v4966 = vld [vmem:[%s4 + $0x190] sm:$0xf]
        %v4967 = vld [vmem:[%s4 + $0x194] sm:$0xf]
        %v4968 = vld [vmem:[%s4 + $0x198] sm:$0xf]
        %v4969 = vld [vmem:[%s4 + $0x19c] sm:$0xf]
        %v4970 = vld [vmem:[%s4 + $0x1a0] sm:$0xf]
        %v4971 = vld [vmem:[%s4 + $0x1a4] sm:$0xf]
        %v4972 = vld [vmem:[%s4 + $0x1a8] sm:$0xf]
        %v4973 = vld [vmem:[%s4 + $0x1ac] sm:$0xf]
        %v4974 = vld [vmem:[%s4 + $0x1b0] sm:$0xf]
        %v4975 = vld [vmem:[%s4 + $0x1b4] sm:$0xf]
        %v4976 = vld [vmem:[%s4 + $0x1b8] sm:$0xf]
        %v4977 = vld [vmem:[%s4 + $0x1bc] sm:$0xf]
        %v4978 = vld [vmem:[%s4 + $0x1c0] sm:$0xf]
        %v4979 = vld [vmem:[%s4 + $0x1c4] sm:$0xf]
        %v4980 = vld [vmem:[%s4 + $0x1c8] sm:$0xf]
        %v4981 = vld [vmem:[%s4 + $0x1cc] sm:$0xf]
        %v4982 = vld [vmem:[%s4 + $0x1d0] sm:$0xf]
        %v4983 = vld [vmem:[%s4 + $0x1d4] sm:$0xf]
        %v4984 = vld [vmem:[%s4 + $0x1d8] sm:$0xf]
        %v4985 = vld [vmem:[%s4 + $0x1dc] sm:$0xf]
        %v4986 = vld [vmem:[%s4 + $0x1e0] sm:$0xf]
        %v4987 = vld [vmem:[%s4 + $0x1e4] sm:$0xf]
        %v4988 = vld [vmem:[%s4 + $0x1e8] sm:$0xf]
        %v4989 = vld [vmem:[%s4 + $0x1ec] sm:$0xf]
        %v4990 = vld [vmem:[%s4 + $0x1f0] sm:$0xf]
        %v4991 = vld [vmem:[%s4 + $0x1f4] sm:$0xf]
        %v4992 = vld [vmem:[%s4 + $0x1f8] sm:$0xf]
        %v4993 = vld [vmem:[%s4 + $0x1fc] sm:$0xf]
        %v4994 = vld [vmem:[%s4 + $0x200] sm:$0xf]
        %v4995 = vld [vmem:[%s4 + $0x204] sm:$0xf]
        %v4996 = vld [vmem:[%s4 + $0x208] sm:$0xf]
        %v4997 = vld [vmem:[%s4 + $0x20c] sm:$0xf]
        %v4998 = vld [vmem:[%s4 + $0x210] sm:$0xf]
        %v4999 = vld [vmem:[%s4 + $0x214] sm:$0xf]
        %v5000 = vld [vmem:[%s4 + $0x218] sm:$0xf]
        %v5001 = vld [vmem:[%s4 + $0x21c] sm:$0xf]
        %v5002 = vld [vmem:[%s4 + $0x220] sm:$0xf]
        %v5003 = vld [vmem:[%s4 + $0x224] sm:$0xf]
        %v5004 = vld [vmem:[%s4 + $0x228] sm:$0xf]
        %v5005 = vld [vmem:[%s4 + $0x22c] sm:$0xf]
        %v5006 = vld [vmem:[%s4 + $0x230] sm:$0xf]
        %v5007 = vld [vmem:[%s4 + $0x234] sm:$0xf]
        %v5008 = vld [vmem:[%s4 + $0x238] sm:$0xf]
        %v5009 = vld [vmem:[%s4 + $0x23c] sm:$0xf]
        %v5154 = vunpack.c.l.b16 %v4866
        %v5155 = vunpack.c.l.b16 %v4867
        %v5156 = vunpack.c.l.b16 %v4868
        %v5157 = vunpack.c.l.b16 %v4869
        %v5158 = vunpack.c.l.b16 %v4870
        %v5159 = vunpack.c.l.b16 %v4871
        %v5160 = vunpack.c.l.b16 %v4872
        %v5161 = vunpack.c.l.b16 %v4873
        %v5162 = vunpack.c.l.b16 %v4874
        %v5163 = vunpack.c.l.b16 %v4875
        %v5164 = vunpack.c.l.b16 %v4876
        %v5165 = vunpack.c.l.b16 %v4877
        %v5166 = vunpack.c.l.b16 %v4878
        %v5167 = vunpack.c.l.b16 %v4879
        %v5168 = vunpack.c.l.b16 %v4880
        %v5169 = vunpack.c.l.b16 %v4881
        %v5170 = vunpack.c.l.b16 %v4882
        %v5171 = vunpack.c.l.b16 %v4883
        %v5172 = vunpack.c.l.b16 %v4884
        %v5173 = vunpack.c.l.b16 %v4885
        %v5174 = vunpack.c.l.b16 %v4886
        %v5175 = vunpack.c.l.b16 %v4887
        %v5176 = vunpack.c.l.b16 %v4888
        %v5177 = vunpack.c.l.b16 %v4889
        %v5178 = vunpack.c.l.b16 %v4890
        %v5179 = vunpack.c.l.b16 %v4891
        %v5180 = vunpack.c.l.b16 %v4892
        %v5181 = vunpack.c.l.b16 %v4893
        %v5182 = vunpack.c.l.b16 %v4894
        %v5183 = vunpack.c.l.b16 %v4895
        %v5184 = vunpack.c.l.b16 %v4896
        %v5185 = vunpack.c.l.b16 %v4897
        %v5186 = vunpack.c.l.b16 %v4898
        %v5187 = vunpack.c.l.b16 %v4899
        %v5188 = vunpack.c.l.b16 %v4900
        %v5189 = vunpack.c.l.b16 %v4901
        %v5190 = vunpack.c.l.b16 %v4902
        %v5191 = vunpack.c.l.b16 %v4903
        %v5192 = vunpack.c.l.b16 %v4904
        %v5193 = vunpack.c.l.b16 %v4905
        %v5194 = vunpack.c.l.b16 %v4906
        %v5195 = vunpack.c.l.b16 %v4907
        %v5196 = vunpack.c.l.b16 %v4908
        %v5197 = vunpack.c.l.b16 %v4909
        %v5198 = vunpack.c.l.b16 %v4910
        %v5199 = vunpack.c.l.b16 %v4911
        %v5200 = vunpack.c.l.b16 %v4912
        %v5201 = vunpack.c.l.b16 %v4913
        %v5202 = vunpack.c.l.b16 %v4914
        %v5203 = vunpack.c.l.b16 %v4915
        %v5204 = vunpack.c.l.b16 %v4916
        %v5205 = vunpack.c.l.b16 %v4917
        %v5206 = vunpack.c.l.b16 %v4918
        %v5207 = vunpack.c.l.b16 %v4919
        %v5208 = vunpack.c.l.b16 %v4920
        %v5209 = vunpack.c.l.b16 %v4921
        %v5210 = vunpack.c.l.b16 %v4922
        %v5211 = vunpack.c.l.b16 %v4923
        %v5212 = vunpack.c.l.b16 %v4924
        %v5213 = vunpack.c.l.b16 %v4925
        %v5214 = vunpack.c.l.b16 %v4926
        %v5215 = vunpack.c.l.b16 %v4927
        %v5216 = vunpack.c.l.b16 %v4928
        %v5217 = vunpack.c.l.b16 %v4929
        %v5218 = vunpack.c.l.b16 %v4930
        %v5219 = vunpack.c.l.b16 %v4931
        %v5220 = vunpack.c.l.b16 %v4932
        %v5221 = vunpack.c.l.b16 %v4933
        %v5222 = vunpack.c.l.b16 %v4934
        %v5223 = vunpack.c.l.b16 %v4935
        %v5224 = vunpack.c.l.b16 %v4936
        %v5225 = vunpack.c.l.b16 %v4937
        %v5226 = vunpack.c.l.b16 %v4938
        %v5227 = vunpack.c.l.b16 %v4939
        %v5228 = vunpack.c.l.b16 %v4940
        %v5229 = vunpack.c.l.b16 %v4941
        %v5230 = vunpack.c.l.b16 %v4942
        %v5231 = vunpack.c.l.b16 %v4943
        %v5232 = vunpack.c.l.b16 %v4944
        %v5233 = vunpack.c.l.b16 %v4945
        %v5234 = vunpack.c.l.b16 %v4946
        %v5235 = vunpack.c.l.b16 %v4947
        %v5236 = vunpack.c.l.b16 %v4948
        %v5237 = vunpack.c.l.b16 %v4949
        %v5238 = vunpack.c.l.b16 %v4950
        %v5239 = vunpack.c.l.b16 %v4951
        %v5240 = vunpack.c.l.b16 %v4952
        %v5241 = vunpack.c.l.b16 %v4953
        %v5242 = vunpack.c.l.b16 %v4954
        %v5243 = vunpack.c.l.b16 %v4955
        %v5244 = vunpack.c.l.b16 %v4956
        %v5245 = vunpack.c.l.b16 %v4957
        %v5246 = vunpack.c.l.b16 %v4958
        %v5247 = vunpack.c.l.b16 %v4959
        %v5248 = vunpack.c.l.b16 %v4960
        %v5249 = vunpack.c.l.b16 %v4961
        %v5250 = vunpack.c.l.b16 %v4962
        %v5251 = vunpack.c.l.b16 %v4963
        %v5252 = vunpack.c.l.b16 %v4964
        %v5253 = vunpack.c.l.b16 %v4965
        %v5254 = vunpack.c.l.b16 %v4966
        %v5255 = vunpack.c.l.b16 %v4967
        %v5256 = vunpack.c.l.b16 %v4968
        %v5257 = vunpack.c.l.b16 %v4969
        %v5258 = vunpack.c.l.b16 %v4970
        %v5259 = vunpack.c.l.b16 %v4971
        %v5260 = vunpack.c.l.b16 %v4972
        %v5261 = vunpack.c.l.b16 %v4973
        %v5262 = vunpack.c.l.b16 %v4974
        %v5263 = vunpack.c.l.b16 %v4975
        %v5264 = vunpack.c.l.b16 %v4976
        %v5265 = vunpack.c.l.b16 %v4977
        %v5266 = vunpack.c.l.b16 %v4978
        %v5267 = vunpack.c.l.b16 %v4979
        %v5268 = vunpack.c.l.b16 %v4980
        %v5269 = vunpack.c.l.b16 %v4981
        %v5270 = vunpack.c.l.b16 %v4982
        %v5271 = vunpack.c.l.b16 %v4983
        %v5272 = vunpack.c.l.b16 %v4984
        %v5273 = vunpack.c.l.b16 %v4985
        %v5274 = vunpack.c.l.b16 %v4986
        %v5275 = vunpack.c.l.b16 %v4987
        %v5276 = vunpack.c.l.b16 %v4988
        %v5277 = vunpack.c.l.b16 %v4989
        %v5278 = vunpack.c.l.b16 %v4990
        %v5279 = vunpack.c.l.b16 %v4991
        %v5280 = vunpack.c.l.b16 %v4992
        %v5281 = vunpack.c.l.b16 %v4993
        %v5282 = vunpack.c.l.b16 %v4994
        %v5283 = vunpack.c.l.b16 %v4995
        %v5284 = vunpack.c.l.b16 %v4996
        %v5285 = vunpack.c.l.b16 %v4997
        %v5286 = vunpack.c.l.b16 %v4998
        %v5287 = vunpack.c.l.b16 %v4999
        %v5288 = vunpack.c.l.b16 %v5000
        %v5289 = vunpack.c.l.b16 %v5001
        %v5290 = vunpack.c.l.b16 %v5002
        %v5291 = vunpack.c.l.b16 %v5003
        %v5292 = vunpack.c.l.b16 %v5004
        %v5293 = vunpack.c.l.b16 %v5005
        %v5294 = vunpack.c.l.b16 %v5006
        %v5295 = vunpack.c.l.b16 %v5007
        %v5296 = vunpack.c.l.b16 %v5008
        %v5297 = vunpack.c.l.b16 %v5009
        %v5298 = vpack.c.b16 %v5155, %v5154
        %v5299 = vpack.c.b16 %v5157, %v5156
        %v5300 = vpack.c.b16 %v5159, %v5158
        %v5301 = vpack.c.b16 %v5161, %v5160
        %v5302 = vpack.c.b16 %v5163, %v5162
        %v5303 = vpack.c.b16 %v5165, %v5164
        %v5304 = vpack.c.b16 %v5167, %v5166
        %v5305 = vpack.c.b16 %v5169, %v5168
        %v5306 = vpack.c.b16 %v5171, %v5170
        %v5307 = vpack.c.b16 %v5173, %v5172
        %v5308 = vpack.c.b16 %v5175, %v5174
        %v5309 = vpack.c.b16 %v5177, %v5176
        %v5310 = vpack.c.b16 %v5179, %v5178
        %v5311 = vpack.c.b16 %v5181, %v5180
        %v5312 = vpack.c.b16 %v5183, %v5182
        %v5313 = vpack.c.b16 %v5185, %v5184
        %v5314 = vpack.c.b16 %v5187, %v5186
        %v5315 = vpack.c.b16 %v5189, %v5188
        %v5316 = vpack.c.b16 %v5191, %v5190
        %v5317 = vpack.c.b16 %v5193, %v5192
        %v5318 = vpack.c.b16 %v5195, %v5194
        %v5319 = vpack.c.b16 %v5197, %v5196
        %v5320 = vpack.c.b16 %v5199, %v5198
        %v5321 = vpack.c.b16 %v5201, %v5200
        %v5322 = vpack.c.b16 %v5203, %v5202
        %v5323 = vpack.c.b16 %v5205, %v5204
        %v5324 = vpack.c.b16 %v5207, %v5206
        %v5325 = vpack.c.b16 %v5209, %v5208
        %v5326 = vpack.c.b16 %v5211, %v5210
        %v5327 = vpack.c.b16 %v5213, %v5212
        %v5328 = vpack.c.b16 %v5215, %v5214
        %v5329 = vpack.c.b16 %v5217, %v5216
        %v5330 = vpack.c.b16 %v5219, %v5218
        %v5331 = vpack.c.b16 %v5221, %v5220
        %v5332 = vpack.c.b16 %v5223, %v5222
        %v5333 = vpack.c.b16 %v5225, %v5224
        %v5334 = vpack.c.b16 %v5227, %v5226
        %v5335 = vpack.c.b16 %v5229, %v5228
        %v5336 = vpack.c.b16 %v5231, %v5230
        %v5337 = vpack.c.b16 %v5233, %v5232
        %v5338 = vpack.c.b16 %v5235, %v5234
        %v5339 = vpack.c.b16 %v5237, %v5236
        %v5340 = vpack.c.b16 %v5239, %v5238
        %v5341 = vpack.c.b16 %v5241, %v5240
        %v5342 = vpack.c.b16 %v5243, %v5242
        %v5343 = vpack.c.b16 %v5245, %v5244
        %v5344 = vpack.c.b16 %v5247, %v5246
        %v5345 = vpack.c.b16 %v5249, %v5248
        %v5346 = vpack.c.b16 %v5251, %v5250
        %v5347 = vpack.c.b16 %v5253, %v5252
        %v5348 = vpack.c.b16 %v5255, %v5254
        %v5349 = vpack.c.b16 %v5257, %v5256
        %v5350 = vpack.c.b16 %v5259, %v5258
        %v5351 = vpack.c.b16 %v5261, %v5260
        %v5352 = vpack.c.b16 %v5263, %v5262
        %v5353 = vpack.c.b16 %v5265, %v5264
        %v5354 = vpack.c.b16 %v5267, %v5266
        %v5355 = vpack.c.b16 %v5269, %v5268
        %v5356 = vpack.c.b16 %v5271, %v5270
        %v5357 = vpack.c.b16 %v5273, %v5272
        %v5358 = vpack.c.b16 %v5275, %v5274
        %v5359 = vpack.c.b16 %v5277, %v5276
        %v5360 = vpack.c.b16 %v5279, %v5278
        %v5361 = vpack.c.b16 %v5281, %v5280
        %v5362 = vpack.c.b16 %v5283, %v5282
        %v5363 = vpack.c.b16 %v5285, %v5284
        %v5364 = vpack.c.b16 %v5287, %v5286
        %v5365 = vpack.c.b16 %v5289, %v5288
        %v5366 = vpack.c.b16 %v5291, %v5290
        %v5367 = vpack.c.b16 %v5293, %v5292
        %v5368 = vpack.c.b16 %v5295, %v5294
        %v5369 = vpack.c.b16 %v5297, %v5296
        %5442 = vmatprep.subr.bf16.mxu0 0
        %5443 = vmatpush1.bf16.msra.mxu0 %v5298
        %5444 = vmatprep.subr.bf16.mxu0 0
        %5445 = vmatpush1.bf16.msra.mxu0 %v5299
        %5446 = vmatprep.subr.bf16.mxu0 0
        %5447 = vmatpush1.bf16.msra.mxu0 %v5300
        %5448 = vmatprep.subr.bf16.mxu0 0
        %5449 = vmatpush1.bf16.msra.mxu0 %v5301
        %5450 = vmatprep.subr.bf16.mxu0 0
        %5451 = vmatpush1.bf16.msra.mxu0 %v5302
        %5452 = vmatprep.subr.bf16.mxu0 0
        %5453 = vmatpush1.bf16.msra.mxu0 %v5303
        %5454 = vmatprep.subr.bf16.mxu0 0
        %5455 = vmatpush1.bf16.msra.mxu0 %v5304
        %5456 = vmatprep.subr.bf16.mxu0 0
        %5457 = vmatpush1.bf16.msra.mxu0 %v5305
        %5458 = vmatprep.subr.bf16.mxu0 0
        %5459 = vmatpush1.bf16.msra.mxu0 %v5306
        %5460 = vmatprep.subr.bf16.mxu0 0
        %5461 = vmatpush1.bf16.msra.mxu0 %v5307
        %5462 = vmatprep.subr.bf16.mxu0 0
        %5463 = vmatpush1.bf16.msra.mxu0 %v5308
        %5464 = vmatprep.subr.bf16.mxu0 0
        %5465 = vmatpush1.bf16.msra.mxu0 %v5309
        %5466 = vmatprep.subr.bf16.mxu0 0
        %5467 = vmatpush1.bf16.msra.mxu0 %v5310
        %5468 = vmatprep.subr.bf16.mxu0 0
        %5469 = vmatpush1.bf16.msra.mxu0 %v5311
        %5470 = vmatprep.subr.bf16.mxu0 0
        %5471 = vmatpush1.bf16.msra.mxu0 %v5312
        %5472 = vmatprep.subr.bf16.mxu0 0
        %5473 = vmatpush1.bf16.msra.mxu0 %v5313
        %5474 = vmatprep.mubr.bf16.mxu0 %v4768
        %5475 = vmatmul.mubr.bf16.gmra.mrb[0].mxu0 %v4767
        %v5476 = vpop.f32.mrb[0].mxu0
        %v5477 = vadd.f32 0.0, %v5476
        %v5478 = vpop.f32.mrb[0].mxu0
        %v5479 = vpop.f32.mrb[0].mxu0
        %v5480 = vadd.f32 0.0, %v5479
        %v5481 = vpop.f32.mrb[0].mxu0
        %5482 = vmatprep.mubr.bf16.mxu0 %v4771
        %5483 = vmatmul.mubr.bf16.gmra.mrb[0].mxu0 %v4770
        %v5484 = vpop.f32.mrb[0].mxu0
        %v5485 = vadd.f32 0.0, %v5484
        %v5486 = vpop.f32.mrb[0].mxu0
        %v5487 = vpop.f32.mrb[0].mxu0
        %v5488 = vadd.f32 0.0, %v5487
        %v5489 = vpop.f32.mrb[0].mxu0
        %5490 = vmatprep.mubr.bf16.mxu0 %v4774
        %5491 = vmatmul.mubr.bf16.gmra.mrb[0].mxu0 %v4773
        %v5492 = vpop.f32.mrb[0].mxu0
        %v5493 = vadd.f32 0.0, %v5492
        %v5494 = vpop.f32.mrb[0].mxu0
        %v5495 = vpop.f32.mrb[0].mxu0
        %v5496 = vadd.f32 0.0, %v5495
        %v5497 = vpop.f32.mrb[0].mxu0
        %5498 = vmatprep.mubr.bf16.mxu0 %v4777
        %5499 = vmatmul.mubr.bf16.gmra.mrb[0].mxu0 %v4776
        %v5500 = vpop.f32.mrb[0].mxu0
        %v5501 = vadd.f32 0.0, %v5500
        %v5502 = vpop.f32.mrb[0].mxu0
        %v5503 = vpop.f32.mrb[0].mxu0
        %v5504 = vadd.f32 0.0, %v5503
        %v5505 = vpop.f32.mrb[0].mxu0
        %5506 = vmatprep.mubr.bf16.mxu0 %v4780
        %5507 = vmatmul.mubr.bf16.gmra.mrb[0].mxu0 %v4779
        %v5508 = vpop.f32.mrb[0].mxu0
        %v5509 = vadd.f32 0.0, %v5508
        %v5510 = vpop.f32.mrb[0].mxu0
        %v5511 = vpop.f32.mrb[0].mxu0
        %v5512 = vadd.f32 0.0, %v5511
        %v5513 = vpop.f32.mrb[0].mxu0
        %5514 = vmatprep.mubr.bf16.mxu0 %v4783
        %5515 = vmatmul.mubr.bf16.gmra.mrb[0].mxu0 %v4782
        %v5516 = vpop.f32.mrb[0].mxu0
        %v5517 = vadd.f32 0.0, %v5516
        %v5518 = vpop.f32.mrb[0].mxu0
        %v5519 = vpop.f32.mrb[0].mxu0
        %v5520 = vadd.f32 0.0, %v5519
        %v5521 = vpop.f32.mrb[0].mxu0
        %5522 = vmatprep.mubr.bf16.mxu0 %v4786
        %5523 = vmatmul.mubr.bf16.gmra.mrb[0].mxu0 %v4785
        %v5524 = vpop.f32.mrb[0].mxu0
        %v5525 = vadd.f32 0.0, %v5524
        %v5526 = vpop.f32.mrb[0].mxu0
        %v5527 = vpop.f32.mrb[0].mxu0
        %v5528 = vadd.f32 0.0, %v5527
        %v5529 = vpop.f32.mrb[0].mxu0
        %5530 = vmatprep.mubr.bf16.mxu0 %v4789
        %5531 = vmatmul.mubr.bf16.gmra.mrb[0].mxu0 %v4788
        %v5532 = vpop.f32.mrb[0].mxu0
        %v5533 = vadd.f32 0.0, %v5532
        %v5534 = vpop.f32.mrb[0].mxu0
        %v5535 = vpop.f32.mrb[0].mxu0
        %v5536 = vadd.f32 0.0, %v5535
        %v5537 = vpop.f32.mrb[0].mxu0
        %5538 = vmatprep.mubr.bf16.mxu0 %v4792
        %5539 = vmatmul.mubr.bf16.gmra.mrb[0].mxu0 %v4791
        %v5540 = vpop.f32.mrb[0].mxu0
        %v5541 = vadd.f32 0.0, %v5540
        %v5542 = vpop.f32.mrb[0].mxu0
        %v5543 = vpop.f32.mrb[0].mxu0
        %v5544 = vadd.f32 0.0, %v5543
        %v5545 = vpop.f32.mrb[0].mxu0
        %5546 = vmatprep.mubr.bf16.mxu0 %v4795
        %5547 = vmatmul.mubr.bf16.gmra.mrb[0].mxu0 %v4794
        %v5548 = vpop.f32.mrb[0].mxu0
        %v5549 = vadd.f32 0.0, %v5548
        %v5550 = vpop.f32.mrb[0].mxu0
        %v5551 = vpop.f32.mrb[0].mxu0
        %v5552 = vadd.f32 0.0, %v5551
        %v5553 = vpop.f32.mrb[0].mxu0
        %5554 = vmatprep.mubr.bf16.mxu0 %v4798
        %5555 = vmatmul.mubr.bf16.gmra.mrb[0].mxu0 %v4797
        %v5556 = vpop.f32.mrb[0].mxu0
        %v5557 = vadd.f32 0.0, %v5556
        %v5558 = vpop.f32.mrb[0].mxu0
        %v5559 = vpop.f32.mrb[0].mxu0
        %v5560 = vadd.f32 0.0, %v5559
        %v5561 = vpop.f32.mrb[0].mxu0
        %5562 = vmatprep.mubr.bf16.mxu0 %v4801
        %5563 = vmatmul.mubr.bf16.gmra.mrb[0].mxu0 %v4800
        %v5564 = vpop.f32.mrb[0].mxu0
        %v5565 = vadd.f32 0.0, %v5564
        %v5566 = vpop.f32.mrb[0].mxu0
        %v5567 = vpop.f32.mrb[0].mxu0
        %v5568 = vadd.f32 0.0, %v5567
        %v5569 = vpop.f32.mrb[0].mxu0
        %5570 = vmatprep.mubr.bf16.mxu0 %v4804
        %5571 = vmatmul.mubr.bf16.gmra.mrb[0].mxu0 %v4803
        %v5572 = vpop.f32.mrb[0].mxu0
        %v5573 = vadd.f32 0.0, %v5572
        %v5574 = vpop.f32.mrb[0].mxu0
        %v5575 = vpop.f32.mrb[0].mxu0
        %v5576 = vadd.f32 0.0, %v5575
        %v5577 = vpop.f32.mrb[0].mxu0
        %5578 = vmatprep.mubr.bf16.mxu0 %v4807
        %5579 = vmatmul.mubr.bf16.gmra.mrb[0].mxu0 %v4806
        %v5580 = vpop.f32.mrb[0].mxu0
        %v5581 = vadd.f32 0.0, %v5580
        %v5582 = vpop.f32.mrb[0].mxu0
        %v5583 = vpop.f32.mrb[0].mxu0
        %v5584 = vadd.f32 0.0, %v5583
        %v5585 = vpop.f32.mrb[0].mxu0
        %5586 = vmatprep.mubr.bf16.mxu0 %v4810
        %5587 = vmatmul.mubr.bf16.gmra.mrb[0].mxu0 %v4809
        %v5588 = vpop.f32.mrb[0].mxu0
        %v5589 = vadd.f32 0.0, %v5588
        %v5590 = vpop.f32.mrb[0].mxu0
        %v5591 = vpop.f32.mrb[0].mxu0
        %v5592 = vadd.f32 0.0, %v5591
        %v5593 = vpop.f32.mrb[0].mxu0
        %5594 = vmatprep.mubr.bf16.mxu0 %v4813
        %5595 = vmatmul.mubr.bf16.gmra.mrb[0].mxu0 %v4812
        %v5596 = vpop.f32.mrb[0].mxu0
        %v5597 = vadd.f32 0.0, %v5596
        %v5598 = vpop.f32.mrb[0].mxu0
        %v5599 = vpop.f32.mrb[0].mxu0
        %v5600 = vadd.f32 0.0, %v5599
        %v5601 = vpop.f32.mrb[0].mxu0
        %5602 = vmatprep.mubr.bf16.mxu0 %v4768
        %5603 = vmatmul.mubr.bf16.gmra.mrb[0].mxu0 %v4767
        %v5604 = vpop.f32.mrb[0].mxu0
        %v5605 = vadd.f32 0.0, %v5604
        %v5606 = vpop.f32.mrb[0].mxu0
        %v5607 = vpop.f32.mrb[0].mxu0
        %v5608 = vadd.f32 0.0, %v5607
        %v5609 = vpop.f32.mrb[0].mxu0
        %5610 = vmatprep.mubr.bf16.mxu0 %v4819
        %5611 = vmatmul.mubr.bf16.gmra.mrb[0].mxu0 %v4818
        %v5612 = vpop.f32.mrb[0].mxu0
        %v5613 = vadd.f32 0.0, %v5612
        %v5614 = vpop.f32.mrb[0].mxu0
        %v5615 = vpop.f32.mrb[0].mxu0
        %v5616 = vadd.f32 0.0, %v5615
        %v5617 = vpop.f32.mrb[0].mxu0
        %5618 = vmatprep.mubr.bf16.mxu0 %v4822
        %5619 = vmatmul.mubr.bf16.gmra.mrb[0].mxu0 %v4821
        %v5620 = vpop.f32.mrb[0].mxu0
        %v5621 = vadd.f32 0.0, %v5620
        %v5622 = vpop.f32.mrb[0].mxu0
        %v5623 = vpop.f32.mrb[0].mxu0
        %v5624 = vadd.f32 0.0, %v5623
        %v5625 = vpop.f32.mrb[0].mxu0
        %5626 = vmatprep.mubr.bf16.mxu0 %v4825
        %5627 = vmatmul.mubr.bf16.gmra.mrb[0].mxu0 %v4824
        %v5628 = vpop.f32.mrb[0].mxu0
        %v5629 = vadd.f32 0.0, %v5628
        %v5630 = vpop.f32.mrb[0].mxu0
        %v5631 = vpop.f32.mrb[0].mxu0
        %v5632 = vadd.f32 0.0, %v5631
        %v5633 = vpop.f32.mrb[0].mxu0
        %5634 = vmatprep.mubr.bf16.mxu0 %v4828
        %5635 = vmatmul.mubr.bf16.gmra.mrb[0].mxu0 %v4827
        %v5636 = vpop.f32.mrb[0].mxu0
        %v5637 = vadd.f32 0.0, %v5636
        %v5638 = vpop.f32.mrb[0].mxu0
        %v5639 = vpop.f32.mrb[0].mxu0
        %v5640 = vadd.f32 0.0, %v5639
        %v5641 = vpop.f32.mrb[0].mxu0
        %5642 = vmatprep.mubr.bf16.mxu0 %v4831
        %5643 = vmatmul.mubr.bf16.gmra.mrb[0].mxu0 %v4830
        %v5644 = vpop.f32.mrb[0].mxu0
        %v5645 = vadd.f32 0.0, %v5644
        %v5646 = vpop.f32.mrb[0].mxu0
        %v5647 = vpop.f32.mrb[0].mxu0
        %v5648 = vadd.f32 0.0, %v5647
        %v5649 = vpop.f32.mrb[0].mxu0
        %5650 = vmatprep.mubr.bf16.mxu0 %v4834
        %5651 = vmatmul.mubr.bf16.gmra.mrb[0].mxu0 %v4833
        %v5652 = vpop.f32.mrb[0].mxu0
        %v5653 = vadd.f32 0.0, %v5652
        %v5654 = vpop.f32.mrb[0].mxu0
        %v5655 = vpop.f32.mrb[0].mxu0
        %v5656 = vadd.f32 0.0, %v5655
        %v5657 = vpop.f32.mrb[0].mxu0
        %5658 = vmatprep.mubr.bf16.mxu0 %v4837
        %5659 = vmatmul.mubr.bf16.gmra.mrb[0].mxu0 %v4836
        %v5660 = vpop.f32.mrb[0].mxu0
        %v5661 = vadd.f32 0.0, %v5660
        %v5662 = vpop.f32.mrb[0].mxu0
        %v5663 = vpop.f32.mrb[0].mxu0
        %v5664 = vadd.f32 0.0, %v5663
        %v5665 = vpop.f32.mrb[0].mxu0
        %5666 = vmatprep.mubr.bf16.mxu0 %v4840
        %5667 = vmatmul.mubr.bf16.gmra.mrb[0].mxu0 %v4839
        %v5668 = vpop.f32.mrb[0].mxu0
        %v5669 = vadd.f32 0.0, %v5668
        %v5670 = vpop.f32.mrb[0].mxu0
        %v5671 = vpop.f32.mrb[0].mxu0
        %v5672 = vadd.f32 0.0, %v5671
        %v5673 = vpop.f32.mrb[0].mxu0
        %5674 = vmatprep.mubr.bf16.mxu0 %v4843
        %5675 = vmatmul.mubr.bf16.gmra.mrb[0].mxu0 %v4842
        %v5676 = vpop.f32.mrb[0].mxu0
        %v5677 = vadd.f32 0.0, %v5676
        %v5678 = vpop.f32.mrb[0].mxu0
        %v5679 = vpop.f32.mrb[0].mxu0
        %v5680 = vadd.f32 0.0, %v5679
        %v5681 = vpop.f32.mrb[0].mxu0
        %5682 = vmatprep.mubr.bf16.mxu0 %v4846
        %5683 = vmatmul.mubr.bf16.gmra.mrb[0].mxu0 %v4845
        %v5684 = vpop.f32.mrb[0].mxu0
        %v5685 = vadd.f32 0.0, %v5684
        %v5686 = vpop.f32.mrb[0].mxu0
        %v5687 = vpop.f32.mrb[0].mxu0
        %v5688 = vadd.f32 0.0, %v5687
        %v5689 = vpop.f32.mrb[0].mxu0
        %5690 = vmatprep.mubr.bf16.mxu0 %v4849
        %5691 = vmatmul.mubr.bf16.gmra.mrb[0].mxu0 %v4848
        %v5692 = vpop.f32.mrb[0].mxu0
        %v5693 = vadd.f32 0.0, %v5692
        %v5694 = vpop.f32.mrb[0].mxu0
        %v5695 = vpop.f32.mrb[0].mxu0
        %v5696 = vadd.f32 0.0, %v5695
        %v5697 = vpop.f32.mrb[0].mxu0
        %5698 = vmatprep.mubr.bf16.mxu0 %v4852
        %5699 = vmatmul.mubr.bf16.gmra.mrb[0].mxu0 %v4851
        %v5700 = vpop.f32.mrb[0].mxu0
        %v5701 = vadd.f32 0.0, %v5700
        %v5702 = vpop.f32.mrb[0].mxu0
        %v5703 = vpop.f32.mrb[0].mxu0
        %v5704 = vadd.f32 0.0, %v5703
        %v5705 = vpop.f32.mrb[0].mxu0
        %5706 = vmatprep.mubr.bf16.mxu0 %v4855
        %5707 = vmatmul.mubr.bf16.gmra.mrb[0].mxu0 %v4854
        %v5708 = vpop.f32.mrb[0].mxu0
        %v5709 = vadd.f32 0.0, %v5708
        %v5710 = vpop.f32.mrb[0].mxu0
        %v5711 = vpop.f32.mrb[0].mxu0
        %v5712 = vadd.f32 0.0, %v5711
        %v5713 = vpop.f32.mrb[0].mxu0
        %5714 = vmatprep.mubr.bf16.mxu0 %v4858
        %5715 = vmatmul.mubr.bf16.gmra.mrb[0].mxu0 %v4857
        %v5716 = vpop.f32.mrb[0].mxu0
        %v5717 = vadd.f32 0.0, %v5716
        %v5718 = vpop.f32.mrb[0].mxu0
        %v5719 = vpop.f32.mrb[0].mxu0
        %v5720 = vadd.f32 0.0, %v5719
        %v5721 = vpop.f32.mrb[0].mxu0
        %5722 = vmatprep.mubr.bf16.mxu0 %v4861
        %5723 = vmatmul.mubr.bf16.gmra.mrb[0].mxu0 %v4860
        %v5724 = vpop.f32.mrb[0].mxu0
        %v5725 = vadd.f32 0.0, %v5724
        %v5726 = vpop.f32.mrb[0].mxu0
        %v5727 = vpop.f32.mrb[0].mxu0
        %v5728 = vadd.f32 0.0, %v5727
        %v5729 = vpop.f32.mrb[0].mxu0
        %5730 = vdwg.mxu0
        %5731 = vmatprep.subr.bf16.mxu0 0
        %5732 = vmatpush1.bf16.msra.mxu0 %v5314
        %5733 = vmatprep.subr.bf16.mxu0 0
        %5734 = vmatpush1.bf16.msra.mxu0 %v5315
        %5735 = vmatprep.subr.bf16.mxu0 0
        %5736 = vmatpush1.bf16.msra.mxu0 %v5316
        %5737 = vmatprep.subr.bf16.mxu0 0
        %5738 = vmatpush1.bf16.msra.mxu0 %v5317
        %5739 = vmatprep.subr.bf16.mxu0 0
        %5740 = vmatpush1.bf16.msra.mxu0 %v5318
        %5741 = vmatprep.subr.bf16.mxu0 0
        %5742 = vmatpush1.bf16.msra.mxu0 %v5319
        %5743 = vmatprep.subr.bf16.mxu0 0
        %5744 = vmatpush1.bf16.msra.mxu0 %v5320
        %5745 = vmatprep.subr.bf16.mxu0 0
        %5746 = vmatpush1.bf16.msra.mxu0 %v5321
        %5747 = vmatprep.subr.bf16.mxu0 0
        %5748 = vmatpush1.bf16.msra.mxu0 %v5322
        %5749 = vmatprep.subr.bf16.mxu0 0
        %5750 = vmatpush1.bf16.msra.mxu0 %v5323
        %5751 = vmatprep.subr.bf16.mxu0 0
        %5752 = vmatpush1.bf16.msra.mxu0 %v5324
        %5753 = vmatprep.subr.bf16.mxu0 0
        %5754 = vmatpush1.bf16.msra.mxu0 %v5325
        %5755 = vmatprep.subr.bf16.mxu0 0
        %5756 = vmatpush1.bf16.msra.mxu0 %v5326
        %5757 = vmatprep.subr.bf16.mxu0 0
        %5758 = vmatpush1.bf16.msra.mxu0 %v5327
        %5759 = vmatprep.subr.bf16.mxu0 0
        %5760 = vmatpush1.bf16.msra.mxu0 %v5328
        %5761 = vmatprep.subr.bf16.mxu0 0
        %5762 = vmatpush1.bf16.msra.mxu0 %v5329
        %5763 = vmatprep.mubr.bf16.mxu0 %v4770
        %5764 = vmatmul.mubr.bf16.gmra.mrb[0].mxu0 %v4769
        %v5765 = vpop.f32.mrb[0].mxu0
        %v5766 = vadd.f32 %v5477, %v5765
        %v5767 = vpop.f32.mrb[0].mxu0
        %v5768 = vpop.f32.mrb[0].mxu0
        %v5769 = vadd.f32 %v5480, %v5768
        %v5770 = vpop.f32.mrb[0].mxu0
        %5771 = vmatprep.mubr.bf16.mxu0 %v4773
        %5772 = vmatmul.mubr.bf16.gmra.mrb[0].mxu0 %v4772
        %v5773 = vpop.f32.mrb[0].mxu0
        %v5774 = vadd.f32 %v5485, %v5773
        %v5775 = vpop.f32.mrb[0].mxu0
        %v5776 = vpop.f32.mrb[0].mxu0
        %v5777 = vadd.f32 %v5488, %v5776
        %v5778 = vpop.f32.mrb[0].mxu0
        %5779 = vmatprep.mubr.bf16.mxu0 %v4776
        %5780 = vmatmul.mubr.bf16.gmra.mrb[0].mxu0 %v4775
        %v5781 = vpop.f32.mrb[0].mxu0
        %v5782 = vadd.f32 %v5493, %v5781
        %v5783 = vpop.f32.mrb[0].mxu0
        %v5784 = vpop.f32.mrb[0].mxu0
        %v5785 = vadd.f32 %v5496, %v5784
        %v5786 = vpop.f32.mrb[0].mxu0
        %5787 = vmatprep.mubr.bf16.mxu0 %v4779
        %5788 = vmatmul.mubr.bf16.gmra.mrb[0].mxu0 %v4778
        %v5789 = vpop.f32.mrb[0].mxu0
        %v5790 = vadd.f32 %v5501, %v5789
        %v5791 = vpop.f32.mrb[0].mxu0
        %v5792 = vpop.f32.mrb[0].mxu0
        %v5793 = vadd.f32 %v5504, %v5792
        %v5794 = vpop.f32.mrb[0].mxu0
        %5795 = vmatprep.mubr.bf16.mxu0 %v4782
        %5796 = vmatmul.mubr.bf16.gmra.mrb[0].mxu0 %v4781
        %v5797 = vpop.f32.mrb[0].mxu0
        %v5798 = vadd.f32 %v5509, %v5797
        %v5799 = vpop.f32.mrb[0].mxu0
        %v5800 = vpop.f32.mrb[0].mxu0
        %v5801 = vadd.f32 %v5512, %v5800
        %v5802 = vpop.f32.mrb[0].mxu0
        %5803 = vmatprep.mubr.bf16.mxu0 %v4785
        %5804 = vmatmul.mubr.bf16.gmra.mrb[0].mxu0 %v4784
        %v5805 = vpop.f32.mrb[0].mxu0
        %v5806 = vadd.f32 %v5517, %v5805
        %v5807 = vpop.f32.mrb[0].mxu0
        %v5808 = vpop.f32.mrb[0].mxu0
        %v5809 = vadd.f32 %v5520, %v5808
        %v5810 = vpop.f32.mrb[0].mxu0
        %5811 = vmatprep.mubr.bf16.mxu0 %v4788
        %5812 = vmatmul.mubr.bf16.gmra.mrb[0].mxu0 %v4787
        %v5813 = vpop.f32.mrb[0].mxu0
        %v5814 = vadd.f32 %v5525, %v5813
        %v5815 = vpop.f32.mrb[0].mxu0
        %v5816 = vpop.f32.mrb[0].mxu0
        %v5817 = vadd.f32 %v5528, %v5816
        %v5818 = vpop.f32.mrb[0].mxu0
        %5819 = vmatprep.mubr.bf16.mxu0 %v4791
        %5820 = vmatmul.mubr.bf16.gmra.mrb[0].mxu0 %v4790
        %v5821 = vpop.f32.mrb[0].mxu0
        %v5822 = vadd.f32 %v5533, %v5821
        %v5823 = vpop.f32.mrb[0].mxu0
        %v5824 = vpop.f32.mrb[0].mxu0
        %v5825 = vadd.f32 %v5536, %v5824
        %v5826 = vpop.f32.mrb[0].mxu0
        %5827 = vmatprep.mubr.bf16.mxu0 %v4794
        %5828 = vmatmul.mubr.bf16.gmra.mrb[0].mxu0 %v4793
        %v5829 = vpop.f32.mrb[0].mxu0
        %v5830 = vadd.f32 %v5541, %v5829
        %v5831 = vpop.f32.mrb[0].mxu0
        %v5832 = vpop.f32.mrb[0].mxu0
        %v5833 = vadd.f32 %v5544, %v5832
        %v5834 = vpop.f32.mrb[0].mxu0
        %5835 = vmatprep.mubr.bf16.mxu0 %v4797
        %5836 = vmatmul.mubr.bf16.gmra.mrb[0].mxu0 %v4796
        %v5837 = vpop.f32.mrb[0].mxu0
        %v5838 = vadd.f32 %v5549, %v5837
        %v5839 = vpop.f32.mrb[0].mxu0
        %v5840 = vpop.f32.mrb[0].mxu0
        %v5841 = vadd.f32 %v5552, %v5840
        %v5842 = vpop.f32.mrb[0].mxu0
        %5843 = vmatprep.mubr.bf16.mxu0 %v4800
        %5844 = vmatmul.mubr.bf16.gmra.mrb[0].mxu0 %v4799
        %v5845 = vpop.f32.mrb[0].mxu0
        %v5846 = vadd.f32 %v5557, %v5845
        %v5847 = vpop.f32.mrb[0].mxu0
        %v5848 = vpop.f32.mrb[0].mxu0
        %v5849 = vadd.f32 %v5560, %v5848
        %v5850 = vpop.f32.mrb[0].mxu0
        %5851 = vmatprep.mubr.bf16.mxu0 %v4803
        %5852 = vmatmul.mubr.bf16.gmra.mrb[0].mxu0 %v4802
        %v5853 = vpop.f32.mrb[0].mxu0
        %v5854 = vadd.f32 %v5565, %v5853
        %v5855 = vpop.f32.mrb[0].mxu0
        %v5856 = vpop.f32.mrb[0].mxu0
        %v5857 = vadd.f32 %v5568, %v5856
        %v5858 = vpop.f32.mrb[0].mxu0
        %5859 = vmatprep.mubr.bf16.mxu0 %v4806
        %5860 = vmatmul.mubr.bf16.gmra.mrb[0].mxu0 %v4805
        %v5861 = vpop.f32.mrb[0].mxu0
        %v5862 = vadd.f32 %v5573, %v5861
        %v5863 = vpop.f32.mrb[0].mxu0
        %v5864 = vpop.f32.mrb[0].mxu0
        %v5865 = vadd.f32 %v5576, %v5864
        %v5866 = vpop.f32.mrb[0].mxu0
        %5867 = vmatprep.mubr.bf16.mxu0 %v4809
        %5868 = vmatmul.mubr.bf16.gmra.mrb[0].mxu0 %v4808
        %v5869 = vpop.f32.mrb[0].mxu0
        %v5870 = vadd.f32 %v5581, %v5869
        %v5871 = vpop.f32.mrb[0].mxu0
        %v5872 = vpop.f32.mrb[0].mxu0
        %v5873 = vadd.f32 %v5584, %v5872
        %v5874 = vpop.f32.mrb[0].mxu0
        %5875 = vmatprep.mubr.bf16.mxu0 %v4812
        %5876 = vmatmul.mubr.bf16.gmra.mrb[0].mxu0 %v4811
        %v5877 = vpop.f32.mrb[0].mxu0
        %v5878 = vadd.f32 %v5589, %v5877
        %v5879 = vpop.f32.mrb[0].mxu0
        %v5880 = vpop.f32.mrb[0].mxu0
        %v5881 = vadd.f32 %v5592, %v5880
        %v5882 = vpop.f32.mrb[0].mxu0
        %5883 = vmatprep.mubr.bf16.mxu0 %v4815
        %5884 = vmatmul.mubr.bf16.gmra.mrb[0].mxu0 %v4814
        %v5885 = vpop.f32.mrb[0].mxu0
        %v5886 = vadd.f32 %v5597, %v5885
        %v5887 = vpop.f32.mrb[0].mxu0
        %v5888 = vpop.f32.mrb[0].mxu0
        %v5889 = vadd.f32 %v5600, %v5888
        %v5890 = vpop.f32.mrb[0].mxu0
        %5891 = vmatprep.mubr.bf16.mxu0 %v4818
        %5892 = vmatmul.mubr.bf16.gmra.mrb[0].mxu0 %v4769
        %v5893 = vpop.f32.mrb[0].mxu0
        %v5894 = vadd.f32 %v5605, %v5893
        %v5895 = vpop.f32.mrb[0].mxu0
        %v5896 = vpop.f32.mrb[0].mxu0
        %v5897 = vadd.f32 %v5608, %v5896
        %v5898 = vpop.f32.mrb[0].mxu0
        %5899 = vmatprep.mubr.bf16.mxu0 %v4821
        %5900 = vmatmul.mubr.bf16.gmra.mrb[0].mxu0 %v4820
        %v5901 = vpop.f32.mrb[0].mxu0
        %v5902 = vadd.f32 %v5613, %v5901
        %v5903 = vpop.f32.mrb[0].mxu0
        %v5904 = vpop.f32.mrb[0].mxu0
        %v5905 = vadd.f32 %v5616, %v5904
        %v5906 = vpop.f32.mrb[0].mxu0
        %5907 = vmatprep.mubr.bf16.mxu0 %v4824
        %5908 = vmatmul.mubr.bf16.gmra.mrb[0].mxu0 %v4823
        %v5909 = vpop.f32.mrb[0].mxu0
        %v5910 = vadd.f32 %v5621, %v5909
        %v5911 = vpop.f32.mrb[0].mxu0
        %v5912 = vpop.f32.mrb[0].mxu0
        %v5913 = vadd.f32 %v5624, %v5912
        %v5914 = vpop.f32.mrb[0].mxu0
        %5915 = vmatprep.mubr.bf16.mxu0 %v4827
        %5916 = vmatmul.mubr.bf16.gmra.mrb[0].mxu0 %v4826
        %v5917 = vpop.f32.mrb[0].mxu0
        %v5918 = vadd.f32 %v5629, %v5917
        %v5919 = vpop.f32.mrb[0].mxu0
        %v5920 = vpop.f32.mrb[0].mxu0
        %v5921 = vadd.f32 %v5632, %v5920
        %v5922 = vpop.f32.mrb[0].mxu0
        %5923 = vmatprep.mubr.bf16.mxu0 %v4830
        %5924 = vmatmul.mubr.bf16.gmra.mrb[0].mxu0 %v4829
        %v5925 = vpop.f32.mrb[0].mxu0
        %v5926 = vadd.f32 %v5637, %v5925
        %v5927 = vpop.f32.mrb[0].mxu0
        %v5928 = vpop.f32.mrb[0].mxu0
        %v5929 = vadd.f32 %v5640, %v5928
        %v5930 = vpop.f32.mrb[0].mxu0
        %5931 = vmatprep.mubr.bf16.mxu0 %v4833
        %5932 = vmatmul.mubr.bf16.gmra.mrb[0].mxu0 %v4832
        %v5933 = vpop.f32.mrb[0].mxu0
        %v5934 = vadd.f32 %v5645, %v5933
        %v5935 = vpop.f32.mrb[0].mxu0
        %v5936 = vpop.f32.mrb[0].mxu0
        %v5937 = vadd.f32 %v5648, %v5936
        %v5938 = vpop.f32.mrb[0].mxu0
        %5939 = vmatprep.mubr.bf16.mxu0 %v4836
        %5940 = vmatmul.mubr.bf16.gmra.mrb[0].mxu0 %v4835
        %v5941 = vpop.f32.mrb[0].mxu0
        %v5942 = vadd.f32 %v5653, %v5941
        %v5943 = vpop.f32.mrb[0].mxu0
        %v5944 = vpop.f32.mrb[0].mxu0
        %v5945 = vadd.f32 %v5656, %v5944
        %v5946 = vpop.f32.mrb[0].mxu0
        %5947 = vmatprep.mubr.bf16.mxu0 %v4839
        %5948 = vmatmul.mubr.bf16.gmra.mrb[0].mxu0 %v4838
        %v5949 = vpop.f32.mrb[0].mxu0
        %v5950 = vadd.f32 %v5661, %v5949
        %v5951 = vpop.f32.mrb[0].mxu0
        %v5952 = vpop.f32.mrb[0].mxu0
        %v5953 = vadd.f32 %v5664, %v5952
        %v5954 = vpop.f32.mrb[0].mxu0
        %5955 = vmatprep.mubr.bf16.mxu0 %v4842
        %5956 = vmatmul.mubr.bf16.gmra.mrb[0].mxu0 %v4841
        %v5957 = vpop.f32.mrb[0].mxu0
        %v5958 = vadd.f32 %v5669, %v5957
        %v5959 = vpop.f32.mrb[0].mxu0
        %v5960 = vpop.f32.mrb[0].mxu0
        %v5961 = vadd.f32 %v5672, %v5960
        %v5962 = vpop.f32.mrb[0].mxu0
        %5963 = vmatprep.mubr.bf16.mxu0 %v4845
        %5964 = vmatmul.mubr.bf16.gmra.mrb[0].mxu0 %v4844
        %v5965 = vpop.f32.mrb[0].mxu0
        %v5966 = vadd.f32 %v5677, %v5965
        %v5967 = vpop.f32.mrb[0].mxu0
        %v5968 = vpop.f32.mrb[0].mxu0
        %v5969 = vadd.f32 %v5680, %v5968
        %v5970 = vpop.f32.mrb[0].mxu0
        %5971 = vmatprep.mubr.bf16.mxu0 %v4848
        %5972 = vmatmul.mubr.bf16.gmra.mrb[0].mxu0 %v4847
        %v5973 = vpop.f32.mrb[0].mxu0
        %v5974 = vadd.f32 %v5685, %v5973
        %v5975 = vpop.f32.mrb[0].mxu0
        %v5976 = vpop.f32.mrb[0].mxu0
        %v5977 = vadd.f32 %v5688, %v5976
        %v5978 = vpop.f32.mrb[0].mxu0
        %5979 = vmatprep.mubr.bf16.mxu0 %v4851
        %5980 = vmatmul.mubr.bf16.gmra.mrb[0].mxu0 %v4850
        %v5981 = vpop.f32.mrb[0].mxu0
        %v5982 = vadd.f32 %v5693, %v5981
        %v5983 = vpop.f32.mrb[0].mxu0
        %v5984 = vpop.f32.mrb[0].mxu0
        %v5985 = vadd.f32 %v5696, %v5984
        %v5986 = vpop.f32.mrb[0].mxu0
        %5987 = vmatprep.mubr.bf16.mxu0 %v4854
        %5988 = vmatmul.mubr.bf16.gmra.mrb[0].mxu0 %v4853
        %v5989 = vpop.f32.mrb[0].mxu0
        %v5990 = vadd.f32 %v5701, %v5989
        %v5991 = vpop.f32.mrb[0].mxu0
        %v5992 = vpop.f32.mrb[0].mxu0
        %v5993 = vadd.f32 %v5704, %v5992
        %v5994 = vpop.f32.mrb[0].mxu0
        %5995 = vmatprep.mubr.bf16.mxu0 %v4857
        %5996 = vmatmul.mubr.bf16.gmra.mrb[0].mxu0 %v4856
        %v5997 = vpop.f32.mrb[0].mxu0
        %v5998 = vadd.f32 %v5709, %v5997
        %v5999 = vpop.f32.mrb[0].mxu0
        %v6000 = vpop.f32.mrb[0].mxu0
        %v6001 = vadd.f32 %v5712, %v6000
        %v6002 = vpop.f32.mrb[0].mxu0
        %6003 = vmatprep.mubr.bf16.mxu0 %v4860
        %6004 = vmatmul.mubr.bf16.gmra.mrb[0].mxu0 %v4859
        %v6005 = vpop.f32.mrb[0].mxu0
        %v6006 = vadd.f32 %v5717, %v6005
        %v6007 = vpop.f32.mrb[0].mxu0
        %v6008 = vpop.f32.mrb[0].mxu0
        %v6009 = vadd.f32 %v5720, %v6008
        %v6010 = vpop.f32.mrb[0].mxu0
        %6011 = vmatprep.mubr.bf16.mxu0 %v4863
        %6012 = vmatmul.mubr.bf16.gmra.mrb[0].mxu0 %v4862
        %v6013 = vpop.f32.mrb[0].mxu0
        %v6014 = vadd.f32 %v5725, %v6013
        %v6015 = vpop.f32.mrb[0].mxu0
        %v6016 = vpop.f32.mrb[0].mxu0
        %v6017 = vadd.f32 %v5728, %v6016
        %v6018 = vpop.f32.mrb[0].mxu0
        %6019 = vdwg.mxu0
        %6020 = vmatprep.subr.bf16.mxu0 0
        %6021 = vmatpush1.bf16.msra.mxu0 %v5330
        %6022 = vmatprep.subr.bf16.mxu0 0
        %6023 = vmatpush1.bf16.msra.mxu0 %v5331
        %6024 = vmatprep.subr.bf16.mxu0 0
        %6025 = vmatpush1.bf16.msra.mxu0 %v5332
        %6026 = vmatprep.subr.bf16.mxu0 0
        %6027 = vmatpush1.bf16.msra.mxu0 %v5333
        %6028 = vmatprep.subr.bf16.mxu0 0
        %6029 = vmatpush1.bf16.msra.mxu0 %v5334
        %6030 = vmatprep.subr.bf16.mxu0 0
        %6031 = vmatpush1.bf16.msra.mxu0 %v5335
        %6032 = vmatprep.subr.bf16.mxu0 0
        %6033 = vmatpush1.bf16.msra.mxu0 %v5336
        %6034 = vmatprep.subr.bf16.mxu0 0
        %6035 = vmatpush1.bf16.msra.mxu0 %v5337
        %6036 = vmatprep.subr.bf16.mxu0 0
        %6037 = vmatpush1.bf16.msra.mxu0 %v5338
        %6038 = vmatprep.subr.bf16.mxu0 0
        %6039 = vmatpush1.bf16.msra.mxu0 %v5339
        %6040 = vmatprep.subr.bf16.mxu0 0
        %6041 = vmatpush1.bf16.msra.mxu0 %v5340
        %6042 = vmatprep.subr.bf16.mxu0 0
        %6043 = vmatpush1.bf16.msra.mxu0 %v5341
        %6044 = vmatprep.subr.bf16.mxu0 0
        %6045 = vmatpush1.bf16.msra.mxu0 %v5342
        %6046 = vmatprep.subr.bf16.mxu0 0
        %6047 = vmatpush1.bf16.msra.mxu0 %v5343
        %6048 = vmatprep.subr.bf16.mxu0 0
        %6049 = vmatpush1.bf16.msra.mxu0 %v5344
        %6050 = vmatprep.subr.bf16.mxu0 0
        %6051 = vmatpush1.bf16.msra.mxu0 %v5345
        %6052 = vmatprep.mubr.bf16.mxu0 %v4772
        %6053 = vmatmul.mubr.bf16.gmra.mrb[0].mxu0 %v4771
        %v6054 = vpop.f32.mrb[0].mxu0
        %v6055 = vadd.f32 %v5766, %v6054
        %v6056 = vpop.f32.mrb[0].mxu0
        %v6057 = vpop.f32.mrb[0].mxu0
        %v6058 = vadd.f32 %v5769, %v6057
        %v6059 = vpop.f32.mrb[0].mxu0
        %6060 = vmatprep.mubr.bf16.mxu0 %v4775
        %6061 = vmatmul.mubr.bf16.gmra.mrb[0].mxu0 %v4774
        %v6062 = vpop.f32.mrb[0].mxu0
        %v6063 = vadd.f32 %v5774, %v6062
        %v6064 = vpop.f32.mrb[0].mxu0
        %v6065 = vpop.f32.mrb[0].mxu0
        %v6066 = vadd.f32 %v5777, %v6065
        %v6067 = vpop.f32.mrb[0].mxu0
        %6068 = vmatprep.mubr.bf16.mxu0 %v4778
        %6069 = vmatmul.mubr.bf16.gmra.mrb[0].mxu0 %v4777
        %v6070 = vpop.f32.mrb[0].mxu0
        %v6071 = vadd.f32 %v5782, %v6070
        %v6072 = vpop.f32.mrb[0].mxu0
        %v6073 = vpop.f32.mrb[0].mxu0
        %v6074 = vadd.f32 %v5785, %v6073
        %v6075 = vpop.f32.mrb[0].mxu0
        %6076 = vmatprep.mubr.bf16.mxu0 %v4781
        %6077 = vmatmul.mubr.bf16.gmra.mrb[0].mxu0 %v4780
        %v6078 = vpop.f32.mrb[0].mxu0
        %v6079 = vadd.f32 %v5790, %v6078
        %v6080 = vpop.f32.mrb[0].mxu0
        %v6081 = vpop.f32.mrb[0].mxu0
        %v6082 = vadd.f32 %v5793, %v6081
        %v6083 = vpop.f32.mrb[0].mxu0
        %6084 = vmatprep.mubr.bf16.mxu0 %v4784
        %6085 = vmatmul.mubr.bf16.gmra.mrb[0].mxu0 %v4783
        %v6086 = vpop.f32.mrb[0].mxu0
        %v6087 = vadd.f32 %v5798, %v6086
        %v6088 = vpop.f32.mrb[0].mxu0
        %v6089 = vpop.f32.mrb[0].mxu0
        %v6090 = vadd.f32 %v5801, %v6089
        %v6091 = vpop.f32.mrb[0].mxu0
        %6092 = vmatprep.mubr.bf16.mxu0 %v4787
        %6093 = vmatmul.mubr.bf16.gmra.mrb[0].mxu0 %v4786
        %v6094 = vpop.f32.mrb[0].mxu0
        %v6095 = vadd.f32 %v5806, %v6094
        %v6096 = vpop.f32.mrb[0].mxu0
        %v6097 = vpop.f32.mrb[0].mxu0
        %v6098 = vadd.f32 %v5809, %v6097
        %v6099 = vpop.f32.mrb[0].mxu0
        %6100 = vmatprep.mubr.bf16.mxu0 %v4790
        %6101 = vmatmul.mubr.bf16.gmra.mrb[0].mxu0 %v4789
        %v6102 = vpop.f32.mrb[0].mxu0
        %v6103 = vadd.f32 %v5814, %v6102
        %v6104 = vpop.f32.mrb[0].mxu0
        %v6105 = vpop.f32.mrb[0].mxu0
        %v6106 = vadd.f32 %v5817, %v6105
        %v6107 = vpop.f32.mrb[0].mxu0
        %6108 = vmatprep.mubr.bf16.mxu0 %v4793
        %6109 = vmatmul.mubr.bf16.gmra.mrb[0].mxu0 %v4792
        %v6110 = vpop.f32.mrb[0].mxu0
        %v6111 = vadd.f32 %v5822, %v6110
        %v6112 = vpop.f32.mrb[0].mxu0
        %v6113 = vpop.f32.mrb[0].mxu0
        %v6114 = vadd.f32 %v5825, %v6113
        %v6115 = vpop.f32.mrb[0].mxu0
        %6116 = vmatprep.mubr.bf16.mxu0 %v4796
        %6117 = vmatmul.mubr.bf16.gmra.mrb[0].mxu0 %v4795
        %v6118 = vpop.f32.mrb[0].mxu0
        %v6119 = vadd.f32 %v5830, %v6118
        %v6120 = vpop.f32.mrb[0].mxu0
        %v6121 = vpop.f32.mrb[0].mxu0
        %v6122 = vadd.f32 %v5833, %v6121
        %v6123 = vpop.f32.mrb[0].mxu0
        %6124 = vmatprep.mubr.bf16.mxu0 %v4799
        %6125 = vmatmul.mubr.bf16.gmra.mrb[0].mxu0 %v4798
        %v6126 = vpop.f32.mrb[0].mxu0
        %v6127 = vadd.f32 %v5838, %v6126
        %v6128 = vpop.f32.mrb[0].mxu0
        %v6129 = vpop.f32.mrb[0].mxu0
        %v6130 = vadd.f32 %v5841, %v6129
        %v6131 = vpop.f32.mrb[0].mxu0
        %6132 = vmatprep.mubr.bf16.mxu0 %v4802
        %6133 = vmatmul.mubr.bf16.gmra.mrb[0].mxu0 %v4801
        %v6134 = vpop.f32.mrb[0].mxu0
        %v6135 = vadd.f32 %v5846, %v6134
        %v6136 = vpop.f32.mrb[0].mxu0
        %v6137 = vpop.f32.mrb[0].mxu0
        %v6138 = vadd.f32 %v5849, %v6137
        %v6139 = vpop.f32.mrb[0].mxu0
        %6140 = vmatprep.mubr.bf16.mxu0 %v4805
        %6141 = vmatmul.mubr.bf16.gmra.mrb[0].mxu0 %v4804
        %v6142 = vpop.f32.mrb[0].mxu0
        %v6143 = vadd.f32 %v5854, %v6142
        %v6144 = vpop.f32.mrb[0].mxu0
        %v6145 = vpop.f32.mrb[0].mxu0
        %v6146 = vadd.f32 %v5857, %v6145
        %v6147 = vpop.f32.mrb[0].mxu0
        %6148 = vmatprep.mubr.bf16.mxu0 %v4808
        %6149 = vmatmul.mubr.bf16.gmra.mrb[0].mxu0 %v4807
        %v6150 = vpop.f32.mrb[0].mxu0
        %v6151 = vadd.f32 %v5862, %v6150
        %v6152 = vpop.f32.mrb[0].mxu0
        %v6153 = vpop.f32.mrb[0].mxu0
        %v6154 = vadd.f32 %v5865, %v6153
        %v6155 = vpop.f32.mrb[0].mxu0
        %6156 = vmatprep.mubr.bf16.mxu0 %v4811
        %6157 = vmatmul.mubr.bf16.gmra.mrb[0].mxu0 %v4810
        %v6158 = vpop.f32.mrb[0].mxu0
        %v6159 = vadd.f32 %v5870, %v6158
        %v6160 = vpop.f32.mrb[0].mxu0
        %v6161 = vpop.f32.mrb[0].mxu0
        %v6162 = vadd.f32 %v5873, %v6161
        %v6163 = vpop.f32.mrb[0].mxu0
        %6164 = vmatprep.mubr.bf16.mxu0 %v4814
        %6165 = vmatmul.mubr.bf16.gmra.mrb[0].mxu0 %v4813
        %v6166 = vpop.f32.mrb[0].mxu0
        %v6167 = vadd.f32 %v5878, %v6166
        %v6168 = vpop.f32.mrb[0].mxu0
        %v6169 = vpop.f32.mrb[0].mxu0
        %v6170 = vadd.f32 %v5881, %v6169
        %v6171 = vpop.f32.mrb[0].mxu0
        %6172 = vmatprep.mubr.bf16.mxu0 %v4817
        %6173 = vmatmul.mubr.bf16.gmra.mrb[0].mxu0 %v4816
        %v6174 = vpop.f32.mrb[0].mxu0
        %v6175 = vadd.f32 %v5886, %v6174
        %v6176 = vpop.f32.mrb[0].mxu0
        %v6177 = vpop.f32.mrb[0].mxu0
        %v6178 = vadd.f32 %v5889, %v6177
        %v6179 = vpop.f32.mrb[0].mxu0
        %6180 = vmatprep.mubr.bf16.mxu0 %v4820
        %6181 = vmatmul.mubr.bf16.gmra.mrb[0].mxu0 %v4819
        %v6182 = vpop.f32.mrb[0].mxu0
        %v6183 = vadd.f32 %v5894, %v6182
        %v6184 = vpop.f32.mrb[0].mxu0
        %v6185 = vpop.f32.mrb[0].mxu0
        %v6186 = vadd.f32 %v5897, %v6185
        %v6187 = vpop.f32.mrb[0].mxu0
        %6188 = vmatprep.mubr.bf16.mxu0 %v4823
        %6189 = vmatmul.mubr.bf16.gmra.mrb[0].mxu0 %v4822
        %v6190 = vpop.f32.mrb[0].mxu0
        %v6191 = vadd.f32 %v5902, %v6190
        %v6192 = vpop.f32.mrb[0].mxu0
        %v6193 = vpop.f32.mrb[0].mxu0
        %v6194 = vadd.f32 %v5905, %v6193
        %v6195 = vpop.f32.mrb[0].mxu0
        %6196 = vmatprep.mubr.bf16.mxu0 %v4826
        %6197 = vmatmul.mubr.bf16.gmra.mrb[0].mxu0 %v4825
        %v6198 = vpop.f32.mrb[0].mxu0
        %v6199 = vadd.f32 %v5910, %v6198
        %v6200 = vpop.f32.mrb[0].mxu0
        %v6201 = vpop.f32.mrb[0].mxu0
        %v6202 = vadd.f32 %v5913, %v6201
        %v6203 = vpop.f32.mrb[0].mxu0
        %6204 = vmatprep.mubr.bf16.mxu0 %v4829
        %6205 = vmatmul.mubr.bf16.gmra.mrb[0].mxu0 %v4828
        %v6206 = vpop.f32.mrb[0].mxu0
        %v6207 = vadd.f32 %v5918, %v6206
        %v6208 = vpop.f32.mrb[0].mxu0
        %v6209 = vpop.f32.mrb[0].mxu0
        %v6210 = vadd.f32 %v5921, %v6209
        %v6211 = vpop.f32.mrb[0].mxu0
        %6212 = vmatprep.mubr.bf16.mxu0 %v4832
        %6213 = vmatmul.mubr.bf16.gmra.mrb[0].mxu0 %v4831
        %v6214 = vpop.f32.mrb[0].mxu0
        %v6215 = vadd.f32 %v5926, %v6214
        %v6216 = vpop.f32.mrb[0].mxu0
        %v6217 = vpop.f32.mrb[0].mxu0
        %v6218 = vadd.f32 %v5929, %v6217
        %v6219 = vpop.f32.mrb[0].mxu0
        %6220 = vmatprep.mubr.bf16.mxu0 %v4835
        %6221 = vmatmul.mubr.bf16.gmra.mrb[0].mxu0 %v4834
        %v6222 = vpop.f32.mrb[0].mxu0
        %v6223 = vadd.f32 %v5934, %v6222
        %v6224 = vpop.f32.mrb[0].mxu0
        %v6225 = vpop.f32.mrb[0].mxu0
        %v6226 = vadd.f32 %v5937, %v6225
        %v6227 = vpop.f32.mrb[0].mxu0
        %6228 = vmatprep.mubr.bf16.mxu0 %v4838
        %6229 = vmatmul.mubr.bf16.gmra.mrb[0].mxu0 %v4837
        %v6230 = vpop.f32.mrb[0].mxu0
        %v6231 = vadd.f32 %v5942, %v6230
        %v6232 = vpop.f32.mrb[0].mxu0
        %v6233 = vpop.f32.mrb[0].mxu0
        %v6234 = vadd.f32 %v5945, %v6233
        %v6235 = vpop.f32.mrb[0].mxu0
        %6236 = vmatprep.mubr.bf16.mxu0 %v4841
        %6237 = vmatmul.mubr.bf16.gmra.mrb[0].mxu0 %v4840
        %v6238 = vpop.f32.mrb[0].mxu0
        %v6239 = vadd.f32 %v5950, %v6238
        %v6240 = vpop.f32.mrb[0].mxu0
        %v6241 = vpop.f32.mrb[0].mxu0
        %v6242 = vadd.f32 %v5953, %v6241
        %v6243 = vpop.f32.mrb[0].mxu0
        %6244 = vmatprep.mubr.bf16.mxu0 %v4844
        %6245 = vmatmul.mubr.bf16.gmra.mrb[0].mxu0 %v4843
        %v6246 = vpop.f32.mrb[0].mxu0
        %v6247 = vadd.f32 %v5958, %v6246
        %v6248 = vpop.f32.mrb[0].mxu0
        %v6249 = vpop.f32.mrb[0].mxu0
        %v6250 = vadd.f32 %v5961, %v6249
        %v6251 = vpop.f32.mrb[0].mxu0
        %6252 = vmatprep.mubr.bf16.mxu0 %v4847
        %6253 = vmatmul.mubr.bf16.gmra.mrb[0].mxu0 %v4846
        %v6254 = vpop.f32.mrb[0].mxu0
        %v6255 = vadd.f32 %v5966, %v6254
        %v6256 = vpop.f32.mrb[0].mxu0
        %v6257 = vpop.f32.mrb[0].mxu0
        %v6258 = vadd.f32 %v5969, %v6257
        %v6259 = vpop.f32.mrb[0].mxu0
        %6260 = vmatprep.mubr.bf16.mxu0 %v4850
        %6261 = vmatmul.mubr.bf16.gmra.mrb[0].mxu0 %v4849
        %v6262 = vpop.f32.mrb[0].mxu0
        %v6263 = vadd.f32 %v5974, %v6262
        %v6264 = vpop.f32.mrb[0].mxu0
        %v6265 = vpop.f32.mrb[0].mxu0
        %v6266 = vadd.f32 %v5977, %v6265
        %v6267 = vpop.f32.mrb[0].mxu0
        %6268 = vmatprep.mubr.bf16.mxu0 %v4853
        %6269 = vmatmul.mubr.bf16.gmra.mrb[0].mxu0 %v4852
        %v6270 = vpop.f32.mrb[0].mxu0
        %v6271 = vadd.f32 %v5982, %v6270
        %v6272 = vpop.f32.mrb[0].mxu0
        %v6273 = vpop.f32.mrb[0].mxu0
        %v6274 = vadd.f32 %v5985, %v6273
        %v6275 = vpop.f32.mrb[0].mxu0
        %6276 = vmatprep.mubr.bf16.mxu0 %v4856
        %6277 = vmatmul.mubr.bf16.gmra.mrb[0].mxu0 %v4855
        %v6278 = vpop.f32.mrb[0].mxu0
        %v6279 = vadd.f32 %v5990, %v6278
        %v6280 = vpop.f32.mrb[0].mxu0
        %v6281 = vpop.f32.mrb[0].mxu0
        %v6282 = vadd.f32 %v5993, %v6281
        %v6283 = vpop.f32.mrb[0].mxu0
        %6284 = vmatprep.mubr.bf16.mxu0 %v4859
        %6285 = vmatmul.mubr.bf16.gmra.mrb[0].mxu0 %v4858
        %v6286 = vpop.f32.mrb[0].mxu0
        %v6287 = vadd.f32 %v5998, %v6286
        %v6288 = vpop.f32.mrb[0].mxu0
        %v6289 = vpop.f32.mrb[0].mxu0
        %v6290 = vadd.f32 %v6001, %v6289
        %v6291 = vpop.f32.mrb[0].mxu0
        %6292 = vmatprep.mubr.bf16.mxu0 %v4862
        %6293 = vmatmul.mubr.bf16.gmra.mrb[0].mxu0 %v4861
        %v6294 = vpop.f32.mrb[0].mxu0
        %v6295 = vadd.f32 %v6006, %v6294
        %v6296 = vpop.f32.mrb[0].mxu0
        %v6297 = vpop.f32.mrb[0].mxu0
        %v6298 = vadd.f32 %v6009, %v6297
        %v6299 = vpop.f32.mrb[0].mxu0
        %6300 = vmatprep.mubr.bf16.mxu0 %v4865
        %6301 = vmatmul.mubr.bf16.gmra.mrb[0].mxu0 %v4864
        %v6302 = vpop.f32.mrb[0].mxu0
        %v6303 = vadd.f32 %v6014, %v6302
        %v6304 = vpop.f32.mrb[0].mxu0
        %v6305 = vpop.f32.mrb[0].mxu0
        %v6306 = vadd.f32 %v6017, %v6305
        %v6307 = vpop.f32.mrb[0].mxu0
        %6308 = vdwg.mxu0
        %6309 = vmatprep.subr.bf16.mxu0 0
        %6310 = vmatpush1.bf16.msra.mxu0 %v5346
        %6311 = vmatprep.subr.bf16.mxu0 0
        %6312 = vmatpush1.bf16.msra.mxu0 %v5347
        %6313 = vmatprep.subr.bf16.mxu0 0
        %6314 = vmatpush1.bf16.msra.mxu0 %v5348
        %6315 = vmatprep.subr.bf16.mxu0 0
        %6316 = vmatpush1.bf16.msra.mxu0 %v5349
        %6317 = vmatprep.subr.bf16.mxu0 0
        %6318 = vmatpush1.bf16.msra.mxu0 %v5350
        %6319 = vmatprep.subr.bf16.mxu0 0
        %6320 = vmatpush1.bf16.msra.mxu0 %v5351
        %6321 = vmatprep.subr.bf16.mxu0 0
        %6322 = vmatpush1.bf16.msra.mxu0 %v5352
        %6323 = vmatprep.subr.bf16.mxu0 0
        %6324 = vmatpush1.bf16.msra.mxu0 %v5353
        %6325 = vmatprep.subr.bf16.mxu0 0
        %6326 = vmatpush1.bf16.msra.mxu0 %v5354
        %6327 = vmatprep.subr.bf16.mxu0 0
        %6328 = vmatpush1.bf16.msra.mxu0 %v5355
        %6329 = vmatprep.subr.bf16.mxu0 0
        %6330 = vmatpush1.bf16.msra.mxu0 %v5356
        %6331 = vmatprep.subr.bf16.mxu0 0
        %6332 = vmatpush1.bf16.msra.mxu0 %v5357
        %6333 = vmatprep.subr.bf16.mxu0 0
        %6334 = vmatpush1.bf16.msra.mxu0 %v5358
        %6335 = vmatprep.subr.bf16.mxu0 0
        %6336 = vmatpush1.bf16.msra.mxu0 %v5359
        %6337 = vmatprep.subr.bf16.mxu0 0
        %6338 = vmatpush1.bf16.msra.mxu0 %v5360
        %6339 = vmatprep.subr.bf16.mxu0 0
        %6340 = vmatpush1.bf16.msra.mxu0 %v5361
        %6341 = vmatprep.mubr.bf16.mxu0 %v4774
        %6342 = vmatmul.mubr.bf16.gmra.mrb[0].mxu0 %v4773
        %v6343 = vpop.f32.mrb[0].mxu0
        %v6344 = vadd.f32 %v6055, %v6343
        %v6345 = vpop.f32.mrb[0].mxu0
        %v6346 = vpop.f32.mrb[0].mxu0
        %v6347 = vadd.f32 %v6058, %v6346
        %v6348 = vpop.f32.mrb[0].mxu0
        %6349 = vmatprep.mubr.bf16.mxu0 %v4777
        %6350 = vmatmul.mubr.bf16.gmra.mrb[0].mxu0 %v4776
        %v6351 = vpop.f32.mrb[0].mxu0
        %v6352 = vadd.f32 %v6063, %v6351
        %v6353 = vpop.f32.mrb[0].mxu0
        %v6354 = vpop.f32.mrb[0].mxu0
        %v6355 = vadd.f32 %v6066, %v6354
        %v6356 = vpop.f32.mrb[0].mxu0
        %6357 = vmatprep.mubr.bf16.mxu0 %v4780
        %6358 = vmatmul.mubr.bf16.gmra.mrb[0].mxu0 %v4779
        %v6359 = vpop.f32.mrb[0].mxu0
        %v6360 = vadd.f32 %v6071, %v6359
        %v6361 = vpop.f32.mrb[0].mxu0
        %v6362 = vpop.f32.mrb[0].mxu0
        %v6363 = vadd.f32 %v6074, %v6362
        %v6364 = vpop.f32.mrb[0].mxu0
        %6365 = vmatprep.mubr.bf16.mxu0 %v4783
        %6366 = vmatmul.mubr.bf16.gmra.mrb[0].mxu0 %v4782
        %v6367 = vpop.f32.mrb[0].mxu0
        %v6368 = vadd.f32 %v6079, %v6367
        %v6369 = vpop.f32.mrb[0].mxu0
        %v6370 = vpop.f32.mrb[0].mxu0
        %v6371 = vadd.f32 %v6082, %v6370
        %v6372 = vpop.f32.mrb[0].mxu0
        %6373 = vmatprep.mubr.bf16.mxu0 %v4786
        %6374 = vmatmul.mubr.bf16.gmra.mrb[0].mxu0 %v4785
        %v6375 = vpop.f32.mrb[0].mxu0
        %v6376 = vadd.f32 %v6087, %v6375
        %v6377 = vpop.f32.mrb[0].mxu0
        %v6378 = vpop.f32.mrb[0].mxu0
        %v6379 = vadd.f32 %v6090, %v6378
        %v6380 = vpop.f32.mrb[0].mxu0
        %6381 = vmatprep.mubr.bf16.mxu0 %v4789
        %6382 = vmatmul.mubr.bf16.gmra.mrb[0].mxu0 %v4788
        %v6383 = vpop.f32.mrb[0].mxu0
        %v6384 = vadd.f32 %v6095, %v6383
        %v6385 = vpop.f32.mrb[0].mxu0
        %v6386 = vpop.f32.mrb[0].mxu0
        %v6387 = vadd.f32 %v6098, %v6386
        %v6388 = vpop.f32.mrb[0].mxu0
        %6389 = vmatprep.mubr.bf16.mxu0 %v4792
        %6390 = vmatmul.mubr.bf16.gmra.mrb[0].mxu0 %v4791
        %v6391 = vpop.f32.mrb[0].mxu0
        %v6392 = vadd.f32 %v6103, %v6391
        %v6393 = vpop.f32.mrb[0].mxu0
        %v6394 = vpop.f32.mrb[0].mxu0
        %v6395 = vadd.f32 %v6106, %v6394
        %v6396 = vpop.f32.mrb[0].mxu0
        %6397 = vmatprep.mubr.bf16.mxu0 %v4795
        %6398 = vmatmul.mubr.bf16.gmra.mrb[0].mxu0 %v4794
        %v6399 = vpop.f32.mrb[0].mxu0
        %v6400 = vadd.f32 %v6111, %v6399
        %v6401 = vpop.f32.mrb[0].mxu0
        %v6402 = vpop.f32.mrb[0].mxu0
        %v6403 = vadd.f32 %v6114, %v6402
        %v6404 = vpop.f32.mrb[0].mxu0
        %6405 = vmatprep.mubr.bf16.mxu0 %v4798
        %6406 = vmatmul.mubr.bf16.gmra.mrb[0].mxu0 %v4797
        %v6407 = vpop.f32.mrb[0].mxu0
        %v6408 = vadd.f32 %v6119, %v6407
        %v6409 = vpop.f32.mrb[0].mxu0
        %v6410 = vpop.f32.mrb[0].mxu0
        %v6411 = vadd.f32 %v6122, %v6410
        %v6412 = vpop.f32.mrb[0].mxu0
        %6413 = vmatprep.mubr.bf16.mxu0 %v4801
        %6414 = vmatmul.mubr.bf16.gmra.mrb[0].mxu0 %v4800
        %v6415 = vpop.f32.mrb[0].mxu0
        %v6416 = vadd.f32 %v6127, %v6415
        %v6417 = vpop.f32.mrb[0].mxu0
        %v6418 = vpop.f32.mrb[0].mxu0
        %v6419 = vadd.f32 %v6130, %v6418
        %v6420 = vpop.f32.mrb[0].mxu0
        %6421 = vmatprep.mubr.bf16.mxu0 %v4804
        %6422 = vmatmul.mubr.bf16.gmra.mrb[0].mxu0 %v4803
        %v6423 = vpop.f32.mrb[0].mxu0
        %v6424 = vadd.f32 %v6135, %v6423
        %v6425 = vpop.f32.mrb[0].mxu0
        %v6426 = vpop.f32.mrb[0].mxu0
        %v6427 = vadd.f32 %v6138, %v6426
        %v6428 = vpop.f32.mrb[0].mxu0
        %6429 = vmatprep.mubr.bf16.mxu0 %v4807
        %6430 = vmatmul.mubr.bf16.gmra.mrb[0].mxu0 %v4806
        %v6431 = vpop.f32.mrb[0].mxu0
        %v6432 = vadd.f32 %v6143, %v6431
        %v6433 = vpop.f32.mrb[0].mxu0
        %v6434 = vpop.f32.mrb[0].mxu0
        %v6435 = vadd.f32 %v6146, %v6434
        %v6436 = vpop.f32.mrb[0].mxu0
        %6437 = vmatprep.mubr.bf16.mxu0 %v4810
        %6438 = vmatmul.mubr.bf16.gmra.mrb[0].mxu0 %v4809
        %v6439 = vpop.f32.mrb[0].mxu0
        %v6440 = vadd.f32 %v6151, %v6439
        %v6441 = vpop.f32.mrb[0].mxu0
        %v6442 = vpop.f32.mrb[0].mxu0
        %v6443 = vadd.f32 %v6154, %v6442
        %v6444 = vpop.f32.mrb[0].mxu0
        %6445 = vmatprep.mubr.bf16.mxu0 %v4813
        %6446 = vmatmul.mubr.bf16.gmra.mrb[0].mxu0 %v4812
        %v6447 = vpop.f32.mrb[0].mxu0
        %v6448 = vadd.f32 %v6159, %v6447
        %v6449 = vpop.f32.mrb[0].mxu0
        %v6450 = vpop.f32.mrb[0].mxu0
        %v6451 = vadd.f32 %v6162, %v6450
        %v6452 = vpop.f32.mrb[0].mxu0
        %6453 = vmatprep.mubr.bf16.mxu0 %v4816
        %6454 = vmatmul.mubr.bf16.gmra.mrb[0].mxu0 %v4815
        %v6455 = vpop.f32.mrb[0].mxu0
        %v6456 = vadd.f32 %v6167, %v6455
        %v6457 = vpop.f32.mrb[0].mxu0
        %v6458 = vpop.f32.mrb[0].mxu0
        %v6459 = vadd.f32 %v6170, %v6458
        %v6460 = vpop.f32.mrb[0].mxu0
        %6461 = vmatprep.mubr.bf16.mxu0 %v4768
        %6462 = vmatmul.mubr.bf16.gmra.mrb[0].mxu0 %v4767
        %v6463 = vpop.f32.mrb[0].mxu0
        %v6464 = vadd.f32 %v6175, %v6463
        %v6465 = vpop.f32.mrb[0].mxu0
        %v6466 = vpop.f32.mrb[0].mxu0
        %v6467 = vadd.f32 %v6178, %v6466
        %v6468 = vpop.f32.mrb[0].mxu0
        %6469 = vmatprep.mubr.bf16.mxu0 %v4822
        %6470 = vmatmul.mubr.bf16.gmra.mrb[0].mxu0 %v4821
        %v6471 = vpop.f32.mrb[0].mxu0
        %v6472 = vadd.f32 %v6183, %v6471
        %v6473 = vpop.f32.mrb[0].mxu0
        %v6474 = vpop.f32.mrb[0].mxu0
        %v6475 = vadd.f32 %v6186, %v6474
        %v6476 = vpop.f32.mrb[0].mxu0
        %6477 = vmatprep.mubr.bf16.mxu0 %v4825
        %6478 = vmatmul.mubr.bf16.gmra.mrb[0].mxu0 %v4824
        %v6479 = vpop.f32.mrb[0].mxu0
        %v6480 = vadd.f32 %v6191, %v6479
        %v6481 = vpop.f32.mrb[0].mxu0
        %v6482 = vpop.f32.mrb[0].mxu0
        %v6483 = vadd.f32 %v6194, %v6482
        %v6484 = vpop.f32.mrb[0].mxu0
        %6485 = vmatprep.mubr.bf16.mxu0 %v4828
        %6486 = vmatmul.mubr.bf16.gmra.mrb[0].mxu0 %v4827
        %v6487 = vpop.f32.mrb[0].mxu0
        %v6488 = vadd.f32 %v6199, %v6487
        %v6489 = vpop.f32.mrb[0].mxu0
        %v6490 = vpop.f32.mrb[0].mxu0
        %v6491 = vadd.f32 %v6202, %v6490
        %v6492 = vpop.f32.mrb[0].mxu0
        %6493 = vmatprep.mubr.bf16.mxu0 %v4831
        %6494 = vmatmul.mubr.bf16.gmra.mrb[0].mxu0 %v4830
        %v6495 = vpop.f32.mrb[0].mxu0
        %v6496 = vadd.f32 %v6207, %v6495
        %v6497 = vpop.f32.mrb[0].mxu0
        %v6498 = vpop.f32.mrb[0].mxu0
        %v6499 = vadd.f32 %v6210, %v6498
        %v6500 = vpop.f32.mrb[0].mxu0
        %6501 = vmatprep.mubr.bf16.mxu0 %v4834
        %6502 = vmatmul.mubr.bf16.gmra.mrb[0].mxu0 %v4833
        %v6503 = vpop.f32.mrb[0].mxu0
        %v6504 = vadd.f32 %v6215, %v6503
        %v6505 = vpop.f32.mrb[0].mxu0
        %v6506 = vpop.f32.mrb[0].mxu0
        %v6507 = vadd.f32 %v6218, %v6506
        %v6508 = vpop.f32.mrb[0].mxu0
        %6509 = vmatprep.mubr.bf16.mxu0 %v4837
        %6510 = vmatmul.mubr.bf16.gmra.mrb[0].mxu0 %v4836
        %v6511 = vpop.f32.mrb[0].mxu0
        %v6512 = vadd.f32 %v6223, %v6511
        %v6513 = vpop.f32.mrb[0].mxu0
        %v6514 = vpop.f32.mrb[0].mxu0
        %v6515 = vadd.f32 %v6226, %v6514
        %v6516 = vpop.f32.mrb[0].mxu0
        %6517 = vmatprep.mubr.bf16.mxu0 %v4840
        %6518 = vmatmul.mubr.bf16.gmra.mrb[0].mxu0 %v4839
        %v6519 = vpop.f32.mrb[0].mxu0
        %v6520 = vadd.f32 %v6231, %v6519
        %v6521 = vpop.f32.mrb[0].mxu0
        %v6522 = vpop.f32.mrb[0].mxu0
        %v6523 = vadd.f32 %v6234, %v6522
        %v6524 = vpop.f32.mrb[0].mxu0
        %6525 = vmatprep.mubr.bf16.mxu0 %v4843
        %6526 = vmatmul.mubr.bf16.gmra.mrb[0].mxu0 %v4842
        %v6527 = vpop.f32.mrb[0].mxu0
        %v6528 = vadd.f32 %v6239, %v6527
        %v6529 = vpop.f32.mrb[0].mxu0
        %v6530 = vpop.f32.mrb[0].mxu0
        %v6531 = vadd.f32 %v6242, %v6530
        %v6532 = vpop.f32.mrb[0].mxu0
        %6533 = vmatprep.mubr.bf16.mxu0 %v4846
        %6534 = vmatmul.mubr.bf16.gmra.mrb[0].mxu0 %v4845
        %v6535 = vpop.f32.mrb[0].mxu0
        %v6536 = vadd.f32 %v6247, %v6535
        %v6537 = vpop.f32.mrb[0].mxu0
        %v6538 = vpop.f32.mrb[0].mxu0
        %v6539 = vadd.f32 %v6250, %v6538
        %v6540 = vpop.f32.mrb[0].mxu0
        %6541 = vmatprep.mubr.bf16.mxu0 %v4849
        %6542 = vmatmul.mubr.bf16.gmra.mrb[0].mxu0 %v4848
        %v6543 = vpop.f32.mrb[0].mxu0
        %v6544 = vadd.f32 %v6255, %v6543
        %v6545 = vpop.f32.mrb[0].mxu0
        %v6546 = vpop.f32.mrb[0].mxu0
        %v6547 = vadd.f32 %v6258, %v6546
        %v6548 = vpop.f32.mrb[0].mxu0
        %6549 = vmatprep.mubr.bf16.mxu0 %v4852
        %6550 = vmatmul.mubr.bf16.gmra.mrb[0].mxu0 %v4851
        %v6551 = vpop.f32.mrb[0].mxu0
        %v6552 = vadd.f32 %v6263, %v6551
        %v6553 = vpop.f32.mrb[0].mxu0
        %v6554 = vpop.f32.mrb[0].mxu0
        %v6555 = vadd.f32 %v6266, %v6554
        %v6556 = vpop.f32.mrb[0].mxu0
        %6557 = vmatprep.mubr.bf16.mxu0 %v4855
        %6558 = vmatmul.mubr.bf16.gmra.mrb[0].mxu0 %v4854
        %v6559 = vpop.f32.mrb[0].mxu0
        %v6560 = vadd.f32 %v6271, %v6559
        %v6561 = vpop.f32.mrb[0].mxu0
        %v6562 = vpop.f32.mrb[0].mxu0
        %v6563 = vadd.f32 %v6274, %v6562
        %v6564 = vpop.f32.mrb[0].mxu0
        %6565 = vmatprep.mubr.bf16.mxu0 %v4858
        %6566 = vmatmul.mubr.bf16.gmra.mrb[0].mxu0 %v4857
        %v6567 = vpop.f32.mrb[0].mxu0
        %v6568 = vadd.f32 %v6279, %v6567
        %v6569 = vpop.f32.mrb[0].mxu0
        %v6570 = vpop.f32.mrb[0].mxu0
        %v6571 = vadd.f32 %v6282, %v6570
        %v6572 = vpop.f32.mrb[0].mxu0
        %6573 = vmatprep.mubr.bf16.mxu0 %v4861
        %6574 = vmatmul.mubr.bf16.gmra.mrb[0].mxu0 %v4860
        %v6575 = vpop.f32.mrb[0].mxu0
        %v6576 = vadd.f32 %v6287, %v6575
        %v6577 = vpop.f32.mrb[0].mxu0
        %v6578 = vpop.f32.mrb[0].mxu0
        %v6579 = vadd.f32 %v6290, %v6578
        %v6580 = vpop.f32.mrb[0].mxu0
        %6581 = vmatprep.mubr.bf16.mxu0 %v4864
        %6582 = vmatmul.mubr.bf16.gmra.mrb[0].mxu0 %v4863
        %v6583 = vpop.f32.mrb[0].mxu0
        %v6584 = vadd.f32 %v6295, %v6583
        %v6585 = vpop.f32.mrb[0].mxu0
        %v6586 = vpop.f32.mrb[0].mxu0
        %v6587 = vadd.f32 %v6298, %v6586
        %v6588 = vpop.f32.mrb[0].mxu0
        %6589 = vmatprep.mubr.bf16.mxu0 %v4768
        %6590 = vmatmul.mubr.bf16.gmra.mrb[0].mxu0 %v4767
        %v6591 = vpop.f32.mrb[0].mxu0
        %v6592 = vadd.f32 %v6303, %v6591
        %v6593 = vpop.f32.mrb[0].mxu0
        %v6594 = vpop.f32.mrb[0].mxu0
        %v6595 = vadd.f32 %v6306, %v6594
        %v6596 = vpop.f32.mrb[0].mxu0
        %6597 = vdwg.mxu0
        %6598 = vmatprep.subr.bf16.mxu0 0
        %6599 = vmatpush1.bf16.msra.mxu0 %v5362
        %6600 = vmatprep.subr.bf16.mxu0 0
        %6601 = vmatpush1.bf16.msra.mxu0 %v5363
        %6602 = vmatprep.subr.bf16.mxu0 0
        %6603 = vmatpush1.bf16.msra.mxu0 %v5364
        %6604 = vmatprep.subr.bf16.mxu0 0
        %6605 = vmatpush1.bf16.msra.mxu0 %v5365
        %6606 = vmatprep.subr.bf16.mxu0 0
        %6607 = vmatpush1.bf16.msra.mxu0 %v5366
        %6608 = vmatprep.subr.bf16.mxu0 0
        %6609 = vmatpush1.bf16.msra.mxu0 %v5367
        %6610 = vmatprep.subr.bf16.mxu0 0
        %6611 = vmatpush1.bf16.msra.mxu0 %v5368
        %6612 = vmatprep.subr.bf16.mxu0 0
        %6613 = vmatpush1.bf16.msra.mxu0 %v5369
        %6614 = vmatprep.subr.bf16.mxu0 0
        %6615 = vmatpush1.bf16.msra.mxu0 0
        %6616 = vmatprep.subr.bf16.mxu0 0
        %6617 = vmatpush1.bf16.msra.mxu0 0
        %6618 = vmatprep.subr.bf16.mxu0 0
        %6619 = vmatpush1.bf16.msra.mxu0 0
        %6620 = vmatprep.subr.bf16.mxu0 0
        %6621 = vmatpush1.bf16.msra.mxu0 0
        %6622 = vmatprep.subr.bf16.mxu0 0
        %6623 = vmatpush1.bf16.msra.mxu0 0
        %6624 = vmatprep.subr.bf16.mxu0 0
        %6625 = vmatpush1.bf16.msra.mxu0 0
        %6626 = vmatprep.subr.bf16.mxu0 0
        %6627 = vmatpush1.bf16.msra.mxu0 0
        %6628 = vmatprep.subr.bf16.mxu0 0
        %6629 = vmatpush1.bf16.msra.mxu0 0
        %6630 = vmatprep.mubr.bf16.mxu0 0
        %6631 = vmatmul.mubr.bf16.gmra.mrb[0].mxu0 %v4775
        %v6632 = vpop.f32.mrb[0].mxu0
        %v6633 = vadd.f32 %v6344, %v6632
        %v6634 = vpop.f32.mrb[0].mxu0
        %v6635 = vpop.f32.mrb[0].mxu0
        %v6636 = vadd.f32 %v6347, %v6635
        %v6637 = vpop.f32.mrb[0].mxu0
        %6638 = vmatprep.mubr.bf16.mxu0 0
        %6639 = vmatmul.mubr.bf16.gmra.mrb[0].mxu0 %v4778
        %v6640 = vpop.f32.mrb[0].mxu0
        %v6641 = vadd.f32 %v6352, %v6640
        %v6642 = vpop.f32.mrb[0].mxu0
        %v6643 = vpop.f32.mrb[0].mxu0
        %v6644 = vadd.f32 %v6355, %v6643
        %v6645 = vpop.f32.mrb[0].mxu0
        %6646 = vmatprep.mubr.bf16.mxu0 0
        %6647 = vmatmul.mubr.bf16.gmra.mrb[0].mxu0 %v4781
        %v6648 = vpop.f32.mrb[0].mxu0
        %v6649 = vadd.f32 %v6360, %v6648
        %v6650 = vpop.f32.mrb[0].mxu0
        %v6651 = vpop.f32.mrb[0].mxu0
        %v6652 = vadd.f32 %v6363, %v6651
        %v6653 = vpop.f32.mrb[0].mxu0
        %6654 = vmatprep.mubr.bf16.mxu0 0
        %6655 = vmatmul.mubr.bf16.gmra.mrb[0].mxu0 %v4784
        %v6656 = vpop.f32.mrb[0].mxu0
        %v6657 = vadd.f32 %v6368, %v6656
        %v6658 = vpop.f32.mrb[0].mxu0
        %v6659 = vpop.f32.mrb[0].mxu0
        %v6660 = vadd.f32 %v6371, %v6659
        %v6661 = vpop.f32.mrb[0].mxu0
        %6662 = vmatprep.mubr.bf16.mxu0 0
        %6663 = vmatmul.mubr.bf16.gmra.mrb[0].mxu0 %v4787
        %v6664 = vpop.f32.mrb[0].mxu0
        %v6665 = vadd.f32 %v6376, %v6664
        %v6666 = vpop.f32.mrb[0].mxu0
        %v6667 = vpop.f32.mrb[0].mxu0
        %v6668 = vadd.f32 %v6379, %v6667
        %v6669 = vpop.f32.mrb[0].mxu0
        %6670 = vmatprep.mubr.bf16.mxu0 0
        %6671 = vmatmul.mubr.bf16.gmra.mrb[0].mxu0 %v4790
        %v6672 = vpop.f32.mrb[0].mxu0
        %v6673 = vadd.f32 %v6384, %v6672
        %v6674 = vpop.f32.mrb[0].mxu0
        %v6675 = vpop.f32.mrb[0].mxu0
        %v6676 = vadd.f32 %v6387, %v6675
        %v6677 = vpop.f32.mrb[0].mxu0
        %6678 = vmatprep.mubr.bf16.mxu0 0
        %6679 = vmatmul.mubr.bf16.gmra.mrb[0].mxu0 %v4793
        %v6680 = vpop.f32.mrb[0].mxu0
        %v6681 = vadd.f32 %v6392, %v6680
        %v6682 = vpop.f32.mrb[0].mxu0
        %v6683 = vpop.f32.mrb[0].mxu0
        %v6684 = vadd.f32 %v6395, %v6683
        %v6685 = vpop.f32.mrb[0].mxu0
        %6686 = vmatprep.mubr.bf16.mxu0 0
        %6687 = vmatmul.mubr.bf16.gmra.mrb[0].mxu0 %v4796
        %v6688 = vpop.f32.mrb[0].mxu0
        %v6689 = vadd.f32 %v6400, %v6688
        %v6690 = vpop.f32.mrb[0].mxu0
        %v6691 = vpop.f32.mrb[0].mxu0
        %v6692 = vadd.f32 %v6403, %v6691
        %v6693 = vpop.f32.mrb[0].mxu0
        %6694 = vmatprep.mubr.bf16.mxu0 0
        %6695 = vmatmul.mubr.bf16.gmra.mrb[0].mxu0 %v4799
        %v6696 = vpop.f32.mrb[0].mxu0
        %v6697 = vadd.f32 %v6408, %v6696
        %v6698 = vpop.f32.mrb[0].mxu0
        %v6699 = vpop.f32.mrb[0].mxu0
        %v6700 = vadd.f32 %v6411, %v6699
        %v6701 = vpop.f32.mrb[0].mxu0
        %6702 = vmatprep.mubr.bf16.mxu0 0
        %6703 = vmatmul.mubr.bf16.gmra.mrb[0].mxu0 %v4802
        %v6704 = vpop.f32.mrb[0].mxu0
        %v6705 = vadd.f32 %v6416, %v6704
        %v6706 = vpop.f32.mrb[0].mxu0
        %v6707 = vpop.f32.mrb[0].mxu0
        %v6708 = vadd.f32 %v6419, %v6707
        %v6709 = vpop.f32.mrb[0].mxu0
        %6710 = vmatprep.mubr.bf16.mxu0 0
        %6711 = vmatmul.mubr.bf16.gmra.mrb[0].mxu0 %v4805
        %v6712 = vpop.f32.mrb[0].mxu0
        %v6713 = vadd.f32 %v6424, %v6712
        %v6714 = vpop.f32.mrb[0].mxu0
        %v6715 = vpop.f32.mrb[0].mxu0
        %v6716 = vadd.f32 %v6427, %v6715
        %v6717 = vpop.f32.mrb[0].mxu0
        %6718 = vmatprep.mubr.bf16.mxu0 0
        %6719 = vmatmul.mubr.bf16.gmra.mrb[0].mxu0 %v4808
        %v6720 = vpop.f32.mrb[0].mxu0
        %v6721 = vadd.f32 %v6432, %v6720
        %v6722 = vpop.f32.mrb[0].mxu0
        %v6723 = vpop.f32.mrb[0].mxu0
        %v6724 = vadd.f32 %v6435, %v6723
        %v6725 = vpop.f32.mrb[0].mxu0
        %6726 = vmatprep.mubr.bf16.mxu0 0
        %6727 = vmatmul.mubr.bf16.gmra.mrb[0].mxu0 %v4811
        %v6728 = vpop.f32.mrb[0].mxu0
        %v6729 = vadd.f32 %v6440, %v6728
        %v6730 = vpop.f32.mrb[0].mxu0
        %v6731 = vpop.f32.mrb[0].mxu0
        %v6732 = vadd.f32 %v6443, %v6731
        %v6733 = vpop.f32.mrb[0].mxu0
        %6734 = vmatprep.mubr.bf16.mxu0 0
        %6735 = vmatmul.mubr.bf16.gmra.mrb[0].mxu0 %v4814
        %v6736 = vpop.f32.mrb[0].mxu0
        %v6737 = vadd.f32 %v6448, %v6736
        %v6738 = vpop.f32.mrb[0].mxu0
        %v6739 = vpop.f32.mrb[0].mxu0
        %v6740 = vadd.f32 %v6451, %v6739
        %v6741 = vpop.f32.mrb[0].mxu0
        %6742 = vmatprep.mubr.bf16.mxu0 0
        %6743 = vmatmul.mubr.bf16.gmra.mrb[0].mxu0 %v4817
        %v6744 = vpop.f32.mrb[0].mxu0
        %v6745 = vadd.f32 %v6456, %v6744
        %v6746 = vpop.f32.mrb[0].mxu0
        %v6747 = vpop.f32.mrb[0].mxu0
        %v6748 = vadd.f32 %v6459, %v6747
        %v6749 = vpop.f32.mrb[0].mxu0
        %6750 = vmatprep.mubr.bf16.mxu0 0
        %6751 = vmatmul.mubr.bf16.gmra.mrb[0].mxu0 %v4769
        %v6752 = vpop.f32.mrb[0].mxu0
        %v6753 = vadd.f32 %v6464, %v6752
        %v6754 = vpop.f32.mrb[0].mxu0
        %v6755 = vpop.f32.mrb[0].mxu0
        %v6756 = vadd.f32 %v6467, %v6755
        %v6757 = vpop.f32.mrb[0].mxu0
        %6758 = vmatprep.mubr.bf16.mxu0 0
        %6759 = vmatmul.mubr.bf16.gmra.mrb[0].mxu0 %v4823
        %v6760 = vpop.f32.mrb[0].mxu0
        %v6761 = vadd.f32 %v6472, %v6760
        %v6762 = vpop.f32.mrb[0].mxu0
        %v6763 = vpop.f32.mrb[0].mxu0
        %v6764 = vadd.f32 %v6475, %v6763
        %v6765 = vpop.f32.mrb[0].mxu0
        %6766 = vmatprep.mubr.bf16.mxu0 0
        %6767 = vmatmul.mubr.bf16.gmra.mrb[0].mxu0 %v4826
        %v6768 = vpop.f32.mrb[0].mxu0
        %v6769 = vadd.f32 %v6480, %v6768
        %v6770 = vpop.f32.mrb[0].mxu0
        %v6771 = vpop.f32.mrb[0].mxu0
        %v6772 = vadd.f32 %v6483, %v6771
        %v6773 = vpop.f32.mrb[0].mxu0
        %6774 = vmatprep.mubr.bf16.mxu0 0
        %6775 = vmatmul.mubr.bf16.gmra.mrb[0].mxu0 %v4829
        %v6776 = vpop.f32.mrb[0].mxu0
        %v6777 = vadd.f32 %v6488, %v6776
        %v6778 = vpop.f32.mrb[0].mxu0
        %v6779 = vpop.f32.mrb[0].mxu0
        %v6780 = vadd.f32 %v6491, %v6779
        %v6781 = vpop.f32.mrb[0].mxu0
        %6782 = vmatprep.mubr.bf16.mxu0 0
        %6783 = vmatmul.mubr.bf16.gmra.mrb[0].mxu0 %v4832
        %v6784 = vpop.f32.mrb[0].mxu0
        %v6785 = vadd.f32 %v6496, %v6784
        %v6786 = vpop.f32.mrb[0].mxu0
        %v6787 = vpop.f32.mrb[0].mxu0
        %v6788 = vadd.f32 %v6499, %v6787
        %v6789 = vpop.f32.mrb[0].mxu0
        %6790 = vmatprep.mubr.bf16.mxu0 0
        %6791 = vmatmul.mubr.bf16.gmra.mrb[0].mxu0 %v4835
        %v6792 = vpop.f32.mrb[0].mxu0
        %v6793 = vadd.f32 %v6504, %v6792
        %v6794 = vpop.f32.mrb[0].mxu0
        %v6795 = vpop.f32.mrb[0].mxu0
        %v6796 = vadd.f32 %v6507, %v6795
        %v6797 = vpop.f32.mrb[0].mxu0
        %6798 = vmatprep.mubr.bf16.mxu0 0
        %6799 = vmatmul.mubr.bf16.gmra.mrb[0].mxu0 %v4838
        %v6800 = vpop.f32.mrb[0].mxu0
        %v6801 = vadd.f32 %v6512, %v6800
        %v6802 = vpop.f32.mrb[0].mxu0
        %v6803 = vpop.f32.mrb[0].mxu0
        %v6804 = vadd.f32 %v6515, %v6803
        %v6805 = vpop.f32.mrb[0].mxu0
        %6806 = vmatprep.mubr.bf16.mxu0 0
        %6807 = vmatmul.mubr.bf16.gmra.mrb[0].mxu0 %v4841
        %v6808 = vpop.f32.mrb[0].mxu0
        %v6809 = vadd.f32 %v6520, %v6808
        %v6810 = vpop.f32.mrb[0].mxu0
        %v6811 = vpop.f32.mrb[0].mxu0
        %v6812 = vadd.f32 %v6523, %v6811
        %v6813 = vpop.f32.mrb[0].mxu0
        %6814 = vmatprep.mubr.bf16.mxu0 0
        %6815 = vmatmul.mubr.bf16.gmra.mrb[0].mxu0 %v4844
        %v6816 = vpop.f32.mrb[0].mxu0
        %v6817 = vadd.f32 %v6528, %v6816
        %v6818 = vpop.f32.mrb[0].mxu0
        %v6819 = vpop.f32.mrb[0].mxu0
        %v6820 = vadd.f32 %v6531, %v6819
        %v6821 = vpop.f32.mrb[0].mxu0
        %6822 = vmatprep.mubr.bf16.mxu0 0
        %6823 = vmatmul.mubr.bf16.gmra.mrb[0].mxu0 %v4847
        %v6824 = vpop.f32.mrb[0].mxu0
        %v6825 = vadd.f32 %v6536, %v6824
        %v6826 = vpop.f32.mrb[0].mxu0
        %v6827 = vpop.f32.mrb[0].mxu0
        %v6828 = vadd.f32 %v6539, %v6827
        %v6829 = vpop.f32.mrb[0].mxu0
        %6830 = vmatprep.mubr.bf16.mxu0 0
        %6831 = vmatmul.mubr.bf16.gmra.mrb[0].mxu0 %v4850
        %v6832 = vpop.f32.mrb[0].mxu0
        %v6833 = vadd.f32 %v6544, %v6832
        %v6834 = vpop.f32.mrb[0].mxu0
        %v6835 = vpop.f32.mrb[0].mxu0
        %v6836 = vadd.f32 %v6547, %v6835
        %v6837 = vpop.f32.mrb[0].mxu0
        %6838 = vmatprep.mubr.bf16.mxu0 0
        %6839 = vmatmul.mubr.bf16.gmra.mrb[0].mxu0 %v4853
        %v6840 = vpop.f32.mrb[0].mxu0
        %v6841 = vadd.f32 %v6552, %v6840
        %v6842 = vpop.f32.mrb[0].mxu0
        %v6843 = vpop.f32.mrb[0].mxu0
        %v6844 = vadd.f32 %v6555, %v6843
        %v6845 = vpop.f32.mrb[0].mxu0
        %6846 = vmatprep.mubr.bf16.mxu0 0
        %6847 = vmatmul.mubr.bf16.gmra.mrb[0].mxu0 %v4856
        %v6848 = vpop.f32.mrb[0].mxu0
        %v6849 = vadd.f32 %v6560, %v6848
        %v6850 = vpop.f32.mrb[0].mxu0
        %v6851 = vpop.f32.mrb[0].mxu0
        %v6852 = vadd.f32 %v6563, %v6851
        %v6853 = vpop.f32.mrb[0].mxu0
        %6854 = vmatprep.mubr.bf16.mxu0 0
        %6855 = vmatmul.mubr.bf16.gmra.mrb[0].mxu0 %v4859
        %v6856 = vpop.f32.mrb[0].mxu0
        %v6857 = vadd.f32 %v6568, %v6856
        %v6858 = vpop.f32.mrb[0].mxu0
        %v6859 = vpop.f32.mrb[0].mxu0
        %v6860 = vadd.f32 %v6571, %v6859
        %v6861 = vpop.f32.mrb[0].mxu0
        %6862 = vmatprep.mubr.bf16.mxu0 0
        %6863 = vmatmul.mubr.bf16.gmra.mrb[0].mxu0 %v4862
        %v6864 = vpop.f32.mrb[0].mxu0
        %v6865 = vadd.f32 %v6576, %v6864
        %v6866 = vpop.f32.mrb[0].mxu0
        %v6867 = vpop.f32.mrb[0].mxu0
        %v6868 = vadd.f32 %v6579, %v6867
        %v6869 = vpop.f32.mrb[0].mxu0
        %6870 = vmatprep.mubr.bf16.mxu0 0
        %6871 = vmatmul.mubr.bf16.gmra.mrb[0].mxu0 %v4865
        %v6872 = vpop.f32.mrb[0].mxu0
        %v6873 = vadd.f32 %v6584, %v6872
        %v6874 = vpop.f32.mrb[0].mxu0
        %v6875 = vpop.f32.mrb[0].mxu0
        %v6876 = vadd.f32 %v6587, %v6875
        %v6877 = vpop.f32.mrb[0].mxu0
        %6878 = vmatprep.mubr.bf16.mxu0 0
        %6879 = vmatmul.mubr.bf16.gmra.mrb[0].mxu0 %v4769
        %v6880 = vpop.f32.mrb[0].mxu0
        %v6881 = vadd.f32 %v6592, %v6880
        %v6882 = vpop.f32.mrb[0].mxu0
        %v6883 = vpop.f32.mrb[0].mxu0
        %v6884 = vadd.f32 %v6595, %v6883
        %v6885 = vpop.f32.mrb[0].mxu0
        %6886 = vdwg.mxu0
        %v6887 = vld [vmem:[%s5] sm:$0x1]
        %v6889 = vlaneseq
        %v6890 = vshrl.u32 %v6889, 7
        %v6891 = vsub.s32 0, %v6890
        %v6892 = vrot.slane %v6887, %v6891
        %v6894 = vmul.f32 %v6633, %v6892
        %v6895 = vmul.f32 %v6636, %v6892
        %v6896 = vmul.f32 %v6641, %v6892
        %v6897 = vmul.f32 %v6644, %v6892
        %v6898 = vmul.f32 %v6649, %v6892
        %v6899 = vmul.f32 %v6652, %v6892
        %v6900 = vmul.f32 %v6657, %v6892
        %v6901 = vmul.f32 %v6660, %v6892
        %v6902 = vmul.f32 %v6665, %v6892
        %v6903 = vmul.f32 %v6668, %v6892
        %v6904 = vmul.f32 %v6673, %v6892
        %v6905 = vmul.f32 %v6676, %v6892
        %v6906 = vmul.f32 %v6681, %v6892
        %v6907 = vmul.f32 %v6684, %v6892
        %v6908 = vmul.f32 %v6689, %v6892
        %v6909 = vmul.f32 %v6692, %v6892
        %v6910 = vmul.f32 %v6697, %v6892
        %v6911 = vmul.f32 %v6700, %v6892
        %v6912 = vmul.f32 %v6705, %v6892
        %v6913 = vmul.f32 %v6708, %v6892
        %v6914 = vmul.f32 %v6713, %v6892
        %v6915 = vmul.f32 %v6716, %v6892
        %v6916 = vmul.f32 %v6721, %v6892
        %v6917 = vmul.f32 %v6724, %v6892
        %v6918 = vmul.f32 %v6729, %v6892
        %v6919 = vmul.f32 %v6732, %v6892
        %v6920 = vmul.f32 %v6737, %v6892
        %v6921 = vmul.f32 %v6740, %v6892
        %v6922 = vmul.f32 %v6745, %v6892
        %v6923 = vmul.f32 %v6748, %v6892
        %v6924 = vmul.f32 %v6753, %v6892
        %v6925 = vmul.f32 %v6756, %v6892
        %v6926 = vmul.f32 %v6761, %v6892
        %v6927 = vmul.f32 %v6764, %v6892
        %v6928 = vmul.f32 %v6769, %v6892
        %v6929 = vmul.f32 %v6772, %v6892
        %v6930 = vmul.f32 %v6777, %v6892
        %v6931 = vmul.f32 %v6780, %v6892
        %v6932 = vmul.f32 %v6785, %v6892
        %v6933 = vmul.f32 %v6788, %v6892
        %v6934 = vmul.f32 %v6793, %v6892
        %v6935 = vmul.f32 %v6796, %v6892
        %v6936 = vmul.f32 %v6801, %v6892
        %v6937 = vmul.f32 %v6804, %v6892
        %v6938 = vmul.f32 %v6809, %v6892
        %v6939 = vmul.f32 %v6812, %v6892
        %v6940 = vmul.f32 %v6817, %v6892
        %v6941 = vmul.f32 %v6820, %v6892
        %v6942 = vmul.f32 %v6825, %v6892
        %v6943 = vmul.f32 %v6828, %v6892
        %v6944 = vmul.f32 %v6833, %v6892
        %v6945 = vmul.f32 %v6836, %v6892
        %v6946 = vmul.f32 %v6841, %v6892
        %v6947 = vmul.f32 %v6844, %v6892
        %v6948 = vmul.f32 %v6849, %v6892
        %v6949 = vmul.f32 %v6852, %v6892
        %v6950 = vmul.f32 %v6857, %v6892
        %v6951 = vmul.f32 %v6860, %v6892
        %v6952 = vmul.f32 %v6865, %v6892
        %v6953 = vmul.f32 %v6868, %v6892
        %v6954 = vmul.f32 %v6873, %v6892
        %v6955 = vmul.f32 %v6876, %v6892
        %v6956 = vmul.f32 %v6881, %v6892
        %v6957 = vmul.f32 %v6884, %v6892
        %v6958 = vld [vmem:[%s6] sm:$0x1]
        %v6960 = vlaneseq
        %v6961 = vshrl.u32 %v6960, 7
        %v6962 = vsub.s32 0, %v6961
        %v6963 = vrot.slane %v6958, %v6962
        %v6965 = vadd.f32 %v6894, %v6963
        %v6966 = vadd.f32 %v6895, %v6963
        %v6967 = vadd.f32 %v6896, %v6963
        %v6968 = vadd.f32 %v6897, %v6963
        %v6969 = vadd.f32 %v6898, %v6963
        %v6970 = vadd.f32 %v6899, %v6963
        %v6971 = vadd.f32 %v6900, %v6963
        %v6972 = vadd.f32 %v6901, %v6963
        %v6973 = vadd.f32 %v6902, %v6963
        %v6974 = vadd.f32 %v6903, %v6963
        %v6975 = vadd.f32 %v6904, %v6963
        %v6976 = vadd.f32 %v6905, %v6963
        %v6977 = vadd.f32 %v6906, %v6963
        %v6978 = vadd.f32 %v6907, %v6963
        %v6979 = vadd.f32 %v6908, %v6963
        %v6980 = vadd.f32 %v6909, %v6963
        %v6981 = vadd.f32 %v6910, %v6963
        %v6982 = vadd.f32 %v6911, %v6963
        %v6983 = vadd.f32 %v6912, %v6963
        %v6984 = vadd.f32 %v6913, %v6963
        %v6985 = vadd.f32 %v6914, %v6963
        %v6986 = vadd.f32 %v6915, %v6963
        %v6987 = vadd.f32 %v6916, %v6963
        %v6988 = vadd.f32 %v6917, %v6963
        %v6989 = vadd.f32 %v6918, %v6963
        %v6990 = vadd.f32 %v6919, %v6963
        %v6991 = vadd.f32 %v6920, %v6963
        %v6992 = vadd.f32 %v6921, %v6963
        %v6993 = vadd.f32 %v6922, %v6963
        %v6994 = vadd.f32 %v6923, %v6963
        %v6995 = vadd.f32 %v6924, %v6963
        %v6996 = vadd.f32 %v6925, %v6963
        %v6997 = vadd.f32 %v6926, %v6963
        %v6998 = vadd.f32 %v6927, %v6963
        %v6999 = vadd.f32 %v6928, %v6963
        %v7000 = vadd.f32 %v6929, %v6963
        %v7001 = vadd.f32 %v6930, %v6963
        %v7002 = vadd.f32 %v6931, %v6963
        %v7003 = vadd.f32 %v6932, %v6963
        %v7004 = vadd.f32 %v6933, %v6963
        %v7005 = vadd.f32 %v6934, %v6963
        %v7006 = vadd.f32 %v6935, %v6963
        %v7007 = vadd.f32 %v6936, %v6963
        %v7008 = vadd.f32 %v6937, %v6963
        %v7009 = vadd.f32 %v6938, %v6963
        %v7010 = vadd.f32 %v6939, %v6963
        %v7011 = vadd.f32 %v6940, %v6963
        %v7012 = vadd.f32 %v6941, %v6963
        %v7013 = vadd.f32 %v6942, %v6963
        %v7014 = vadd.f32 %v6943, %v6963
        %v7015 = vadd.f32 %v6944, %v6963
        %v7016 = vadd.f32 %v6945, %v6963
        %v7017 = vadd.f32 %v6946, %v6963
        %v7018 = vadd.f32 %v6947, %v6963
        %v7019 = vadd.f32 %v6948, %v6963
        %v7020 = vadd.f32 %v6949, %v6963
        %v7021 = vadd.f32 %v6950, %v6963
        %v7022 = vadd.f32 %v6951, %v6963
        %v7023 = vadd.f32 %v6952, %v6963
        %v7024 = vadd.f32 %v6953, %v6963
        %v7025 = vadd.f32 %v6954, %v6963
        %v7026 = vadd.f32 %v6955, %v6963
        %v7027 = vadd.f32 %v6956, %v6963
        %v7028 = vadd.f32 %v6957, %v6963
        %v7029 = vmax.f32 %v6965, 0.0
        %v7030 = vmax.f32 %v6966, 0.0
        %v7031 = vmax.f32 %v6967, 0.0
        %v7032 = vmax.f32 %v6968, 0.0
        %v7033 = vmax.f32 %v6969, 0.0
        %v7034 = vmax.f32 %v6970, 0.0
        %v7035 = vmax.f32 %v6971, 0.0
        %v7036 = vmax.f32 %v6972, 0.0
        %v7037 = vmax.f32 %v6973, 0.0
        %v7038 = vmax.f32 %v6974, 0.0
        %v7039 = vmax.f32 %v6975, 0.0
        %v7040 = vmax.f32 %v6976, 0.0
        %v7041 = vmax.f32 %v6977, 0.0
        %v7042 = vmax.f32 %v6978, 0.0
        %v7043 = vmax.f32 %v6979, 0.0
        %v7044 = vmax.f32 %v6980, 0.0
        %v7045 = vmax.f32 %v6981, 0.0
        %v7046 = vmax.f32 %v6982, 0.0
        %v7047 = vmax.f32 %v6983, 0.0
        %v7048 = vmax.f32 %v6984, 0.0
        %v7049 = vmax.f32 %v6985, 0.0
        %v7050 = vmax.f32 %v6986, 0.0
        %v7051 = vmax.f32 %v6987, 0.0
        %v7052 = vmax.f32 %v6988, 0.0
        %v7053 = vmax.f32 %v6989, 0.0
        %v7054 = vmax.f32 %v6990, 0.0
        %v7055 = vmax.f32 %v6991, 0.0
        %v7056 = vmax.f32 %v6992, 0.0
        %v7057 = vmax.f32 %v6993, 0.0
        %v7058 = vmax.f32 %v6994, 0.0
        %v7059 = vmax.f32 %v6995, 0.0
        %v7060 = vmax.f32 %v6996, 0.0
        %v7061 = vmax.f32 %v6997, 0.0
        %v7062 = vmax.f32 %v6998, 0.0
        %v7063 = vmax.f32 %v6999, 0.0
        %v7064 = vmax.f32 %v7000, 0.0
        %v7065 = vmax.f32 %v7001, 0.0
        %v7066 = vmax.f32 %v7002, 0.0
        %v7067 = vmax.f32 %v7003, 0.0
        %v7068 = vmax.f32 %v7004, 0.0
        %v7069 = vmax.f32 %v7005, 0.0
        %v7070 = vmax.f32 %v7006, 0.0
        %v7071 = vmax.f32 %v7007, 0.0
        %v7072 = vmax.f32 %v7008, 0.0
        %v7073 = vmax.f32 %v7009, 0.0
        %v7074 = vmax.f32 %v7010, 0.0
        %v7075 = vmax.f32 %v7011, 0.0
        %v7076 = vmax.f32 %v7012, 0.0
        %v7077 = vmax.f32 %v7013, 0.0
        %v7078 = vmax.f32 %v7014, 0.0
        %v7079 = vmax.f32 %v7015, 0.0
        %v7080 = vmax.f32 %v7016, 0.0
        %v7081 = vmax.f32 %v7017, 0.0
        %v7082 = vmax.f32 %v7018, 0.0
        %v7083 = vmax.f32 %v7019, 0.0
        %v7084 = vmax.f32 %v7020, 0.0
        %v7085 = vmax.f32 %v7021, 0.0
        %v7086 = vmax.f32 %v7022, 0.0
        %v7087 = vmax.f32 %v7023, 0.0
        %v7088 = vmax.f32 %v7024, 0.0
        %v7089 = vmax.f32 %v7025, 0.0
        %v7090 = vmax.f32 %v7026, 0.0
        %v7091 = vmax.f32 %v7027, 0.0
        %v7092 = vmax.f32 %v7028, 0.0
        %v7157 = vrot.slane %v7029, 7
        %v7158 = vrot.slane %v7030, 7
        %v7159 = vsel %vm602, %v7157, %v7158
        %v7160 = vrot.slane %v7031, 7
        %v7161 = vrot.slane %v7032, 7
        %v7162 = vsel %vm602, %v7160, %v7161
        %v7163 = vrot.slane %v7033, 7
        %v7164 = vrot.slane %v7034, 7
        %v7165 = vsel %vm602, %v7163, %v7164
        %v7166 = vrot.slane %v7035, 7
        %v7167 = vrot.slane %v7036, 7
        %v7168 = vsel %vm602, %v7166, %v7167
        %v7169 = vrot.slane %v7037, 7
        %v7170 = vrot.slane %v7038, 7
        %v7171 = vsel %vm602, %v7169, %v7170
        %v7172 = vrot.slane %v7039, 7
        %v7173 = vrot.slane %v7040, 7
        %v7174 = vsel %vm602, %v7172, %v7173
        %v7175 = vrot.slane %v7041, 7
        %v7176 = vrot.slane %v7042, 7
        %v7177 = vsel %vm602, %v7175, %v7176
        %v7178 = vrot.slane %v7043, 7
        %v7179 = vrot.slane %v7044, 7
        %v7180 = vsel %vm602, %v7178, %v7179
        %v7181 = vrot.slane %v7045, 7
        %v7182 = vrot.slane %v7046, 7
        %v7183 = vsel %vm602, %v7181, %v7182
        %v7184 = vrot.slane %v7047, 7
        %v7185 = vrot.slane %v7048, 7
        %v7186 = vsel %vm602, %v7184, %v7185
        %v7187 = vrot.slane %v7049, 7
        %v7188 = vrot.slane %v7050, 7
        %v7189 = vsel %vm602, %v7187, %v7188
        %v7190 = vrot.slane %v7051, 7
        %v7191 = vrot.slane %v7052, 7
        %v7192 = vsel %vm602, %v7190, %v7191
        %v7193 = vrot.slane %v7053, 7
        %v7194 = vrot.slane %v7054, 7
        %v7195 = vsel %vm602, %v7193, %v7194
        %v7196 = vrot.slane %v7055, 7
        %v7197 = vrot.slane %v7056, 7
        %v7198 = vsel %vm602, %v7196, %v7197
        %v7199 = vrot.slane %v7057, 7
        %v7200 = vrot.slane %v7058, 7
        %v7201 = vsel %vm602, %v7199, %v7200
        %v7202 = vrot.slane %v7059, 7
        %v7203 = vrot.slane %v7060, 7
        %v7204 = vsel %vm602, %v7202, %v7203
        %v7205 = vrot.slane %v7061, 7
        %v7206 = vrot.slane %v7062, 7
        %v7207 = vsel %vm602, %v7205, %v7206
        %v7208 = vrot.slane %v7063, 7
        %v7209 = vrot.slane %v7064, 7
        %v7210 = vsel %vm602, %v7208, %v7209
        %v7211 = vrot.slane %v7065, 7
        %v7212 = vrot.slane %v7066, 7
        %v7213 = vsel %vm602, %v7211, %v7212
        %v7214 = vrot.slane %v7067, 7
        %v7215 = vrot.slane %v7068, 7
        %v7216 = vsel %vm602, %v7214, %v7215
        %v7217 = vrot.slane %v7069, 7
        %v7218 = vrot.slane %v7070, 7
        %v7219 = vsel %vm602, %v7217, %v7218
        %v7220 = vrot.slane %v7071, 7
        %v7221 = vrot.slane %v7072, 7
        %v7222 = vsel %vm602, %v7220, %v7221
        %v7223 = vrot.slane %v7073, 7
        %v7224 = vrot.slane %v7074, 7
        %v7225 = vsel %vm602, %v7223, %v7224
        %v7226 = vrot.slane %v7075, 7
        %v7227 = vrot.slane %v7076, 7
        %v7228 = vsel %vm602, %v7226, %v7227
        %v7229 = vrot.slane %v7077, 7
        %v7230 = vrot.slane %v7078, 7
        %v7231 = vsel %vm602, %v7229, %v7230
        %v7232 = vrot.slane %v7079, 7
        %v7233 = vrot.slane %v7080, 7
        %v7234 = vsel %vm602, %v7232, %v7233
        %v7235 = vrot.slane %v7081, 7
        %v7236 = vrot.slane %v7082, 7
        %v7237 = vsel %vm602, %v7235, %v7236
        %v7238 = vrot.slane %v7083, 7
        %v7239 = vrot.slane %v7084, 7
        %v7240 = vsel %vm602, %v7238, %v7239
        %v7241 = vrot.slane %v7085, 7
        %v7242 = vrot.slane %v7086, 7
        %v7243 = vsel %vm602, %v7241, %v7242
        %v7244 = vrot.slane %v7087, 7
        %v7245 = vrot.slane %v7088, 7
        %v7246 = vsel %vm602, %v7244, %v7245
        %v7247 = vrot.slane %v7089, 7
        %v7248 = vrot.slane %v7090, 7
        %v7249 = vsel %vm602, %v7247, %v7248
        %v7250 = vrot.slane %v7091, 7
        %v7251 = vrot.slane %v7092, 7
        %v7252 = vsel %vm602, %v7250, %v7251
        %v7349 = vsel %vm602, 0.0, %v7157
        %v7350 = vsel %vm602, 0.0, %v7160
        %v7351 = vsel %vm602, 0.0, %v7163
        %v7352 = vsel %vm602, 0.0, %v7166
        %v7353 = vsel %vm602, 0.0, %v7169
        %v7354 = vsel %vm602, 0.0, %v7172
        %v7355 = vsel %vm602, 0.0, %v7175
        %v7356 = vsel %vm602, 0.0, %v7178
        %v7357 = vsel %vm602, 0.0, %v7181
        %v7358 = vsel %vm602, 0.0, %v7184
        %v7359 = vsel %vm602, 0.0, %v7187
        %v7360 = vsel %vm602, 0.0, %v7190
        %v7361 = vsel %vm602, 0.0, %v7193
        %v7362 = vsel %vm602, 0.0, %v7196
        %v7363 = vsel %vm602, 0.0, %v7199
        %v7364 = vsel %vm602, 0.0, %v7202
        %v7365 = vsel %vm602, 0.0, %v7205
        %v7366 = vsel %vm602, 0.0, %v7208
        %v7367 = vsel %vm602, 0.0, %v7211
        %v7368 = vsel %vm602, 0.0, %v7214
        %v7369 = vsel %vm602, 0.0, %v7217
        %v7370 = vsel %vm602, 0.0, %v7220
        %v7371 = vsel %vm602, 0.0, %v7223
        %v7372 = vsel %vm602, 0.0, %v7226
        %v7373 = vsel %vm602, 0.0, %v7229
        %v7374 = vsel %vm602, 0.0, %v7232
        %v7375 = vsel %vm602, 0.0, %v7235
        %v7376 = vsel %vm602, 0.0, %v7238
        %v7377 = vsel %vm602, 0.0, %v7241
        %v7378 = vsel %vm602, 0.0, %v7244
        %v7379 = vsel %vm602, 0.0, %v7247
        %v7380 = vsel %vm602, 0.0, %v7250
        %v7381 = vsel %vm602, %v7158, 0.0
        %v7382 = vsel %vm602, %v7161, 0.0
        %v7383 = vsel %vm602, %v7164, 0.0
        %v7384 = vsel %vm602, %v7167, 0.0
        %v7385 = vsel %vm602, %v7170, 0.0
        %v7386 = vsel %vm602, %v7173, 0.0
        %v7387 = vsel %vm602, %v7176, 0.0
        %v7388 = vsel %vm602, %v7179, 0.0
        %v7389 = vsel %vm602, %v7182, 0.0
        %v7390 = vsel %vm602, %v7185, 0.0
        %v7391 = vsel %vm602, %v7188, 0.0
        %v7392 = vsel %vm602, %v7191, 0.0
        %v7393 = vsel %vm602, %v7194, 0.0
        %v7394 = vsel %vm602, %v7197, 0.0
        %v7395 = vsel %vm602, %v7200, 0.0
        %v7396 = vsel %vm602, %v7203, 0.0
        %v7397 = vsel %vm602, %v7206, 0.0
        %v7398 = vsel %vm602, %v7209, 0.0
        %v7399 = vsel %vm602, %v7212, 0.0
        %v7400 = vsel %vm602, %v7215, 0.0
        %v7401 = vsel %vm602, %v7218, 0.0
        %v7402 = vsel %vm602, %v7221, 0.0
        %v7403 = vsel %vm602, %v7224, 0.0
        %v7404 = vsel %vm602, %v7227, 0.0
        %v7405 = vsel %vm602, %v7230, 0.0
        %v7406 = vsel %vm602, %v7233, 0.0
        %v7407 = vsel %vm602, %v7236, 0.0
        %v7408 = vsel %vm602, %v7239, 0.0
        %v7409 = vsel %vm602, %v7242, 0.0
        %v7410 = vsel %vm602, %v7245, 0.0
        %v7411 = vsel %vm602, %v7248, 0.0
        %v7412 = vsel %vm602, %v7251, 0.0
        %v7473 = vrot.slane %v7349, 1
        %v7474 = vrot.slane %v7159, 1
        %v7475 = vsel %vm925, %v7473, %v7474
        %v7476 = vrot.slane %v7381, 1
        %v7477 = vsel %vm925, %v7474, %v7476
        %v7478 = vrot.slane %v7350, 1
        %v7479 = vrot.slane %v7162, 1
        %v7480 = vsel %vm925, %v7478, %v7479
        %v7481 = vrot.slane %v7382, 1
        %v7482 = vsel %vm925, %v7479, %v7481
        %v7483 = vrot.slane %v7351, 1
        %v7484 = vrot.slane %v7165, 1
        %v7485 = vsel %vm925, %v7483, %v7484
        %v7486 = vrot.slane %v7383, 1
        %v7487 = vsel %vm925, %v7484, %v7486
        %v7488 = vrot.slane %v7352, 1
        %v7489 = vrot.slane %v7168, 1
        %v7490 = vsel %vm925, %v7488, %v7489
        %v7491 = vrot.slane %v7384, 1
        %v7492 = vsel %vm925, %v7489, %v7491
        %v7493 = vrot.slane %v7353, 1
        %v7494 = vrot.slane %v7171, 1
        %v7495 = vsel %vm925, %v7493, %v7494
        %v7496 = vrot.slane %v7385, 1
        %v7497 = vsel %vm925, %v7494, %v7496
        %v7498 = vrot.slane %v7354, 1
        %v7499 = vrot.slane %v7174, 1
        %v7500 = vsel %vm925, %v7498, %v7499
        %v7501 = vrot.slane %v7386, 1
        %v7502 = vsel %vm925, %v7499, %v7501
        %v7503 = vrot.slane %v7355, 1
        %v7504 = vrot.slane %v7177, 1
        %v7505 = vsel %vm925, %v7503, %v7504
        %v7506 = vrot.slane %v7387, 1
        %v7507 = vsel %vm925, %v7504, %v7506
        %v7508 = vrot.slane %v7356, 1
        %v7509 = vrot.slane %v7180, 1
        %v7510 = vsel %vm925, %v7508, %v7509
        %v7511 = vrot.slane %v7388, 1
        %v7512 = vsel %vm925, %v7509, %v7511
        %v7513 = vrot.slane %v7357, 1
        %v7514 = vrot.slane %v7183, 1
        %v7515 = vsel %vm925, %v7513, %v7514
        %v7516 = vrot.slane %v7389, 1
        %v7517 = vsel %vm925, %v7514, %v7516
        %v7518 = vrot.slane %v7358, 1
        %v7519 = vrot.slane %v7186, 1
        %v7520 = vsel %vm925, %v7518, %v7519
        %v7521 = vrot.slane %v7390, 1
        %v7522 = vsel %vm925, %v7519, %v7521
        %v7523 = vrot.slane %v7359, 1
        %v7524 = vrot.slane %v7189, 1
        %v7525 = vsel %vm925, %v7523, %v7524
        %v7526 = vrot.slane %v7391, 1
        %v7527 = vsel %vm925, %v7524, %v7526
        %v7528 = vrot.slane %v7360, 1
        %v7529 = vrot.slane %v7192, 1
        %v7530 = vsel %vm925, %v7528, %v7529
        %v7531 = vrot.slane %v7392, 1
        %v7532 = vsel %vm925, %v7529, %v7531
        %v7533 = vrot.slane %v7361, 1
        %v7534 = vrot.slane %v7195, 1
        %v7535 = vsel %vm925, %v7533, %v7534
        %v7536 = vrot.slane %v7393, 1
        %v7537 = vsel %vm925, %v7534, %v7536
        %v7538 = vrot.slane %v7362, 1
        %v7539 = vrot.slane %v7198, 1
        %v7540 = vsel %vm925, %v7538, %v7539
        %v7541 = vrot.slane %v7394, 1
        %v7542 = vsel %vm925, %v7539, %v7541
        %v7543 = vrot.slane %v7363, 1
        %v7544 = vrot.slane %v7201, 1
        %v7545 = vsel %vm925, %v7543, %v7544
        %v7546 = vrot.slane %v7395, 1
        %v7547 = vsel %vm925, %v7544, %v7546
        %v7548 = vrot.slane %v7365, 1
        %v7549 = vrot.slane %v7207, 1
        %v7550 = vsel %vm925, %v7548, %v7549
        %v7551 = vrot.slane %v7397, 1
        %v7552 = vsel %vm925, %v7549, %v7551
        %v7553 = vrot.slane %v7366, 1
        %v7554 = vrot.slane %v7210, 1
        %v7555 = vsel %vm925, %v7553, %v7554
        %v7556 = vrot.slane %v7398, 1
        %v7557 = vsel %vm925, %v7554, %v7556
        %v7558 = vrot.slane %v7367, 1
        %v7559 = vrot.slane %v7213, 1
        %v7560 = vsel %vm925, %v7558, %v7559
        %v7561 = vrot.slane %v7399, 1
        %v7562 = vsel %vm925, %v7559, %v7561
        %v7563 = vrot.slane %v7368, 1
        %v7564 = vrot.slane %v7216, 1
        %v7565 = vsel %vm925, %v7563, %v7564
        %v7566 = vrot.slane %v7400, 1
        %v7567 = vsel %vm925, %v7564, %v7566
        %v7568 = vrot.slane %v7369, 1
        %v7569 = vrot.slane %v7219, 1
        %v7570 = vsel %vm925, %v7568, %v7569
        %v7571 = vrot.slane %v7401, 1
        %v7572 = vsel %vm925, %v7569, %v7571
        %v7573 = vrot.slane %v7370, 1
        %v7574 = vrot.slane %v7222, 1
        %v7575 = vsel %vm925, %v7573, %v7574
        %v7576 = vrot.slane %v7402, 1
        %v7577 = vsel %vm925, %v7574, %v7576
        %v7578 = vrot.slane %v7371, 1
        %v7579 = vrot.slane %v7225, 1
        %v7580 = vsel %vm925, %v7578, %v7579
        %v7581 = vrot.slane %v7403, 1
        %v7582 = vsel %vm925, %v7579, %v7581
        %v7583 = vrot.slane %v7372, 1
        %v7584 = vrot.slane %v7228, 1
        %v7585 = vsel %vm925, %v7583, %v7584
        %v7586 = vrot.slane %v7404, 1
        %v7587 = vsel %vm925, %v7584, %v7586
        %v7588 = vrot.slane %v7373, 1
        %v7589 = vrot.slane %v7231, 1
        %v7590 = vsel %vm925, %v7588, %v7589
        %v7591 = vrot.slane %v7405, 1
        %v7592 = vsel %vm925, %v7589, %v7591
        %v7593 = vrot.slane %v7374, 1
        %v7594 = vrot.slane %v7234, 1
        %v7595 = vsel %vm925, %v7593, %v7594
        %v7596 = vrot.slane %v7406, 1
        %v7597 = vsel %vm925, %v7594, %v7596
        %v7598 = vrot.slane %v7375, 1
        %v7599 = vrot.slane %v7237, 1
        %v7600 = vsel %vm925, %v7598, %v7599
        %v7601 = vrot.slane %v7407, 1
        %v7602 = vsel %vm925, %v7599, %v7601
        %v7603 = vrot.slane %v7376, 1
        %v7604 = vrot.slane %v7240, 1
        %v7605 = vsel %vm925, %v7603, %v7604
        %v7606 = vrot.slane %v7408, 1
        %v7607 = vsel %vm925, %v7604, %v7606
        %v7608 = vrot.slane %v7377, 1
        %v7609 = vrot.slane %v7243, 1
        %v7610 = vsel %vm925, %v7608, %v7609
        %v7611 = vrot.slane %v7409, 1
        %v7612 = vsel %vm925, %v7609, %v7611
        %v7613 = vrot.slane %v7378, 1
        %v7614 = vrot.slane %v7246, 1
        %v7615 = vsel %vm925, %v7613, %v7614
        %v7616 = vrot.slane %v7410, 1
        %v7617 = vsel %vm925, %v7614, %v7616
        %v7618 = vrot.slane %v7379, 1
        %v7619 = vrot.slane %v7249, 1
        %v7620 = vsel %vm925, %v7618, %v7619
        %v7621 = vrot.slane %v7411, 1
        %v7622 = vsel %vm925, %v7619, %v7621
        %v7683 = vrot.slane %v7349, 2
        %v7684 = vrot.slane %v7159, 2
        %v7685 = vsel %vm1267, %v7683, %v7684
        %v7686 = vrot.slane %v7381, 2
        %v7687 = vsel %vm1267, %v7684, %v7686
        %v7688 = vrot.slane %v7350, 2
        %v7689 = vrot.slane %v7162, 2
        %v7690 = vsel %vm1267, %v7688, %v7689
        %v7691 = vrot.slane %v7382, 2
        %v7692 = vsel %vm1267, %v7689, %v7691
        %v7693 = vrot.slane %v7351, 2
        %v7694 = vrot.slane %v7165, 2
        %v7695 = vsel %vm1267, %v7693, %v7694
        %v7696 = vrot.slane %v7383, 2
        %v7697 = vsel %vm1267, %v7694, %v7696
        %v7698 = vrot.slane %v7352, 2
        %v7699 = vrot.slane %v7168, 2
        %v7700 = vsel %vm1267, %v7698, %v7699
        %v7701 = vrot.slane %v7384, 2
        %v7702 = vsel %vm1267, %v7699, %v7701
        %v7703 = vrot.slane %v7353, 2
        %v7704 = vrot.slane %v7171, 2
        %v7705 = vsel %vm1267, %v7703, %v7704
        %v7706 = vrot.slane %v7385, 2
        %v7707 = vsel %vm1267, %v7704, %v7706
        %v7708 = vrot.slane %v7354, 2
        %v7709 = vrot.slane %v7174, 2
        %v7710 = vsel %vm1267, %v7708, %v7709
        %v7711 = vrot.slane %v7386, 2
        %v7712 = vsel %vm1267, %v7709, %v7711
        %v7713 = vrot.slane %v7355, 2
        %v7714 = vrot.slane %v7177, 2
        %v7715 = vsel %vm1267, %v7713, %v7714
        %v7716 = vrot.slane %v7387, 2
        %v7717 = vsel %vm1267, %v7714, %v7716
        %v7718 = vrot.slane %v7356, 2
        %v7719 = vrot.slane %v7180, 2
        %v7720 = vsel %vm1267, %v7718, %v7719
        %v7721 = vrot.slane %v7388, 2
        %v7722 = vsel %vm1267, %v7719, %v7721
        %v7723 = vrot.slane %v7357, 2
        %v7724 = vrot.slane %v7183, 2
        %v7725 = vsel %vm1267, %v7723, %v7724
        %v7726 = vrot.slane %v7389, 2
        %v7727 = vsel %vm1267, %v7724, %v7726
        %v7728 = vrot.slane %v7358, 2
        %v7729 = vrot.slane %v7186, 2
        %v7730 = vsel %vm1267, %v7728, %v7729
        %v7731 = vrot.slane %v7390, 2
        %v7732 = vsel %vm1267, %v7729, %v7731
        %v7733 = vrot.slane %v7359, 2
        %v7734 = vrot.slane %v7189, 2
        %v7735 = vsel %vm1267, %v7733, %v7734
        %v7736 = vrot.slane %v7391, 2
        %v7737 = vsel %vm1267, %v7734, %v7736
        %v7738 = vrot.slane %v7360, 2
        %v7739 = vrot.slane %v7192, 2
        %v7740 = vsel %vm1267, %v7738, %v7739
        %v7741 = vrot.slane %v7392, 2
        %v7742 = vsel %vm1267, %v7739, %v7741
        %v7743 = vrot.slane %v7361, 2
        %v7744 = vrot.slane %v7195, 2
        %v7745 = vsel %vm1267, %v7743, %v7744
        %v7746 = vrot.slane %v7393, 2
        %v7747 = vsel %vm1267, %v7744, %v7746
        %v7748 = vrot.slane %v7362, 2
        %v7749 = vrot.slane %v7198, 2
        %v7750 = vsel %vm1267, %v7748, %v7749
        %v7751 = vrot.slane %v7394, 2
        %v7752 = vsel %vm1267, %v7749, %v7751
        %v7753 = vrot.slane %v7363, 2
        %v7754 = vrot.slane %v7201, 2
        %v7755 = vsel %vm1267, %v7753, %v7754
        %v7756 = vrot.slane %v7395, 2
        %v7757 = vsel %vm1267, %v7754, %v7756
        %v7758 = vrot.slane %v7365, 2
        %v7759 = vrot.slane %v7207, 2
        %v7760 = vsel %vm1267, %v7758, %v7759
        %v7761 = vrot.slane %v7397, 2
        %v7762 = vsel %vm1267, %v7759, %v7761
        %v7763 = vrot.slane %v7366, 2
        %v7764 = vrot.slane %v7210, 2
        %v7765 = vsel %vm1267, %v7763, %v7764
        %v7766 = vrot.slane %v7398, 2
        %v7767 = vsel %vm1267, %v7764, %v7766
        %v7768 = vrot.slane %v7367, 2
        %v7769 = vrot.slane %v7213, 2
        %v7770 = vsel %vm1267, %v7768, %v7769
        %v7771 = vrot.slane %v7399, 2
        %v7772 = vsel %vm1267, %v7769, %v7771
        %v7773 = vrot.slane %v7368, 2
        %v7774 = vrot.slane %v7216, 2
        %v7775 = vsel %vm1267, %v7773, %v7774
        %v7776 = vrot.slane %v7400, 2
        %v7777 = vsel %vm1267, %v7774, %v7776
        %v7778 = vrot.slane %v7369, 2
        %v7779 = vrot.slane %v7219, 2
        %v7780 = vsel %vm1267, %v7778, %v7779
        %v7781 = vrot.slane %v7401, 2
        %v7782 = vsel %vm1267, %v7779, %v7781
        %v7783 = vrot.slane %v7370, 2
        %v7784 = vrot.slane %v7222, 2
        %v7785 = vsel %vm1267, %v7783, %v7784
        %v7786 = vrot.slane %v7402, 2
        %v7787 = vsel %vm1267, %v7784, %v7786
        %v7788 = vrot.slane %v7371, 2
        %v7789 = vrot.slane %v7225, 2
        %v7790 = vsel %vm1267, %v7788, %v7789
        %v7791 = vrot.slane %v7403, 2
        %v7792 = vsel %vm1267, %v7789, %v7791
        %v7793 = vrot.slane %v7372, 2
        %v7794 = vrot.slane %v7228, 2
        %v7795 = vsel %vm1267, %v7793, %v7794
        %v7796 = vrot.slane %v7404, 2
        %v7797 = vsel %vm1267, %v7794, %v7796
        %v7798 = vrot.slane %v7373, 2
        %v7799 = vrot.slane %v7231, 2
        %v7800 = vsel %vm1267, %v7798, %v7799
        %v7801 = vrot.slane %v7405, 2
        %v7802 = vsel %vm1267, %v7799, %v7801
        %v7803 = vrot.slane %v7374, 2
        %v7804 = vrot.slane %v7234, 2
        %v7805 = vsel %vm1267, %v7803, %v7804
        %v7806 = vrot.slane %v7406, 2
        %v7807 = vsel %vm1267, %v7804, %v7806
        %v7808 = vrot.slane %v7375, 2
        %v7809 = vrot.slane %v7237, 2
        %v7810 = vsel %vm1267, %v7808, %v7809
        %v7811 = vrot.slane %v7407, 2
        %v7812 = vsel %vm1267, %v7809, %v7811
        %v7813 = vrot.slane %v7376, 2
        %v7814 = vrot.slane %v7240, 2
        %v7815 = vsel %vm1267, %v7813, %v7814
        %v7816 = vrot.slane %v7408, 2
        %v7817 = vsel %vm1267, %v7814, %v7816
        %v7818 = vrot.slane %v7377, 2
        %v7819 = vrot.slane %v7243, 2
        %v7820 = vsel %vm1267, %v7818, %v7819
        %v7821 = vrot.slane %v7409, 2
        %v7822 = vsel %vm1267, %v7819, %v7821
        %v7823 = vrot.slane %v7378, 2
        %v7824 = vrot.slane %v7246, 2
        %v7825 = vsel %vm1267, %v7823, %v7824
        %v7826 = vrot.slane %v7410, 2
        %v7827 = vsel %vm1267, %v7824, %v7826
        %v7828 = vrot.slane %v7379, 2
        %v7829 = vrot.slane %v7249, 2
        %v7830 = vsel %vm1267, %v7828, %v7829
        %v7831 = vrot.slane %v7411, 2
        %v7832 = vsel %vm1267, %v7829, %v7831
        %v7897 = vrot.slane %v7364, 1
        %v7898 = vrot.slane %v7204, 1
        %v7899 = vsel %vm925, %v7897, %v7898
        %v7900 = vrot.slane %v7396, 1
        %v7901 = vsel %vm925, %v7898, %v7900
        %v7902 = vrot.slane %v7380, 1
        %v7903 = vrot.slane %v7252, 1
        %v7904 = vsel %vm925, %v7902, %v7903
        %v7905 = vrot.slane %v7412, 1
        %v7906 = vsel %vm925, %v7903, %v7905
        %v7911 = vrot.slane %v7364, 2
        %v7912 = vrot.slane %v7204, 2
        %v7913 = vsel %vm1267, %v7911, %v7912
        %v7914 = vrot.slane %v7396, 2
        %v7915 = vsel %vm1267, %v7912, %v7914
        %v7916 = vrot.slane %v7380, 2
        %v7917 = vrot.slane %v7252, 2
        %v7918 = vsel %vm1267, %v7916, %v7917
        %v7919 = vrot.slane %v7412, 2
        %v7920 = vsel %vm1267, %v7917, %v7919
        %v7925 = vpack.c.bf16 %v7159, %v7349
        %v7926 = vpack.c.bf16 %v7477, %v7475
        %v7927 = vpack.c.bf16 %v7687, %v7685
        %v7928 = vpack.c.bf16 %v7162, %v7350
        %v7929 = vpack.c.bf16 %v7482, %v7480
        %v7930 = vpack.c.bf16 %v7692, %v7690
        %v7931 = vpack.c.bf16 %v7165, %v7351
        %v7932 = vpack.c.bf16 %v7487, %v7485
        %v7933 = vpack.c.bf16 %v7697, %v7695
        %v7934 = vpack.c.bf16 %v7168, %v7352
        %v7935 = vpack.c.bf16 %v7492, %v7490
        %v7936 = vpack.c.bf16 %v7702, %v7700
        %v7937 = vpack.c.bf16 %v7171, %v7353
        %v7938 = vpack.c.bf16 %v7497, %v7495
        %v7939 = vpack.c.bf16 %v7707, %v7705
        %v7940 = vpack.c.bf16 %v7174, %v7354
        %v7941 = vpack.c.bf16 %v7502, %v7500
        %v7942 = vpack.c.bf16 %v7712, %v7710
        %v7943 = vpack.c.bf16 %v7177, %v7355
        %v7944 = vpack.c.bf16 %v7507, %v7505
        %v7945 = vpack.c.bf16 %v7717, %v7715
        %v7946 = vpack.c.bf16 %v7180, %v7356
        %v7947 = vpack.c.bf16 %v7512, %v7510
        %v7948 = vpack.c.bf16 %v7722, %v7720
        %v7949 = vpack.c.bf16 %v7183, %v7357
        %v7950 = vpack.c.bf16 %v7517, %v7515
        %v7951 = vpack.c.bf16 %v7727, %v7725
        %v7952 = vpack.c.bf16 %v7186, %v7358
        %v7953 = vpack.c.bf16 %v7522, %v7520
        %v7954 = vpack.c.bf16 %v7732, %v7730
        %v7955 = vpack.c.bf16 %v7189, %v7359
        %v7956 = vpack.c.bf16 %v7527, %v7525
        %v7957 = vpack.c.bf16 %v7737, %v7735
        %v7958 = vpack.c.bf16 %v7192, %v7360
        %v7959 = vpack.c.bf16 %v7532, %v7530
        %v7960 = vpack.c.bf16 %v7742, %v7740
        %v7961 = vpack.c.bf16 %v7195, %v7361
        %v7962 = vpack.c.bf16 %v7537, %v7535
        %v7963 = vpack.c.bf16 %v7747, %v7745
        %v7964 = vpack.c.bf16 %v7198, %v7362
        %v7965 = vpack.c.bf16 %v7542, %v7540
        %v7966 = vpack.c.bf16 %v7752, %v7750
        %v7967 = vpack.c.bf16 %v7201, %v7363
        %v7968 = vpack.c.bf16 %v7547, %v7545
        %v7969 = vpack.c.bf16 %v7757, %v7755
        %v7970 = vpack.c.bf16 %v7204, %v7364
        %v7971 = vpack.c.bf16 %v7901, %v7899
        %v7972 = vpack.c.bf16 %v7915, %v7913
        %v7973 = vpack.c.bf16 %v7207, %v7365
        %v7974 = vpack.c.bf16 %v7552, %v7550
        %v7975 = vpack.c.bf16 %v7762, %v7760
        %v7976 = vpack.c.bf16 %v7210, %v7366
        %v7977 = vpack.c.bf16 %v7557, %v7555
        %v7978 = vpack.c.bf16 %v7767, %v7765
        %v7979 = vpack.c.bf16 %v7213, %v7367
        %v7980 = vpack.c.bf16 %v7562, %v7560
        %v7981 = vpack.c.bf16 %v7772, %v7770
        %v7982 = vpack.c.bf16 %v7216, %v7368
        %v7983 = vpack.c.bf16 %v7567, %v7565
        %v7984 = vpack.c.bf16 %v7777, %v7775
        %v7985 = vpack.c.bf16 %v7219, %v7369
        %v7986 = vpack.c.bf16 %v7572, %v7570
        %v7987 = vpack.c.bf16 %v7782, %v7780
        %v7988 = vpack.c.bf16 %v7222, %v7370
        %v7989 = vpack.c.bf16 %v7577, %v7575
        %v7990 = vpack.c.bf16 %v7787, %v7785
        %v7991 = vpack.c.bf16 %v7225, %v7371
        %v7992 = vpack.c.bf16 %v7582, %v7580
        %v7993 = vpack.c.bf16 %v7792, %v7790
        %v7994 = vpack.c.bf16 %v7228, %v7372
        %v7995 = vpack.c.bf16 %v7587, %v7585
        %v7996 = vpack.c.bf16 %v7797, %v7795
        %v7997 = vpack.c.bf16 %v7231, %v7373
        %v7998 = vpack.c.bf16 %v7592, %v7590
        %v7999 = vpack.c.bf16 %v7802, %v7800
        %v8000 = vpack.c.bf16 %v7234, %v7374
        %v8001 = vpack.c.bf16 %v7597, %v7595
        %v8002 = vpack.c.bf16 %v7807, %v7805
        %v8003 = vpack.c.bf16 %v7237, %v7375
        %v8004 = vpack.c.bf16 %v7602, %v7600
        %v8005 = vpack.c.bf16 %v7812, %v7810
        %v8006 = vpack.c.bf16 %v7240, %v7376
        %v8007 = vpack.c.bf16 %v7607, %v7605
        %v8008 = vpack.c.bf16 %v7817, %v7815
        %v8009 = vpack.c.bf16 %v7243, %v7377
        %v8010 = vpack.c.bf16 %v7612, %v7610
        %v8011 = vpack.c.bf16 %v7822, %v7820
        %v8012 = vpack.c.bf16 %v7246, %v7378
        %v8013 = vpack.c.bf16 %v7617, %v7615
        %v8014 = vpack.c.bf16 %v7827, %v7825
        %v8015 = vpack.c.bf16 %v7249, %v7379
        %v8016 = vpack.c.bf16 %v7622, %v7620
        %v8017 = vpack.c.bf16 %v7832, %v7830
        %v8018 = vpack.c.bf16 %v7252, %v7380
        %v8019 = vpack.c.bf16 %v7906, %v7904
        %v8020 = vpack.c.bf16 %v7920, %v7918
        %v8021 = vld [vmem:[%s7] sm:$0xf]
        %v8022 = vld [vmem:[%s7 + $0x4] sm:$0xf]
        %v8023 = vld [vmem:[%s7 + $0x8] sm:$0xf]
        %v8024 = vld [vmem:[%s7 + $0xc] sm:$0xf]
        %v8025 = vld [vmem:[%s7 + $0x10] sm:$0xf]
        %v8026 = vld [vmem:[%s7 + $0x14] sm:$0xf]
        %v8027 = vld [vmem:[%s7 + $0x18] sm:$0xf]
        %v8028 = vld [vmem:[%s7 + $0x1c] sm:$0xf]
        %v8029 = vld [vmem:[%s7 + $0x20] sm:$0xf]
        %v8030 = vld [vmem:[%s7 + $0x24] sm:$0xf]
        %v8031 = vld [vmem:[%s7 + $0x28] sm:$0xf]
        %v8032 = vld [vmem:[%s7 + $0x2c] sm:$0xf]
        %v8033 = vld [vmem:[%s7 + $0x30] sm:$0xf]
        %v8034 = vld [vmem:[%s7 + $0x34] sm:$0xf]
        %v8035 = vld [vmem:[%s7 + $0x38] sm:$0xf]
        %v8036 = vld [vmem:[%s7 + $0x3c] sm:$0xf]
        %v8037 = vld [vmem:[%s7 + $0x40] sm:$0xf]
        %v8038 = vld [vmem:[%s7 + $0x44] sm:$0xf]
        %v8039 = vld [vmem:[%s7 + $0x48] sm:$0xf]
        %v8040 = vld [vmem:[%s7 + $0x4c] sm:$0xf]
        %v8041 = vld [vmem:[%s7 + $0x50] sm:$0xf]
        %v8042 = vld [vmem:[%s7 + $0x54] sm:$0xf]
        %v8043 = vld [vmem:[%s7 + $0x58] sm:$0xf]
        %v8044 = vld [vmem:[%s7 + $0x5c] sm:$0xf]
        %v8045 = vld [vmem:[%s7 + $0x60] sm:$0xf]
        %v8046 = vld [vmem:[%s7 + $0x64] sm:$0xf]
        %v8047 = vld [vmem:[%s7 + $0x68] sm:$0xf]
        %v8048 = vld [vmem:[%s7 + $0x6c] sm:$0xf]
        %v8049 = vld [vmem:[%s7 + $0x70] sm:$0xf]
        %v8050 = vld [vmem:[%s7 + $0x74] sm:$0xf]
        %v8051 = vld [vmem:[%s7 + $0x78] sm:$0xf]
        %v8052 = vld [vmem:[%s7 + $0x7c] sm:$0xf]
        %v8053 = vld [vmem:[%s7 + $0x80] sm:$0xf]
        %v8054 = vld [vmem:[%s7 + $0x84] sm:$0xf]
        %v8055 = vld [vmem:[%s7 + $0x88] sm:$0xf]
        %v8056 = vld [vmem:[%s7 + $0x8c] sm:$0xf]
        %v8057 = vld [vmem:[%s7 + $0x90] sm:$0xf]
        %v8058 = vld [vmem:[%s7 + $0x94] sm:$0xf]
        %v8059 = vld [vmem:[%s7 + $0x98] sm:$0xf]
        %v8060 = vld [vmem:[%s7 + $0x9c] sm:$0xf]
        %v8061 = vld [vmem:[%s7 + $0xa0] sm:$0xf]
        %v8062 = vld [vmem:[%s7 + $0xa4] sm:$0xf]
        %v8063 = vld [vmem:[%s7 + $0xa8] sm:$0xf]
        %v8064 = vld [vmem:[%s7 + $0xac] sm:$0xf]
        %v8065 = vld [vmem:[%s7 + $0xb0] sm:$0xf]
        %v8066 = vld [vmem:[%s7 + $0xb4] sm:$0xf]
        %v8067 = vld [vmem:[%s7 + $0xb8] sm:$0xf]
        %v8068 = vld [vmem:[%s7 + $0xbc] sm:$0xf]
        %v8069 = vld [vmem:[%s7 + $0xc0] sm:$0xf]
        %v8070 = vld [vmem:[%s7 + $0xc4] sm:$0xf]
        %v8071 = vld [vmem:[%s7 + $0xc8] sm:$0xf]
        %v8072 = vld [vmem:[%s7 + $0xcc] sm:$0xf]
        %v8073 = vld [vmem:[%s7 + $0xd0] sm:$0xf]
        %v8074 = vld [vmem:[%s7 + $0xd4] sm:$0xf]
        %v8075 = vld [vmem:[%s7 + $0xd8] sm:$0xf]
        %v8076 = vld [vmem:[%s7 + $0xdc] sm:$0xf]
        %v8077 = vld [vmem:[%s7 + $0xe0] sm:$0xf]
        %v8078 = vld [vmem:[%s7 + $0xe4] sm:$0xf]
        %v8079 = vld [vmem:[%s7 + $0xe8] sm:$0xf]
        %v8080 = vld [vmem:[%s7 + $0xec] sm:$0xf]
        %v8081 = vld [vmem:[%s7 + $0xf0] sm:$0xf]
        %v8082 = vld [vmem:[%s7 + $0xf4] sm:$0xf]
        %v8083 = vld [vmem:[%s7 + $0xf8] sm:$0xf]
        %v8084 = vld [vmem:[%s7 + $0xfc] sm:$0xf]
        %v8085 = vld [vmem:[%s7 + $0x100] sm:$0xf]
        %v8086 = vld [vmem:[%s7 + $0x104] sm:$0xf]
        %v8087 = vld [vmem:[%s7 + $0x108] sm:$0xf]
        %v8088 = vld [vmem:[%s7 + $0x10c] sm:$0xf]
        %v8089 = vld [vmem:[%s7 + $0x110] sm:$0xf]
        %v8090 = vld [vmem:[%s7 + $0x114] sm:$0xf]
        %v8091 = vld [vmem:[%s7 + $0x118] sm:$0xf]
        %v8092 = vld [vmem:[%s7 + $0x11c] sm:$0xf]
        %v8093 = vld [vmem:[%s7 + $0x120] sm:$0xf]
        %v8094 = vld [vmem:[%s7 + $0x124] sm:$0xf]
        %v8095 = vld [vmem:[%s7 + $0x128] sm:$0xf]
        %v8096 = vld [vmem:[%s7 + $0x12c] sm:$0xf]
        %v8097 = vld [vmem:[%s7 + $0x130] sm:$0xf]
        %v8098 = vld [vmem:[%s7 + $0x134] sm:$0xf]
        %v8099 = vld [vmem:[%s7 + $0x138] sm:$0xf]
        %v8100 = vld [vmem:[%s7 + $0x13c] sm:$0xf]
        %v8101 = vld [vmem:[%s7 + $0x140] sm:$0xf]
        %v8102 = vld [vmem:[%s7 + $0x144] sm:$0xf]
        %v8103 = vld [vmem:[%s7 + $0x148] sm:$0xf]
        %v8104 = vld [vmem:[%s7 + $0x14c] sm:$0xf]
        %v8105 = vld [vmem:[%s7 + $0x150] sm:$0xf]
        %v8106 = vld [vmem:[%s7 + $0x154] sm:$0xf]
        %v8107 = vld [vmem:[%s7 + $0x158] sm:$0xf]
        %v8108 = vld [vmem:[%s7 + $0x15c] sm:$0xf]
        %v8109 = vld [vmem:[%s7 + $0x160] sm:$0xf]
        %v8110 = vld [vmem:[%s7 + $0x164] sm:$0xf]
        %v8111 = vld [vmem:[%s7 + $0x168] sm:$0xf]
        %v8112 = vld [vmem:[%s7 + $0x16c] sm:$0xf]
        %v8113 = vld [vmem:[%s7 + $0x170] sm:$0xf]
        %v8114 = vld [vmem:[%s7 + $0x174] sm:$0xf]
        %v8115 = vld [vmem:[%s7 + $0x178] sm:$0xf]
        %v8116 = vld [vmem:[%s7 + $0x17c] sm:$0xf]
        %v8117 = vld [vmem:[%s7 + $0x180] sm:$0xf]
        %v8118 = vld [vmem:[%s7 + $0x184] sm:$0xf]
        %v8119 = vld [vmem:[%s7 + $0x188] sm:$0xf]
        %v8120 = vld [vmem:[%s7 + $0x18c] sm:$0xf]
        %v8121 = vld [vmem:[%s7 + $0x190] sm:$0xf]
        %v8122 = vld [vmem:[%s7 + $0x194] sm:$0xf]
        %v8123 = vld [vmem:[%s7 + $0x198] sm:$0xf]
        %v8124 = vld [vmem:[%s7 + $0x19c] sm:$0xf]
        %v8125 = vld [vmem:[%s7 + $0x1a0] sm:$0xf]
        %v8126 = vld [vmem:[%s7 + $0x1a4] sm:$0xf]
        %v8127 = vld [vmem:[%s7 + $0x1a8] sm:$0xf]
        %v8128 = vld [vmem:[%s7 + $0x1ac] sm:$0xf]
        %v8129 = vld [vmem:[%s7 + $0x1b0] sm:$0xf]
        %v8130 = vld [vmem:[%s7 + $0x1b4] sm:$0xf]
        %v8131 = vld [vmem:[%s7 + $0x1b8] sm:$0xf]
        %v8132 = vld [vmem:[%s7 + $0x1bc] sm:$0xf]
        %v8133 = vld [vmem:[%s7 + $0x1c0] sm:$0xf]
        %v8134 = vld [vmem:[%s7 + $0x1c4] sm:$0xf]
        %v8135 = vld [vmem:[%s7 + $0x1c8] sm:$0xf]
        %v8136 = vld [vmem:[%s7 + $0x1cc] sm:$0xf]
        %v8137 = vld [vmem:[%s7 + $0x1d0] sm:$0xf]
        %v8138 = vld [vmem:[%s7 + $0x1d4] sm:$0xf]
        %v8139 = vld [vmem:[%s7 + $0x1d8] sm:$0xf]
        %v8140 = vld [vmem:[%s7 + $0x1dc] sm:$0xf]
        %v8141 = vld [vmem:[%s7 + $0x1e0] sm:$0xf]
        %v8142 = vld [vmem:[%s7 + $0x1e4] sm:$0xf]
        %v8143 = vld [vmem:[%s7 + $0x1e8] sm:$0xf]
        %v8144 = vld [vmem:[%s7 + $0x1ec] sm:$0xf]
        %v8145 = vld [vmem:[%s7 + $0x1f0] sm:$0xf]
        %v8146 = vld [vmem:[%s7 + $0x1f4] sm:$0xf]
        %v8147 = vld [vmem:[%s7 + $0x1f8] sm:$0xf]
        %v8148 = vld [vmem:[%s7 + $0x1fc] sm:$0xf]
        %v8149 = vld [vmem:[%s7 + $0x200] sm:$0xf]
        %v8150 = vld [vmem:[%s7 + $0x204] sm:$0xf]
        %v8151 = vld [vmem:[%s7 + $0x208] sm:$0xf]
        %v8152 = vld [vmem:[%s7 + $0x20c] sm:$0xf]
        %v8153 = vld [vmem:[%s7 + $0x210] sm:$0xf]
        %v8154 = vld [vmem:[%s7 + $0x214] sm:$0xf]
        %v8155 = vld [vmem:[%s7 + $0x218] sm:$0xf]
        %v8156 = vld [vmem:[%s7 + $0x21c] sm:$0xf]
        %v8157 = vld [vmem:[%s7 + $0x220] sm:$0xf]
        %v8158 = vld [vmem:[%s7 + $0x224] sm:$0xf]
        %v8159 = vld [vmem:[%s7 + $0x228] sm:$0xf]
        %v8160 = vld [vmem:[%s7 + $0x22c] sm:$0xf]
        %v8161 = vld [vmem:[%s7 + $0x230] sm:$0xf]
        %v8162 = vld [vmem:[%s7 + $0x234] sm:$0xf]
        %v8163 = vld [vmem:[%s7 + $0x238] sm:$0xf]
        %v8164 = vld [vmem:[%s7 + $0x23c] sm:$0xf]
        %v8309 = vunpack.c.l.b16 %v8021
        %v8310 = vunpack.c.l.b16 %v8022
        %v8311 = vunpack.c.l.b16 %v8023
        %v8312 = vunpack.c.l.b16 %v8024
        %v8313 = vunpack.c.l.b16 %v8025
        %v8314 = vunpack.c.l.b16 %v8026
        %v8315 = vunpack.c.l.b16 %v8027
        %v8316 = vunpack.c.l.b16 %v8028
        %v8317 = vunpack.c.l.b16 %v8029
        %v8318 = vunpack.c.l.b16 %v8030
        %v8319 = vunpack.c.l.b16 %v8031
        %v8320 = vunpack.c.l.b16 %v8032
        %v8321 = vunpack.c.l.b16 %v8033
        %v8322 = vunpack.c.l.b16 %v8034
        %v8323 = vunpack.c.l.b16 %v8035
        %v8324 = vunpack.c.l.b16 %v8036
        %v8325 = vunpack.c.l.b16 %v8037
        %v8326 = vunpack.c.l.b16 %v8038
        %v8327 = vunpack.c.l.b16 %v8039
        %v8328 = vunpack.c.l.b16 %v8040
        %v8329 = vunpack.c.l.b16 %v8041
        %v8330 = vunpack.c.l.b16 %v8042
        %v8331 = vunpack.c.l.b16 %v8043
        %v8332 = vunpack.c.l.b16 %v8044
        %v8333 = vunpack.c.l.b16 %v8045
        %v8334 = vunpack.c.l.b16 %v8046
        %v8335 = vunpack.c.l.b16 %v8047
        %v8336 = vunpack.c.l.b16 %v8048
        %v8337 = vunpack.c.l.b16 %v8049
        %v8338 = vunpack.c.l.b16 %v8050
        %v8339 = vunpack.c.l.b16 %v8051
        %v8340 = vunpack.c.l.b16 %v8052
        %v8341 = vunpack.c.l.b16 %v8053
        %v8342 = vunpack.c.l.b16 %v8054
        %v8343 = vunpack.c.l.b16 %v8055
        %v8344 = vunpack.c.l.b16 %v8056
        %v8345 = vunpack.c.l.b16 %v8057
        %v8346 = vunpack.c.l.b16 %v8058
        %v8347 = vunpack.c.l.b16 %v8059
        %v8348 = vunpack.c.l.b16 %v8060
        %v8349 = vunpack.c.l.b16 %v8061
        %v8350 = vunpack.c.l.b16 %v8062
        %v8351 = vunpack.c.l.b16 %v8063
        %v8352 = vunpack.c.l.b16 %v8064
        %v8353 = vunpack.c.l.b16 %v8065
        %v8354 = vunpack.c.l.b16 %v8066
        %v8355 = vunpack.c.l.b16 %v8067
        %v8356 = vunpack.c.l.b16 %v8068
        %v8357 = vunpack.c.l.b16 %v8069
        %v8358 = vunpack.c.l.b16 %v8070
        %v8359 = vunpack.c.l.b16 %v8071
        %v8360 = vunpack.c.l.b16 %v8072
        %v8361 = vunpack.c.l.b16 %v8073
        %v8362 = vunpack.c.l.b16 %v8074
        %v8363 = vunpack.c.l.b16 %v8075
        %v8364 = vunpack.c.l.b16 %v8076
        %v8365 = vunpack.c.l.b16 %v8077
        %v8366 = vunpack.c.l.b16 %v8078
        %v8367 = vunpack.c.l.b16 %v8079
        %v8368 = vunpack.c.l.b16 %v8080
        %v8369 = vunpack.c.l.b16 %v8081
        %v8370 = vunpack.c.l.b16 %v8082
        %v8371 = vunpack.c.l.b16 %v8083
        %v8372 = vunpack.c.l.b16 %v8084
        %v8373 = vunpack.c.l.b16 %v8085
        %v8374 = vunpack.c.l.b16 %v8086
        %v8375 = vunpack.c.l.b16 %v8087
        %v8376 = vunpack.c.l.b16 %v8088
        %v8377 = vunpack.c.l.b16 %v8089
        %v8378 = vunpack.c.l.b16 %v8090
        %v8379 = vunpack.c.l.b16 %v8091
        %v8380 = vunpack.c.l.b16 %v8092
        %v8381 = vunpack.c.l.b16 %v8093
        %v8382 = vunpack.c.l.b16 %v8094
        %v8383 = vunpack.c.l.b16 %v8095
        %v8384 = vunpack.c.l.b16 %v8096
        %v8385 = vunpack.c.l.b16 %v8097
        %v8386 = vunpack.c.l.b16 %v8098
        %v8387 = vunpack.c.l.b16 %v8099
        %v8388 = vunpack.c.l.b16 %v8100
        %v8389 = vunpack.c.l.b16 %v8101
        %v8390 = vunpack.c.l.b16 %v8102
        %v8391 = vunpack.c.l.b16 %v8103
        %v8392 = vunpack.c.l.b16 %v8104
        %v8393 = vunpack.c.l.b16 %v8105
        %v8394 = vunpack.c.l.b16 %v8106
        %v8395 = vunpack.c.l.b16 %v8107
        %v8396 = vunpack.c.l.b16 %v8108
        %v8397 = vunpack.c.l.b16 %v8109
        %v8398 = vunpack.c.l.b16 %v8110
        %v8399 = vunpack.c.l.b16 %v8111
        %v8400 = vunpack.c.l.b16 %v8112
        %v8401 = vunpack.c.l.b16 %v8113
        %v8402 = vunpack.c.l.b16 %v8114
        %v8403 = vunpack.c.l.b16 %v8115
        %v8404 = vunpack.c.l.b16 %v8116
        %v8405 = vunpack.c.l.b16 %v8117
        %v8406 = vunpack.c.l.b16 %v8118
        %v8407 = vunpack.c.l.b16 %v8119
        %v8408 = vunpack.c.l.b16 %v8120
        %v8409 = vunpack.c.l.b16 %v8121
        %v8410 = vunpack.c.l.b16 %v8122
        %v8411 = vunpack.c.l.b16 %v8123
        %v8412 = vunpack.c.l.b16 %v8124
        %v8413 = vunpack.c.l.b16 %v8125
        %v8414 = vunpack.c.l.b16 %v8126
        %v8415 = vunpack.c.l.b16 %v8127
        %v8416 = vunpack.c.l.b16 %v8128
        %v8417 = vunpack.c.l.b16 %v8129
        %v8418 = vunpack.c.l.b16 %v8130
        %v8419 = vunpack.c.l.b16 %v8131
        %v8420 = vunpack.c.l.b16 %v8132
        %v8421 = vunpack.c.l.b16 %v8133
        %v8422 = vunpack.c.l.b16 %v8134
        %v8423 = vunpack.c.l.b16 %v8135
        %v8424 = vunpack.c.l.b16 %v8136
        %v8425 = vunpack.c.l.b16 %v8137
        %v8426 = vunpack.c.l.b16 %v8138
        %v8427 = vunpack.c.l.b16 %v8139
        %v8428 = vunpack.c.l.b16 %v8140
        %v8429 = vunpack.c.l.b16 %v8141
        %v8430 = vunpack.c.l.b16 %v8142
        %v8431 = vunpack.c.l.b16 %v8143
        %v8432 = vunpack.c.l.b16 %v8144
        %v8433 = vunpack.c.l.b16 %v8145
        %v8434 = vunpack.c.l.b16 %v8146
        %v8435 = vunpack.c.l.b16 %v8147
        %v8436 = vunpack.c.l.b16 %v8148
        %v8437 = vunpack.c.l.b16 %v8149
        %v8438 = vunpack.c.l.b16 %v8150
        %v8439 = vunpack.c.l.b16 %v8151
        %v8440 = vunpack.c.l.b16 %v8152
        %v8441 = vunpack.c.l.b16 %v8153
        %v8442 = vunpack.c.l.b16 %v8154
        %v8443 = vunpack.c.l.b16 %v8155
        %v8444 = vunpack.c.l.b16 %v8156
        %v8445 = vunpack.c.l.b16 %v8157
        %v8446 = vunpack.c.l.b16 %v8158
        %v8447 = vunpack.c.l.b16 %v8159
        %v8448 = vunpack.c.l.b16 %v8160
        %v8449 = vunpack.c.l.b16 %v8161
        %v8450 = vunpack.c.l.b16 %v8162
        %v8451 = vunpack.c.l.b16 %v8163
        %v8452 = vunpack.c.l.b16 %v8164
        %v8453 = vpack.c.b16 %v8310, %v8309
        %v8454 = vpack.c.b16 %v8312, %v8311
        %v8455 = vpack.c.b16 %v8314, %v8313
        %v8456 = vpack.c.b16 %v8316, %v8315
        %v8457 = vpack.c.b16 %v8318, %v8317
        %v8458 = vpack.c.b16 %v8320, %v8319
        %v8459 = vpack.c.b16 %v8322, %v8321
        %v8460 = vpack.c.b16 %v8324, %v8323
        %v8461 = vpack.c.b16 %v8326, %v8325
        %v8462 = vpack.c.b16 %v8328, %v8327
        %v8463 = vpack.c.b16 %v8330, %v8329
        %v8464 = vpack.c.b16 %v8332, %v8331
        %v8465 = vpack.c.b16 %v8334, %v8333
        %v8466 = vpack.c.b16 %v8336, %v8335
        %v8467 = vpack.c.b16 %v8338, %v8337
        %v8468 = vpack.c.b16 %v8340, %v8339
        %v8469 = vpack.c.b16 %v8342, %v8341
        %v8470 = vpack.c.b16 %v8344, %v8343
        %v8471 = vpack.c.b16 %v8346, %v8345
        %v8472 = vpack.c.b16 %v8348, %v8347
        %v8473 = vpack.c.b16 %v8350, %v8349
        %v8474 = vpack.c.b16 %v8352, %v8351
        %v8475 = vpack.c.b16 %v8354, %v8353
        %v8476 = vpack.c.b16 %v8356, %v8355
        %v8477 = vpack.c.b16 %v8358, %v8357
        %v8478 = vpack.c.b16 %v8360, %v8359
        %v8479 = vpack.c.b16 %v8362, %v8361
        %v8480 = vpack.c.b16 %v8364, %v8363
        %v8481 = vpack.c.b16 %v8366, %v8365
        %v8482 = vpack.c.b16 %v8368, %v8367
        %v8483 = vpack.c.b16 %v8370, %v8369
        %v8484 = vpack.c.b16 %v8372, %v8371
        %v8485 = vpack.c.b16 %v8374, %v8373
        %v8486 = vpack.c.b16 %v8376, %v8375
        %v8487 = vpack.c.b16 %v8378, %v8377
        %v8488 = vpack.c.b16 %v8380, %v8379
        %v8489 = vpack.c.b16 %v8382, %v8381
        %v8490 = vpack.c.b16 %v8384, %v8383
        %v8491 = vpack.c.b16 %v8386, %v8385
        %v8492 = vpack.c.b16 %v8388, %v8387
        %v8493 = vpack.c.b16 %v8390, %v8389
        %v8494 = vpack.c.b16 %v8392, %v8391
        %v8495 = vpack.c.b16 %v8394, %v8393
        %v8496 = vpack.c.b16 %v8396, %v8395
        %v8497 = vpack.c.b16 %v8398, %v8397
        %v8498 = vpack.c.b16 %v8400, %v8399
        %v8499 = vpack.c.b16 %v8402, %v8401
        %v8500 = vpack.c.b16 %v8404, %v8403
        %v8501 = vpack.c.b16 %v8406, %v8405
        %v8502 = vpack.c.b16 %v8408, %v8407
        %v8503 = vpack.c.b16 %v8410, %v8409
        %v8504 = vpack.c.b16 %v8412, %v8411
        %v8505 = vpack.c.b16 %v8414, %v8413
        %v8506 = vpack.c.b16 %v8416, %v8415
        %v8507 = vpack.c.b16 %v8418, %v8417
        %v8508 = vpack.c.b16 %v8420, %v8419
        %v8509 = vpack.c.b16 %v8422, %v8421
        %v8510 = vpack.c.b16 %v8424, %v8423
        %v8511 = vpack.c.b16 %v8426, %v8425
        %v8512 = vpack.c.b16 %v8428, %v8427
        %v8513 = vpack.c.b16 %v8430, %v8429
        %v8514 = vpack.c.b16 %v8432, %v8431
        %v8515 = vpack.c.b16 %v8434, %v8433
        %v8516 = vpack.c.b16 %v8436, %v8435
        %v8517 = vpack.c.b16 %v8438, %v8437
        %v8518 = vpack.c.b16 %v8440, %v8439
        %v8519 = vpack.c.b16 %v8442, %v8441
        %v8520 = vpack.c.b16 %v8444, %v8443
        %v8521 = vpack.c.b16 %v8446, %v8445
        %v8522 = vpack.c.b16 %v8448, %v8447
        %v8523 = vpack.c.b16 %v8450, %v8449
        %v8524 = vpack.c.b16 %v8452, %v8451
        %8597 = vmatprep.subr.bf16.mxu0 0
        %8598 = vmatpush1.bf16.msra.mxu0 %v8453
        %8599 = vmatprep.subr.bf16.mxu0 0
        %8600 = vmatpush1.bf16.msra.mxu0 %v8454
        %8601 = vmatprep.subr.bf16.mxu0 0
        %8602 = vmatpush1.bf16.msra.mxu0 %v8455
        %8603 = vmatprep.subr.bf16.mxu0 0
        %8604 = vmatpush1.bf16.msra.mxu0 %v8456
        %8605 = vmatprep.subr.bf16.mxu0 0
        %8606 = vmatpush1.bf16.msra.mxu0 %v8457
        %8607 = vmatprep.subr.bf16.mxu0 0
        %8608 = vmatpush1.bf16.msra.mxu0 %v8458
        %8609 = vmatprep.subr.bf16.mxu0 0
        %8610 = vmatpush1.bf16.msra.mxu0 %v8459
        %8611 = vmatprep.subr.bf16.mxu0 0
        %8612 = vmatpush1.bf16.msra.mxu0 %v8460
        %8613 = vmatprep.subr.bf16.mxu0 0
        %8614 = vmatpush1.bf16.msra.mxu0 %v8461
        %8615 = vmatprep.subr.bf16.mxu0 0
        %8616 = vmatpush1.bf16.msra.mxu0 %v8462
        %8617 = vmatprep.subr.bf16.mxu0 0
        %8618 = vmatpush1.bf16.msra.mxu0 %v8463
        %8619 = vmatprep.subr.bf16.mxu0 0
        %8620 = vmatpush1.bf16.msra.mxu0 %v8464
        %8621 = vmatprep.subr.bf16.mxu0 0
        %8622 = vmatpush1.bf16.msra.mxu0 %v8465
        %8623 = vmatprep.subr.bf16.mxu0 0
        %8624 = vmatpush1.bf16.msra.mxu0 %v8466
        %8625 = vmatprep.subr.bf16.mxu0 0
        %8626 = vmatpush1.bf16.msra.mxu0 %v8467
        %8627 = vmatprep.subr.bf16.mxu0 0
        %8628 = vmatpush1.bf16.msra.mxu0 %v8468
        %8629 = vmatprep.mubr.bf16.mxu0 %v4768
        %8630 = vmatmul.mubr.bf16.gmra.mrb[0].mxu0 %v4767
        %v8631 = vpop.f32.mrb[0].mxu0
        %v8632 = vadd.f32 0.0, %v8631
        %v8633 = vpop.f32.mrb[0].mxu0
        %v8634 = vpop.f32.mrb[0].mxu0
        %v8635 = vadd.f32 0.0, %v8634
        %v8636 = vpop.f32.mrb[0].mxu0
        %8637 = vmatprep.mubr.bf16.mxu0 %v7926
        %8638 = vmatmul.mubr.bf16.gmra.mrb[0].mxu0 %v7925
        %v8639 = vpop.f32.mrb[0].mxu0
        %v8640 = vadd.f32 0.0, %v8639
        %v8641 = vpop.f32.mrb[0].mxu0
        %v8642 = vpop.f32.mrb[0].mxu0
        %v8643 = vadd.f32 0.0, %v8642
        %v8644 = vpop.f32.mrb[0].mxu0
        %8645 = vmatprep.mubr.bf16.mxu0 %v7929
        %8646 = vmatmul.mubr.bf16.gmra.mrb[0].mxu0 %v7928
        %v8647 = vpop.f32.mrb[0].mxu0
        %v8648 = vadd.f32 0.0, %v8647
        %v8649 = vpop.f32.mrb[0].mxu0
        %v8650 = vpop.f32.mrb[0].mxu0
        %v8651 = vadd.f32 0.0, %v8650
        %v8652 = vpop.f32.mrb[0].mxu0
        %8653 = vmatprep.mubr.bf16.mxu0 %v7932
        %8654 = vmatmul.mubr.bf16.gmra.mrb[0].mxu0 %v7931
        %v8655 = vpop.f32.mrb[0].mxu0
        %v8656 = vadd.f32 0.0, %v8655
        %v8657 = vpop.f32.mrb[0].mxu0
        %v8658 = vpop.f32.mrb[0].mxu0
        %v8659 = vadd.f32 0.0, %v8658
        %v8660 = vpop.f32.mrb[0].mxu0
        %8661 = vmatprep.mubr.bf16.mxu0 %v7935
        %8662 = vmatmul.mubr.bf16.gmra.mrb[0].mxu0 %v7934
        %v8663 = vpop.f32.mrb[0].mxu0
        %v8664 = vadd.f32 0.0, %v8663
        %v8665 = vpop.f32.mrb[0].mxu0
        %v8666 = vpop.f32.mrb[0].mxu0
        %v8667 = vadd.f32 0.0, %v8666
        %v8668 = vpop.f32.mrb[0].mxu0
        %8669 = vmatprep.mubr.bf16.mxu0 %v7938
        %8670 = vmatmul.mubr.bf16.gmra.mrb[0].mxu0 %v7937
        %v8671 = vpop.f32.mrb[0].mxu0
        %v8672 = vadd.f32 0.0, %v8671
        %v8673 = vpop.f32.mrb[0].mxu0
        %v8674 = vpop.f32.mrb[0].mxu0
        %v8675 = vadd.f32 0.0, %v8674
        %v8676 = vpop.f32.mrb[0].mxu0
        %8677 = vmatprep.mubr.bf16.mxu0 %v7941
        %8678 = vmatmul.mubr.bf16.gmra.mrb[0].mxu0 %v7940
        %v8679 = vpop.f32.mrb[0].mxu0
        %v8680 = vadd.f32 0.0, %v8679
        %v8681 = vpop.f32.mrb[0].mxu0
        %v8682 = vpop.f32.mrb[0].mxu0
        %v8683 = vadd.f32 0.0, %v8682
        %v8684 = vpop.f32.mrb[0].mxu0
        %8685 = vmatprep.mubr.bf16.mxu0 %v7944
        %8686 = vmatmul.mubr.bf16.gmra.mrb[0].mxu0 %v7943
        %v8687 = vpop.f32.mrb[0].mxu0
        %v8688 = vadd.f32 0.0, %v8687
        %v8689 = vpop.f32.mrb[0].mxu0
        %v8690 = vpop.f32.mrb[0].mxu0
        %v8691 = vadd.f32 0.0, %v8690
        %v8692 = vpop.f32.mrb[0].mxu0
        %8693 = vmatprep.mubr.bf16.mxu0 %v7947
        %8694 = vmatmul.mubr.bf16.gmra.mrb[0].mxu0 %v7946
        %v8695 = vpop.f32.mrb[0].mxu0
        %v8696 = vadd.f32 0.0, %v8695
        %v8697 = vpop.f32.mrb[0].mxu0
        %v8698 = vpop.f32.mrb[0].mxu0
        %v8699 = vadd.f32 0.0, %v8698
        %v8700 = vpop.f32.mrb[0].mxu0
        %8701 = vmatprep.mubr.bf16.mxu0 %v7950
        %8702 = vmatmul.mubr.bf16.gmra.mrb[0].mxu0 %v7949
        %v8703 = vpop.f32.mrb[0].mxu0
        %v8704 = vadd.f32 0.0, %v8703
        %v8705 = vpop.f32.mrb[0].mxu0
        %v8706 = vpop.f32.mrb[0].mxu0
        %v8707 = vadd.f32 0.0, %v8706
        %v8708 = vpop.f32.mrb[0].mxu0
        %8709 = vmatprep.mubr.bf16.mxu0 %v7953
        %8710 = vmatmul.mubr.bf16.gmra.mrb[0].mxu0 %v7952
        %v8711 = vpop.f32.mrb[0].mxu0
        %v8712 = vadd.f32 0.0, %v8711
        %v8713 = vpop.f32.mrb[0].mxu0
        %v8714 = vpop.f32.mrb[0].mxu0
        %v8715 = vadd.f32 0.0, %v8714
        %v8716 = vpop.f32.mrb[0].mxu0
        %8717 = vmatprep.mubr.bf16.mxu0 %v7956
        %8718 = vmatmul.mubr.bf16.gmra.mrb[0].mxu0 %v7955
        %v8719 = vpop.f32.mrb[0].mxu0
        %v8720 = vadd.f32 0.0, %v8719
        %v8721 = vpop.f32.mrb[0].mxu0
        %v8722 = vpop.f32.mrb[0].mxu0
        %v8723 = vadd.f32 0.0, %v8722
        %v8724 = vpop.f32.mrb[0].mxu0
        %8725 = vmatprep.mubr.bf16.mxu0 %v7959
        %8726 = vmatmul.mubr.bf16.gmra.mrb[0].mxu0 %v7958
        %v8727 = vpop.f32.mrb[0].mxu0
        %v8728 = vadd.f32 0.0, %v8727
        %v8729 = vpop.f32.mrb[0].mxu0
        %v8730 = vpop.f32.mrb[0].mxu0
        %v8731 = vadd.f32 0.0, %v8730
        %v8732 = vpop.f32.mrb[0].mxu0
        %8733 = vmatprep.mubr.bf16.mxu0 %v7962
        %8734 = vmatmul.mubr.bf16.gmra.mrb[0].mxu0 %v7961
        %v8735 = vpop.f32.mrb[0].mxu0
        %v8736 = vadd.f32 0.0, %v8735
        %v8737 = vpop.f32.mrb[0].mxu0
        %v8738 = vpop.f32.mrb[0].mxu0
        %v8739 = vadd.f32 0.0, %v8738
        %v8740 = vpop.f32.mrb[0].mxu0
        %8741 = vmatprep.mubr.bf16.mxu0 %v7965
        %8742 = vmatmul.mubr.bf16.gmra.mrb[0].mxu0 %v7964
        %v8743 = vpop.f32.mrb[0].mxu0
        %v8744 = vadd.f32 0.0, %v8743
        %v8745 = vpop.f32.mrb[0].mxu0
        %v8746 = vpop.f32.mrb[0].mxu0
        %v8747 = vadd.f32 0.0, %v8746
        %v8748 = vpop.f32.mrb[0].mxu0
        %8749 = vmatprep.mubr.bf16.mxu0 %v7968
        %8750 = vmatmul.mubr.bf16.gmra.mrb[0].mxu0 %v7967
        %v8751 = vpop.f32.mrb[0].mxu0
        %v8752 = vadd.f32 0.0, %v8751
        %v8753 = vpop.f32.mrb[0].mxu0
        %v8754 = vpop.f32.mrb[0].mxu0
        %v8755 = vadd.f32 0.0, %v8754
        %v8756 = vpop.f32.mrb[0].mxu0
        %8757 = vmatprep.mubr.bf16.mxu0 %v4768
        %8758 = vmatmul.mubr.bf16.gmra.mrb[0].mxu0 %v4767
        %v8759 = vpop.f32.mrb[0].mxu0
        %v8760 = vadd.f32 0.0, %v8759
        %v8761 = vpop.f32.mrb[0].mxu0
        %v8762 = vpop.f32.mrb[0].mxu0
        %v8763 = vadd.f32 0.0, %v8762
        %v8764 = vpop.f32.mrb[0].mxu0
        %8765 = vmatprep.mubr.bf16.mxu0 %v7974
        %8766 = vmatmul.mubr.bf16.gmra.mrb[0].mxu0 %v7973
        %v8767 = vpop.f32.mrb[0].mxu0
        %v8768 = vadd.f32 0.0, %v8767
        %v8769 = vpop.f32.mrb[0].mxu0
        %v8770 = vpop.f32.mrb[0].mxu0
        %v8771 = vadd.f32 0.0, %v8770
        %v8772 = vpop.f32.mrb[0].mxu0
        %8773 = vmatprep.mubr.bf16.mxu0 %v7977
        %8774 = vmatmul.mubr.bf16.gmra.mrb[0].mxu0 %v7976
        %v8775 = vpop.f32.mrb[0].mxu0
        %v8776 = vadd.f32 0.0, %v8775
        %v8777 = vpop.f32.mrb[0].mxu0
        %v8778 = vpop.f32.mrb[0].mxu0
        %v8779 = vadd.f32 0.0, %v8778
        %v8780 = vpop.f32.mrb[0].mxu0
        %8781 = vmatprep.mubr.bf16.mxu0 %v7980
        %8782 = vmatmul.mubr.bf16.gmra.mrb[0].mxu0 %v7979
        %v8783 = vpop.f32.mrb[0].mxu0
        %v8784 = vadd.f32 0.0, %v8783
        %v8785 = vpop.f32.mrb[0].mxu0
        %v8786 = vpop.f32.mrb[0].mxu0
        %v8787 = vadd.f32 0.0, %v8786
        %v8788 = vpop.f32.mrb[0].mxu0
        %8789 = vmatprep.mubr.bf16.mxu0 %v7983
        %8790 = vmatmul.mubr.bf16.gmra.mrb[0].mxu0 %v7982
        %v8791 = vpop.f32.mrb[0].mxu0
        %v8792 = vadd.f32 0.0, %v8791
        %v8793 = vpop.f32.mrb[0].mxu0
        %v8794 = vpop.f32.mrb[0].mxu0
        %v8795 = vadd.f32 0.0, %v8794
        %v8796 = vpop.f32.mrb[0].mxu0
        %8797 = vmatprep.mubr.bf16.mxu0 %v7986
        %8798 = vmatmul.mubr.bf16.gmra.mrb[0].mxu0 %v7985
        %v8799 = vpop.f32.mrb[0].mxu0
        %v8800 = vadd.f32 0.0, %v8799
        %v8801 = vpop.f32.mrb[0].mxu0
        %v8802 = vpop.f32.mrb[0].mxu0
        %v8803 = vadd.f32 0.0, %v8802
        %v8804 = vpop.f32.mrb[0].mxu0
        %8805 = vmatprep.mubr.bf16.mxu0 %v7989
        %8806 = vmatmul.mubr.bf16.gmra.mrb[0].mxu0 %v7988
        %v8807 = vpop.f32.mrb[0].mxu0
        %v8808 = vadd.f32 0.0, %v8807
        %v8809 = vpop.f32.mrb[0].mxu0
        %v8810 = vpop.f32.mrb[0].mxu0
        %v8811 = vadd.f32 0.0, %v8810
        %v8812 = vpop.f32.mrb[0].mxu0
        %8813 = vmatprep.mubr.bf16.mxu0 %v7992
        %8814 = vmatmul.mubr.bf16.gmra.mrb[0].mxu0 %v7991
        %v8815 = vpop.f32.mrb[0].mxu0
        %v8816 = vadd.f32 0.0, %v8815
        %v8817 = vpop.f32.mrb[0].mxu0
        %v8818 = vpop.f32.mrb[0].mxu0
        %v8819 = vadd.f32 0.0, %v8818
        %v8820 = vpop.f32.mrb[0].mxu0
        %8821 = vmatprep.mubr.bf16.mxu0 %v7995
        %8822 = vmatmul.mubr.bf16.gmra.mrb[0].mxu0 %v7994
        %v8823 = vpop.f32.mrb[0].mxu0
        %v8824 = vadd.f32 0.0, %v8823
        %v8825 = vpop.f32.mrb[0].mxu0
        %v8826 = vpop.f32.mrb[0].mxu0
        %v8827 = vadd.f32 0.0, %v8826
        %v8828 = vpop.f32.mrb[0].mxu0
        %8829 = vmatprep.mubr.bf16.mxu0 %v7998
        %8830 = vmatmul.mubr.bf16.gmra.mrb[0].mxu0 %v7997
        %v8831 = vpop.f32.mrb[0].mxu0
        %v8832 = vadd.f32 0.0, %v8831
        %v8833 = vpop.f32.mrb[0].mxu0
        %v8834 = vpop.f32.mrb[0].mxu0
        %v8835 = vadd.f32 0.0, %v8834
        %v8836 = vpop.f32.mrb[0].mxu0
        %8837 = vmatprep.mubr.bf16.mxu0 %v8001
        %8838 = vmatmul.mubr.bf16.gmra.mrb[0].mxu0 %v8000
        %v8839 = vpop.f32.mrb[0].mxu0
        %v8840 = vadd.f32 0.0, %v8839
        %v8841 = vpop.f32.mrb[0].mxu0
        %v8842 = vpop.f32.mrb[0].mxu0
        %v8843 = vadd.f32 0.0, %v8842
        %v8844 = vpop.f32.mrb[0].mxu0
        %8845 = vmatprep.mubr.bf16.mxu0 %v8004
        %8846 = vmatmul.mubr.bf16.gmra.mrb[0].mxu0 %v8003
        %v8847 = vpop.f32.mrb[0].mxu0
        %v8848 = vadd.f32 0.0, %v8847
        %v8849 = vpop.f32.mrb[0].mxu0
        %v8850 = vpop.f32.mrb[0].mxu0
        %v8851 = vadd.f32 0.0, %v8850
        %v8852 = vpop.f32.mrb[0].mxu0
        %8853 = vmatprep.mubr.bf16.mxu0 %v8007
        %8854 = vmatmul.mubr.bf16.gmra.mrb[0].mxu0 %v8006
        %v8855 = vpop.f32.mrb[0].mxu0
        %v8856 = vadd.f32 0.0, %v8855
        %v8857 = vpop.f32.mrb[0].mxu0
        %v8858 = vpop.f32.mrb[0].mxu0
        %v8859 = vadd.f32 0.0, %v8858
        %v8860 = vpop.f32.mrb[0].mxu0
        %8861 = vmatprep.mubr.bf16.mxu0 %v8010
        %8862 = vmatmul.mubr.bf16.gmra.mrb[0].mxu0 %v8009
        %v8863 = vpop.f32.mrb[0].mxu0
        %v8864 = vadd.f32 0.0, %v8863
        %v8865 = vpop.f32.mrb[0].mxu0
        %v8866 = vpop.f32.mrb[0].mxu0
        %v8867 = vadd.f32 0.0, %v8866
        %v8868 = vpop.f32.mrb[0].mxu0
        %8869 = vmatprep.mubr.bf16.mxu0 %v8013
        %8870 = vmatmul.mubr.bf16.gmra.mrb[0].mxu0 %v8012
        %v8871 = vpop.f32.mrb[0].mxu0
        %v8872 = vadd.f32 0.0, %v8871
        %v8873 = vpop.f32.mrb[0].mxu0
        %v8874 = vpop.f32.mrb[0].mxu0
        %v8875 = vadd.f32 0.0, %v8874
        %v8876 = vpop.f32.mrb[0].mxu0
        %8877 = vmatprep.mubr.bf16.mxu0 %v8016
        %8878 = vmatmul.mubr.bf16.gmra.mrb[0].mxu0 %v8015
        %v8879 = vpop.f32.mrb[0].mxu0
        %v8880 = vadd.f32 0.0, %v8879
        %v8881 = vpop.f32.mrb[0].mxu0
        %v8882 = vpop.f32.mrb[0].mxu0
        %v8883 = vadd.f32 0.0, %v8882
        %v8884 = vpop.f32.mrb[0].mxu0
        %8885 = vdwg.mxu0
        %8886 = vmatprep.subr.bf16.mxu0 0
        %8887 = vmatpush1.bf16.msra.mxu0 %v8469
        %8888 = vmatprep.subr.bf16.mxu0 0
        %8889 = vmatpush1.bf16.msra.mxu0 %v8470
        %8890 = vmatprep.subr.bf16.mxu0 0
        %8891 = vmatpush1.bf16.msra.mxu0 %v8471
        %8892 = vmatprep.subr.bf16.mxu0 0
        %8893 = vmatpush1.bf16.msra.mxu0 %v8472
        %8894 = vmatprep.subr.bf16.mxu0 0
        %8895 = vmatpush1.bf16.msra.mxu0 %v8473
        %8896 = vmatprep.subr.bf16.mxu0 0
        %8897 = vmatpush1.bf16.msra.mxu0 %v8474
        %8898 = vmatprep.subr.bf16.mxu0 0
        %8899 = vmatpush1.bf16.msra.mxu0 %v8475
        %8900 = vmatprep.subr.bf16.mxu0 0
        %8901 = vmatpush1.bf16.msra.mxu0 %v8476
        %8902 = vmatprep.subr.bf16.mxu0 0
        %8903 = vmatpush1.bf16.msra.mxu0 %v8477
        %8904 = vmatprep.subr.bf16.mxu0 0
        %8905 = vmatpush1.bf16.msra.mxu0 %v8478
        %8906 = vmatprep.subr.bf16.mxu0 0
        %8907 = vmatpush1.bf16.msra.mxu0 %v8479
        %8908 = vmatprep.subr.bf16.mxu0 0
        %8909 = vmatpush1.bf16.msra.mxu0 %v8480
        %8910 = vmatprep.subr.bf16.mxu0 0
        %8911 = vmatpush1.bf16.msra.mxu0 %v8481
        %8912 = vmatprep.subr.bf16.mxu0 0
        %8913 = vmatpush1.bf16.msra.mxu0 %v8482
        %8914 = vmatprep.subr.bf16.mxu0 0
        %8915 = vmatpush1.bf16.msra.mxu0 %v8483
        %8916 = vmatprep.subr.bf16.mxu0 0
        %8917 = vmatpush1.bf16.msra.mxu0 %v8484
        %8918 = vmatprep.mubr.bf16.mxu0 %v7925
        %8919 = vmatmul.mubr.bf16.gmra.mrb[0].mxu0 %v4769
        %v8920 = vpop.f32.mrb[0].mxu0
        %v8921 = vadd.f32 %v8632, %v8920
        %v8922 = vpop.f32.mrb[0].mxu0
        %v8923 = vpop.f32.mrb[0].mxu0
        %v8924 = vadd.f32 %v8635, %v8923
        %v8925 = vpop.f32.mrb[0].mxu0
        %8926 = vmatprep.mubr.bf16.mxu0 %v7928
        %8927 = vmatmul.mubr.bf16.gmra.mrb[0].mxu0 %v7927
        %v8928 = vpop.f32.mrb[0].mxu0
        %v8929 = vadd.f32 %v8640, %v8928
        %v8930 = vpop.f32.mrb[0].mxu0
        %v8931 = vpop.f32.mrb[0].mxu0
        %v8932 = vadd.f32 %v8643, %v8931
        %v8933 = vpop.f32.mrb[0].mxu0
        %8934 = vmatprep.mubr.bf16.mxu0 %v7931
        %8935 = vmatmul.mubr.bf16.gmra.mrb[0].mxu0 %v7930
        %v8936 = vpop.f32.mrb[0].mxu0
        %v8937 = vadd.f32 %v8648, %v8936
        %v8938 = vpop.f32.mrb[0].mxu0
        %v8939 = vpop.f32.mrb[0].mxu0
        %v8940 = vadd.f32 %v8651, %v8939
        %v8941 = vpop.f32.mrb[0].mxu0
        %8942 = vmatprep.mubr.bf16.mxu0 %v7934
        %8943 = vmatmul.mubr.bf16.gmra.mrb[0].mxu0 %v7933
        %v8944 = vpop.f32.mrb[0].mxu0
        %v8945 = vadd.f32 %v8656, %v8944
        %v8946 = vpop.f32.mrb[0].mxu0
        %v8947 = vpop.f32.mrb[0].mxu0
        %v8948 = vadd.f32 %v8659, %v8947
        %v8949 = vpop.f32.mrb[0].mxu0
        %8950 = vmatprep.mubr.bf16.mxu0 %v7937
        %8951 = vmatmul.mubr.bf16.gmra.mrb[0].mxu0 %v7936
        %v8952 = vpop.f32.mrb[0].mxu0
        %v8953 = vadd.f32 %v8664, %v8952
        %v8954 = vpop.f32.mrb[0].mxu0
        %v8955 = vpop.f32.mrb[0].mxu0
        %v8956 = vadd.f32 %v8667, %v8955
        %v8957 = vpop.f32.mrb[0].mxu0
        %8958 = vmatprep.mubr.bf16.mxu0 %v7940
        %8959 = vmatmul.mubr.bf16.gmra.mrb[0].mxu0 %v7939
        %v8960 = vpop.f32.mrb[0].mxu0
        %v8961 = vadd.f32 %v8672, %v8960
        %v8962 = vpop.f32.mrb[0].mxu0
        %v8963 = vpop.f32.mrb[0].mxu0
        %v8964 = vadd.f32 %v8675, %v8963
        %v8965 = vpop.f32.mrb[0].mxu0
        %8966 = vmatprep.mubr.bf16.mxu0 %v7943
        %8967 = vmatmul.mubr.bf16.gmra.mrb[0].mxu0 %v7942
        %v8968 = vpop.f32.mrb[0].mxu0
        %v8969 = vadd.f32 %v8680, %v8968
        %v8970 = vpop.f32.mrb[0].mxu0
        %v8971 = vpop.f32.mrb[0].mxu0
        %v8972 = vadd.f32 %v8683, %v8971
        %v8973 = vpop.f32.mrb[0].mxu0
        %8974 = vmatprep.mubr.bf16.mxu0 %v7946
        %8975 = vmatmul.mubr.bf16.gmra.mrb[0].mxu0 %v7945
        %v8976 = vpop.f32.mrb[0].mxu0
        %v8977 = vadd.f32 %v8688, %v8976
        %v8978 = vpop.f32.mrb[0].mxu0
        %v8979 = vpop.f32.mrb[0].mxu0
        %v8980 = vadd.f32 %v8691, %v8979
        %v8981 = vpop.f32.mrb[0].mxu0
        %8982 = vmatprep.mubr.bf16.mxu0 %v7949
        %8983 = vmatmul.mubr.bf16.gmra.mrb[0].mxu0 %v7948
        %v8984 = vpop.f32.mrb[0].mxu0
        %v8985 = vadd.f32 %v8696, %v8984
        %v8986 = vpop.f32.mrb[0].mxu0
        %v8987 = vpop.f32.mrb[0].mxu0
        %v8988 = vadd.f32 %v8699, %v8987
        %v8989 = vpop.f32.mrb[0].mxu0
        %8990 = vmatprep.mubr.bf16.mxu0 %v7952
        %8991 = vmatmul.mubr.bf16.gmra.mrb[0].mxu0 %v7951
        %v8992 = vpop.f32.mrb[0].mxu0
        %v8993 = vadd.f32 %v8704, %v8992
        %v8994 = vpop.f32.mrb[0].mxu0
        %v8995 = vpop.f32.mrb[0].mxu0
        %v8996 = vadd.f32 %v8707, %v8995
        %v8997 = vpop.f32.mrb[0].mxu0
        %8998 = vmatprep.mubr.bf16.mxu0 %v7955
        %8999 = vmatmul.mubr.bf16.gmra.mrb[0].mxu0 %v7954
        %v9000 = vpop.f32.mrb[0].mxu0
        %v9001 = vadd.f32 %v8712, %v9000
        %v9002 = vpop.f32.mrb[0].mxu0
        %v9003 = vpop.f32.mrb[0].mxu0
        %v9004 = vadd.f32 %v8715, %v9003
        %v9005 = vpop.f32.mrb[0].mxu0
        %9006 = vmatprep.mubr.bf16.mxu0 %v7958
        %9007 = vmatmul.mubr.bf16.gmra.mrb[0].mxu0 %v7957
        %v9008 = vpop.f32.mrb[0].mxu0
        %v9009 = vadd.f32 %v8720, %v9008
        %v9010 = vpop.f32.mrb[0].mxu0
        %v9011 = vpop.f32.mrb[0].mxu0
        %v9012 = vadd.f32 %v8723, %v9011
        %v9013 = vpop.f32.mrb[0].mxu0
        %9014 = vmatprep.mubr.bf16.mxu0 %v7961
        %9015 = vmatmul.mubr.bf16.gmra.mrb[0].mxu0 %v7960
        %v9016 = vpop.f32.mrb[0].mxu0
        %v9017 = vadd.f32 %v8728, %v9016
        %v9018 = vpop.f32.mrb[0].mxu0
        %v9019 = vpop.f32.mrb[0].mxu0
        %v9020 = vadd.f32 %v8731, %v9019
        %v9021 = vpop.f32.mrb[0].mxu0
        %9022 = vmatprep.mubr.bf16.mxu0 %v7964
        %9023 = vmatmul.mubr.bf16.gmra.mrb[0].mxu0 %v7963
        %v9024 = vpop.f32.mrb[0].mxu0
        %v9025 = vadd.f32 %v8736, %v9024
        %v9026 = vpop.f32.mrb[0].mxu0
        %v9027 = vpop.f32.mrb[0].mxu0
        %v9028 = vadd.f32 %v8739, %v9027
        %v9029 = vpop.f32.mrb[0].mxu0
        %9030 = vmatprep.mubr.bf16.mxu0 %v7967
        %9031 = vmatmul.mubr.bf16.gmra.mrb[0].mxu0 %v7966
        %v9032 = vpop.f32.mrb[0].mxu0
        %v9033 = vadd.f32 %v8744, %v9032
        %v9034 = vpop.f32.mrb[0].mxu0
        %v9035 = vpop.f32.mrb[0].mxu0
        %v9036 = vadd.f32 %v8747, %v9035
        %v9037 = vpop.f32.mrb[0].mxu0
        %9038 = vmatprep.mubr.bf16.mxu0 %v7970
        %9039 = vmatmul.mubr.bf16.gmra.mrb[0].mxu0 %v7969
        %v9040 = vpop.f32.mrb[0].mxu0
        %v9041 = vadd.f32 %v8752, %v9040
        %v9042 = vpop.f32.mrb[0].mxu0
        %v9043 = vpop.f32.mrb[0].mxu0
        %v9044 = vadd.f32 %v8755, %v9043
        %v9045 = vpop.f32.mrb[0].mxu0
        %9046 = vmatprep.mubr.bf16.mxu0 %v7973
        %9047 = vmatmul.mubr.bf16.gmra.mrb[0].mxu0 %v4769
        %v9048 = vpop.f32.mrb[0].mxu0
        %v9049 = vadd.f32 %v8760, %v9048
        %v9050 = vpop.f32.mrb[0].mxu0
        %v9051 = vpop.f32.mrb[0].mxu0
        %v9052 = vadd.f32 %v8763, %v9051
        %v9053 = vpop.f32.mrb[0].mxu0
        %9054 = vmatprep.mubr.bf16.mxu0 %v7976
        %9055 = vmatmul.mubr.bf16.gmra.mrb[0].mxu0 %v7975
        %v9056 = vpop.f32.mrb[0].mxu0
        %v9057 = vadd.f32 %v8768, %v9056
        %v9058 = vpop.f32.mrb[0].mxu0
        %v9059 = vpop.f32.mrb[0].mxu0
        %v9060 = vadd.f32 %v8771, %v9059
        %v9061 = vpop.f32.mrb[0].mxu0
        %9062 = vmatprep.mubr.bf16.mxu0 %v7979
        %9063 = vmatmul.mubr.bf16.gmra.mrb[0].mxu0 %v7978
        %v9064 = vpop.f32.mrb[0].mxu0
        %v9065 = vadd.f32 %v8776, %v9064
        %v9066 = vpop.f32.mrb[0].mxu0
        %v9067 = vpop.f32.mrb[0].mxu0
        %v9068 = vadd.f32 %v8779, %v9067
        %v9069 = vpop.f32.mrb[0].mxu0
        %9070 = vmatprep.mubr.bf16.mxu0 %v7982
        %9071 = vmatmul.mubr.bf16.gmra.mrb[0].mxu0 %v7981
        %v9072 = vpop.f32.mrb[0].mxu0
        %v9073 = vadd.f32 %v8784, %v9072
        %v9074 = vpop.f32.mrb[0].mxu0
        %v9075 = vpop.f32.mrb[0].mxu0
        %v9076 = vadd.f32 %v8787, %v9075
        %v9077 = vpop.f32.mrb[0].mxu0
        %9078 = vmatprep.mubr.bf16.mxu0 %v7985
        %9079 = vmatmul.mubr.bf16.gmra.mrb[0].mxu0 %v7984
        %v9080 = vpop.f32.mrb[0].mxu0
        %v9081 = vadd.f32 %v8792, %v9080
        %v9082 = vpop.f32.mrb[0].mxu0
        %v9083 = vpop.f32.mrb[0].mxu0
        %v9084 = vadd.f32 %v8795, %v9083
        %v9085 = vpop.f32.mrb[0].mxu0
        %9086 = vmatprep.mubr.bf16.mxu0 %v7988
        %9087 = vmatmul.mubr.bf16.gmra.mrb[0].mxu0 %v7987
        %v9088 = vpop.f32.mrb[0].mxu0
        %v9089 = vadd.f32 %v8800, %v9088
        %v9090 = vpop.f32.mrb[0].mxu0
        %v9091 = vpop.f32.mrb[0].mxu0
        %v9092 = vadd.f32 %v8803, %v9091
        %v9093 = vpop.f32.mrb[0].mxu0
        %9094 = vmatprep.mubr.bf16.mxu0 %v7991
        %9095 = vmatmul.mubr.bf16.gmra.mrb[0].mxu0 %v7990
        %v9096 = vpop.f32.mrb[0].mxu0
        %v9097 = vadd.f32 %v8808, %v9096
        %v9098 = vpop.f32.mrb[0].mxu0
        %v9099 = vpop.f32.mrb[0].mxu0
        %v9100 = vadd.f32 %v8811, %v9099
        %v9101 = vpop.f32.mrb[0].mxu0
        %9102 = vmatprep.mubr.bf16.mxu0 %v7994
        %9103 = vmatmul.mubr.bf16.gmra.mrb[0].mxu0 %v7993
        %v9104 = vpop.f32.mrb[0].mxu0
        %v9105 = vadd.f32 %v8816, %v9104
        %v9106 = vpop.f32.mrb[0].mxu0
        %v9107 = vpop.f32.mrb[0].mxu0
        %v9108 = vadd.f32 %v8819, %v9107
        %v9109 = vpop.f32.mrb[0].mxu0
        %9110 = vmatprep.mubr.bf16.mxu0 %v7997
        %9111 = vmatmul.mubr.bf16.gmra.mrb[0].mxu0 %v7996
        %v9112 = vpop.f32.mrb[0].mxu0
        %v9113 = vadd.f32 %v8824, %v9112
        %v9114 = vpop.f32.mrb[0].mxu0
        %v9115 = vpop.f32.mrb[0].mxu0
        %v9116 = vadd.f32 %v8827, %v9115
        %v9117 = vpop.f32.mrb[0].mxu0
        %9118 = vmatprep.mubr.bf16.mxu0 %v8000
        %9119 = vmatmul.mubr.bf16.gmra.mrb[0].mxu0 %v7999
        %v9120 = vpop.f32.mrb[0].mxu0
        %v9121 = vadd.f32 %v8832, %v9120
        %v9122 = vpop.f32.mrb[0].mxu0
        %v9123 = vpop.f32.mrb[0].mxu0
        %v9124 = vadd.f32 %v8835, %v9123
        %v9125 = vpop.f32.mrb[0].mxu0
        %9126 = vmatprep.mubr.bf16.mxu0 %v8003
        %9127 = vmatmul.mubr.bf16.gmra.mrb[0].mxu0 %v8002
        %v9128 = vpop.f32.mrb[0].mxu0
        %v9129 = vadd.f32 %v8840, %v9128
        %v9130 = vpop.f32.mrb[0].mxu0
        %v9131 = vpop.f32.mrb[0].mxu0
        %v9132 = vadd.f32 %v8843, %v9131
        %v9133 = vpop.f32.mrb[0].mxu0
        %9134 = vmatprep.mubr.bf16.mxu0 %v8006
        %9135 = vmatmul.mubr.bf16.gmra.mrb[0].mxu0 %v8005
        %v9136 = vpop.f32.mrb[0].mxu0
        %v9137 = vadd.f32 %v8848, %v9136
        %v9138 = vpop.f32.mrb[0].mxu0
        %v9139 = vpop.f32.mrb[0].mxu0
        %v9140 = vadd.f32 %v8851, %v9139
        %v9141 = vpop.f32.mrb[0].mxu0
        %9142 = vmatprep.mubr.bf16.mxu0 %v8009
        %9143 = vmatmul.mubr.bf16.gmra.mrb[0].mxu0 %v8008
        %v9144 = vpop.f32.mrb[0].mxu0
        %v9145 = vadd.f32 %v8856, %v9144
        %v9146 = vpop.f32.mrb[0].mxu0
        %v9147 = vpop.f32.mrb[0].mxu0
        %v9148 = vadd.f32 %v8859, %v9147
        %v9149 = vpop.f32.mrb[0].mxu0
        %9150 = vmatprep.mubr.bf16.mxu0 %v8012
        %9151 = vmatmul.mubr.bf16.gmra.mrb[0].mxu0 %v8011
        %v9152 = vpop.f32.mrb[0].mxu0
        %v9153 = vadd.f32 %v8864, %v9152
        %v9154 = vpop.f32.mrb[0].mxu0
        %v9155 = vpop.f32.mrb[0].mxu0
        %v9156 = vadd.f32 %v8867, %v9155
        %v9157 = vpop.f32.mrb[0].mxu0
        %9158 = vmatprep.mubr.bf16.mxu0 %v8015
        %9159 = vmatmul.mubr.bf16.gmra.mrb[0].mxu0 %v8014
        %v9160 = vpop.f32.mrb[0].mxu0
        %v9161 = vadd.f32 %v8872, %v9160
        %v9162 = vpop.f32.mrb[0].mxu0
        %v9163 = vpop.f32.mrb[0].mxu0
        %v9164 = vadd.f32 %v8875, %v9163
        %v9165 = vpop.f32.mrb[0].mxu0
        %9166 = vmatprep.mubr.bf16.mxu0 %v8018
        %9167 = vmatmul.mubr.bf16.gmra.mrb[0].mxu0 %v8017
        %v9168 = vpop.f32.mrb[0].mxu0
        %v9169 = vadd.f32 %v8880, %v9168
        %v9170 = vpop.f32.mrb[0].mxu0
        %v9171 = vpop.f32.mrb[0].mxu0
        %v9172 = vadd.f32 %v8883, %v9171
        %v9173 = vpop.f32.mrb[0].mxu0
        %9174 = vdwg.mxu0
        %9175 = vmatprep.subr.bf16.mxu0 0
        %9176 = vmatpush1.bf16.msra.mxu0 %v8485
        %9177 = vmatprep.subr.bf16.mxu0 0
        %9178 = vmatpush1.bf16.msra.mxu0 %v8486
        %9179 = vmatprep.subr.bf16.mxu0 0
        %9180 = vmatpush1.bf16.msra.mxu0 %v8487
        %9181 = vmatprep.subr.bf16.mxu0 0
        %9182 = vmatpush1.bf16.msra.mxu0 %v8488
        %9183 = vmatprep.subr.bf16.mxu0 0
        %9184 = vmatpush1.bf16.msra.mxu0 %v8489
        %9185 = vmatprep.subr.bf16.mxu0 0
        %9186 = vmatpush1.bf16.msra.mxu0 %v8490
        %9187 = vmatprep.subr.bf16.mxu0 0
        %9188 = vmatpush1.bf16.msra.mxu0 %v8491
        %9189 = vmatprep.subr.bf16.mxu0 0
        %9190 = vmatpush1.bf16.msra.mxu0 %v8492
        %9191 = vmatprep.subr.bf16.mxu0 0
        %9192 = vmatpush1.bf16.msra.mxu0 %v8493
        %9193 = vmatprep.subr.bf16.mxu0 0
        %9194 = vmatpush1.bf16.msra.mxu0 %v8494
        %9195 = vmatprep.subr.bf16.mxu0 0
        %9196 = vmatpush1.bf16.msra.mxu0 %v8495
        %9197 = vmatprep.subr.bf16.mxu0 0
        %9198 = vmatpush1.bf16.msra.mxu0 %v8496
        %9199 = vmatprep.subr.bf16.mxu0 0
        %9200 = vmatpush1.bf16.msra.mxu0 %v8497
        %9201 = vmatprep.subr.bf16.mxu0 0
        %9202 = vmatpush1.bf16.msra.mxu0 %v8498
        %9203 = vmatprep.subr.bf16.mxu0 0
        %9204 = vmatpush1.bf16.msra.mxu0 %v8499
        %9205 = vmatprep.subr.bf16.mxu0 0
        %9206 = vmatpush1.bf16.msra.mxu0 %v8500
        %9207 = vmatprep.mubr.bf16.mxu0 %v7927
        %9208 = vmatmul.mubr.bf16.gmra.mrb[0].mxu0 %v7926
        %v9209 = vpop.f32.mrb[0].mxu0
        %v9210 = vadd.f32 %v8921, %v9209
        %v9211 = vpop.f32.mrb[0].mxu0
        %v9212 = vpop.f32.mrb[0].mxu0
        %v9213 = vadd.f32 %v8924, %v9212
        %v9214 = vpop.f32.mrb[0].mxu0
        %9215 = vmatprep.mubr.bf16.mxu0 %v7930
        %9216 = vmatmul.mubr.bf16.gmra.mrb[0].mxu0 %v7929
        %v9217 = vpop.f32.mrb[0].mxu0
        %v9218 = vadd.f32 %v8929, %v9217
        %v9219 = vpop.f32.mrb[0].mxu0
        %v9220 = vpop.f32.mrb[0].mxu0
        %v9221 = vadd.f32 %v8932, %v9220
        %v9222 = vpop.f32.mrb[0].mxu0
        %9223 = vmatprep.mubr.bf16.mxu0 %v7933
        %9224 = vmatmul.mubr.bf16.gmra.mrb[0].mxu0 %v7932
        %v9225 = vpop.f32.mrb[0].mxu0
        %v9226 = vadd.f32 %v8937, %v9225
        %v9227 = vpop.f32.mrb[0].mxu0
        %v9228 = vpop.f32.mrb[0].mxu0
        %v9229 = vadd.f32 %v8940, %v9228
        %v9230 = vpop.f32.mrb[0].mxu0
        %9231 = vmatprep.mubr.bf16.mxu0 %v7936
        %9232 = vmatmul.mubr.bf16.gmra.mrb[0].mxu0 %v7935
        %v9233 = vpop.f32.mrb[0].mxu0
        %v9234 = vadd.f32 %v8945, %v9233
        %v9235 = vpop.f32.mrb[0].mxu0
        %v9236 = vpop.f32.mrb[0].mxu0
        %v9237 = vadd.f32 %v8948, %v9236
        %v9238 = vpop.f32.mrb[0].mxu0
        %9239 = vmatprep.mubr.bf16.mxu0 %v7939
        %9240 = vmatmul.mubr.bf16.gmra.mrb[0].mxu0 %v7938
        %v9241 = vpop.f32.mrb[0].mxu0
        %v9242 = vadd.f32 %v8953, %v9241
        %v9243 = vpop.f32.mrb[0].mxu0
        %v9244 = vpop.f32.mrb[0].mxu0
        %v9245 = vadd.f32 %v8956, %v9244
        %v9246 = vpop.f32.mrb[0].mxu0
        %9247 = vmatprep.mubr.bf16.mxu0 %v7942
        %9248 = vmatmul.mubr.bf16.gmra.mrb[0].mxu0 %v7941
        %v9249 = vpop.f32.mrb[0].mxu0
        %v9250 = vadd.f32 %v8961, %v9249
        %v9251 = vpop.f32.mrb[0].mxu0
        %v9252 = vpop.f32.mrb[0].mxu0
        %v9253 = vadd.f32 %v8964, %v9252
        %v9254 = vpop.f32.mrb[0].mxu0
        %9255 = vmatprep.mubr.bf16.mxu0 %v7945
        %9256 = vmatmul.mubr.bf16.gmra.mrb[0].mxu0 %v7944
        %v9257 = vpop.f32.mrb[0].mxu0
        %v9258 = vadd.f32 %v8969, %v9257
        %v9259 = vpop.f32.mrb[0].mxu0
        %v9260 = vpop.f32.mrb[0].mxu0
        %v9261 = vadd.f32 %v8972, %v9260
        %v9262 = vpop.f32.mrb[0].mxu0
        %9263 = vmatprep.mubr.bf16.mxu0 %v7948
        %9264 = vmatmul.mubr.bf16.gmra.mrb[0].mxu0 %v7947
        %v9265 = vpop.f32.mrb[0].mxu0
        %v9266 = vadd.f32 %v8977, %v9265
        %v9267 = vpop.f32.mrb[0].mxu0
        %v9268 = vpop.f32.mrb[0].mxu0
        %v9269 = vadd.f32 %v8980, %v9268
        %v9270 = vpop.f32.mrb[0].mxu0
        %9271 = vmatprep.mubr.bf16.mxu0 %v7951
        %9272 = vmatmul.mubr.bf16.gmra.mrb[0].mxu0 %v7950
        %v9273 = vpop.f32.mrb[0].mxu0
        %v9274 = vadd.f32 %v8985, %v9273
        %v9275 = vpop.f32.mrb[0].mxu0
        %v9276 = vpop.f32.mrb[0].mxu0
        %v9277 = vadd.f32 %v8988, %v9276
        %v9278 = vpop.f32.mrb[0].mxu0
        %9279 = vmatprep.mubr.bf16.mxu0 %v7954
        %9280 = vmatmul.mubr.bf16.gmra.mrb[0].mxu0 %v7953
        %v9281 = vpop.f32.mrb[0].mxu0
        %v9282 = vadd.f32 %v8993, %v9281
        %v9283 = vpop.f32.mrb[0].mxu0
        %v9284 = vpop.f32.mrb[0].mxu0
        %v9285 = vadd.f32 %v8996, %v9284
        %v9286 = vpop.f32.mrb[0].mxu0
        %9287 = vmatprep.mubr.bf16.mxu0 %v7957
        %9288 = vmatmul.mubr.bf16.gmra.mrb[0].mxu0 %v7956
        %v9289 = vpop.f32.mrb[0].mxu0
        %v9290 = vadd.f32 %v9001, %v9289
        %v9291 = vpop.f32.mrb[0].mxu0
        %v9292 = vpop.f32.mrb[0].mxu0
        %v9293 = vadd.f32 %v9004, %v9292
        %v9294 = vpop.f32.mrb[0].mxu0
        %9295 = vmatprep.mubr.bf16.mxu0 %v7960
        %9296 = vmatmul.mubr.bf16.gmra.mrb[0].mxu0 %v7959
        %v9297 = vpop.f32.mrb[0].mxu0
        %v9298 = vadd.f32 %v9009, %v9297
        %v9299 = vpop.f32.mrb[0].mxu0
        %v9300 = vpop.f32.mrb[0].mxu0
        %v9301 = vadd.f32 %v9012, %v9300
        %v9302 = vpop.f32.mrb[0].mxu0
        %9303 = vmatprep.mubr.bf16.mxu0 %v7963
        %9304 = vmatmul.mubr.bf16.gmra.mrb[0].mxu0 %v7962
        %v9305 = vpop.f32.mrb[0].mxu0
        %v9306 = vadd.f32 %v9017, %v9305
        %v9307 = vpop.f32.mrb[0].mxu0
        %v9308 = vpop.f32.mrb[0].mxu0
        %v9309 = vadd.f32 %v9020, %v9308
        %v9310 = vpop.f32.mrb[0].mxu0
        %9311 = vmatprep.mubr.bf16.mxu0 %v7966
        %9312 = vmatmul.mubr.bf16.gmra.mrb[0].mxu0 %v7965
        %v9313 = vpop.f32.mrb[0].mxu0
        %v9314 = vadd.f32 %v9025, %v9313
        %v9315 = vpop.f32.mrb[0].mxu0
        %v9316 = vpop.f32.mrb[0].mxu0
        %v9317 = vadd.f32 %v9028, %v9316
        %v9318 = vpop.f32.mrb[0].mxu0
        %9319 = vmatprep.mubr.bf16.mxu0 %v7969
        %9320 = vmatmul.mubr.bf16.gmra.mrb[0].mxu0 %v7968
        %v9321 = vpop.f32.mrb[0].mxu0
        %v9322 = vadd.f32 %v9033, %v9321
        %v9323 = vpop.f32.mrb[0].mxu0
        %v9324 = vpop.f32.mrb[0].mxu0
        %v9325 = vadd.f32 %v9036, %v9324
        %v9326 = vpop.f32.mrb[0].mxu0
        %9327 = vmatprep.mubr.bf16.mxu0 %v7972
        %9328 = vmatmul.mubr.bf16.gmra.mrb[0].mxu0 %v7971
        %v9329 = vpop.f32.mrb[0].mxu0
        %v9330 = vadd.f32 %v9041, %v9329
        %v9331 = vpop.f32.mrb[0].mxu0
        %v9332 = vpop.f32.mrb[0].mxu0
        %v9333 = vadd.f32 %v9044, %v9332
        %v9334 = vpop.f32.mrb[0].mxu0
        %9335 = vmatprep.mubr.bf16.mxu0 %v7975
        %9336 = vmatmul.mubr.bf16.gmra.mrb[0].mxu0 %v7974
        %v9337 = vpop.f32.mrb[0].mxu0
        %v9338 = vadd.f32 %v9049, %v9337
        %v9339 = vpop.f32.mrb[0].mxu0
        %v9340 = vpop.f32.mrb[0].mxu0
        %v9341 = vadd.f32 %v9052, %v9340
        %v9342 = vpop.f32.mrb[0].mxu0
        %9343 = vmatprep.mubr.bf16.mxu0 %v7978
        %9344 = vmatmul.mubr.bf16.gmra.mrb[0].mxu0 %v7977
        %v9345 = vpop.f32.mrb[0].mxu0
        %v9346 = vadd.f32 %v9057, %v9345
        %v9347 = vpop.f32.mrb[0].mxu0
        %v9348 = vpop.f32.mrb[0].mxu0
        %v9349 = vadd.f32 %v9060, %v9348
        %v9350 = vpop.f32.mrb[0].mxu0
        %9351 = vmatprep.mubr.bf16.mxu0 %v7981
        %9352 = vmatmul.mubr.bf16.gmra.mrb[0].mxu0 %v7980
        %v9353 = vpop.f32.mrb[0].mxu0
        %v9354 = vadd.f32 %v9065, %v9353
        %v9355 = vpop.f32.mrb[0].mxu0
        %v9356 = vpop.f32.mrb[0].mxu0
        %v9357 = vadd.f32 %v9068, %v9356
        %v9358 = vpop.f32.mrb[0].mxu0
        %9359 = vmatprep.mubr.bf16.mxu0 %v7984
        %9360 = vmatmul.mubr.bf16.gmra.mrb[0].mxu0 %v7983
        %v9361 = vpop.f32.mrb[0].mxu0
        %v9362 = vadd.f32 %v9073, %v9361
        %v9363 = vpop.f32.mrb[0].mxu0
        %v9364 = vpop.f32.mrb[0].mxu0
        %v9365 = vadd.f32 %v9076, %v9364
        %v9366 = vpop.f32.mrb[0].mxu0
        %9367 = vmatprep.mubr.bf16.mxu0 %v7987
        %9368 = vmatmul.mubr.bf16.gmra.mrb[0].mxu0 %v7986
        %v9369 = vpop.f32.mrb[0].mxu0
        %v9370 = vadd.f32 %v9081, %v9369
        %v9371 = vpop.f32.mrb[0].mxu0
        %v9372 = vpop.f32.mrb[0].mxu0
        %v9373 = vadd.f32 %v9084, %v9372
        %v9374 = vpop.f32.mrb[0].mxu0
        %9375 = vmatprep.mubr.bf16.mxu0 %v7990
        %9376 = vmatmul.mubr.bf16.gmra.mrb[0].mxu0 %v7989
        %v9377 = vpop.f32.mrb[0].mxu0
        %v9378 = vadd.f32 %v9089, %v9377
        %v9379 = vpop.f32.mrb[0].mxu0
        %v9380 = vpop.f32.mrb[0].mxu0
        %v9381 = vadd.f32 %v9092, %v9380
        %v9382 = vpop.f32.mrb[0].mxu0
        %9383 = vmatprep.mubr.bf16.mxu0 %v7993
        %9384 = vmatmul.mubr.bf16.gmra.mrb[0].mxu0 %v7992
        %v9385 = vpop.f32.mrb[0].mxu0
        %v9386 = vadd.f32 %v9097, %v9385
        %v9387 = vpop.f32.mrb[0].mxu0
        %v9388 = vpop.f32.mrb[0].mxu0
        %v9389 = vadd.f32 %v9100, %v9388
        %v9390 = vpop.f32.mrb[0].mxu0
        %9391 = vmatprep.mubr.bf16.mxu0 %v7996
        %9392 = vmatmul.mubr.bf16.gmra.mrb[0].mxu0 %v7995
        %v9393 = vpop.f32.mrb[0].mxu0
        %v9394 = vadd.f32 %v9105, %v9393
        %v9395 = vpop.f32.mrb[0].mxu0
        %v9396 = vpop.f32.mrb[0].mxu0
        %v9397 = vadd.f32 %v9108, %v9396
        %v9398 = vpop.f32.mrb[0].mxu0
        %9399 = vmatprep.mubr.bf16.mxu0 %v7999
        %9400 = vmatmul.mubr.bf16.gmra.mrb[0].mxu0 %v7998
        %v9401 = vpop.f32.mrb[0].mxu0
        %v9402 = vadd.f32 %v9113, %v9401
        %v9403 = vpop.f32.mrb[0].mxu0
        %v9404 = vpop.f32.mrb[0].mxu0
        %v9405 = vadd.f32 %v9116, %v9404
        %v9406 = vpop.f32.mrb[0].mxu0
        %9407 = vmatprep.mubr.bf16.mxu0 %v8002
        %9408 = vmatmul.mubr.bf16.gmra.mrb[0].mxu0 %v8001
        %v9409 = vpop.f32.mrb[0].mxu0
        %v9410 = vadd.f32 %v9121, %v9409
        %v9411 = vpop.f32.mrb[0].mxu0
        %v9412 = vpop.f32.mrb[0].mxu0
        %v9413 = vadd.f32 %v9124, %v9412
        %v9414 = vpop.f32.mrb[0].mxu0
        %9415 = vmatprep.mubr.bf16.mxu0 %v8005
        %9416 = vmatmul.mubr.bf16.gmra.mrb[0].mxu0 %v8004
        %v9417 = vpop.f32.mrb[0].mxu0
        %v9418 = vadd.f32 %v9129, %v9417
        %v9419 = vpop.f32.mrb[0].mxu0
        %v9420 = vpop.f32.mrb[0].mxu0
        %v9421 = vadd.f32 %v9132, %v9420
        %v9422 = vpop.f32.mrb[0].mxu0
        %9423 = vmatprep.mubr.bf16.mxu0 %v8008
        %9424 = vmatmul.mubr.bf16.gmra.mrb[0].mxu0 %v8007
        %v9425 = vpop.f32.mrb[0].mxu0
        %v9426 = vadd.f32 %v9137, %v9425
        %v9427 = vpop.f32.mrb[0].mxu0
        %v9428 = vpop.f32.mrb[0].mxu0
        %v9429 = vadd.f32 %v9140, %v9428
        %v9430 = vpop.f32.mrb[0].mxu0
        %9431 = vmatprep.mubr.bf16.mxu0 %v8011
        %9432 = vmatmul.mubr.bf16.gmra.mrb[0].mxu0 %v8010
        %v9433 = vpop.f32.mrb[0].mxu0
        %v9434 = vadd.f32 %v9145, %v9433
        %v9435 = vpop.f32.mrb[0].mxu0
        %v9436 = vpop.f32.mrb[0].mxu0
        %v9437 = vadd.f32 %v9148, %v9436
        %v9438 = vpop.f32.mrb[0].mxu0
        %9439 = vmatprep.mubr.bf16.mxu0 %v8014
        %9440 = vmatmul.mubr.bf16.gmra.mrb[0].mxu0 %v8013
        %v9441 = vpop.f32.mrb[0].mxu0
        %v9442 = vadd.f32 %v9153, %v9441
        %v9443 = vpop.f32.mrb[0].mxu0
        %v9444 = vpop.f32.mrb[0].mxu0
        %v9445 = vadd.f32 %v9156, %v9444
        %v9446 = vpop.f32.mrb[0].mxu0
        %9447 = vmatprep.mubr.bf16.mxu0 %v8017
        %9448 = vmatmul.mubr.bf16.gmra.mrb[0].mxu0 %v8016
        %v9449 = vpop.f32.mrb[0].mxu0
        %v9450 = vadd.f32 %v9161, %v9449
        %v9451 = vpop.f32.mrb[0].mxu0
        %v9452 = vpop.f32.mrb[0].mxu0
        %v9453 = vadd.f32 %v9164, %v9452
        %v9454 = vpop.f32.mrb[0].mxu0
        %9455 = vmatprep.mubr.bf16.mxu0 %v8020
        %9456 = vmatmul.mubr.bf16.gmra.mrb[0].mxu0 %v8019
        %v9457 = vpop.f32.mrb[0].mxu0
        %v9458 = vadd.f32 %v9169, %v9457
        %v9459 = vpop.f32.mrb[0].mxu0
        %v9460 = vpop.f32.mrb[0].mxu0
        %v9461 = vadd.f32 %v9172, %v9460
        %v9462 = vpop.f32.mrb[0].mxu0
        %9463 = vdwg.mxu0
        %9464 = vmatprep.subr.bf16.mxu0 0
        %9465 = vmatpush1.bf16.msra.mxu0 %v8501
        %9466 = vmatprep.subr.bf16.mxu0 0
        %9467 = vmatpush1.bf16.msra.mxu0 %v8502
        %9468 = vmatprep.subr.bf16.mxu0 0
        %9469 = vmatpush1.bf16.msra.mxu0 %v8503
        %9470 = vmatprep.subr.bf16.mxu0 0
        %9471 = vmatpush1.bf16.msra.mxu0 %v8504
        %9472 = vmatprep.subr.bf16.mxu0 0
        %9473 = vmatpush1.bf16.msra.mxu0 %v8505
        %9474 = vmatprep.subr.bf16.mxu0 0
        %9475 = vmatpush1.bf16.msra.mxu0 %v8506
        %9476 = vmatprep.subr.bf16.mxu0 0
        %9477 = vmatpush1.bf16.msra.mxu0 %v8507
        %9478 = vmatprep.subr.bf16.mxu0 0
        %9479 = vmatpush1.bf16.msra.mxu0 %v8508
        %9480 = vmatprep.subr.bf16.mxu0 0
        %9481 = vmatpush1.bf16.msra.mxu0 %v8509
        %9482 = vmatprep.subr.bf16.mxu0 0
        %9483 = vmatpush1.bf16.msra.mxu0 %v8510
        %9484 = vmatprep.subr.bf16.mxu0 0
        %9485 = vmatpush1.bf16.msra.mxu0 %v8511
        %9486 = vmatprep.subr.bf16.mxu0 0
        %9487 = vmatpush1.bf16.msra.mxu0 %v8512
        %9488 = vmatprep.subr.bf16.mxu0 0
        %9489 = vmatpush1.bf16.msra.mxu0 %v8513
        %9490 = vmatprep.subr.bf16.mxu0 0
        %9491 = vmatpush1.bf16.msra.mxu0 %v8514
        %9492 = vmatprep.subr.bf16.mxu0 0
        %9493 = vmatpush1.bf16.msra.mxu0 %v8515
        %9494 = vmatprep.subr.bf16.mxu0 0
        %9495 = vmatpush1.bf16.msra.mxu0 %v8516
        %9496 = vmatprep.mubr.bf16.mxu0 %v7929
        %9497 = vmatmul.mubr.bf16.gmra.mrb[0].mxu0 %v7928
        %v9498 = vpop.f32.mrb[0].mxu0
        %v9499 = vadd.f32 %v9210, %v9498
        %v9500 = vpop.f32.mrb[0].mxu0
        %v9501 = vpop.f32.mrb[0].mxu0
        %v9502 = vadd.f32 %v9213, %v9501
        %v9503 = vpop.f32.mrb[0].mxu0
        %9504 = vmatprep.mubr.bf16.mxu0 %v7932
        %9505 = vmatmul.mubr.bf16.gmra.mrb[0].mxu0 %v7931
        %v9506 = vpop.f32.mrb[0].mxu0
        %v9507 = vadd.f32 %v9218, %v9506
        %v9508 = vpop.f32.mrb[0].mxu0
        %v9509 = vpop.f32.mrb[0].mxu0
        %v9510 = vadd.f32 %v9221, %v9509
        %v9511 = vpop.f32.mrb[0].mxu0
        %9512 = vmatprep.mubr.bf16.mxu0 %v7935
        %9513 = vmatmul.mubr.bf16.gmra.mrb[0].mxu0 %v7934
        %v9514 = vpop.f32.mrb[0].mxu0
        %v9515 = vadd.f32 %v9226, %v9514
        %v9516 = vpop.f32.mrb[0].mxu0
        %v9517 = vpop.f32.mrb[0].mxu0
        %v9518 = vadd.f32 %v9229, %v9517
        %v9519 = vpop.f32.mrb[0].mxu0
        %9520 = vmatprep.mubr.bf16.mxu0 %v7938
        %9521 = vmatmul.mubr.bf16.gmra.mrb[0].mxu0 %v7937
        %v9522 = vpop.f32.mrb[0].mxu0
        %v9523 = vadd.f32 %v9234, %v9522
        %v9524 = vpop.f32.mrb[0].mxu0
        %v9525 = vpop.f32.mrb[0].mxu0
        %v9526 = vadd.f32 %v9237, %v9525
        %v9527 = vpop.f32.mrb[0].mxu0
        %9528 = vmatprep.mubr.bf16.mxu0 %v7941
        %9529 = vmatmul.mubr.bf16.gmra.mrb[0].mxu0 %v7940
        %v9530 = vpop.f32.mrb[0].mxu0
        %v9531 = vadd.f32 %v9242, %v9530
        %v9532 = vpop.f32.mrb[0].mxu0
        %v9533 = vpop.f32.mrb[0].mxu0
        %v9534 = vadd.f32 %v9245, %v9533
        %v9535 = vpop.f32.mrb[0].mxu0
        %9536 = vmatprep.mubr.bf16.mxu0 %v7944
        %9537 = vmatmul.mubr.bf16.gmra.mrb[0].mxu0 %v7943
        %v9538 = vpop.f32.mrb[0].mxu0
        %v9539 = vadd.f32 %v9250, %v9538
        %v9540 = vpop.f32.mrb[0].mxu0
        %v9541 = vpop.f32.mrb[0].mxu0
        %v9542 = vadd.f32 %v9253, %v9541
        %v9543 = vpop.f32.mrb[0].mxu0
        %9544 = vmatprep.mubr.bf16.mxu0 %v7947
        %9545 = vmatmul.mubr.bf16.gmra.mrb[0].mxu0 %v7946
        %v9546 = vpop.f32.mrb[0].mxu0
        %v9547 = vadd.f32 %v9258, %v9546
        %v9548 = vpop.f32.mrb[0].mxu0
        %v9549 = vpop.f32.mrb[0].mxu0
        %v9550 = vadd.f32 %v9261, %v9549
        %v9551 = vpop.f32.mrb[0].mxu0
        %9552 = vmatprep.mubr.bf16.mxu0 %v7950
        %9553 = vmatmul.mubr.bf16.gmra.mrb[0].mxu0 %v7949
        %v9554 = vpop.f32.mrb[0].mxu0
        %v9555 = vadd.f32 %v9266, %v9554
        %v9556 = vpop.f32.mrb[0].mxu0
        %v9557 = vpop.f32.mrb[0].mxu0
        %v9558 = vadd.f32 %v9269, %v9557
        %v9559 = vpop.f32.mrb[0].mxu0
        %9560 = vmatprep.mubr.bf16.mxu0 %v7953
        %9561 = vmatmul.mubr.bf16.gmra.mrb[0].mxu0 %v7952
        %v9562 = vpop.f32.mrb[0].mxu0
        %v9563 = vadd.f32 %v9274, %v9562
        %v9564 = vpop.f32.mrb[0].mxu0
        %v9565 = vpop.f32.mrb[0].mxu0
        %v9566 = vadd.f32 %v9277, %v9565
        %v9567 = vpop.f32.mrb[0].mxu0
        %9568 = vmatprep.mubr.bf16.mxu0 %v7956
        %9569 = vmatmul.mubr.bf16.gmra.mrb[0].mxu0 %v7955
        %v9570 = vpop.f32.mrb[0].mxu0
        %v9571 = vadd.f32 %v9282, %v9570
        %v9572 = vpop.f32.mrb[0].mxu0
        %v9573 = vpop.f32.mrb[0].mxu0
        %v9574 = vadd.f32 %v9285, %v9573
        %v9575 = vpop.f32.mrb[0].mxu0
        %9576 = vmatprep.mubr.bf16.mxu0 %v7959
        %9577 = vmatmul.mubr.bf16.gmra.mrb[0].mxu0 %v7958
        %v9578 = vpop.f32.mrb[0].mxu0
        %v9579 = vadd.f32 %v9290, %v9578
        %v9580 = vpop.f32.mrb[0].mxu0
        %v9581 = vpop.f32.mrb[0].mxu0
        %v9582 = vadd.f32 %v9293, %v9581
        %v9583 = vpop.f32.mrb[0].mxu0
        %9584 = vmatprep.mubr.bf16.mxu0 %v7962
        %9585 = vmatmul.mubr.bf16.gmra.mrb[0].mxu0 %v7961
        %v9586 = vpop.f32.mrb[0].mxu0
        %v9587 = vadd.f32 %v9298, %v9586
        %v9588 = vpop.f32.mrb[0].mxu0
        %v9589 = vpop.f32.mrb[0].mxu0
        %v9590 = vadd.f32 %v9301, %v9589
        %v9591 = vpop.f32.mrb[0].mxu0
        %9592 = vmatprep.mubr.bf16.mxu0 %v7965
        %9593 = vmatmul.mubr.bf16.gmra.mrb[0].mxu0 %v7964
        %v9594 = vpop.f32.mrb[0].mxu0
        %v9595 = vadd.f32 %v9306, %v9594
        %v9596 = vpop.f32.mrb[0].mxu0
        %v9597 = vpop.f32.mrb[0].mxu0
        %v9598 = vadd.f32 %v9309, %v9597
        %v9599 = vpop.f32.mrb[0].mxu0
        %9600 = vmatprep.mubr.bf16.mxu0 %v7968
        %9601 = vmatmul.mubr.bf16.gmra.mrb[0].mxu0 %v7967
        %v9602 = vpop.f32.mrb[0].mxu0
        %v9603 = vadd.f32 %v9314, %v9602
        %v9604 = vpop.f32.mrb[0].mxu0
        %v9605 = vpop.f32.mrb[0].mxu0
        %v9606 = vadd.f32 %v9317, %v9605
        %v9607 = vpop.f32.mrb[0].mxu0
        %9608 = vmatprep.mubr.bf16.mxu0 %v7971
        %9609 = vmatmul.mubr.bf16.gmra.mrb[0].mxu0 %v7970
        %v9610 = vpop.f32.mrb[0].mxu0
        %v9611 = vadd.f32 %v9322, %v9610
        %v9612 = vpop.f32.mrb[0].mxu0
        %v9613 = vpop.f32.mrb[0].mxu0
        %v9614 = vadd.f32 %v9325, %v9613
        %v9615 = vpop.f32.mrb[0].mxu0
        %9616 = vmatprep.mubr.bf16.mxu0 %v4768
        %9617 = vmatmul.mubr.bf16.gmra.mrb[0].mxu0 %v4767
        %v9618 = vpop.f32.mrb[0].mxu0
        %v9619 = vadd.f32 %v9330, %v9618
        %v9620 = vpop.f32.mrb[0].mxu0
        %v9621 = vpop.f32.mrb[0].mxu0
        %v9622 = vadd.f32 %v9333, %v9621
        %v9623 = vpop.f32.mrb[0].mxu0
        %9624 = vmatprep.mubr.bf16.mxu0 %v7977
        %9625 = vmatmul.mubr.bf16.gmra.mrb[0].mxu0 %v7976
        %v9626 = vpop.f32.mrb[0].mxu0
        %v9627 = vadd.f32 %v9338, %v9626
        %v9628 = vpop.f32.mrb[0].mxu0
        %v9629 = vpop.f32.mrb[0].mxu0
        %v9630 = vadd.f32 %v9341, %v9629
        %v9631 = vpop.f32.mrb[0].mxu0
        %9632 = vmatprep.mubr.bf16.mxu0 %v7980
        %9633 = vmatmul.mubr.bf16.gmra.mrb[0].mxu0 %v7979
        %v9634 = vpop.f32.mrb[0].mxu0
        %v9635 = vadd.f32 %v9346, %v9634
        %v9636 = vpop.f32.mrb[0].mxu0
        %v9637 = vpop.f32.mrb[0].mxu0
        %v9638 = vadd.f32 %v9349, %v9637
        %v9639 = vpop.f32.mrb[0].mxu0
        %9640 = vmatprep.mubr.bf16.mxu0 %v7983
        %9641 = vmatmul.mubr.bf16.gmra.mrb[0].mxu0 %v7982
        %v9642 = vpop.f32.mrb[0].mxu0
        %v9643 = vadd.f32 %v9354, %v9642
        %v9644 = vpop.f32.mrb[0].mxu0
        %v9645 = vpop.f32.mrb[0].mxu0
        %v9646 = vadd.f32 %v9357, %v9645
        %v9647 = vpop.f32.mrb[0].mxu0
        %9648 = vmatprep.mubr.bf16.mxu0 %v7986
        %9649 = vmatmul.mubr.bf16.gmra.mrb[0].mxu0 %v7985
        %v9650 = vpop.f32.mrb[0].mxu0
        %v9651 = vadd.f32 %v9362, %v9650
        %v9652 = vpop.f32.mrb[0].mxu0
        %v9653 = vpop.f32.mrb[0].mxu0
        %v9654 = vadd.f32 %v9365, %v9653
        %v9655 = vpop.f32.mrb[0].mxu0
        %9656 = vmatprep.mubr.bf16.mxu0 %v7989
        %9657 = vmatmul.mubr.bf16.gmra.mrb[0].mxu0 %v7988
        %v9658 = vpop.f32.mrb[0].mxu0
        %v9659 = vadd.f32 %v9370, %v9658
        %v9660 = vpop.f32.mrb[0].mxu0
        %v9661 = vpop.f32.mrb[0].mxu0
        %v9662 = vadd.f32 %v9373, %v9661
        %v9663 = vpop.f32.mrb[0].mxu0
        %9664 = vmatprep.mubr.bf16.mxu0 %v7992
        %9665 = vmatmul.mubr.bf16.gmra.mrb[0].mxu0 %v7991
        %v9666 = vpop.f32.mrb[0].mxu0
        %v9667 = vadd.f32 %v9378, %v9666
        %v9668 = vpop.f32.mrb[0].mxu0
        %v9669 = vpop.f32.mrb[0].mxu0
        %v9670 = vadd.f32 %v9381, %v9669
        %v9671 = vpop.f32.mrb[0].mxu0
        %9672 = vmatprep.mubr.bf16.mxu0 %v7995
        %9673 = vmatmul.mubr.bf16.gmra.mrb[0].mxu0 %v7994
        %v9674 = vpop.f32.mrb[0].mxu0
        %v9675 = vadd.f32 %v9386, %v9674
        %v9676 = vpop.f32.mrb[0].mxu0
        %v9677 = vpop.f32.mrb[0].mxu0
        %v9678 = vadd.f32 %v9389, %v9677
        %v9679 = vpop.f32.mrb[0].mxu0
        %9680 = vmatprep.mubr.bf16.mxu0 %v7998
        %9681 = vmatmul.mubr.bf16.gmra.mrb[0].mxu0 %v7997
        %v9682 = vpop.f32.mrb[0].mxu0
        %v9683 = vadd.f32 %v9394, %v9682
        %v9684 = vpop.f32.mrb[0].mxu0
        %v9685 = vpop.f32.mrb[0].mxu0
        %v9686 = vadd.f32 %v9397, %v9685
        %v9687 = vpop.f32.mrb[0].mxu0
        %9688 = vmatprep.mubr.bf16.mxu0 %v8001
        %9689 = vmatmul.mubr.bf16.gmra.mrb[0].mxu0 %v8000
        %v9690 = vpop.f32.mrb[0].mxu0
        %v9691 = vadd.f32 %v9402, %v9690
        %v9692 = vpop.f32.mrb[0].mxu0
        %v9693 = vpop.f32.mrb[0].mxu0
        %v9694 = vadd.f32 %v9405, %v9693
        %v9695 = vpop.f32.mrb[0].mxu0
        %9696 = vmatprep.mubr.bf16.mxu0 %v8004
        %9697 = vmatmul.mubr.bf16.gmra.mrb[0].mxu0 %v8003
        %v9698 = vpop.f32.mrb[0].mxu0
        %v9699 = vadd.f32 %v9410, %v9698
        %v9700 = vpop.f32.mrb[0].mxu0
        %v9701 = vpop.f32.mrb[0].mxu0
        %v9702 = vadd.f32 %v9413, %v9701
        %v9703 = vpop.f32.mrb[0].mxu0
        %9704 = vmatprep.mubr.bf16.mxu0 %v8007
        %9705 = vmatmul.mubr.bf16.gmra.mrb[0].mxu0 %v8006
        %v9706 = vpop.f32.mrb[0].mxu0
        %v9707 = vadd.f32 %v9418, %v9706
        %v9708 = vpop.f32.mrb[0].mxu0
        %v9709 = vpop.f32.mrb[0].mxu0
        %v9710 = vadd.f32 %v9421, %v9709
        %v9711 = vpop.f32.mrb[0].mxu0
        %9712 = vmatprep.mubr.bf16.mxu0 %v8010
        %9713 = vmatmul.mubr.bf16.gmra.mrb[0].mxu0 %v8009
        %v9714 = vpop.f32.mrb[0].mxu0
        %v9715 = vadd.f32 %v9426, %v9714
        %v9716 = vpop.f32.mrb[0].mxu0
        %v9717 = vpop.f32.mrb[0].mxu0
        %v9718 = vadd.f32 %v9429, %v9717
        %v9719 = vpop.f32.mrb[0].mxu0
        %9720 = vmatprep.mubr.bf16.mxu0 %v8013
        %9721 = vmatmul.mubr.bf16.gmra.mrb[0].mxu0 %v8012
        %v9722 = vpop.f32.mrb[0].mxu0
        %v9723 = vadd.f32 %v9434, %v9722
        %v9724 = vpop.f32.mrb[0].mxu0
        %v9725 = vpop.f32.mrb[0].mxu0
        %v9726 = vadd.f32 %v9437, %v9725
        %v9727 = vpop.f32.mrb[0].mxu0
        %9728 = vmatprep.mubr.bf16.mxu0 %v8016
        %9729 = vmatmul.mubr.bf16.gmra.mrb[0].mxu0 %v8015
        %v9730 = vpop.f32.mrb[0].mxu0
        %v9731 = vadd.f32 %v9442, %v9730
        %v9732 = vpop.f32.mrb[0].mxu0
        %v9733 = vpop.f32.mrb[0].mxu0
        %v9734 = vadd.f32 %v9445, %v9733
        %v9735 = vpop.f32.mrb[0].mxu0
        %9736 = vmatprep.mubr.bf16.mxu0 %v8019
        %9737 = vmatmul.mubr.bf16.gmra.mrb[0].mxu0 %v8018
        %v9738 = vpop.f32.mrb[0].mxu0
        %v9739 = vadd.f32 %v9450, %v9738
        %v9740 = vpop.f32.mrb[0].mxu0
        %v9741 = vpop.f32.mrb[0].mxu0
        %v9742 = vadd.f32 %v9453, %v9741
        %v9743 = vpop.f32.mrb[0].mxu0
        %9744 = vmatprep.mubr.bf16.mxu0 %v4768
        %9745 = vmatmul.mubr.bf16.gmra.mrb[0].mxu0 %v4767
        %v9746 = vpop.f32.mrb[0].mxu0
        %v9747 = vadd.f32 %v9458, %v9746
        %v9748 = vpop.f32.mrb[0].mxu0
        %v9749 = vpop.f32.mrb[0].mxu0
        %v9750 = vadd.f32 %v9461, %v9749
        %v9751 = vpop.f32.mrb[0].mxu0
        %9752 = vdwg.mxu0
        %9753 = vmatprep.subr.bf16.mxu0 0
        %9754 = vmatpush1.bf16.msra.mxu0 %v8517
        %9755 = vmatprep.subr.bf16.mxu0 0
        %9756 = vmatpush1.bf16.msra.mxu0 %v8518
        %9757 = vmatprep.subr.bf16.mxu0 0
        %9758 = vmatpush1.bf16.msra.mxu0 %v8519
        %9759 = vmatprep.subr.bf16.mxu0 0
        %9760 = vmatpush1.bf16.msra.mxu0 %v8520
        %9761 = vmatprep.subr.bf16.mxu0 0
        %9762 = vmatpush1.bf16.msra.mxu0 %v8521
        %9763 = vmatprep.subr.bf16.mxu0 0
        %9764 = vmatpush1.bf16.msra.mxu0 %v8522
        %9765 = vmatprep.subr.bf16.mxu0 0
        %9766 = vmatpush1.bf16.msra.mxu0 %v8523
        %9767 = vmatprep.subr.bf16.mxu0 0
        %9768 = vmatpush1.bf16.msra.mxu0 %v8524
        %9769 = vmatprep.subr.bf16.mxu0 0
        %9770 = vmatpush1.bf16.msra.mxu0 0
        %9771 = vmatprep.subr.bf16.mxu0 0
        %9772 = vmatpush1.bf16.msra.mxu0 0
        %9773 = vmatprep.subr.bf16.mxu0 0
        %9774 = vmatpush1.bf16.msra.mxu0 0
        %9775 = vmatprep.subr.bf16.mxu0 0
        %9776 = vmatpush1.bf16.msra.mxu0 0
        %9777 = vmatprep.subr.bf16.mxu0 0
        %9778 = vmatpush1.bf16.msra.mxu0 0
        %9779 = vmatprep.subr.bf16.mxu0 0
        %9780 = vmatpush1.bf16.msra.mxu0 0
        %9781 = vmatprep.subr.bf16.mxu0 0
        %9782 = vmatpush1.bf16.msra.mxu0 0
        %9783 = vmatprep.subr.bf16.mxu0 0
        %9784 = vmatpush1.bf16.msra.mxu0 0
        %9785 = vmatprep.mubr.bf16.mxu0 0
        %9786 = vmatmul.mubr.bf16.gmra.mrb[0].mxu0 %v7930
        %v9787 = vpop.f32.mrb[0].mxu0
        %v9788 = vadd.f32 %v9499, %v9787
        %v9789 = vpop.f32.mrb[0].mxu0
        %v9790 = vpop.f32.mrb[0].mxu0
        %v9791 = vadd.f32 %v9502, %v9790
        %v9792 = vpop.f32.mrb[0].mxu0
        %9793 = vmatprep.mubr.bf16.mxu0 0
        %9794 = vmatmul.mubr.bf16.gmra.mrb[0].mxu0 %v7933
        %v9795 = vpop.f32.mrb[0].mxu0
        %v9796 = vadd.f32 %v9507, %v9795
        %v9797 = vpop.f32.mrb[0].mxu0
        %v9798 = vpop.f32.mrb[0].mxu0
        %v9799 = vadd.f32 %v9510, %v9798
        %v9800 = vpop.f32.mrb[0].mxu0
        %9801 = vmatprep.mubr.bf16.mxu0 0
        %9802 = vmatmul.mubr.bf16.gmra.mrb[0].mxu0 %v7936
        %v9803 = vpop.f32.mrb[0].mxu0
        %v9804 = vadd.f32 %v9515, %v9803
        %v9805 = vpop.f32.mrb[0].mxu0
        %v9806 = vpop.f32.mrb[0].mxu0
        %v9807 = vadd.f32 %v9518, %v9806
        %v9808 = vpop.f32.mrb[0].mxu0
        %9809 = vmatprep.mubr.bf16.mxu0 0
        %9810 = vmatmul.mubr.bf16.gmra.mrb[0].mxu0 %v7939
        %v9811 = vpop.f32.mrb[0].mxu0
        %v9812 = vadd.f32 %v9523, %v9811
        %v9813 = vpop.f32.mrb[0].mxu0
        %v9814 = vpop.f32.mrb[0].mxu0
        %v9815 = vadd.f32 %v9526, %v9814
        %v9816 = vpop.f32.mrb[0].mxu0
        %9817 = vmatprep.mubr.bf16.mxu0 0
        %9818 = vmatmul.mubr.bf16.gmra.mrb[0].mxu0 %v7942
        %v9819 = vpop.f32.mrb[0].mxu0
        %v9820 = vadd.f32 %v9531, %v9819
        %v9821 = vpop.f32.mrb[0].mxu0
        %v9822 = vpop.f32.mrb[0].mxu0
        %v9823 = vadd.f32 %v9534, %v9822
        %v9824 = vpop.f32.mrb[0].mxu0
        %9825 = vmatprep.mubr.bf16.mxu0 0
        %9826 = vmatmul.mubr.bf16.gmra.mrb[0].mxu0 %v7945
        %v9827 = vpop.f32.mrb[0].mxu0
        %v9828 = vadd.f32 %v9539, %v9827
        %v9829 = vpop.f32.mrb[0].mxu0
        %v9830 = vpop.f32.mrb[0].mxu0
        %v9831 = vadd.f32 %v9542, %v9830
        %v9832 = vpop.f32.mrb[0].mxu0
        %9833 = vmatprep.mubr.bf16.mxu0 0
        %9834 = vmatmul.mubr.bf16.gmra.mrb[0].mxu0 %v7948
        %v9835 = vpop.f32.mrb[0].mxu0
        %v9836 = vadd.f32 %v9547, %v9835
        %v9837 = vpop.f32.mrb[0].mxu0
        %v9838 = vpop.f32.mrb[0].mxu0
        %v9839 = vadd.f32 %v9550, %v9838
        %v9840 = vpop.f32.mrb[0].mxu0
        %9841 = vmatprep.mubr.bf16.mxu0 0
        %9842 = vmatmul.mubr.bf16.gmra.mrb[0].mxu0 %v7951
        %v9843 = vpop.f32.mrb[0].mxu0
        %v9844 = vadd.f32 %v9555, %v9843
        %v9845 = vpop.f32.mrb[0].mxu0
        %v9846 = vpop.f32.mrb[0].mxu0
        %v9847 = vadd.f32 %v9558, %v9846
        %v9848 = vpop.f32.mrb[0].mxu0
        %9849 = vmatprep.mubr.bf16.mxu0 0
        %9850 = vmatmul.mubr.bf16.gmra.mrb[0].mxu0 %v7954
        %v9851 = vpop.f32.mrb[0].mxu0
        %v9852 = vadd.f32 %v9563, %v9851
        %v9853 = vpop.f32.mrb[0].mxu0
        %v9854 = vpop.f32.mrb[0].mxu0
        %v9855 = vadd.f32 %v9566, %v9854
        %v9856 = vpop.f32.mrb[0].mxu0
        %9857 = vmatprep.mubr.bf16.mxu0 0
        %9858 = vmatmul.mubr.bf16.gmra.mrb[0].mxu0 %v7957
        %v9859 = vpop.f32.mrb[0].mxu0
        %v9860 = vadd.f32 %v9571, %v9859
        %v9861 = vpop.f32.mrb[0].mxu0
        %v9862 = vpop.f32.mrb[0].mxu0
        %v9863 = vadd.f32 %v9574, %v9862
        %v9864 = vpop.f32.mrb[0].mxu0
        %9865 = vmatprep.mubr.bf16.mxu0 0
        %9866 = vmatmul.mubr.bf16.gmra.mrb[0].mxu0 %v7960
        %v9867 = vpop.f32.mrb[0].mxu0
        %v9868 = vadd.f32 %v9579, %v9867
        %v9869 = vpop.f32.mrb[0].mxu0
        %v9870 = vpop.f32.mrb[0].mxu0
        %v9871 = vadd.f32 %v9582, %v9870
        %v9872 = vpop.f32.mrb[0].mxu0
        %9873 = vmatprep.mubr.bf16.mxu0 0
        %9874 = vmatmul.mubr.bf16.gmra.mrb[0].mxu0 %v7963
        %v9875 = vpop.f32.mrb[0].mxu0
        %v9876 = vadd.f32 %v9587, %v9875
        %v9877 = vpop.f32.mrb[0].mxu0
        %v9878 = vpop.f32.mrb[0].mxu0
        %v9879 = vadd.f32 %v9590, %v9878
        %v9880 = vpop.f32.mrb[0].mxu0
        %9881 = vmatprep.mubr.bf16.mxu0 0
        %9882 = vmatmul.mubr.bf16.gmra.mrb[0].mxu0 %v7966
        %v9883 = vpop.f32.mrb[0].mxu0
        %v9884 = vadd.f32 %v9595, %v9883
        %v9885 = vpop.f32.mrb[0].mxu0
        %v9886 = vpop.f32.mrb[0].mxu0
        %v9887 = vadd.f32 %v9598, %v9886
        %v9888 = vpop.f32.mrb[0].mxu0
        %9889 = vmatprep.mubr.bf16.mxu0 0
        %9890 = vmatmul.mubr.bf16.gmra.mrb[0].mxu0 %v7969
        %v9891 = vpop.f32.mrb[0].mxu0
        %v9892 = vadd.f32 %v9603, %v9891
        %v9893 = vpop.f32.mrb[0].mxu0
        %v9894 = vpop.f32.mrb[0].mxu0
        %v9895 = vadd.f32 %v9606, %v9894
        %v9896 = vpop.f32.mrb[0].mxu0
        %9897 = vmatprep.mubr.bf16.mxu0 0
        %9898 = vmatmul.mubr.bf16.gmra.mrb[0].mxu0 %v7972
        %v9899 = vpop.f32.mrb[0].mxu0
        %v9900 = vadd.f32 %v9611, %v9899
        %v9901 = vpop.f32.mrb[0].mxu0
        %v9902 = vpop.f32.mrb[0].mxu0
        %v9903 = vadd.f32 %v9614, %v9902
        %v9904 = vpop.f32.mrb[0].mxu0
        %9905 = vmatprep.mubr.bf16.mxu0 0
        %9906 = vmatmul.mubr.bf16.gmra.mrb[0].mxu0 %v4769
        %v9907 = vpop.f32.mrb[0].mxu0
        %v9908 = vadd.f32 %v9619, %v9907
        %v9909 = vpop.f32.mrb[0].mxu0
        %v9910 = vpop.f32.mrb[0].mxu0
        %v9911 = vadd.f32 %v9622, %v9910
        %v9912 = vpop.f32.mrb[0].mxu0
        %9913 = vmatprep.mubr.bf16.mxu0 0
        %9914 = vmatmul.mubr.bf16.gmra.mrb[0].mxu0 %v7978
        %v9915 = vpop.f32.mrb[0].mxu0
        %v9916 = vadd.f32 %v9627, %v9915
        %v9917 = vpop.f32.mrb[0].mxu0
        %v9918 = vpop.f32.mrb[0].mxu0
        %v9919 = vadd.f32 %v9630, %v9918
        %v9920 = vpop.f32.mrb[0].mxu0
        %9921 = vmatprep.mubr.bf16.mxu0 0
        %9922 = vmatmul.mubr.bf16.gmra.mrb[0].mxu0 %v7981
        %v9923 = vpop.f32.mrb[0].mxu0
        %v9924 = vadd.f32 %v9635, %v9923
        %v9925 = vpop.f32.mrb[0].mxu0
        %v9926 = vpop.f32.mrb[0].mxu0
        %v9927 = vadd.f32 %v9638, %v9926
        %v9928 = vpop.f32.mrb[0].mxu0
        %9929 = vmatprep.mubr.bf16.mxu0 0
        %9930 = vmatmul.mubr.bf16.gmra.mrb[0].mxu0 %v7984
        %v9931 = vpop.f32.mrb[0].mxu0
        %v9932 = vadd.f32 %v9643, %v9931
        %v9933 = vpop.f32.mrb[0].mxu0
        %v9934 = vpop.f32.mrb[0].mxu0
        %v9935 = vadd.f32 %v9646, %v9934
        %v9936 = vpop.f32.mrb[0].mxu0
        %9937 = vmatprep.mubr.bf16.mxu0 0
        %9938 = vmatmul.mubr.bf16.gmra.mrb[0].mxu0 %v7987
        %v9939 = vpop.f32.mrb[0].mxu0
        %v9940 = vadd.f32 %v9651, %v9939
        %v9941 = vpop.f32.mrb[0].mxu0
        %v9942 = vpop.f32.mrb[0].mxu0
        %v9943 = vadd.f32 %v9654, %v9942
        %v9944 = vpop.f32.mrb[0].mxu0
        %9945 = vmatprep.mubr.bf16.mxu0 0
        %9946 = vmatmul.mubr.bf16.gmra.mrb[0].mxu0 %v7990
        %v9947 = vpop.f32.mrb[0].mxu0
        %v9948 = vadd.f32 %v9659, %v9947
        %v9949 = vpop.f32.mrb[0].mxu0
        %v9950 = vpop.f32.mrb[0].mxu0
        %v9951 = vadd.f32 %v9662, %v9950
        %v9952 = vpop.f32.mrb[0].mxu0
        %9953 = vmatprep.mubr.bf16.mxu0 0
        %9954 = vmatmul.mubr.bf16.gmra.mrb[0].mxu0 %v7993
        %v9955 = vpop.f32.mrb[0].mxu0
        %v9956 = vadd.f32 %v9667, %v9955
        %v9957 = vpop.f32.mrb[0].mxu0
        %v9958 = vpop.f32.mrb[0].mxu0
        %v9959 = vadd.f32 %v9670, %v9958
        %v9960 = vpop.f32.mrb[0].mxu0
        %9961 = vmatprep.mubr.bf16.mxu0 0
        %9962 = vmatmul.mubr.bf16.gmra.mrb[0].mxu0 %v7996
        %v9963 = vpop.f32.mrb[0].mxu0
        %v9964 = vadd.f32 %v9675, %v9963
        %v9965 = vpop.f32.mrb[0].mxu0
        %v9966 = vpop.f32.mrb[0].mxu0
        %v9967 = vadd.f32 %v9678, %v9966
        %v9968 = vpop.f32.mrb[0].mxu0
        %9969 = vmatprep.mubr.bf16.mxu0 0
        %9970 = vmatmul.mubr.bf16.gmra.mrb[0].mxu0 %v7999
        %v9971 = vpop.f32.mrb[0].mxu0
        %v9972 = vadd.f32 %v9683, %v9971
        %v9973 = vpop.f32.mrb[0].mxu0
        %v9974 = vpop.f32.mrb[0].mxu0
        %v9975 = vadd.f32 %v9686, %v9974
        %v9976 = vpop.f32.mrb[0].mxu0
        %9977 = vmatprep.mubr.bf16.mxu0 0
        %9978 = vmatmul.mubr.bf16.gmra.mrb[0].mxu0 %v8002
        %v9979 = vpop.f32.mrb[0].mxu0
        %v9980 = vadd.f32 %v9691, %v9979
        %v9981 = vpop.f32.mrb[0].mxu0
        %v9982 = vpop.f32.mrb[0].mxu0
        %v9983 = vadd.f32 %v9694, %v9982
        %v9984 = vpop.f32.mrb[0].mxu0
        %9985 = vmatprep.mubr.bf16.mxu0 0
        %9986 = vmatmul.mubr.bf16.gmra.mrb[0].mxu0 %v8005
        %v9987 = vpop.f32.mrb[0].mxu0
        %v9988 = vadd.f32 %v9699, %v9987
        %v9989 = vpop.f32.mrb[0].mxu0
        %v9990 = vpop.f32.mrb[0].mxu0
        %v9991 = vadd.f32 %v9702, %v9990
        %v9992 = vpop.f32.mrb[0].mxu0
        %9993 = vmatprep.mubr.bf16.mxu0 0
        %9994 = vmatmul.mubr.bf16.gmra.mrb[0].mxu0 %v8008
        %v9995 = vpop.f32.mrb[0].mxu0
        %v9996 = vadd.f32 %v9707, %v9995
        %v9997 = vpop.f32.mrb[0].mxu0
        %v9998 = vpop.f32.mrb[0].mxu0
        %v9999 = vadd.f32 %v9710, %v9998
        %v10000 = vpop.f32.mrb[0].mxu0
        %10001 = vmatprep.mubr.bf16.mxu0 0
        %10002 = vmatmul.mubr.bf16.gmra.mrb[0].mxu0 %v8011
        %v10003 = vpop.f32.mrb[0].mxu0
        %v10004 = vadd.f32 %v9715, %v10003
        %v10005 = vpop.f32.mrb[0].mxu0
        %v10006 = vpop.f32.mrb[0].mxu0
        %v10007 = vadd.f32 %v9718, %v10006
        %v10008 = vpop.f32.mrb[0].mxu0
        %10009 = vmatprep.mubr.bf16.mxu0 0
        %10010 = vmatmul.mubr.bf16.gmra.mrb[0].mxu0 %v8014
        %v10011 = vpop.f32.mrb[0].mxu0
        %v10012 = vadd.f32 %v9723, %v10011
        %v10013 = vpop.f32.mrb[0].mxu0
        %v10014 = vpop.f32.mrb[0].mxu0
        %v10015 = vadd.f32 %v9726, %v10014
        %v10016 = vpop.f32.mrb[0].mxu0
        %10017 = vmatprep.mubr.bf16.mxu0 0
        %10018 = vmatmul.mubr.bf16.gmra.mrb[0].mxu0 %v8017
        %v10019 = vpop.f32.mrb[0].mxu0
        %v10020 = vadd.f32 %v9731, %v10019
        %v10021 = vpop.f32.mrb[0].mxu0
        %v10022 = vpop.f32.mrb[0].mxu0
        %v10023 = vadd.f32 %v9734, %v10022
        %v10024 = vpop.f32.mrb[0].mxu0
        %10025 = vmatprep.mubr.bf16.mxu0 0
        %10026 = vmatmul.mubr.bf16.gmra.mrb[0].mxu0 %v8020
        %v10027 = vpop.f32.mrb[0].mxu0
        %v10028 = vadd.f32 %v9739, %v10027
        %v10029 = vpop.f32.mrb[0].mxu0
        %v10030 = vpop.f32.mrb[0].mxu0
        %v10031 = vadd.f32 %v9742, %v10030
        %v10032 = vpop.f32.mrb[0].mxu0
        %10033 = vmatprep.mubr.bf16.mxu0 0
        %10034 = vmatmul.mubr.bf16.gmra.mrb[0].mxu0 %v4769
        %v10035 = vpop.f32.mrb[0].mxu0
        %v10036 = vadd.f32 %v9747, %v10035
        %v10037 = vpop.f32.mrb[0].mxu0
        %v10038 = vpop.f32.mrb[0].mxu0
        %v10039 = vadd.f32 %v9750, %v10038
        %v10040 = vpop.f32.mrb[0].mxu0
        %10041 = vdwg.mxu0
        %v10042 = vld [vmem:[%s8] sm:$0x1]
        %v10044 = vlaneseq
        %v10045 = vshrl.u32 %v10044, 7
        %v10046 = vsub.s32 0, %v10045
        %v10047 = vrot.slane %v10042, %v10046
        %v10049 = vmul.f32 %v9788, %v10047
        %v10050 = vmul.f32 %v9791, %v10047
        %v10051 = vmul.f32 %v9796, %v10047
        %v10052 = vmul.f32 %v9799, %v10047
        %v10053 = vmul.f32 %v9804, %v10047
        %v10054 = vmul.f32 %v9807, %v10047
        %v10055 = vmul.f32 %v9812, %v10047
        %v10056 = vmul.f32 %v9815, %v10047
        %v10057 = vmul.f32 %v9820, %v10047
        %v10058 = vmul.f32 %v9823, %v10047
        %v10059 = vmul.f32 %v9828, %v10047
        %v10060 = vmul.f32 %v9831, %v10047
        %v10061 = vmul.f32 %v9836, %v10047
        %v10062 = vmul.f32 %v9839, %v10047
        %v10063 = vmul.f32 %v9844, %v10047
        %v10064 = vmul.f32 %v9847, %v10047
        %v10065 = vmul.f32 %v9852, %v10047
        %v10066 = vmul.f32 %v9855, %v10047
        %v10067 = vmul.f32 %v9860, %v10047
        %v10068 = vmul.f32 %v9863, %v10047
        %v10069 = vmul.f32 %v9868, %v10047
        %v10070 = vmul.f32 %v9871, %v10047
        %v10071 = vmul.f32 %v9876, %v10047
        %v10072 = vmul.f32 %v9879, %v10047
        %v10073 = vmul.f32 %v9884, %v10047
        %v10074 = vmul.f32 %v9887, %v10047
        %v10075 = vmul.f32 %v9892, %v10047
        %v10076 = vmul.f32 %v9895, %v10047
        %v10077 = vmul.f32 %v9900, %v10047
        %v10078 = vmul.f32 %v9903, %v10047
        %v10079 = vmul.f32 %v9908, %v10047
        %v10080 = vmul.f32 %v9911, %v10047
        %v10081 = vmul.f32 %v9916, %v10047
        %v10082 = vmul.f32 %v9919, %v10047
        %v10083 = vmul.f32 %v9924, %v10047
        %v10084 = vmul.f32 %v9927, %v10047
        %v10085 = vmul.f32 %v9932, %v10047
        %v10086 = vmul.f32 %v9935, %v10047
        %v10087 = vmul.f32 %v9940, %v10047
        %v10088 = vmul.f32 %v9943, %v10047
        %v10089 = vmul.f32 %v9948, %v10047
        %v10090 = vmul.f32 %v9951, %v10047
        %v10091 = vmul.f32 %v9956, %v10047
        %v10092 = vmul.f32 %v9959, %v10047
        %v10093 = vmul.f32 %v9964, %v10047
        %v10094 = vmul.f32 %v9967, %v10047
        %v10095 = vmul.f32 %v9972, %v10047
        %v10096 = vmul.f32 %v9975, %v10047
        %v10097 = vmul.f32 %v9980, %v10047
        %v10098 = vmul.f32 %v9983, %v10047
        %v10099 = vmul.f32 %v9988, %v10047
        %v10100 = vmul.f32 %v9991, %v10047
        %v10101 = vmul.f32 %v9996, %v10047
        %v10102 = vmul.f32 %v9999, %v10047
        %v10103 = vmul.f32 %v10004, %v10047
        %v10104 = vmul.f32 %v10007, %v10047
        %v10105 = vmul.f32 %v10012, %v10047
        %v10106 = vmul.f32 %v10015, %v10047
        %v10107 = vmul.f32 %v10020, %v10047
        %v10108 = vmul.f32 %v10023, %v10047
        %v10109 = vmul.f32 %v10028, %v10047
        %v10110 = vmul.f32 %v10031, %v10047
        %v10111 = vmul.f32 %v10036, %v10047
        %v10112 = vmul.f32 %v10039, %v10047
        %v10113 = vld [vmem:[%s9] sm:$0x1]
        %v10115 = vlaneseq
        %v10116 = vshrl.u32 %v10115, 7
        %v10117 = vsub.s32 0, %v10116
        %v10118 = vrot.slane %v10113, %v10117
        %v10120 = vadd.f32 %v10049, %v10118
        %v10121 = vadd.f32 %v10050, %v10118
        %v10122 = vadd.f32 %v10051, %v10118
        %v10123 = vadd.f32 %v10052, %v10118
        %v10124 = vadd.f32 %v10053, %v10118
        %v10125 = vadd.f32 %v10054, %v10118
        %v10126 = vadd.f32 %v10055, %v10118
        %v10127 = vadd.f32 %v10056, %v10118
        %v10128 = vadd.f32 %v10057, %v10118
        %v10129 = vadd.f32 %v10058, %v10118
        %v10130 = vadd.f32 %v10059, %v10118
        %v10131 = vadd.f32 %v10060, %v10118
        %v10132 = vadd.f32 %v10061, %v10118
        %v10133 = vadd.f32 %v10062, %v10118
        %v10134 = vadd.f32 %v10063, %v10118
        %v10135 = vadd.f32 %v10064, %v10118
        %v10136 = vadd.f32 %v10065, %v10118
        %v10137 = vadd.f32 %v10066, %v10118
        %v10138 = vadd.f32 %v10067, %v10118
        %v10139 = vadd.f32 %v10068, %v10118
        %v10140 = vadd.f32 %v10069, %v10118
        %v10141 = vadd.f32 %v10070, %v10118
        %v10142 = vadd.f32 %v10071, %v10118
        %v10143 = vadd.f32 %v10072, %v10118
        %v10144 = vadd.f32 %v10073, %v10118
        %v10145 = vadd.f32 %v10074, %v10118
        %v10146 = vadd.f32 %v10075, %v10118
        %v10147 = vadd.f32 %v10076, %v10118
        %v10148 = vadd.f32 %v10077, %v10118
        %v10149 = vadd.f32 %v10078, %v10118
        %v10150 = vadd.f32 %v10079, %v10118
        %v10151 = vadd.f32 %v10080, %v10118
        %v10152 = vadd.f32 %v10081, %v10118
        %v10153 = vadd.f32 %v10082, %v10118
        %v10154 = vadd.f32 %v10083, %v10118
        %v10155 = vadd.f32 %v10084, %v10118
        %v10156 = vadd.f32 %v10085, %v10118
        %v10157 = vadd.f32 %v10086, %v10118
        %v10158 = vadd.f32 %v10087, %v10118
        %v10159 = vadd.f32 %v10088, %v10118
        %v10160 = vadd.f32 %v10089, %v10118
        %v10161 = vadd.f32 %v10090, %v10118
        %v10162 = vadd.f32 %v10091, %v10118
        %v10163 = vadd.f32 %v10092, %v10118
        %v10164 = vadd.f32 %v10093, %v10118
        %v10165 = vadd.f32 %v10094, %v10118
        %v10166 = vadd.f32 %v10095, %v10118
        %v10167 = vadd.f32 %v10096, %v10118
        %v10168 = vadd.f32 %v10097, %v10118
        %v10169 = vadd.f32 %v10098, %v10118
        %v10170 = vadd.f32 %v10099, %v10118
        %v10171 = vadd.f32 %v10100, %v10118
        %v10172 = vadd.f32 %v10101, %v10118
        %v10173 = vadd.f32 %v10102, %v10118
        %v10174 = vadd.f32 %v10103, %v10118
        %v10175 = vadd.f32 %v10104, %v10118
        %v10176 = vadd.f32 %v10105, %v10118
        %v10177 = vadd.f32 %v10106, %v10118
        %v10178 = vadd.f32 %v10107, %v10118
        %v10179 = vadd.f32 %v10108, %v10118
        %v10180 = vadd.f32 %v10109, %v10118
        %v10181 = vadd.f32 %v10110, %v10118
        %v10182 = vadd.f32 %v10111, %v10118
        %v10183 = vadd.f32 %v10112, %v10118
        %v10184 = vadd.f32 %v10120, %v10121
        %v10185 = vadd.f32 %v10184, %v10122
        %v10186 = vadd.f32 %v10185, %v10123
        %v10187 = vadd.f32 %v10186, %v10124
        %v10188 = vadd.f32 %v10187, %v10125
        %v10189 = vadd.f32 %v10188, %v10126
        %v10190 = vadd.f32 %v10189, %v10127
        %v10191 = vadd.f32 %v10190, %v10128
        %v10192 = vadd.f32 %v10191, %v10129
        %v10193 = vadd.f32 %v10192, %v10130
        %v10194 = vadd.f32 %v10193, %v10131
        %v10195 = vadd.f32 %v10194, %v10132
        %v10196 = vadd.f32 %v10195, %v10133
        %v10197 = vadd.f32 %v10196, %v10134
        %v10198 = vadd.f32 %v10197, %v10135
        %v10199 = vadd.f32 %v10198, %v10136
        %v10200 = vadd.f32 %v10199, %v10137
        %v10201 = vadd.f32 %v10200, %v10138
        %v10202 = vadd.f32 %v10201, %v10139
        %v10203 = vadd.f32 %v10202, %v10140
        %v10204 = vadd.f32 %v10203, %v10141
        %v10205 = vadd.f32 %v10204, %v10142
        %v10206 = vadd.f32 %v10205, %v10143
        %v10207 = vadd.f32 %v10206, %v10144
        %v10208 = vadd.f32 %v10207, %v10145
        %v10209 = vadd.f32 %v10208, %v10146
        %v10210 = vadd.f32 %v10209, %v10147
        %v10211 = vadd.f32 %v10210, %v10148
        %v10212 = vadd.f32 %v10211, %v10149
        %v10213 = vadd.f32 %v10212, %v10150
        %v10214 = vadd.f32 %v10213, %v10151
        %v10215 = vrot.slane %v10214, 4
        %v10216 = vadd.f32 %v10214, %v10215
        %v10217 = vrot.slane %v10216, 2
        %v10218 = vadd.f32 %v10216, %v10217
        %v10219 = vrot.slane %v10218, 1
        %v10220 = vadd.f32 %v10218, %v10219
        %v10221 = vadd.f32 %v10152, %v10153
        %v10222 = vadd.f32 %v10221, %v10154
        %v10223 = vadd.f32 %v10222, %v10155
        %v10224 = vadd.f32 %v10223, %v10156
        %v10225 = vadd.f32 %v10224, %v10157
        %v10226 = vadd.f32 %v10225, %v10158
        %v10227 = vadd.f32 %v10226, %v10159
        %v10228 = vadd.f32 %v10227, %v10160
        %v10229 = vadd.f32 %v10228, %v10161
        %v10230 = vadd.f32 %v10229, %v10162
        %v10231 = vadd.f32 %v10230, %v10163
        %v10232 = vadd.f32 %v10231, %v10164
        %v10233 = vadd.f32 %v10232, %v10165
        %v10234 = vadd.f32 %v10233, %v10166
        %v10235 = vadd.f32 %v10234, %v10167
        %v10236 = vadd.f32 %v10235, %v10168
        %v10237 = vadd.f32 %v10236, %v10169
        %v10238 = vadd.f32 %v10237, %v10170
        %v10239 = vadd.f32 %v10238, %v10171
        %v10240 = vadd.f32 %v10239, %v10172
        %v10241 = vadd.f32 %v10240, %v10173
        %v10242 = vadd.f32 %v10241, %v10174
        %v10243 = vadd.f32 %v10242, %v10175
        %v10244 = vadd.f32 %v10243, %v10176
        %v10245 = vadd.f32 %v10244, %v10177
        %v10246 = vadd.f32 %v10245, %v10178
        %v10247 = vadd.f32 %v10246, %v10179
        %v10248 = vadd.f32 %v10247, %v10180
        %v10249 = vadd.f32 %v10248, %v10181
        %v10250 = vadd.f32 %v10249, %v10182
        %v10251 = vadd.f32 %v10250, %v10183
        %v10252 = vrot.slane %v10251, 4
        %v10253 = vadd.f32 %v10251, %v10252
        %v10254 = vrot.slane %v10253, 2
        %v10255 = vadd.f32 %v10253, %v10254
        %v10256 = vrot.slane %v10255, 1
        %v10257 = vadd.f32 %v10255, %v10256
        %v10258 = vrcp.pop 256.0
        %v10259 = vmul.f32 %v10220, %v10258
        %v10260 = vmul.f32 %v10257, %v10258
        %v10261 = vld [vmem:[%s10] sm:$0xff]
        %v10262 = vld [vmem:[%s10 + $0x8] sm:$0xff]
        %v10263 = vld [vmem:[%s10 + $0x10] sm:$0xff]
        %v10264 = vld [vmem:[%s10 + $0x18] sm:$0xff]
        %v10265 = vld [vmem:[%s10 + $0x20] sm:$0xff]
        %v10266 = vld [vmem:[%s10 + $0x28] sm:$0xff]
        %v10267 = vld [vmem:[%s10 + $0x30] sm:$0xff]
        %v10268 = vld [vmem:[%s10 + $0x38] sm:$0xff]
        %v10269 = vld [vmem:[%s10 + $0x40] sm:$0xff]
        %v10270 = vld [vmem:[%s10 + $0x48] sm:$0xff]
        %v10271 = vld [vmem:[%s10 + $0x50] sm:$0xff]
        %v10272 = vld [vmem:[%s10 + $0x58] sm:$0xff]
        %v10273 = vld [vmem:[%s10 + $0x60] sm:$0xff]
        %v10274 = vld [vmem:[%s10 + $0x68] sm:$0xff]
        %v10275 = vld [vmem:[%s10 + $0x70] sm:$0xff]
        %v10276 = vld [vmem:[%s10 + $0x78] sm:$0xff]
        %v10277 = vld [vmem:[%s11] sm:$0x1]
        %v10279 = vlaneseq
        %v10280 = vshrl.u32 %v10279, 7
        %v10281 = vsub.s32 0, %v10280
        %v10282 = vrot.slane %v10277, %v10281
        %vm10286 = vcmask 1041409
        %v10287 = vsel %vm10286, %v10260, %v10259
        %10289 = vmatprep.subr.mxu0 0.0
        %10290 = vmatpush1.msra.mxu0 %v10261
        %10291 = vmatprep.subr.mxu0 0.0
        %10292 = vmatpush1.msra.mxu0 %v10262
        %10293 = vmatprep.subr.mxu0 0.0
        %10294 = vmatpush1.msra.mxu0 %v10263
        %10295 = vmatprep.subr.mxu0 0.0
        %10296 = vmatpush1.msra.mxu0 %v10264
        %10297 = vmatprep.subr.mxu0 0.0
        %10298 = vmatpush1.msra.mxu0 %v10265
        %10299 = vmatprep.subr.mxu0 0.0
        %10300 = vmatpush1.msra.mxu0 %v10266
        %10301 = vmatprep.subr.mxu0 0.0
        %10302 = vmatpush1.msra.mxu0 %v10267
        %10303 = vmatprep.subr.mxu0 0.0
        %10304 = vmatpush1.msra.mxu0 %v10268
        %10305 = vmatprep.subr.mxu0 0.0
        %10306 = vmatpush1.msra.mxu0 %v10269
        %10307 = vmatprep.subr.mxu0 0.0
        %10308 = vmatpush1.msra.mxu0 %v10270
        %10309 = vmatprep.subr.mxu0 0.0
        %10310 = vmatpush1.msra.mxu0 %v10271
        %10311 = vmatprep.subr.mxu0 0.0
        %10312 = vmatpush1.msra.mxu0 %v10272
        %10313 = vmatprep.subr.mxu0 0.0
        %10314 = vmatpush1.msra.mxu0 %v10273
        %10315 = vmatprep.subr.mxu0 0.0
        %10316 = vmatpush1.msra.mxu0 %v10274
        %10317 = vmatprep.subr.mxu0 0.0
        %10318 = vmatpush1.msra.mxu0 %v10275
        %10319 = vmatprep.subr.mxu0 0.0
        %10320 = vmatpush1.msra.mxu0 %v10276
        %10321 = vmatprep.subr.mxu0 0.0
        %10322 = vmatpush1.msra.mxu0 0.0
        %10323 = vmatprep.subr.mxu0 0.0
        %10324 = vmatpush1.msra.mxu0 0.0
        %10325 = vmatprep.subr.mxu0 0.0
        %10326 = vmatpush1.msra.mxu0 0.0
        %10327 = vmatprep.subr.mxu0 0.0
        %10328 = vmatpush1.msra.mxu0 0.0
        %10329 = vmatprep.subr.mxu0 0.0
        %10330 = vmatpush1.msra.mxu0 0.0
        %10331 = vmatprep.subr.mxu0 0.0
        %10332 = vmatpush1.msra.mxu0 0.0
        %10333 = vmatprep.subr.mxu0 0.0
        %10334 = vmatpush1.msra.mxu0 0.0
        %10335 = vmatprep.subr.mxu0 0.0
        %10336 = vmatpush1.msra.mxu0 0.0
        %10337 = vmatprep.subr.mxu0 0.0
        %10338 = vmatpush1.msra.mxu0 0.0
        %10339 = vmatprep.subr.mxu0 0.0
        %10340 = vmatpush1.msra.mxu0 0.0
        %10341 = vmatprep.subr.mxu0 0.0
        %10342 = vmatpush1.msra.mxu0 0.0
        %10343 = vmatprep.subr.mxu0 0.0
        %10344 = vmatpush1.msra.mxu0 0.0
        %10345 = vmatprep.subr.mxu0 0.0
        %10346 = vmatpush1.msra.mxu0 0.0
        %10347 = vmatprep.subr.mxu0 0.0
        %10348 = vmatpush1.msra.mxu0 0.0
        %10349 = vmatprep.subr.mxu0 0.0
        %10350 = vmatpush1.msra.mxu0 0.0
        %10351 = vmatprep.subr.mxu0 0.0
        %10352 = vmatpush1.msra.mxu0 0.0
        %10353 = vmatprep.mubr.f32.mxu0 0.0
        %10354 = vmatmul.mubr.f32.gmra.mrb[0].mxu0 %v10287
        %v10355 = vpop.f32.mrb[0].mxu0
        %v10356 = vadd.f32 %v10282, %v10355
        %v10357 = vpop.f32.mrb[0].mxu0
        %10358 = vdwg.mxu0
        %v10359 = vld [vmem:[%s12] sm:$0xff]
        %v10360 = vld [vmem:[%s12 + $0x8] sm:$0xff]
        %v10361 = vld [vmem:[%s12 + $0x10] sm:$0xff]
        %v10362 = vld [vmem:[%s12 + $0x18] sm:$0xff]
        %v10363 = vld [vmem:[%s13] sm:$0x1]
        %v10365 = vlaneseq
        %v10366 = vshrl.u32 %v10365, 7
        %v10367 = vsub.s32 0, %v10366
        %v10368 = vrot.slane %v10363, %v10367
        %v10371 = vsel %vm3218, %v10356, 0
        %10373 = vmatprep.subr.mxu0 0.0
        %10374 = vmatpush1.msra.mxu0 %v10359
        %10375 = vmatprep.subr.mxu0 0.0
        %10376 = vmatpush1.msra.mxu0 %v10360
        %10377 = vmatprep.subr.mxu0 0.0
        %10378 = vmatpush1.msra.mxu0 %v10361
        %10379 = vmatprep.subr.mxu0 0.0
        %10380 = vmatpush1.msra.mxu0 %v10362
        %10381 = vmatprep.subr.mxu0 0.0
        %10382 = vmatpush1.msra.mxu0 0.0
        %10383 = vmatprep.subr.mxu0 0.0
        %10384 = vmatpush1.msra.mxu0 0.0
        %10385 = vmatprep.subr.mxu0 0.0
        %10386 = vmatpush1.msra.mxu0 0.0
        %10387 = vmatprep.subr.mxu0 0.0
        %10388 = vmatpush1.msra.mxu0 0.0
        %10389 = vmatprep.subr.mxu0 0.0
        %10390 = vmatpush1.msra.mxu0 0.0
        %10391 = vmatprep.subr.mxu0 0.0
        %10392 = vmatpush1.msra.mxu0 0.0
        %10393 = vmatprep.subr.mxu0 0.0
        %10394 = vmatpush1.msra.mxu0 0.0
        %10395 = vmatprep.subr.mxu0 0.0
        %10396 = vmatpush1.msra.mxu0 0.0
        %10397 = vmatprep.subr.mxu0 0.0
        %10398 = vmatpush1.msra.mxu0 0.0
        %10399 = vmatprep.subr.mxu0 0.0
        %10400 = vmatpush1.msra.mxu0 0.0
        %10401 = vmatprep.subr.mxu0 0.0
        %10402 = vmatpush1.msra.mxu0 0.0
        %10403 = vmatprep.subr.mxu0 0.0
        %10404 = vmatpush1.msra.mxu0 0.0
        %10405 = vmatprep.subr.mxu0 0.0
        %10406 = vmatpush1.msra.mxu0 0.0
        %10407 = vmatprep.subr.mxu0 0.0
        %10408 = vmatpush1.msra.mxu0 0.0
        %10409 = vmatprep.subr.mxu0 0.0
        %10410 = vmatpush1.msra.mxu0 0.0
        %10411 = vmatprep.subr.mxu0 0.0
        %10412 = vmatpush1.msra.mxu0 0.0
        %10413 = vmatprep.subr.mxu0 0.0
        %10414 = vmatpush1.msra.mxu0 0.0
        %10415 = vmatprep.subr.mxu0 0.0
        %10416 = vmatpush1.msra.mxu0 0.0
        %10417 = vmatprep.subr.mxu0 0.0
        %10418 = vmatpush1.msra.mxu0 0.0
        %10419 = vmatprep.subr.mxu0 0.0
        %10420 = vmatpush1.msra.mxu0 0.0
        %10421 = vmatprep.subr.mxu0 0.0
        %10422 = vmatpush1.msra.mxu0 0.0
        %10423 = vmatprep.subr.mxu0 0.0
        %10424 = vmatpush1.msra.mxu0 0.0
        %10425 = vmatprep.subr.mxu0 0.0
        %10426 = vmatpush1.msra.mxu0 0.0
        %10427 = vmatprep.subr.mxu0 0.0
        %10428 = vmatpush1.msra.mxu0 0.0
        %10429 = vmatprep.subr.mxu0 0.0
        %10430 = vmatpush1.msra.mxu0 0.0
        %10431 = vmatprep.subr.mxu0 0.0
        %10432 = vmatpush1.msra.mxu0 0.0
        %10433 = vmatprep.subr.mxu0 0.0
        %10434 = vmatpush1.msra.mxu0 0.0
        %10435 = vmatprep.subr.mxu0 0.0
        %10436 = vmatpush1.msra.mxu0 0.0
        %10437 = vmatprep.mubr.f32.mxu0 0.0
        %10438 = vmatmul.mubr.f32.gmra.mrb[0].mxu0 %v10371
        %v10439 = vpop.f32.mrb[0].mxu0
        %v10440 = vadd.f32 %v10368, %v10439
        %v10441 = vpop.f32.mrb[0].mxu0
        %10442 = vdwg.mxu0
        %v10443 = vxor.u32 %v10440, 2147483648
        %v10444 = vmul.f32 %v10443, 1.442695
        %v10445 = vpow.pop %v10444
        %v10446 = vadd.f32 %v10445, 1.0
        %v10447 = vrcp.pop %v10446
        %v10448 = vmul.f32 1.0, %v10447
        %v10451 = vunpack.c.l.s4 1966171168
        %v10452 = vunpack.c.0.s8 %v10451
        %v10453 = vlaneseq
        %v10454 = vshrl.u32 %v10453, 7
        %v10455 = vsub.s32 %v10452, %v10454
        %v10456 = vrot.slane %v10448, %v10455
        %v10457 = vcombine.high %v10456, %v10456
        %v10459 = vunpack.c.l.s4 1966171168
        %v10460 = vunpack.c.0.s8 %v10459
        %v10461 = vlaneseq
        %v10462 = vshrl.u32 %v10461, 7
        %v10463 = vsub.s32 %v10460, %v10462
        %v10464 = vrot.slane %v10456, %v10463
        %v10466 = vunpack.c.l.s4 1966171168
        %v10467 = vunpack.c.0.s8 %v10466
        %v10468 = vlaneseq
        %v10469 = vshrl.u32 %v10468, 7
        %v10470 = vsub.s32 %v10467, %v10469
        %v10471 = vrot.slane %v10457, %v10470
        %v10472 = vlaneseq
        %v10473 = vshrl.u32 %v10472, 7
        %v10474 = vsub.s32 0, %v10473
        %v10475 = vrot.slane %v10464, %v10474
        %v10476 = vlaneseq
        %v10477 = vshrl.u32 %v10476, 7
        %v10478 = vsub.s32 0, %v10477
        %v10479 = vrot.slane %v10471, %v10478
        %v10482 = vmul.f32 %v10120, %v10475
        %v10483 = vmul.f32 %v10121, %v10475
        %v10484 = vmul.f32 %v10122, %v10475
        %v10485 = vmul.f32 %v10123, %v10475
        %v10486 = vmul.f32 %v10124, %v10475
        %v10487 = vmul.f32 %v10125, %v10475
        %v10488 = vmul.f32 %v10126, %v10475
        %v10489 = vmul.f32 %v10127, %v10475
        %v10490 = vmul.f32 %v10128, %v10475
        %v10491 = vmul.f32 %v10129, %v10475
        %v10492 = vmul.f32 %v10130, %v10475
        %v10493 = vmul.f32 %v10131, %v10475
        %v10494 = vmul.f32 %v10132, %v10475
        %v10495 = vmul.f32 %v10133, %v10475
        %v10496 = vmul.f32 %v10134, %v10475
        %v10497 = vmul.f32 %v10135, %v10475
        %v10498 = vmul.f32 %v10136, %v10475
        %v10499 = vmul.f32 %v10137, %v10475
        %v10500 = vmul.f32 %v10138, %v10475
        %v10501 = vmul.f32 %v10139, %v10475
        %v10502 = vmul.f32 %v10140, %v10475
        %v10503 = vmul.f32 %v10141, %v10475
        %v10504 = vmul.f32 %v10142, %v10475
        %v10505 = vmul.f32 %v10143, %v10475
        %v10506 = vmul.f32 %v10144, %v10475
        %v10507 = vmul.f32 %v10145, %v10475
        %v10508 = vmul.f32 %v10146, %v10475
        %v10509 = vmul.f32 %v10147, %v10475
        %v10510 = vmul.f32 %v10148, %v10475
        %v10511 = vmul.f32 %v10149, %v10475
        %v10512 = vmul.f32 %v10150, %v10475
        %v10513 = vmul.f32 %v10151, %v10475
        %v10514 = vmul.f32 %v10152, %v10479
        %v10515 = vmul.f32 %v10153, %v10479
        %v10516 = vmul.f32 %v10154, %v10479
        %v10517 = vmul.f32 %v10155, %v10479
        %v10518 = vmul.f32 %v10156, %v10479
        %v10519 = vmul.f32 %v10157, %v10479
        %v10520 = vmul.f32 %v10158, %v10479
        %v10521 = vmul.f32 %v10159, %v10479
        %v10522 = vmul.f32 %v10160, %v10479
        %v10523 = vmul.f32 %v10161, %v10479
        %v10524 = vmul.f32 %v10162, %v10479
        %v10525 = vmul.f32 %v10163, %v10479
        %v10526 = vmul.f32 %v10164, %v10479
        %v10527 = vmul.f32 %v10165, %v10479
        %v10528 = vmul.f32 %v10166, %v10479
        %v10529 = vmul.f32 %v10167, %v10479
        %v10530 = vmul.f32 %v10168, %v10479
        %v10531 = vmul.f32 %v10169, %v10479
        %v10532 = vmul.f32 %v10170, %v10479
        %v10533 = vmul.f32 %v10171, %v10479
        %v10534 = vmul.f32 %v10172, %v10479
        %v10535 = vmul.f32 %v10173, %v10479
        %v10536 = vmul.f32 %v10174, %v10479
        %v10537 = vmul.f32 %v10175, %v10479
        %v10538 = vmul.f32 %v10176, %v10479
        %v10539 = vmul.f32 %v10177, %v10479
        %v10540 = vmul.f32 %v10178, %v10479
        %v10541 = vmul.f32 %v10179, %v10479
        %v10542 = vmul.f32 %v10180, %v10479
        %v10543 = vmul.f32 %v10181, %v10479
        %v10544 = vmul.f32 %v10182, %v10479
        %v10545 = vmul.f32 %v10183, %v10479
        %v10546 = vadd.f32 %v10482, %v3867
        %v10547 = vadd.f32 %v10483, %v3868
        %v10548 = vadd.f32 %v10484, %v3869
        %v10549 = vadd.f32 %v10485, %v3870
        %v10550 = vadd.f32 %v10486, %v3871
        %v10551 = vadd.f32 %v10487, %v3872
        %v10552 = vadd.f32 %v10488, %v3873
        %v10553 = vadd.f32 %v10489, %v3874
        %v10554 = vadd.f32 %v10490, %v3875
        %v10555 = vadd.f32 %v10491, %v3876
        %v10556 = vadd.f32 %v10492, %v3877
        %v10557 = vadd.f32 %v10493, %v3878
        %v10558 = vadd.f32 %v10494, %v3879
        %v10559 = vadd.f32 %v10495, %v3880
        %v10560 = vadd.f32 %v10496, %v3881
        %v10561 = vadd.f32 %v10497, %v3882
        %v10562 = vadd.f32 %v10498, %v3883
        %v10563 = vadd.f32 %v10499, %v3884
        %v10564 = vadd.f32 %v10500, %v3885
        %v10565 = vadd.f32 %v10501, %v3886
        %v10566 = vadd.f32 %v10502, %v3887
        %v10567 = vadd.f32 %v10503, %v3888
        %v10568 = vadd.f32 %v10504, %v3889
        %v10569 = vadd.f32 %v10505, %v3890
        %v10570 = vadd.f32 %v10506, %v3891
        %v10571 = vadd.f32 %v10507, %v3892
        %v10572 = vadd.f32 %v10508, %v3893
        %v10573 = vadd.f32 %v10509, %v3894
        %v10574 = vadd.f32 %v10510, %v3895
        %v10575 = vadd.f32 %v10511, %v3896
        %v10576 = vadd.f32 %v10512, %v3897
        %v10577 = vadd.f32 %v10513, %v3898
        %v10578 = vadd.f32 %v10514, %v3899
        %v10579 = vadd.f32 %v10515, %v3900
        %v10580 = vadd.f32 %v10516, %v3901
        %v10581 = vadd.f32 %v10517, %v3902
        %v10582 = vadd.f32 %v10518, %v3903
        %v10583 = vadd.f32 %v10519, %v3904
        %v10584 = vadd.f32 %v10520, %v3905
        %v10585 = vadd.f32 %v10521, %v3906
        %v10586 = vadd.f32 %v10522, %v3907
        %v10587 = vadd.f32 %v10523, %v3908
        %v10588 = vadd.f32 %v10524, %v3909
        %v10589 = vadd.f32 %v10525, %v3910
        %v10590 = vadd.f32 %v10526, %v3911
        %v10591 = vadd.f32 %v10527, %v3912
        %v10592 = vadd.f32 %v10528, %v3913
        %v10593 = vadd.f32 %v10529, %v3914
        %v10594 = vadd.f32 %v10530, %v3915
        %v10595 = vadd.f32 %v10531, %v3916
        %v10596 = vadd.f32 %v10532, %v3917
        %v10597 = vadd.f32 %v10533, %v3918
        %v10598 = vadd.f32 %v10534, %v3919
        %v10599 = vadd.f32 %v10535, %v3920
        %v10600 = vadd.f32 %v10536, %v3921
        %v10601 = vadd.f32 %v10537, %v3922
        %v10602 = vadd.f32 %v10538, %v3923
        %v10603 = vadd.f32 %v10539, %v3924
        %v10604 = vadd.f32 %v10540, %v3925
        %v10605 = vadd.f32 %v10541, %v3926
        %v10606 = vadd.f32 %v10542, %v3927
        %v10607 = vadd.f32 %v10543, %v3928
        %v10608 = vadd.f32 %v10544, %v3929
        %v10609 = vadd.f32 %v10545, %v3930
        %v10610 = vmax.f32 %v10546, 0.0
        %v10611 = vmax.f32 %v10547, 0.0
        %v10612 = vmax.f32 %v10548, 0.0
        %v10613 = vmax.f32 %v10549, 0.0
        %v10614 = vmax.f32 %v10550, 0.0
        %v10615 = vmax.f32 %v10551, 0.0
        %v10616 = vmax.f32 %v10552, 0.0
        %v10617 = vmax.f32 %v10553, 0.0
        %v10618 = vmax.f32 %v10554, 0.0
        %v10619 = vmax.f32 %v10555, 0.0
        %v10620 = vmax.f32 %v10556, 0.0
        %v10621 = vmax.f32 %v10557, 0.0
        %v10622 = vmax.f32 %v10558, 0.0
        %v10623 = vmax.f32 %v10559, 0.0
        %v10624 = vmax.f32 %v10560, 0.0
        %v10625 = vmax.f32 %v10561, 0.0
        %v10626 = vmax.f32 %v10562, 0.0
        %v10627 = vmax.f32 %v10563, 0.0
        %v10628 = vmax.f32 %v10564, 0.0
        %v10629 = vmax.f32 %v10565, 0.0
        %v10630 = vmax.f32 %v10566, 0.0
        %v10631 = vmax.f32 %v10567, 0.0
        %v10632 = vmax.f32 %v10568, 0.0
        %v10633 = vmax.f32 %v10569, 0.0
        %v10634 = vmax.f32 %v10570, 0.0
        %v10635 = vmax.f32 %v10571, 0.0
        %v10636 = vmax.f32 %v10572, 0.0
        %v10637 = vmax.f32 %v10573, 0.0
        %v10638 = vmax.f32 %v10574, 0.0
        %v10639 = vmax.f32 %v10575, 0.0
        %v10640 = vmax.f32 %v10576, 0.0
        %v10641 = vmax.f32 %v10577, 0.0
        %v10642 = vmax.f32 %v10578, 0.0
        %v10643 = vmax.f32 %v10579, 0.0
        %v10644 = vmax.f32 %v10580, 0.0
        %v10645 = vmax.f32 %v10581, 0.0
        %v10646 = vmax.f32 %v10582, 0.0
        %v10647 = vmax.f32 %v10583, 0.0
        %v10648 = vmax.f32 %v10584, 0.0
        %v10649 = vmax.f32 %v10585, 0.0
        %v10650 = vmax.f32 %v10586, 0.0
        %v10651 = vmax.f32 %v10587, 0.0
        %v10652 = vmax.f32 %v10588, 0.0
        %v10653 = vmax.f32 %v10589, 0.0
        %v10654 = vmax.f32 %v10590, 0.0
        %v10655 = vmax.f32 %v10591, 0.0
        %v10656 = vmax.f32 %v10592, 0.0
        %v10657 = vmax.f32 %v10593, 0.0
        %v10658 = vmax.f32 %v10594, 0.0
        %v10659 = vmax.f32 %v10595, 0.0
        %v10660 = vmax.f32 %v10596, 0.0
        %v10661 = vmax.f32 %v10597, 0.0
        %v10662 = vmax.f32 %v10598, 0.0
        %v10663 = vmax.f32 %v10599, 0.0
        %v10664 = vmax.f32 %v10600, 0.0
        %v10665 = vmax.f32 %v10601, 0.0
        %v10666 = vmax.f32 %v10602, 0.0
        %v10667 = vmax.f32 %v10603, 0.0
        %v10668 = vmax.f32 %v10604, 0.0
        %v10669 = vmax.f32 %v10605, 0.0
        %v10670 = vmax.f32 %v10606, 0.0
        %v10671 = vmax.f32 %v10607, 0.0
        %v10672 = vmax.f32 %v10608, 0.0
        %v10673 = vmax.f32 %v10609, 0.0
        %10674 = vst [vmem:[%s463] sm:$0xff] %v10610
        %10675 = vst [vmem:[%s463 + $0x8] sm:$0xff] %v10611
        %10676 = vst [vmem:[%s463 + $0x10] sm:$0xff] %v10612
        %10677 = vst [vmem:[%s463 + $0x18] sm:$0xff] %v10613
        %10678 = vst [vmem:[%s463 + $0x20] sm:$0xff] %v10614
        %10679 = vst [vmem:[%s463 + $0x28] sm:$0xff] %v10615
        %10680 = vst [vmem:[%s463 + $0x30] sm:$0xff] %v10616
        %10681 = vst [vmem:[%s463 + $0x38] sm:$0xff] %v10617
        %10682 = vst [vmem:[%s463 + $0x40] sm:$0xff] %v10618
        %10683 = vst [vmem:[%s463 + $0x48] sm:$0xff] %v10619
        %10684 = vst [vmem:[%s463 + $0x50] sm:$0xff] %v10620
        %10685 = vst [vmem:[%s463 + $0x58] sm:$0xff] %v10621
        %10686 = vst [vmem:[%s463 + $0x60] sm:$0xff] %v10622
        %10687 = vst [vmem:[%s463 + $0x68] sm:$0xff] %v10623
        %10688 = vst [vmem:[%s463 + $0x70] sm:$0xff] %v10624
        %10689 = vst [vmem:[%s463 + $0x78] sm:$0xff] %v10625
        %10690 = vst [vmem:[%s463 + $0x80] sm:$0xff] %v10626
        %10691 = vst [vmem:[%s463 + $0x88] sm:$0xff] %v10627
        %10692 = vst [vmem:[%s463 + $0x90] sm:$0xff] %v10628
        %10693 = vst [vmem:[%s463 + $0x98] sm:$0xff] %v10629
        %10694 = vst [vmem:[%s463 + $0xa0] sm:$0xff] %v10630
        %10695 = vst [vmem:[%s463 + $0xa8] sm:$0xff] %v10631
        %10696 = vst [vmem:[%s463 + $0xb0] sm:$0xff] %v10632
        %10697 = vst [vmem:[%s463 + $0xb8] sm:$0xff] %v10633
        %10698 = vst [vmem:[%s463 + $0xc0] sm:$0xff] %v10634
        %10699 = vst [vmem:[%s463 + $0xc8] sm:$0xff] %v10635
        %10700 = vst [vmem:[%s463 + $0xd0] sm:$0xff] %v10636
        %10701 = vst [vmem:[%s463 + $0xd8] sm:$0xff] %v10637
        %10702 = vst [vmem:[%s463 + $0xe0] sm:$0xff] %v10638
        %10703 = vst [vmem:[%s463 + $0xe8] sm:$0xff] %v10639
        %10704 = vst [vmem:[%s463 + $0xf0] sm:$0xff] %v10640
        %10705 = vst [vmem:[%s463 + $0xf8] sm:$0xff] %v10641
        %10706 = vst [vmem:[%s463 + $0x100] sm:$0xff] %v10642
        %10707 = vst [vmem:[%s463 + $0x108] sm:$0xff] %v10643
        %10708 = vst [vmem:[%s463 + $0x110] sm:$0xff] %v10644
        %10709 = vst [vmem:[%s463 + $0x118] sm:$0xff] %v10645
        %10710 = vst [vmem:[%s463 + $0x120] sm:$0xff] %v10646
        %10711 = vst [vmem:[%s463 + $0x128] sm:$0xff] %v10647
        %10712 = vst [vmem:[%s463 + $0x130] sm:$0xff] %v10648
        %10713 = vst [vmem:[%s463 + $0x138] sm:$0xff] %v10649
        %10714 = vst [vmem:[%s463 + $0x140] sm:$0xff] %v10650
        %10715 = vst [vmem:[%s463 + $0x148] sm:$0xff] %v10651
        %10716 = vst [vmem:[%s463 + $0x150] sm:$0xff] %v10652
        %10717 = vst [vmem:[%s463 + $0x158] sm:$0xff] %v10653
        %10718 = vst [vmem:[%s463 + $0x160] sm:$0xff] %v10654
        %10719 = vst [vmem:[%s463 + $0x168] sm:$0xff] %v10655
        %10720 = vst [vmem:[%s463 + $0x170] sm:$0xff] %v10656
        %10721 = vst [vmem:[%s463 + $0x178] sm:$0xff] %v10657
        %10722 = vst [vmem:[%s463 + $0x180] sm:$0xff] %v10658
        %10723 = vst [vmem:[%s463 + $0x188] sm:$0xff] %v10659
        %10724 = vst [vmem:[%s463 + $0x190] sm:$0xff] %v10660
        %10725 = vst [vmem:[%s463 + $0x198] sm:$0xff] %v10661
        %10726 = vst [vmem:[%s463 + $0x1a0] sm:$0xff] %v10662
        %10727 = vst [vmem:[%s463 + $0x1a8] sm:$0xff] %v10663
        %10728 = vst [vmem:[%s463 + $0x1b0] sm:$0xff] %v10664
        %10729 = vst [vmem:[%s463 + $0x1b8] sm:$0xff] %v10665
        %10730 = vst [vmem:[%s463 + $0x1c0] sm:$0xff] %v10666
        %10731 = vst [vmem:[%s463 + $0x1c8] sm:$0xff] %v10667
        %10732 = vst [vmem:[%s463 + $0x1d0] sm:$0xff] %v10668
        %10733 = vst [vmem:[%s463 + $0x1d8] sm:$0xff] %v10669
        %10734 = vst [vmem:[%s463 + $0x1e0] sm:$0xff] %v10670
        %10735 = vst [vmem:[%s463 + $0x1e8] sm:$0xff] %v10671
        %10736 = vst [vmem:[%s463 + $0x1f0] sm:$0xff] %v10672
        %10737 = vst [vmem:[%s463 + $0x1f8] sm:$0xff] %v10673
        %s10738 = sand.u32 %s335, 1
        %s10739 = scalar_lea.sflag [#allocation3], %s10738
        %s10740 = sand.u32 %s335, 1
        %s10741 = smul.addr %s10740, 512
        %s10742 = scalar_lea.vmem [#allocation2], %s10741
        // Predicated region
        $region77: #{tpu_custom_call.1} parent=75 // pred_check
          %p10743 = pneg %p345
        $region78: #{tpu_custom_call.1} parent=75 // pred_check_branch
          %10745 = sbr.rel (%p10743) target = $region80
        $region79: #{tpu_custom_call.1} parent=75 // pred_region
          %s10746 = smul.u32 2, %s28
          %s10748 = ssub.s32 8192, 8192
          %10749 = vsyncadd %s10739, %s10748
          %s10750 = smul.addr %s10746, 32
          %s10751 = smul.addr %s10750, 128
          %s10752 = scalar_lea.hbm %s14, %s10751
          %s10753 = sshll.u32 %s10742, 4
          %s10754 = int_to_ptr.vmem [resolvable:$true] %s10753
          %10759 = dma.vmem_to_hbm [thread:$0]  %s10754, 8192, %s10752, %s10739, 128, 128, 8
        $region80: #{tpu_custom_call.1} parent=75 // pred_fallthru
          _
      $region76: #{tpu_custom_call.1} parent=5 // pred_fallthru
        _
      %p10760 = scmp.le.s32.totalorder 2, %s23
      // Predicated region
      $region81: #{tpu_custom_call.1} parent=5 // pred_check
        %p10761 = pneg %p10760
      $region82: #{tpu_custom_call.1} parent=5 // pred_check_branch
        %10763 = sbr.rel (%p10761) target = $region84
      $region83: #{tpu_custom_call.1} parent=5 // pred_region
        %s10764 = ssub.s32 %s23, 2
        // Predicated region
        $region85: #{tpu_custom_call.1} parent=83 // pred_check
          %p10765 = pneg %p351
        $region86: #{tpu_custom_call.1} parent=83 // pred_check_branch
          %10767 = sbr.rel (%p10765) target = $region88
        $region87: #{tpu_custom_call.1} parent=83 // pred_region
          %s10768 = sand.u32 %s336, 1
          %s10769 = scalar_lea.sflag [#allocation3], %s10768
          %s10770 = sand.u32 %s336, 1
          %s10771 = smul.addr %s10770, 512
          %s10772 = scalar_lea.vmem [#allocation2], %s10771
          %10773 = dma.done %s10769, 8192
        $region88: #{tpu_custom_call.1} parent=83 // pred_fallthru
          _
      $region84: #{tpu_custom_call.1} parent=5 // pred_fallthru
        _
    $region6: #{tpu_custom_call.1} parent=1 // loop_footer
      %s27 = sadd.s32 1, %s23
    $region7: #{tpu_custom_call.1} parent=1 // loop_footer_branch
      %22 = sbr.rel target = $region3
    $region8: #{tpu_custom_call.1} parent=1 // loop_exit
      _
    %10774 = vsyncpa [#allocation3], 1
    %s10775 = scalar_lea.sflag [#allocation3], 1
    %10776 = vsyncpa %s10775, 1

</llo_original>
